<compile_context>
chip_gen: v5e
topology: v5e:2x2
jax: 0.10.0
libtpu: 0.0.40
codegen_flags: <defaults>
</compile_context>

<pallas_src>
import jax
import jax.numpy as jnp
from jax.experimental import pallas as pl
from jax.experimental.pallas import tpu as pltpu

# ------------------------- small, TPU-friendly config -------------------------
VOCAB = 32                     # synthetic vocab (ids drawn from [1, VOCAB))
VOCAB_PAD = 128                # embedding table padded to a full lane width
HIDDEN = 128                   # stands in for 768
N_LAYERS = 2                   # stands in for 12
N_HEADS = 2
HEAD_DIM = HIDDEN // N_HEADS   # 64
HD_PAD = 128                   # per-head width padded to a full 128-lane tile
QKV_W = 3 * N_HEADS * HD_PAD   # fused Q|K|V projection width (768)
CTX_W = N_HEADS * HD_PAD       # attention-context width (256)
FFN = 256                      # intermediate size
MAX_POS = 16
BIO_LEN = 16                   # hyper['bio_len']
BIO_PAD = 128                  # emission output padded to a full lane width
EPS = 1e-12
B_BLK = 16                     # sequences per grid step -> M = B_BLK * S tokens


# ------------------------------- fused kernel --------------------------------
def _bert_kernel(ids_ref, bias_ref, wemb_ref, pos_ref, emb_g_ref, emb_b_ref,
                 wqkv_ref, bqkv_ref, wo_ref, bo_ref, ln1_g_ref, ln1_b_ref,
                 w1_ref, b1_ref, w2_ref, b2_ref, ln2_g_ref, ln2_b_ref,
                 we_ref, be_ref, dec_ref, ctx_ref):
    """One grid step = B_BLK sequences flattened to M = B_BLK*S token rows."""
    f32 = jnp.float32
    bf16 = jnp.bfloat16
    m = ids_ref.shape[0]                              # token rows in this block

    def ln(y, g, b):                                  # residual added by caller
        mu = jnp.mean(y, axis=-1, keepdims=True)
        var = jnp.mean(jnp.square(y - mu), axis=-1, keepdims=True)
        return (y - mu) * jax.lax.rsqrt(var + EPS) * g + b

    # ---- embedding lookup fused in-kernel: one-hot matmul on the MXU ----
    ids = ids_ref[...]                                            # [M, 1] int32
    vocab_iota = jax.lax.broadcasted_iota(jnp.int32, (m, VOCAB_PAD), 1)
    onehot = jnp.where(ids == vocab_iota, 1.0, 0.0).astype(bf16)  # [M, VOCAB_PAD]
    tok = jnp.dot(onehot, wemb_ref[...], preferred_element_type=f32)
    x = ln(tok + pos_ref[...], emb_g_ref[...], emb_b_ref[...])    # [M, H] f32

    bias = bias_ref[...]                         # [M, M] block-diag + key-pad bias
    scale = 1.0 / (HEAD_DIM ** 0.5)

    for l in range(N_LAYERS):                    # static unroll (2 layers)
        # ---- fused Q|K|V projection (head-dim padded to 128 lanes) ----
        qkv = jnp.dot(x.astype(bf16), wqkv_ref[l],
                      preferred_element_type=f32) + bqkv_ref[l]    # [M, 768]

        # ---- per-head attention; all slices lane-aligned (multiples of 128) ----
        for h in range(N_HEADS):
            q = qkv[:, h * HD_PAD:(h + 1) * HD_PAD]
            k = qkv[:, CTX_W + h * HD_PAD:CTX_W + (h + 1) * HD_PAD]
            v = qkv[:, 2 * CTX_W + h * HD_PAD:2 * CTX_W + (h + 1) * HD_PAD]
            s = jax.lax.dot_general(q.astype(bf16), k.astype(bf16),
                                    (((1,), (1,)), ((), ())),
                                    preferred_element_type=f32) * scale
            s = s + bias
            s = s - jnp.max(s, axis=-1, keepdims=True)
            p = jnp.exp(s)
            p = p * pl.reciprocal(jnp.sum(p, axis=-1, keepdims=True), approx=True)
            ctx_ref[:, h * HD_PAD:(h + 1) * HD_PAD] = jnp.dot(
                p.astype(bf16), v.astype(bf16),
                preferred_element_type=f32).astype(bf16)

        # ---- output projection + residual + LN (fused) ----
        attn = jnp.dot(ctx_ref[...], wo_ref[l],
                       preferred_element_type=f32) + bo_ref[l]
        x = ln(x + attn, ln1_g_ref[l], ln1_b_ref[l])

        # ---- FFN + residual + LN (fused) ----
        h1 = jnp.dot(x.astype(bf16), w1_ref[l],
                     preferred_element_type=f32) + b1_ref[l]
        # TODO(synk): HF BERT uses exact erf GELU; tanh approximation kept for safe TPU lowering.
        h1 = jax.nn.gelu(h1, approximate=True)
        h2 = jnp.dot(h1.astype(bf16), w2_ref[l],
                     preferred_element_type=f32) + b2_ref[l]
        x = ln(x + h2, ln2_g_ref[l], ln2_b_ref[l])

    # ---- emission (padded to 128 lanes) + argmax (first-max tie-break) ----
    logits = jnp.dot(x.astype(bf16), we_ref[...],
                     preferred_element_type=f32) + be_ref[...]     # [M, 128]
    mx = jnp.max(logits, axis=-1, keepdims=True)
    cls_iota = jax.lax.broadcasted_iota(jnp.int32, logits.shape, 1)
    cand = jnp.where(logits == mx, cls_iota, jnp.iinfo(jnp.int32).max)
    dec_ref[...] = jnp.min(cand, axis=-1)[None, :]                 # [1, M] lane-dense


# ----------------------------- model (glue + kernel) --------------------------
def bert_forward(input_ids, label, params):
    """Eval-mode forward: returns (None, decode) like the PyTorch module."""
    del label  # only used by the training loss branch
    B, S = input_ids.shape
    assert B % B_BLK == 0, "batch must be a multiple of B_BLK"
    assert S <= MAX_POS
    G = B // B_BLK              # grid steps (even -> balanced across v7x's 2 TCs)
    M = B_BLK * S               # token rows per grid step (128)

    ids = input_ids.astype(jnp.int32).reshape(G, M, 1)

    # Block-diagonal additive attention bias: the key-padding mask
    # (mask1 = input_x != 0) combined with a same-sequence mask so B_BLK
    # sequences share one [M, M] attention without mixing.  Tiny, computed in
    # XLA (analogous to HF's extended_attention_mask).
    key_bias = jnp.where(input_ids == 0, -1e9, 0.0).astype(jnp.float32)
    key_bias = key_bias.reshape(G, 1, M)
    seq_ids = jnp.arange(M, dtype=jnp.int32) // S
    same_seq = seq_ids[:, None] == seq_ids[None, :]                 # [M, M]
    attn_bias = jnp.where(same_seq[None, :, :], key_bias, -1e9)     # [G, M, M] f32

    # position + token-type-0 embeddings, pre-tiled to the token block
    pos_type = params["pos_emb"][:S] + params["type_emb"][0][None, :]   # [S, H]
    pos_type = jnp.tile(pos_type, (B_BLK, 1))                           # [M, H]

    def full2(shape):
        return pl.BlockSpec(shape, lambda g: (0, 0))

    def full3(shape):
        return pl.BlockSpec(shape, lambda g: (0, 0, 0))

    decode = pl.pallas_call(
        _bert_kernel,
        out_shape=jax.ShapeDtypeStruct((G, 1, M), jnp.int32),
        grid_spec=pltpu.PrefetchScalarGridSpec(
            num_scalar_prefetch=0,
            grid=(G,),
            in_specs=[
                pl.BlockSpec((None, M, 1), lambda g: (g, 0, 0)),     # token ids
                pl.BlockSpec((None, M, M), lambda g: (g, 0, 0)),     # attention bias
                full2((VOCAB_PAD, HIDDEN)),                          # word emb (bf16)
                full2((M, HIDDEN)),                                  # pos+type emb
                full2((1, HIDDEN)), full2((1, HIDDEN)),              # emb LN g/b
                full3((N_LAYERS, HIDDEN, QKV_W)),                    # wqkv (bf16)
                full3((N_LAYERS, 1, QKV_W)),                         # bqkv
                full3((N_LAYERS, CTX_W, HIDDEN)),                    # wo   (bf16)
                full3((N_LAYERS, 1, HIDDEN)),                        # bo
                full3((N_LAYERS, 1, HIDDEN)),                        # ln1_g
                full3((N_LAYERS, 1, HIDDEN)),                        # ln1_b
                full3((N_LAYERS, HIDDEN, FFN)),                      # w1   (bf16)
                full3((N_LAYERS, 1, FFN)),                           # b1
                full3((N_LAYERS, FFN, HIDDEN)),                      # w2   (bf16)
                full3((N_LAYERS, 1, HIDDEN)),                        # b2
                full3((N_LAYERS, 1, HIDDEN)),                        # ln2_g
                full3((N_LAYERS, 1, HIDDEN)),                        # ln2_b
                full2((HIDDEN, BIO_PAD)),                            # emission w (padded, bf16)
                full2((1, BIO_PAD)),                                 # emission b (padded)
            ],
            out_specs=pl.BlockSpec((None, 1, M), lambda g: (g, 0, 0)),
            scratch_shapes=[pltpu.VMEM((M, CTX_W), jnp.bfloat16)]),  # head-ctx scratch
        compiler_params=pltpu.CompilerParams(
            dimension_semantics=("parallel",),
            vmem_limit_bytes=64 * 1024 * 1024),
    )(ids, attn_bias,
      params["word_emb"], pos_type,
      params["emb_ln_g"], params["emb_ln_b"],
      params["wqkv"], params["bqkv"], params["wo"], params["bo"],
      params["ln1_g"], params["ln1_b"],
      params["w1"], params["b1"], params["w2"], params["b2"],
      params["ln2_g"], params["ln2_b"],
      params["emission_w"], params["emission_b"])

    # dropout1 is identity in eval mode
    # TODO(synk): training-branch NLL loss (get_loss) not implemented; eval path only.
    return None, decode.reshape(B, S)


# ------------------------------ parameter init --------------------------------
def init_params(key):
    keys = iter(jax.random.split(key, 64))

    def nrm(shape, scale=0.02, dtype=jnp.float32):
        return (jax.random.normal(next(keys), shape, jnp.float32) * scale).astype(dtype)

    def stack(shape, dtype=jnp.float32, scale=0.02):
        return (jax.random.normal(next(keys), (N_LAYERS,) + shape, jnp.float32)
                * scale).astype(dtype)

    # Fused Q|K|V weight: each head's 64-wide block padded to a full 128-lane
    # tile (pad columns zero) -> lane-aligned head slices in the kernel.
    col = jnp.arange(QKV_W)
    qkv_keep = ((col % HD_PAD) < HEAD_DIM).astype(jnp.float32)
    wqkv = (jax.random.normal(next(keys), (N_LAYERS, HIDDEN, QKV_W), jnp.float32)
            * 0.02 * qkv_keep[None, None, :]).astype(jnp.bfloat16)

    # Attention output projection: rows matching padded head lanes are zero.
    row = jnp.arange(CTX_W)
    wo_keep = ((row % HD_PAD) < HEAD_DIM).astype(jnp.float32)
    wo = (jax.random.normal(next(keys), (N_LAYERS, CTX_W, HIDDEN), jnp.float32)
          * 0.02 * wo_keep[None, :, None]).astype(jnp.bfloat16)

    # Word-embedding table padded to 128 rows (only ids < VOCAB are ever used).
    word_emb = jnp.pad(nrm((VOCAB, HIDDEN)),
                       ((0, VOCAB_PAD - VOCAB), (0, 0))).astype(jnp.bfloat16)

    # emission padded 16 -> 128 lanes; padded logits get bias -1e30 so argmax
    # can never select a padded class.
    emission_w = nrm((HIDDEN, BIO_LEN))
    emission_w = jnp.pad(emission_w, ((0, 0), (0, BIO_PAD - BIO_LEN))).astype(jnp.bfloat16)
    emission_b = jnp.full((1, BIO_PAD), -1e30, jnp.float32).at[0, :BIO_LEN].set(0.0)

    return dict(
        word_emb=word_emb,
        pos_emb=nrm((MAX_POS, HIDDEN)),
        type_emb=nrm((2, HIDDEN)),
        emb_ln_g=jnp.ones((1, HIDDEN), jnp.float32),
        emb_ln_b=jnp.zeros((1, HIDDEN), jnp.float32),
        wqkv=wqkv,
        bqkv=jnp.zeros((N_LAYERS, 1, QKV_W), jnp.float32),
        wo=wo,
        bo=jnp.zeros((N_LAYERS, 1, HIDDEN), jnp.float32),
        ln1_g=jnp.ones((N_LAYERS, 1, HIDDEN), jnp.float32),
        ln1_b=jnp.zeros((N_LAYERS, 1, HIDDEN), jnp.float32),
        w1=stack((HIDDEN, FFN), jnp.bfloat16),
        b1=jnp.zeros((N_LAYERS, 1, FFN), jnp.float32),
        w2=stack((FFN, HIDDEN), jnp.bfloat16),
        b2=jnp.zeros((N_LAYERS, 1, HIDDEN), jnp.float32),
        ln2_g=jnp.ones((N_LAYERS, 1, HIDDEN), jnp.float32),
        ln2_b=jnp.zeros((N_LAYERS, 1, HIDDEN), jnp.float32),
        emission_w=emission_w,
        emission_b=emission_b,
    )


# ----------------------------------- main -------------------------------------
if __name__ == "__main__":
    key = jax.random.PRNGKey(0)
    pkey, ikey, lkey = jax.random.split(key, 3)

    params = init_params(pkey)

    # 32 sequences of 8 tokens -> 2 grid steps, each a 128-row token block.
    B, S = 32, 8
    input_ids = jax.random.randint(ikey, (B, S), 1, VOCAB, dtype=jnp.int32)
    input_ids = input_ids.at[:, -2:].set(0)          # trailing padding tokens
    label = jax.random.randint(lkey, (B, S), 0, BIO_LEN, dtype=jnp.int32)

    loss, decode = jax.jit(bert_forward)(input_ids, label, params)
    decode = jax.block_until_ready(decode)

    assert loss is None
    assert decode.shape == (B, S)
    assert decode.dtype == jnp.int32
    assert int(decode.min()) >= 0 and int(decode.max()) < BIO_LEN
    print("KERNEL_OK")
</pallas_src>

<mosaic_0001>
module attributes {stable_mosaic.version = 11 : i64} {
  func.func @_bert_kernel(%arg0: i32, %arg1: memref<1x128x1xi32, #tpu.memory_space<vmem>>, %arg2: memref<1x128x128xf32, #tpu.memory_space<vmem>>, %arg3: memref<128x128xbf16, #tpu.memory_space<vmem>>, %arg4: memref<128x128xf32, #tpu.memory_space<vmem>>, %arg5: memref<1x128xf32, #tpu.memory_space<vmem>>, %arg6: memref<1x128xf32, #tpu.memory_space<vmem>>, %arg7: memref<2x128x768xbf16, #tpu.memory_space<vmem>>, %arg8: memref<2x1x768xf32, #tpu.memory_space<vmem>>, %arg9: memref<2x256x128xbf16, #tpu.memory_space<vmem>>, %arg10: memref<2x1x128xf32, #tpu.memory_space<vmem>>, %arg11: memref<2x1x128xf32, #tpu.memory_space<vmem>>, %arg12: memref<2x1x128xf32, #tpu.memory_space<vmem>>, %arg13: memref<2x128x256xbf16, #tpu.memory_space<vmem>>, %arg14: memref<2x1x256xf32, #tpu.memory_space<vmem>>, %arg15: memref<2x256x128xbf16, #tpu.memory_space<vmem>>, %arg16: memref<2x1x128xf32, #tpu.memory_space<vmem>>, %arg17: memref<2x1x128xf32, #tpu.memory_space<vmem>>, %arg18: memref<2x1x128xf32, #tpu.memory_space<vmem>>, %arg19: memref<128x128xbf16, #tpu.memory_space<vmem>>, %arg20: memref<1x128xf32, #tpu.memory_space<vmem>>, %arg21: memref<1x1x128xi32, #tpu.memory_space<vmem>>, %arg22: memref<128x256xbf16, #tpu.memory_space<vmem>>) attributes {dimension_semantics = [#tpu.dimension_semantics<parallel>], iteration_bounds = array<i64: 2>, scalar_prefetch = 0 : i64, scratch_operands = 1 : i64, tpu.core_type = #tpu.core_type<tc>, window_params = [{transform_indices = @transform_0, window_bounds = array<i64: 1, 128, 1>}, {transform_indices = @transform_1, window_bounds = array<i64: 1, 128, 128>}, {pipeline_mode = #tpu.pipeline_mode<synchronous>, transform_indices = @transform_2, window_bounds = array<i64: 128, 128>}, {pipeline_mode = #tpu.pipeline_mode<synchronous>, transform_indices = @transform_3, window_bounds = array<i64: 128, 128>}, {pipeline_mode = #tpu.pipeline_mode<synchronous>, transform_indices = @transform_4, window_bounds = array<i64: 1, 128>}, {pipeline_mode = #tpu.pipeline_mode<synchronous>, transform_indices = @transform_5, window_bounds = array<i64: 1, 128>}, {pipeline_mode = #tpu.pipeline_mode<synchronous>, transform_indices = @transform_6, window_bounds = array<i64: 2, 128, 768>}, {pipeline_mode = #tpu.pipeline_mode<synchronous>, transform_indices = @transform_7, window_bounds = array<i64: 2, 1, 768>}, {pipeline_mode = #tpu.pipeline_mode<synchronous>, transform_indices = @transform_8, window_bounds = array<i64: 2, 256, 128>}, {pipeline_mode = #tpu.pipeline_mode<synchronous>, transform_indices = @transform_9, window_bounds = array<i64: 2, 1, 128>}, {pipeline_mode = #tpu.pipeline_mode<synchronous>, transform_indices = @transform_10, window_bounds = array<i64: 2, 1, 128>}, {pipeline_mode = #tpu.pipeline_mode<synchronous>, transform_indices = @transform_11, window_bounds = array<i64: 2, 1, 128>}, {pipeline_mode = #tpu.pipeline_mode<synchronous>, transform_indices = @transform_12, window_bounds = array<i64: 2, 128, 256>}, {pipeline_mode = #tpu.pipeline_mode<synchronous>, transform_indices = @transform_13, window_bounds = array<i64: 2, 1, 256>}, {pipeline_mode = #tpu.pipeline_mode<synchronous>, transform_indices = @transform_14, window_bounds = array<i64: 2, 256, 128>}, {pipeline_mode = #tpu.pipeline_mode<synchronous>, transform_indices = @transform_15, window_bounds = array<i64: 2, 1, 128>}, {pipeline_mode = #tpu.pipeline_mode<synchronous>, transform_indices = @transform_16, window_bounds = array<i64: 2, 1, 128>}, {pipeline_mode = #tpu.pipeline_mode<synchronous>, transform_indices = @transform_17, window_bounds = array<i64: 2, 1, 128>}, {pipeline_mode = #tpu.pipeline_mode<synchronous>, transform_indices = @transform_18, window_bounds = array<i64: 128, 128>}, {pipeline_mode = #tpu.pipeline_mode<synchronous>, transform_indices = @transform_19, window_bounds = array<i64: 1, 128>}, {transform_indices = @transform_20, window_bounds = array<i64: 1, 1, 128>}]} {
    %c0 = arith.constant 0 : index
    %c0_0 = arith.constant 0 : index
    %c0_1 = arith.constant 0 : index
    %0 = vector.load %arg1[%c0, %c0_0, %c0_1] : memref<1x128x1xi32, #tpu.memory_space<vmem>>, vector<1x128x1xi32>
    %1 = vector.shape_cast %0 : vector<1x128x1xi32> to vector<128x1xi32>
    %2 = tpu.iota {dimensions = array<i32: 1>} : vector<128x128xi32>
    %3 = vector.broadcast %1 : vector<128x1xi32> to vector<128x128xi32>
    %4 = arith.cmpi eq, %3, %2 : vector<128x128xi32>
    %cst = arith.constant 1.000000e+00 : f32
    %cst_2 = arith.constant 0.000000e+00 : f32
    %5 = vector.broadcast %cst : f32 to vector<128x128xf32>
    %6 = vector.broadcast %cst_2 : f32 to vector<128x128xf32>
    %7 = arith.select %4, %5, %6 : vector<128x128xi1>, vector<128x128xf32>
    %8 = arith.truncf %7 : vector<128x128xf32> to vector<128x128xbf16>
    %c0_3 = arith.constant 0 : index
    %c0_4 = arith.constant 0 : index
    %9 = vector.load %arg3[%c0_3, %c0_4] : memref<128x128xbf16, #tpu.memory_space<vmem>>, vector<128x128xbf16>
    %cst_5 = arith.constant dense<0.000000e+00> : vector<128x128xf32>
    %10 = tpu.matmul %8, %9, %cst_5 {dimension_numbers = #tpu.dot_dimension_numbers<[1], [0], [0], [1], [0, 0, 1, 1], [], []>} : vector<128x128xbf16>, vector<128x128xbf16>, vector<128x128xf32> -> vector<128x128xf32>
    %c0_6 = arith.constant 0 : index
    %c0_7 = arith.constant 0 : index
    %11 = vector.load %arg4[%c0_6, %c0_7] : memref<128x128xf32, #tpu.memory_space<vmem>>, vector<128x128xf32>
    %12 = arith.addf %10, %11 : vector<128x128xf32>
    %c0_8 = arith.constant 0 : index
    %c0_9 = arith.constant 0 : index
    %13 = vector.load %arg5[%c0_8, %c0_9] : memref<1x128xf32, #tpu.memory_space<vmem>>, vector<1x128xf32>
    %c0_10 = arith.constant 0 : index
    %c0_11 = arith.constant 0 : index
    %14 = vector.load %arg6[%c0_10, %c0_11] : memref<1x128xf32, #tpu.memory_space<vmem>>, vector<1x128xf32>
    %cst_12 = arith.constant dense<0.000000e+00> : vector<128xf32>
    %15 = vector.multi_reduction <add>, %12, %cst_12 [1] : vector<128x128xf32> to vector<128xf32>
    %16 = vector.shape_cast %15 : vector<128xf32> to vector<128x1xf32>
    %cst_13 = arith.constant 1.280000e+02 : f32
    %17 = vector.broadcast %cst_13 : f32 to vector<128x1xf32>
    %18 = arith.divf %16, %17 : vector<128x1xf32>
    %19 = vector.broadcast %18 : vector<128x1xf32> to vector<128x128xf32>
    %20 = arith.subf %12, %19 : vector<128x128xf32>
    %21 = arith.mulf %20, %20 : vector<128x128xf32>
    %cst_14 = arith.constant dense<0.000000e+00> : vector<128xf32>
    %22 = vector.multi_reduction <add>, %21, %cst_14 [1] : vector<128x128xf32> to vector<128xf32>
    %23 = vector.shape_cast %22 : vector<128xf32> to vector<128x1xf32>
    %cst_15 = arith.constant 1.280000e+02 : f32
    %24 = vector.broadcast %cst_15 : f32 to vector<128x1xf32>
    %25 = arith.divf %23, %24 : vector<128x1xf32>
    %26 = vector.broadcast %18 : vector<128x1xf32> to vector<128x128xf32>
    %27 = arith.subf %12, %26 : vector<128x128xf32>
    %cst_16 = arith.constant 9.99999996E-13 : f32
    %28 = vector.broadcast %cst_16 : f32 to vector<128x1xf32>
    %29 = arith.addf %25, %28 : vector<128x1xf32>
    %30 = math.rsqrt %29 : vector<128x1xf32>
    %31 = vector.broadcast %30 : vector<128x1xf32> to vector<128x128xf32>
    %32 = arith.mulf %27, %31 : vector<128x128xf32>
    %33 = vector.broadcast %13 : vector<1x128xf32> to vector<128x128xf32>
    %34 = arith.mulf %32, %33 : vector<128x128xf32>
    %35 = vector.broadcast %14 : vector<1x128xf32> to vector<128x128xf32>
    %36 = arith.addf %34, %35 : vector<128x128xf32>
    %c0_17 = arith.constant 0 : index
    %c0_18 = arith.constant 0 : index
    %c0_19 = arith.constant 0 : index
    %37 = vector.load %arg2[%c0_17, %c0_18, %c0_19] : memref<1x128x128xf32, #tpu.memory_space<vmem>>, vector<1x128x128xf32>
    %38 = vector.shape_cast %37 : vector<1x128x128xf32> to vector<128x128xf32>
    %39 = arith.truncf %36 : vector<128x128xf32> to vector<128x128xbf16>
    %c0_20 = arith.constant 0 : index
    %c0_21 = arith.constant 0 : index
    %c0_22 = arith.constant 0 : index
    %40 = vector.load %arg7[%c0_20, %c0_21, %c0_22] : memref<2x128x768xbf16, #tpu.memory_space<vmem>>, vector<1x128x768xbf16>
    %41 = vector.shape_cast %40 : vector<1x128x768xbf16> to vector<128x768xbf16>
    %cst_23 = arith.constant dense<0.000000e+00> : vector<128x768xf32>
    %42 = tpu.matmul %39, %41, %cst_23 {dimension_numbers = #tpu.dot_dimension_numbers<[1], [0], [0], [1], [0, 0, 1, 1], [], []>} : vector<128x128xbf16>, vector<128x768xbf16>, vector<128x768xf32> -> vector<128x768xf32>
    %c0_24 = arith.constant 0 : index
    %c0_25 = arith.constant 0 : index
    %c0_26 = arith.constant 0 : index
    %43 = vector.load %arg8[%c0_24, %c0_25, %c0_26] : memref<2x1x768xf32, #tpu.memory_space<vmem>>, vector<1x1x768xf32>
    %44 = vector.shape_cast %43 : vector<1x1x768xf32> to vector<1x768xf32>
    %45 = vector.broadcast %44 : vector<1x768xf32> to vector<128x768xf32>
    %46 = arith.addf %42, %45 : vector<128x768xf32>
    %47 = vector.extract_strided_slice %46 {offsets = [0, 0], sizes = [128, 128], strides = [1, 1]} : vector<128x768xf32> to vector<128x128xf32>
    %48 = vector.extract_strided_slice %46 {offsets = [0, 256], sizes = [128, 128], strides = [1, 1]} : vector<128x768xf32> to vector<128x128xf32>
    %49 = vector.extract_strided_slice %46 {offsets = [0, 512], sizes = [128, 128], strides = [1, 1]} : vector<128x768xf32> to vector<128x128xf32>
    %50 = arith.truncf %47 : vector<128x128xf32> to vector<128x128xbf16>
    %51 = arith.truncf %48 : vector<128x128xf32> to vector<128x128xbf16>
    %cst_27 = arith.constant dense<0.000000e+00> : vector<128x128xf32>
    %52 = tpu.matmul %50, %51, %cst_27 {dimension_numbers = #tpu.dot_dimension_numbers<[1], [1], [0], [0], [0, 0, 1, 0], [], []>} : vector<128x128xbf16>, vector<128x128xbf16>, vector<128x128xf32> -> vector<128x128xf32>
    %cst_28 = arith.constant 1.250000e-01 : f32
    %53 = vector.broadcast %cst_28 : f32 to vector<128x128xf32>
    %54 = arith.mulf %52, %53 : vector<128x128xf32>
    %55 = arith.addf %54, %38 : vector<128x128xf32>
    %cst_29 = arith.constant dense<0xFF800000> : vector<128xf32>
    %56 = vector.multi_reduction <maximumf>, %55, %cst_29 [1] : vector<128x128xf32> to vector<128xf32>
    %57 = vector.shape_cast %56 : vector<128xf32> to vector<128x1xf32>
    %58 = vector.broadcast %57 : vector<128x1xf32> to vector<128x128xf32>
    %59 = arith.subf %55, %58 : vector<128x128xf32>
    %60 = math.exp %59 : vector<128x128xf32>
    %cst_30 = arith.constant dense<0.000000e+00> : vector<128xf32>
    %61 = vector.multi_reduction <add>, %60, %cst_30 [1] : vector<128x128xf32> to vector<128xf32>
    %62 = vector.shape_cast %61 : vector<128xf32> to vector<128x1xf32>
    %63 = tpu.reciprocal %62 {approx = true} : vector<128x1xf32> -> vector<128x1xf32>
    %64 = vector.broadcast %63 : vector<128x1xf32> to vector<128x128xf32>
    %65 = arith.mulf %60, %64 : vector<128x128xf32>
    %66 = arith.truncf %65 : vector<128x128xf32> to vector<128x128xbf16>
    %67 = arith.truncf %49 : vector<128x128xf32> to vector<128x128xbf16>
    %cst_31 = arith.constant dense<0.000000e+00> : vector<128x128xf32>
    %68 = tpu.matmul %66, %67, %cst_31 {dimension_numbers = #tpu.dot_dimension_numbers<[1], [0], [0], [1], [0, 0, 1, 1], [], []>} : vector<128x128xbf16>, vector<128x128xbf16>, vector<128x128xf32> -> vector<128x128xf32>
    %69 = arith.truncf %68 : vector<128x128xf32> to vector<128x128xbf16>
    %c0_32 = arith.constant 0 : index
    %c0_33 = arith.constant 0 : index
    %70 = vector.load %arg22[%c0_32, %c0_33] : memref<128x256xbf16, #tpu.memory_space<vmem>>, vector<128x128xbf16>
    tpu.vector_store %arg22[%c0_32, %c0_33], %69 {strides = array<i32>} : memref<128x256xbf16, #tpu.memory_space<vmem>>, vector<128x128xbf16>,
    %71 = vector.extract_strided_slice %46 {offsets = [0, 128], sizes = [128, 128], strides = [1, 1]} : vector<128x768xf32> to vector<128x128xf32>
    %72 = vector.extract_strided_slice %46 {offsets = [0, 384], sizes = [128, 128], strides = [1, 1]} : vector<128x768xf32> to vector<128x128xf32>
    %73 = vector.extract_strided_slice %46 {offsets = [0, 640], sizes = [128, 128], strides = [1, 1]} : vector<128x768xf32> to vector<128x128xf32>
    %74 = arith.truncf %71 : vector<128x128xf32> to vector<128x128xbf16>
    %75 = arith.truncf %72 : vector<128x128xf32> to vector<128x128xbf16>
    %cst_34 = arith.constant dense<0.000000e+00> : vector<128x128xf32>
    %76 = tpu.matmul %74, %75, %cst_34 {dimension_numbers = #tpu.dot_dimension_numbers<[1], [1], [0], [0], [0, 0, 1, 0], [], []>} : vector<128x128xbf16>, vector<128x128xbf16>, vector<128x128xf32> -> vector<128x128xf32>
    %cst_35 = arith.constant 1.250000e-01 : f32
    %77 = vector.broadcast %cst_35 : f32 to vector<128x128xf32>
    %78 = arith.mulf %76, %77 : vector<128x128xf32>
    %79 = arith.addf %78, %38 : vector<128x128xf32>
    %cst_36 = arith.constant dense<0xFF800000> : vector<128xf32>
    %80 = vector.multi_reduction <maximumf>, %79, %cst_36 [1] : vector<128x128xf32> to vector<128xf32>
    %81 = vector.shape_cast %80 : vector<128xf32> to vector<128x1xf32>
    %82 = vector.broadcast %81 : vector<128x1xf32> to vector<128x128xf32>
    %83 = arith.subf %79, %82 : vector<128x128xf32>
    %84 = math.exp %83 : vector<128x128xf32>
    %cst_37 = arith.constant dense<0.000000e+00> : vector<128xf32>
    %85 = vector.multi_reduction <add>, %84, %cst_37 [1] : vector<128x128xf32> to vector<128xf32>
    %86 = vector.shape_cast %85 : vector<128xf32> to vector<128x1xf32>
    %87 = tpu.reciprocal %86 {approx = true} : vector<128x1xf32> -> vector<128x1xf32>
    %88 = vector.broadcast %87 : vector<128x1xf32> to vector<128x128xf32>
    %89 = arith.mulf %84, %88 : vector<128x128xf32>
    %90 = arith.truncf %89 : vector<128x128xf32> to vector<128x128xbf16>
    %91 = arith.truncf %73 : vector<128x128xf32> to vector<128x128xbf16>
    %cst_38 = arith.constant dense<0.000000e+00> : vector<128x128xf32>
    %92 = tpu.matmul %90, %91, %cst_38 {dimension_numbers = #tpu.dot_dimension_numbers<[1], [0], [0], [1], [0, 0, 1, 1], [], []>} : vector<128x128xbf16>, vector<128x128xbf16>, vector<128x128xf32> -> vector<128x128xf32>
    %93 = arith.truncf %92 : vector<128x128xf32> to vector<128x128xbf16>
    %c0_39 = arith.constant 0 : index
    %c128 = arith.constant 128 : index
    %94 = vector.load %arg22[%c0_39, %c128] : memref<128x256xbf16, #tpu.memory_space<vmem>>, vector<128x128xbf16>
    tpu.vector_store %arg22[%c0_39, %c128], %93 {strides = array<i32>} : memref<128x256xbf16, #tpu.memory_space<vmem>>, vector<128x128xbf16>,
    %c0_40 = arith.constant 0 : index
    %c0_41 = arith.constant 0 : index
    %95 = vector.load %arg22[%c0_40, %c0_41] : memref<128x256xbf16, #tpu.memory_space<vmem>>, vector<128x256xbf16>
    %c0_42 = arith.constant 0 : index
    %c0_43 = arith.constant 0 : index
    %c0_44 = arith.constant 0 : index
    %96 = vector.load %arg9[%c0_42, %c0_43, %c0_44] : memref<2x256x128xbf16, #tpu.memory_space<vmem>>, vector<1x256x128xbf16>
    %97 = vector.shape_cast %96 : vector<1x256x128xbf16> to vector<256x128xbf16>
    %cst_45 = arith.constant dense<0.000000e+00> : vector<128x128xf32>
    %98 = tpu.matmul %95, %97, %cst_45 {dimension_numbers = #tpu.dot_dimension_numbers<[1], [0], [0], [1], [0, 0, 1, 1], [], []>} : vector<128x256xbf16>, vector<256x128xbf16>, vector<128x128xf32> -> vector<128x128xf32>
    %c0_46 = arith.constant 0 : index
    %c0_47 = arith.constant 0 : index
    %c0_48 = arith.constant 0 : index
    %99 = vector.load %arg10[%c0_46, %c0_47, %c0_48] : memref<2x1x128xf32, #tpu.memory_space<vmem>>, vector<1x1x128xf32>
    %100 = vector.shape_cast %99 : vector<1x1x128xf32> to vector<1x128xf32>
    %101 = vector.broadcast %100 : vector<1x128xf32> to vector<128x128xf32>
    %102 = arith.addf %98, %101 : vector<128x128xf32>
    %103 = arith.addf %36, %102 : vector<128x128xf32>
    %c0_49 = arith.constant 0 : index
    %c0_50 = arith.constant 0 : index
    %c0_51 = arith.constant 0 : index
    %104 = vector.load %arg11[%c0_49, %c0_50, %c0_51] : memref<2x1x128xf32, #tpu.memory_space<vmem>>, vector<1x1x128xf32>
    %105 = vector.shape_cast %104 : vector<1x1x128xf32> to vector<1x128xf32>
    %c0_52 = arith.constant 0 : index
    %c0_53 = arith.constant 0 : index
    %c0_54 = arith.constant 0 : index
    %106 = vector.load %arg12[%c0_52, %c0_53, %c0_54] : memref<2x1x128xf32, #tpu.memory_space<vmem>>, vector<1x1x128xf32>
    %107 = vector.shape_cast %106 : vector<1x1x128xf32> to vector<1x128xf32>
    %cst_55 = arith.constant dense<0.000000e+00> : vector<128xf32>
    %108 = vector.multi_reduction <add>, %103, %cst_55 [1] : vector<128x128xf32> to vector<128xf32>
    %109 = vector.shape_cast %108 : vector<128xf32> to vector<128x1xf32>
    %cst_56 = arith.constant 1.280000e+02 : f32
    %110 = vector.broadcast %cst_56 : f32 to vector<128x1xf32>
    %111 = arith.divf %109, %110 : vector<128x1xf32>
    %112 = vector.broadcast %111 : vector<128x1xf32> to vector<128x128xf32>
    %113 = arith.subf %103, %112 : vector<128x128xf32>
    %114 = arith.mulf %113, %113 : vector<128x128xf32>
    %cst_57 = arith.constant dense<0.000000e+00> : vector<128xf32>
    %115 = vector.multi_reduction <add>, %114, %cst_57 [1] : vector<128x128xf32> to vector<128xf32>
    %116 = vector.shape_cast %115 : vector<128xf32> to vector<128x1xf32>
    %cst_58 = arith.constant 1.280000e+02 : f32
    %117 = vector.broadcast %cst_58 : f32 to vector<128x1xf32>
    %118 = arith.divf %116, %117 : vector<128x1xf32>
    %119 = vector.broadcast %111 : vector<128x1xf32> to vector<128x128xf32>
    %120 = arith.subf %103, %119 : vector<128x128xf32>
    %cst_59 = arith.constant 9.99999996E-13 : f32
    %121 = vector.broadcast %cst_59 : f32 to vector<128x1xf32>
    %122 = arith.addf %118, %121 : vector<128x1xf32>
    %123 = math.rsqrt %122 : vector<128x1xf32>
    %124 = vector.broadcast %123 : vector<128x1xf32> to vector<128x128xf32>
    %125 = arith.mulf %120, %124 : vector<128x128xf32>
    %126 = vector.broadcast %105 : vector<1x128xf32> to vector<128x128xf32>
    %127 = arith.mulf %125, %126 : vector<128x128xf32>
    %128 = vector.broadcast %107 : vector<1x128xf32> to vector<128x128xf32>
    %129 = arith.addf %127, %128 : vector<128x128xf32>
    %130 = arith.truncf %129 : vector<128x128xf32> to vector<128x128xbf16>
    %c0_60 = arith.constant 0 : index
    %c0_61 = arith.constant 0 : index
    %c0_62 = arith.constant 0 : index
    %131 = vector.load %arg13[%c0_60, %c0_61, %c0_62] : memref<2x128x256xbf16, #tpu.memory_space<vmem>>, vector<1x128x256xbf16>
    %132 = vector.shape_cast %131 : vector<1x128x256xbf16> to vector<128x256xbf16>
    %cst_63 = arith.constant dense<0.000000e+00> : vector<128x256xf32>
    %133 = tpu.matmul %130, %132, %cst_63 {dimension_numbers = #tpu.dot_dimension_numbers<[1], [0], [0], [1], [0, 0, 1, 1], [], []>} : vector<128x128xbf16>, vector<128x256xbf16>, vector<128x256xf32> -> vector<128x256xf32>
    %c0_64 = arith.constant 0 : index
    %c0_65 = arith.constant 0 : index
    %c0_66 = arith.constant 0 : index
    %134 = vector.load %arg14[%c0_64, %c0_65, %c0_66] : memref<2x1x256xf32, #tpu.memory_space<vmem>>, vector<1x1x256xf32>
    %135 = vector.shape_cast %134 : vector<1x1x256xf32> to vector<1x256xf32>
    %136 = vector.broadcast %135 : vector<1x256xf32> to vector<128x256xf32>
    %137 = arith.addf %133, %136 : vector<128x256xf32>
    %138 = arith.mulf %137, %137 : vector<128x256xf32>
    %139 = arith.mulf %137, %138 : vector<128x256xf32>
    %cst_67 = arith.constant 4.471500e-02 : f32
    %140 = vector.broadcast %cst_67 : f32 to vector<128x256xf32>
    %141 = arith.mulf %140, %139 : vector<128x256xf32>
    %142 = arith.addf %137, %141 : vector<128x256xf32>
    %cst_68 = arith.constant 0.797884583 : f32
    %143 = vector.broadcast %cst_68 : f32 to vector<128x256xf32>
    %144 = arith.mulf %143, %142 : vector<128x256xf32>
    %145 = math.tanh %144 : vector<128x256xf32>
    %cst_69 = arith.constant 1.000000e+00 : f32
    %146 = vector.broadcast %cst_69 : f32 to vector<128x256xf32>
    %147 = arith.addf %146, %145 : vector<128x256xf32>
    %cst_70 = arith.constant 5.000000e-01 : f32
    %148 = vector.broadcast %cst_70 : f32 to vector<128x256xf32>
    %149 = arith.mulf %148, %147 : vector<128x256xf32>
    %150 = arith.mulf %137, %149 : vector<128x256xf32>
    %151 = arith.truncf %150 : vector<128x256xf32> to vector<128x256xbf16>
    %c0_71 = arith.constant 0 : index
    %c0_72 = arith.constant 0 : index
    %c0_73 = arith.constant 0 : index
    %152 = vector.load %arg15[%c0_71, %c0_72, %c0_73] : memref<2x256x128xbf16, #tpu.memory_space<vmem>>, vector<1x256x128xbf16>
    %153 = vector.shape_cast %152 : vector<1x256x128xbf16> to vector<256x128xbf16>
    %cst_74 = arith.constant dense<0.000000e+00> : vector<128x128xf32>
    %154 = tpu.matmul %151, %153, %cst_74 {dimension_numbers = #tpu.dot_dimension_numbers<[1], [0], [0], [1], [0, 0, 1, 1], [], []>} : vector<128x256xbf16>, vector<256x128xbf16>, vector<128x128xf32> -> vector<128x128xf32>
    %c0_75 = arith.constant 0 : index
    %c0_76 = arith.constant 0 : index
    %c0_77 = arith.constant 0 : index
    %155 = vector.load %arg16[%c0_75, %c0_76, %c0_77] : memref<2x1x128xf32, #tpu.memory_space<vmem>>, vector<1x1x128xf32>
    %156 = vector.shape_cast %155 : vector<1x1x128xf32> to vector<1x128xf32>
    %157 = vector.broadcast %156 : vector<1x128xf32> to vector<128x128xf32>
    %158 = arith.addf %154, %157 : vector<128x128xf32>
    %159 = arith.addf %129, %158 : vector<128x128xf32>
    %c0_78 = arith.constant 0 : index
    %c0_79 = arith.constant 0 : index
    %c0_80 = arith.constant 0 : index
    %160 = vector.load %arg17[%c0_78, %c0_79, %c0_80] : memref<2x1x128xf32, #tpu.memory_space<vmem>>, vector<1x1x128xf32>
    %161 = vector.shape_cast %160 : vector<1x1x128xf32> to vector<1x128xf32>
    %c0_81 = arith.constant 0 : index
    %c0_82 = arith.constant 0 : index
    %c0_83 = arith.constant 0 : index
    %162 = vector.load %arg18[%c0_81, %c0_82, %c0_83] : memref<2x1x128xf32, #tpu.memory_space<vmem>>, vector<1x1x128xf32>
    %163 = vector.shape_cast %162 : vector<1x1x128xf32> to vector<1x128xf32>
    %cst_84 = arith.constant dense<0.000000e+00> : vector<128xf32>
    %164 = vector.multi_reduction <add>, %159, %cst_84 [1] : vector<128x128xf32> to vector<128xf32>
    %165 = vector.shape_cast %164 : vector<128xf32> to vector<128x1xf32>
    %cst_85 = arith.constant 1.280000e+02 : f32
    %166 = vector.broadcast %cst_85 : f32 to vector<128x1xf32>
    %167 = arith.divf %165, %166 : vector<128x1xf32>
    %168 = vector.broadcast %167 : vector<128x1xf32> to vector<128x128xf32>
    %169 = arith.subf %159, %168 : vector<128x128xf32>
    %170 = arith.mulf %169, %169 : vector<128x128xf32>
    %cst_86 = arith.constant dense<0.000000e+00> : vector<128xf32>
    %171 = vector.multi_reduction <add>, %170, %cst_86 [1] : vector<128x128xf32> to vector<128xf32>
    %172 = vector.shape_cast %171 : vector<128xf32> to vector<128x1xf32>
    %cst_87 = arith.constant 1.280000e+02 : f32
    %173 = vector.broadcast %cst_87 : f32 to vector<128x1xf32>
    %174 = arith.divf %172, %173 : vector<128x1xf32>
    %175 = vector.broadcast %167 : vector<128x1xf32> to vector<128x128xf32>
    %176 = arith.subf %159, %175 : vector<128x128xf32>
    %cst_88 = arith.constant 9.99999996E-13 : f32
    %177 = vector.broadcast %cst_88 : f32 to vector<128x1xf32>
    %178 = arith.addf %174, %177 : vector<128x1xf32>
    %179 = math.rsqrt %178 : vector<128x1xf32>
    %180 = vector.broadcast %179 : vector<128x1xf32> to vector<128x128xf32>
    %181 = arith.mulf %176, %180 : vector<128x128xf32>
    %182 = vector.broadcast %161 : vector<1x128xf32> to vector<128x128xf32>
    %183 = arith.mulf %181, %182 : vector<128x128xf32>
    %184 = vector.broadcast %163 : vector<1x128xf32> to vector<128x128xf32>
    %185 = arith.addf %183, %184 : vector<128x128xf32>
    %186 = arith.truncf %185 : vector<128x128xf32> to vector<128x128xbf16>
    %c1 = arith.constant 1 : index
    %c0_89 = arith.constant 0 : index
    %c0_90 = arith.constant 0 : index
    %187 = vector.load %arg7[%c1, %c0_89, %c0_90] : memref<2x128x768xbf16, #tpu.memory_space<vmem>>, vector<1x128x768xbf16>
    %188 = vector.shape_cast %187 : vector<1x128x768xbf16> to vector<128x768xbf16>
    %cst_91 = arith.constant dense<0.000000e+00> : vector<128x768xf32>
    %189 = tpu.matmul %186, %188, %cst_91 {dimension_numbers = #tpu.dot_dimension_numbers<[1], [0], [0], [1], [0, 0, 1, 1], [], []>} : vector<128x128xbf16>, vector<128x768xbf16>, vector<128x768xf32> -> vector<128x768xf32>
    %c1_92 = arith.constant 1 : index
    %c0_93 = arith.constant 0 : index
    %c0_94 = arith.constant 0 : index
    %190 = vector.load %arg8[%c1_92, %c0_93, %c0_94] : memref<2x1x768xf32, #tpu.memory_space<vmem>>, vector<1x1x768xf32>
    %191 = vector.shape_cast %190 : vector<1x1x768xf32> to vector<1x768xf32>
    %192 = vector.broadcast %191 : vector<1x768xf32> to vector<128x768xf32>
    %193 = arith.addf %189, %192 : vector<128x768xf32>
    %194 = vector.extract_strided_slice %193 {offsets = [0, 0], sizes = [128, 128], strides = [1, 1]} : vector<128x768xf32> to vector<128x128xf32>
    %195 = vector.extract_strided_slice %193 {offsets = [0, 256], sizes = [128, 128], strides = [1, 1]} : vector<128x768xf32> to vector<128x128xf32>
    %196 = vector.extract_strided_slice %193 {offsets = [0, 512], sizes = [128, 128], strides = [1, 1]} : vector<128x768xf32> to vector<128x128xf32>
    %197 = arith.truncf %194 : vector<128x128xf32> to vector<128x128xbf16>
    %198 = arith.truncf %195 : vector<128x128xf32> to vector<128x128xbf16>
    %cst_95 = arith.constant dense<0.000000e+00> : vector<128x128xf32>
    %199 = tpu.matmul %197, %198, %cst_95 {dimension_numbers = #tpu.dot_dimension_numbers<[1], [1], [0], [0], [0, 0, 1, 0], [], []>} : vector<128x128xbf16>, vector<128x128xbf16>, vector<128x128xf32> -> vector<128x128xf32>
    %cst_96 = arith.constant 1.250000e-01 : f32
    %200 = vector.broadcast %cst_96 : f32 to vector<128x128xf32>
    %201 = arith.mulf %199, %200 : vector<128x128xf32>
    %202 = arith.addf %201, %38 : vector<128x128xf32>
    %cst_97 = arith.constant dense<0xFF800000> : vector<128xf32>
    %203 = vector.multi_reduction <maximumf>, %202, %cst_97 [1] : vector<128x128xf32> to vector<128xf32>
    %204 = vector.shape_cast %203 : vector<128xf32> to vector<128x1xf32>
    %205 = vector.broadcast %204 : vector<128x1xf32> to vector<128x128xf32>
    %206 = arith.subf %202, %205 : vector<128x128xf32>
    %207 = math.exp %206 : vector<128x128xf32>
    %cst_98 = arith.constant dense<0.000000e+00> : vector<128xf32>
    %208 = vector.multi_reduction <add>, %207, %cst_98 [1] : vector<128x128xf32> to vector<128xf32>
    %209 = vector.shape_cast %208 : vector<128xf32> to vector<128x1xf32>
    %210 = tpu.reciprocal %209 {approx = true} : vector<128x1xf32> -> vector<128x1xf32>
    %211 = vector.broadcast %210 : vector<128x1xf32> to vector<128x128xf32>
    %212 = arith.mulf %207, %211 : vector<128x128xf32>
    %213 = arith.truncf %212 : vector<128x128xf32> to vector<128x128xbf16>
    %214 = arith.truncf %196 : vector<128x128xf32> to vector<128x128xbf16>
    %cst_99 = arith.constant dense<0.000000e+00> : vector<128x128xf32>
    %215 = tpu.matmul %213, %214, %cst_99 {dimension_numbers = #tpu.dot_dimension_numbers<[1], [0], [0], [1], [0, 0, 1, 1], [], []>} : vector<128x128xbf16>, vector<128x128xbf16>, vector<128x128xf32> -> vector<128x128xf32>
    %216 = arith.truncf %215 : vector<128x128xf32> to vector<128x128xbf16>
    %c0_100 = arith.constant 0 : index
    %c0_101 = arith.constant 0 : index
    %217 = vector.load %arg22[%c0_100, %c0_101] : memref<128x256xbf16, #tpu.memory_space<vmem>>, vector<128x128xbf16>
    tpu.vector_store %arg22[%c0_100, %c0_101], %216 {strides = array<i32>} : memref<128x256xbf16, #tpu.memory_space<vmem>>, vector<128x128xbf16>,
    %218 = vector.extract_strided_slice %193 {offsets = [0, 128], sizes = [128, 128], strides = [1, 1]} : vector<128x768xf32> to vector<128x128xf32>
    %219 = vector.extract_strided_slice %193 {offsets = [0, 384], sizes = [128, 128], strides = [1, 1]} : vector<128x768xf32> to vector<128x128xf32>
    %220 = vector.extract_strided_slice %193 {offsets = [0, 640], sizes = [128, 128], strides = [1, 1]} : vector<128x768xf32> to vector<128x128xf32>
    %221 = arith.truncf %218 : vector<128x128xf32> to vector<128x128xbf16>
    %222 = arith.truncf %219 : vector<128x128xf32> to vector<128x128xbf16>
    %cst_102 = arith.constant dense<0.000000e+00> : vector<128x128xf32>
    %223 = tpu.matmul %221, %222, %cst_102 {dimension_numbers = #tpu.dot_dimension_numbers<[1], [1], [0], [0], [0, 0, 1, 0], [], []>} : vector<128x128xbf16>, vector<128x128xbf16>, vector<128x128xf32> -> vector<128x128xf32>
    %cst_103 = arith.constant 1.250000e-01 : f32
    %224 = vector.broadcast %cst_103 : f32 to vector<128x128xf32>
    %225 = arith.mulf %223, %224 : vector<128x128xf32>
    %226 = arith.addf %225, %38 : vector<128x128xf32>
    %cst_104 = arith.constant dense<0xFF800000> : vector<128xf32>
    %227 = vector.multi_reduction <maximumf>, %226, %cst_104 [1] : vector<128x128xf32> to vector<128xf32>
    %228 = vector.shape_cast %227 : vector<128xf32> to vector<128x1xf32>
    %229 = vector.broadcast %228 : vector<128x1xf32> to vector<128x128xf32>
    %230 = arith.subf %226, %229 : vector<128x128xf32>
    %231 = math.exp %230 : vector<128x128xf32>
    %cst_105 = arith.constant dense<0.000000e+00> : vector<128xf32>
    %232 = vector.multi_reduction <add>, %231, %cst_105 [1] : vector<128x128xf32> to vector<128xf32>
    %233 = vector.shape_cast %232 : vector<128xf32> to vector<128x1xf32>
    %234 = tpu.reciprocal %233 {approx = true} : vector<128x1xf32> -> vector<128x1xf32>
    %235 = vector.broadcast %234 : vector<128x1xf32> to vector<128x128xf32>
    %236 = arith.mulf %231, %235 : vector<128x128xf32>
    %237 = arith.truncf %236 : vector<128x128xf32> to vector<128x128xbf16>
    %238 = arith.truncf %220 : vector<128x128xf32> to vector<128x128xbf16>
    %cst_106 = arith.constant dense<0.000000e+00> : vector<128x128xf32>
    %239 = tpu.matmul %237, %238, %cst_106 {dimension_numbers = #tpu.dot_dimension_numbers<[1], [0], [0], [1], [0, 0, 1, 1], [], []>} : vector<128x128xbf16>, vector<128x128xbf16>, vector<128x128xf32> -> vector<128x128xf32>
    %240 = arith.truncf %239 : vector<128x128xf32> to vector<128x128xbf16>
    %c0_107 = arith.constant 0 : index
    %c128_108 = arith.constant 128 : index
    %241 = vector.load %arg22[%c0_107, %c128_108] : memref<128x256xbf16, #tpu.memory_space<vmem>>, vector<128x128xbf16>
    tpu.vector_store %arg22[%c0_107, %c128_108], %240 {strides = array<i32>} : memref<128x256xbf16, #tpu.memory_space<vmem>>, vector<128x128xbf16>,
    %c0_109 = arith.constant 0 : index
    %c0_110 = arith.constant 0 : index
    %242 = vector.load %arg22[%c0_109, %c0_110] : memref<128x256xbf16, #tpu.memory_space<vmem>>, vector<128x256xbf16>
    %c1_111 = arith.constant 1 : index
    %c0_112 = arith.constant 0 : index
    %c0_113 = arith.constant 0 : index
    %243 = vector.load %arg9[%c1_111, %c0_112, %c0_113] : memref<2x256x128xbf16, #tpu.memory_space<vmem>>, vector<1x256x128xbf16>
    %244 = vector.shape_cast %243 : vector<1x256x128xbf16> to vector<256x128xbf16>
    %cst_114 = arith.constant dense<0.000000e+00> : vector<128x128xf32>
    %245 = tpu.matmul %242, %244, %cst_114 {dimension_numbers = #tpu.dot_dimension_numbers<[1], [0], [0], [1], [0, 0, 1, 1], [], []>} : vector<128x256xbf16>, vector<256x128xbf16>, vector<128x128xf32> -> vector<128x128xf32>
    %c1_115 = arith.constant 1 : index
    %c0_116 = arith.constant 0 : index
    %c0_117 = arith.constant 0 : index
    %246 = vector.load %arg10[%c1_115, %c0_116, %c0_117] : memref<2x1x128xf32, #tpu.memory_space<vmem>>, vector<1x1x128xf32>
    %247 = vector.shape_cast %246 : vector<1x1x128xf32> to vector<1x128xf32>
    %248 = vector.broadcast %247 : vector<1x128xf32> to vector<128x128xf32>
    %249 = arith.addf %245, %248 : vector<128x128xf32>
    %250 = arith.addf %185, %249 : vector<128x128xf32>
    %c1_118 = arith.constant 1 : index
    %c0_119 = arith.constant 0 : index
    %c0_120 = arith.constant 0 : index
    %251 = vector.load %arg11[%c1_118, %c0_119, %c0_120] : memref<2x1x128xf32, #tpu.memory_space<vmem>>, vector<1x1x128xf32>
    %252 = vector.shape_cast %251 : vector<1x1x128xf32> to vector<1x128xf32>
    %c1_121 = arith.constant 1 : index
    %c0_122 = arith.constant 0 : index
    %c0_123 = arith.constant 0 : index
    %253 = vector.load %arg12[%c1_121, %c0_122, %c0_123] : memref<2x1x128xf32, #tpu.memory_space<vmem>>, vector<1x1x128xf32>
    %254 = vector.shape_cast %253 : vector<1x1x128xf32> to vector<1x128xf32>
    %cst_124 = arith.constant dense<0.000000e+00> : vector<128xf32>
    %255 = vector.multi_reduction <add>, %250, %cst_124 [1] : vector<128x128xf32> to vector<128xf32>
    %256 = vector.shape_cast %255 : vector<128xf32> to vector<128x1xf32>
    %cst_125 = arith.constant 1.280000e+02 : f32
    %257 = vector.broadcast %cst_125 : f32 to vector<128x1xf32>
    %258 = arith.divf %256, %257 : vector<128x1xf32>
    %259 = vector.broadcast %258 : vector<128x1xf32> to vector<128x128xf32>
    %260 = arith.subf %250, %259 : vector<128x128xf32>
    %261 = arith.mulf %260, %260 : vector<128x128xf32>
    %cst_126 = arith.constant dense<0.000000e+00> : vector<128xf32>
    %262 = vector.multi_reduction <add>, %261, %cst_126 [1] : vector<128x128xf32> to vector<128xf32>
    %263 = vector.shape_cast %262 : vector<128xf32> to vector<128x1xf32>
    %cst_127 = arith.constant 1.280000e+02 : f32
    %264 = vector.broadcast %cst_127 : f32 to vector<128x1xf32>
    %265 = arith.divf %263, %264 : vector<128x1xf32>
    %266 = vector.broadcast %258 : vector<128x1xf32> to vector<128x128xf32>
    %267 = arith.subf %250, %266 : vector<128x128xf32>
    %cst_128 = arith.constant 9.99999996E-13 : f32
    %268 = vector.broadcast %cst_128 : f32 to vector<128x1xf32>
    %269 = arith.addf %265, %268 : vector<128x1xf32>
    %270 = math.rsqrt %269 : vector<128x1xf32>
    %271 = vector.broadcast %270 : vector<128x1xf32> to vector<128x128xf32>
    %272 = arith.mulf %267, %271 : vector<128x128xf32>
    %273 = vector.broadcast %252 : vector<1x128xf32> to vector<128x128xf32>
    %274 = arith.mulf %272, %273 : vector<128x128xf32>
    %275 = vector.broadcast %254 : vector<1x128xf32> to vector<128x128xf32>
    %276 = arith.addf %274, %275 : vector<128x128xf32>
    %277 = arith.truncf %276 : vector<128x128xf32> to vector<128x128xbf16>
    %c1_129 = arith.constant 1 : index
    %c0_130 = arith.constant 0 : index
    %c0_131 = arith.constant 0 : index
    %278 = vector.load %arg13[%c1_129, %c0_130, %c0_131] : memref<2x128x256xbf16, #tpu.memory_space<vmem>>, vector<1x128x256xbf16>
    %279 = vector.shape_cast %278 : vector<1x128x256xbf16> to vector<128x256xbf16>
    %cst_132 = arith.constant dense<0.000000e+00> : vector<128x256xf32>
    %280 = tpu.matmul %277, %279, %cst_132 {dimension_numbers = #tpu.dot_dimension_numbers<[1], [0], [0], [1], [0, 0, 1, 1], [], []>} : vector<128x128xbf16>, vector<128x256xbf16>, vector<128x256xf32> -> vector<128x256xf32>
    %c1_133 = arith.constant 1 : index
    %c0_134 = arith.constant 0 : index
    %c0_135 = arith.constant 0 : index
    %281 = vector.load %arg14[%c1_133, %c0_134, %c0_135] : memref<2x1x256xf32, #tpu.memory_space<vmem>>, vector<1x1x256xf32>
    %282 = vector.shape_cast %281 : vector<1x1x256xf32> to vector<1x256xf32>
    %283 = vector.broadcast %282 : vector<1x256xf32> to vector<128x256xf32>
    %284 = arith.addf %280, %283 : vector<128x256xf32>
    %285 = arith.mulf %284, %284 : vector<128x256xf32>
    %286 = arith.mulf %284, %285 : vector<128x256xf32>
    %cst_136 = arith.constant 4.471500e-02 : f32
    %287 = vector.broadcast %cst_136 : f32 to vector<128x256xf32>
    %288 = arith.mulf %287, %286 : vector<128x256xf32>
    %289 = arith.addf %284, %288 : vector<128x256xf32>
    %cst_137 = arith.constant 0.797884583 : f32
    %290 = vector.broadcast %cst_137 : f32 to vector<128x256xf32>
    %291 = arith.mulf %290, %289 : vector<128x256xf32>
    %292 = math.tanh %291 : vector<128x256xf32>
    %cst_138 = arith.constant 1.000000e+00 : f32
    %293 = vector.broadcast %cst_138 : f32 to vector<128x256xf32>
    %294 = arith.addf %293, %292 : vector<128x256xf32>
    %cst_139 = arith.constant 5.000000e-01 : f32
    %295 = vector.broadcast %cst_139 : f32 to vector<128x256xf32>
    %296 = arith.mulf %295, %294 : vector<128x256xf32>
    %297 = arith.mulf %284, %296 : vector<128x256xf32>
    %298 = arith.truncf %297 : vector<128x256xf32> to vector<128x256xbf16>
    %c1_140 = arith.constant 1 : index
    %c0_141 = arith.constant 0 : index
    %c0_142 = arith.constant 0 : index
    %299 = vector.load %arg15[%c1_140, %c0_141, %c0_142] : memref<2x256x128xbf16, #tpu.memory_space<vmem>>, vector<1x256x128xbf16>
    %300 = vector.shape_cast %299 : vector<1x256x128xbf16> to vector<256x128xbf16>
    %cst_143 = arith.constant dense<0.000000e+00> : vector<128x128xf32>
    %301 = tpu.matmul %298, %300, %cst_143 {dimension_numbers = #tpu.dot_dimension_numbers<[1], [0], [0], [1], [0, 0, 1, 1], [], []>} : vector<128x256xbf16>, vector<256x128xbf16>, vector<128x128xf32> -> vector<128x128xf32>
    %c1_144 = arith.constant 1 : index
    %c0_145 = arith.constant 0 : index
    %c0_146 = arith.constant 0 : index
    %302 = vector.load %arg16[%c1_144, %c0_145, %c0_146] : memref<2x1x128xf32, #tpu.memory_space<vmem>>, vector<1x1x128xf32>
    %303 = vector.shape_cast %302 : vector<1x1x128xf32> to vector<1x128xf32>
    %304 = vector.broadcast %303 : vector<1x128xf32> to vector<128x128xf32>
    %305 = arith.addf %301, %304 : vector<128x128xf32>
    %306 = arith.addf %276, %305 : vector<128x128xf32>
    %c1_147 = arith.constant 1 : index
    %c0_148 = arith.constant 0 : index
    %c0_149 = arith.constant 0 : index
    %307 = vector.load %arg17[%c1_147, %c0_148, %c0_149] : memref<2x1x128xf32, #tpu.memory_space<vmem>>, vector<1x1x128xf32>
    %308 = vector.shape_cast %307 : vector<1x1x128xf32> to vector<1x128xf32>
    %c1_150 = arith.constant 1 : index
    %c0_151 = arith.constant 0 : index
    %c0_152 = arith.constant 0 : index
    %309 = vector.load %arg18[%c1_150, %c0_151, %c0_152] : memref<2x1x128xf32, #tpu.memory_space<vmem>>, vector<1x1x128xf32>
    %310 = vector.shape_cast %309 : vector<1x1x128xf32> to vector<1x128xf32>
    %cst_153 = arith.constant dense<0.000000e+00> : vector<128xf32>
    %311 = vector.multi_reduction <add>, %306, %cst_153 [1] : vector<128x128xf32> to vector<128xf32>
    %312 = vector.shape_cast %311 : vector<128xf32> to vector<128x1xf32>
    %cst_154 = arith.constant 1.280000e+02 : f32
    %313 = vector.broadcast %cst_154 : f32 to vector<128x1xf32>
    %314 = arith.divf %312, %313 : vector<128x1xf32>
    %315 = vector.broadcast %314 : vector<128x1xf32> to vector<128x128xf32>
    %316 = arith.subf %306, %315 : vector<128x128xf32>
    %317 = arith.mulf %316, %316 : vector<128x128xf32>
    %cst_155 = arith.constant dense<0.000000e+00> : vector<128xf32>
    %318 = vector.multi_reduction <add>, %317, %cst_155 [1] : vector<128x128xf32> to vector<128xf32>
    %319 = vector.shape_cast %318 : vector<128xf32> to vector<128x1xf32>
    %cst_156 = arith.constant 1.280000e+02 : f32
    %320 = vector.broadcast %cst_156 : f32 to vector<128x1xf32>
    %321 = arith.divf %319, %320 : vector<128x1xf32>
    %322 = vector.broadcast %314 : vector<128x1xf32> to vector<128x128xf32>
    %323 = arith.subf %306, %322 : vector<128x128xf32>
    %cst_157 = arith.constant 9.99999996E-13 : f32
    %324 = vector.broadcast %cst_157 : f32 to vector<128x1xf32>
    %325 = arith.addf %321, %324 : vector<128x1xf32>
    %326 = math.rsqrt %325 : vector<128x1xf32>
    %327 = vector.broadcast %326 : vector<128x1xf32> to vector<128x128xf32>
    %328 = arith.mulf %323, %327 : vector<128x128xf32>
    %329 = vector.broadcast %308 : vector<1x128xf32> to vector<128x128xf32>
    %330 = arith.mulf %328, %329 : vector<128x128xf32>
    %331 = vector.broadcast %310 : vector<1x128xf32> to vector<128x128xf32>
    %332 = arith.addf %330, %331 : vector<128x128xf32>
    %333 = arith.truncf %332 : vector<128x128xf32> to vector<128x128xbf16>
    %c0_158 = arith.constant 0 : index
    %c0_159 = arith.constant 0 : index
    %334 = vector.load %arg19[%c0_158, %c0_159] : memref<128x128xbf16, #tpu.memory_space<vmem>>, vector<128x128xbf16>
    %cst_160 = arith.constant dense<0.000000e+00> : vector<128x128xf32>
    %335 = tpu.matmul %333, %334, %cst_160 {dimension_numbers = #tpu.dot_dimension_numbers<[1], [0], [0], [1], [0, 0, 1, 1], [], []>} : vector<128x128xbf16>, vector<128x128xbf16>, vector<128x128xf32> -> vector<128x128xf32>
    %c0_161 = arith.constant 0 : index
    %c0_162 = arith.constant 0 : index
    %336 = vector.load %arg20[%c0_161, %c0_162] : memref<1x128xf32, #tpu.memory_space<vmem>>, vector<1x128xf32>
    %337 = vector.broadcast %336 : vector<1x128xf32> to vector<128x128xf32>
    %338 = arith.addf %335, %337 : vector<128x128xf32>
    %cst_163 = arith.constant dense<0xFF800000> : vector<128xf32>
    %339 = vector.multi_reduction <maximumf>, %338, %cst_163 [1] : vector<128x128xf32> to vector<128xf32>
    %340 = vector.shape_cast %339 : vector<128xf32> to vector<128x1xf32>
    %341 = tpu.iota {dimensions = array<i32: 1>} : vector<128x128xi32>
    %342 = vector.broadcast %340 : vector<128x1xf32> to vector<128x128xf32>
    %343 = arith.cmpf oeq, %338, %342 : vector<128x128xf32>
    %c2147483647_i32 = arith.constant 2147483647 : i32
    %344 = vector.broadcast %c2147483647_i32 : i32 to vector<128x128xi32>
    %345 = arith.select %343, %341, %344 : vector<128x128xi1>, vector<128x128xi32>
    %cst_164 = arith.constant dense<2147483647> : vector<128xi32>
    %346 = vector.multi_reduction <minsi>, %345, %cst_164 [1] : vector<128x128xi32> to vector<128xi32>
    %347 = vector.shape_cast %346 : vector<128xi32> to vector<1x128xi32>
    %c0_165 = arith.constant 0 : index
    %c0_166 = arith.constant 0 : index
    %c0_167 = arith.constant 0 : index
    %348 = vector.load %arg21[%c0_165, %c0_166, %c0_167] : memref<1x1x128xi32, #tpu.memory_space<vmem>>, vector<1x1x128xi32>
    %349 = vector.shape_cast %348 : vector<1x1x128xi32> to vector<1x128xi32>
    %350 = vector.shape_cast %347 : vector<1x128xi32> to vector<1x1x128xi32>
    tpu.vector_store %arg21[%c0_165, %c0_166, %c0_167], %350 {strides = array<i32>} : memref<1x1x128xi32, #tpu.memory_space<vmem>>, vector<1x1x128xi32>,
    return
  }
  func.func @transform_0(%arg0: i32) -> (i32, i32, i32) {
    %c0_i32 = arith.constant 0 : i32
    %c0_i32_0 = arith.constant 0 : i32
    %c0_i32_1 = arith.constant 0 : i32
    return %arg0, %c0_i32, %c0_i32_0 : i32, i32, i32
  }
  func.func @transform_1(%arg0: i32) -> (i32, i32, i32) {
    %c0_i32 = arith.constant 0 : i32
    %c0_i32_0 = arith.constant 0 : i32
    %c0_i32_1 = arith.constant 0 : i32
    return %arg0, %c0_i32, %c0_i32_0 : i32, i32, i32
  }
  func.func @transform_2(%arg0: i32) -> (i32, i32) {
    %c0_i32 = arith.constant 0 : i32
    %c0_i32_0 = arith.constant 0 : i32
    %c0_i32_1 = arith.constant 0 : i32
    return %c0_i32, %c0_i32_0 : i32, i32
  }
  func.func @transform_3(%arg0: i32) -> (i32, i32) {
    %c0_i32 = arith.constant 0 : i32
    %c0_i32_0 = arith.constant 0 : i32
    %c0_i32_1 = arith.constant 0 : i32
    return %c0_i32, %c0_i32_0 : i32, i32
  }
  func.func @transform_4(%arg0: i32) -> (i32, i32) {
    %c0_i32 = arith.constant 0 : i32
    %c0_i32_0 = arith.constant 0 : i32
    %c0_i32_1 = arith.constant 0 : i32
    return %c0_i32, %c0_i32_0 : i32, i32
  }
  func.func @transform_5(%arg0: i32) -> (i32, i32) {
    %c0_i32 = arith.constant 0 : i32
    %c0_i32_0 = arith.constant 0 : i32
    %c0_i32_1 = arith.constant 0 : i32
    return %c0_i32, %c0_i32_0 : i32, i32
  }
  func.func @transform_6(%arg0: i32) -> (i32, i32, i32) {
    %c0_i32 = arith.constant 0 : i32
    %c0_i32_0 = arith.constant 0 : i32
    %c0_i32_1 = arith.constant 0 : i32
    %c0_i32_2 = arith.constant 0 : i32
    return %c0_i32, %c0_i32_0, %c0_i32_1 : i32, i32, i32
  }
  func.func @transform_7(%arg0: i32) -> (i32, i32, i32) {
    %c0_i32 = arith.constant 0 : i32
    %c0_i32_0 = arith.constant 0 : i32
    %c0_i32_1 = arith.constant 0 : i32
    %c0_i32_2 = arith.constant 0 : i32
    return %c0_i32, %c0_i32_0, %c0_i32_1 : i32, i32, i32
  }
  func.func @transform_8(%arg0: i32) -> (i32, i32, i32) {
    %c0_i32 = arith.constant 0 : i32
    %c0_i32_0 = arith.constant 0 : i32
    %c0_i32_1 = arith.constant 0 : i32
    %c0_i32_2 = arith.constant 0 : i32
    return %c0_i32, %c0_i32_0, %c0_i32_1 : i32, i32, i32
  }
  func.func @transform_9(%arg0: i32) -> (i32, i32, i32) {
    %c0_i32 = arith.constant 0 : i32
    %c0_i32_0 = arith.constant 0 : i32
    %c0_i32_1 = arith.constant 0 : i32
    %c0_i32_2 = arith.constant 0 : i32
    return %c0_i32, %c0_i32_0, %c0_i32_1 : i32, i32, i32
  }
  func.func @transform_10(%arg0: i32) -> (i32, i32, i32) {
    %c0_i32 = arith.constant 0 : i32
    %c0_i32_0 = arith.constant 0 : i32
    %c0_i32_1 = arith.constant 0 : i32
    %c0_i32_2 = arith.constant 0 : i32
    return %c0_i32, %c0_i32_0, %c0_i32_1 : i32, i32, i32
  }
  func.func @transform_11(%arg0: i32) -> (i32, i32, i32) {
    %c0_i32 = arith.constant 0 : i32
    %c0_i32_0 = arith.constant 0 : i32
    %c0_i32_1 = arith.constant 0 : i32
    %c0_i32_2 = arith.constant 0 : i32
    return %c0_i32, %c0_i32_0, %c0_i32_1 : i32, i32, i32
  }
  func.func @transform_12(%arg0: i32) -> (i32, i32, i32) {
    %c0_i32 = arith.constant 0 : i32
    %c0_i32_0 = arith.constant 0 : i32
    %c0_i32_1 = arith.constant 0 : i32
    %c0_i32_2 = arith.constant 0 : i32
    return %c0_i32, %c0_i32_0, %c0_i32_1 : i32, i32, i32
  }
  func.func @transform_13(%arg0: i32) -> (i32, i32, i32) {
    %c0_i32 = arith.constant 0 : i32
    %c0_i32_0 = arith.constant 0 : i32
    %c0_i32_1 = arith.constant 0 : i32
    %c0_i32_2 = arith.constant 0 : i32
    return %c0_i32, %c0_i32_0, %c0_i32_1 : i32, i32, i32
  }
  func.func @transform_14(%arg0: i32) -> (i32, i32, i32) {
    %c0_i32 = arith.constant 0 : i32
    %c0_i32_0 = arith.constant 0 : i32
    %c0_i32_1 = arith.constant 0 : i32
    %c0_i32_2 = arith.constant 0 : i32
    return %c0_i32, %c0_i32_0, %c0_i32_1 : i32, i32, i32
  }
  func.func @transform_15(%arg0: i32) -> (i32, i32, i32) {
    %c0_i32 = arith.constant 0 : i32
    %c0_i32_0 = arith.constant 0 : i32
    %c0_i32_1 = arith.constant 0 : i32
    %c0_i32_2 = arith.constant 0 : i32
    return %c0_i32, %c0_i32_0, %c0_i32_1 : i32, i32, i32
  }
  func.func @transform_16(%arg0: i32) -> (i32, i32, i32) {
    %c0_i32 = arith.constant 0 : i32
    %c0_i32_0 = arith.constant 0 : i32
    %c0_i32_1 = arith.constant 0 : i32
    %c0_i32_2 = arith.constant 0 : i32
    return %c0_i32, %c0_i32_0, %c0_i32_1 : i32, i32, i32
  }
  func.func @transform_17(%arg0: i32) -> (i32, i32, i32) {
    %c0_i32 = arith.constant 0 : i32
    %c0_i32_0 = arith.constant 0 : i32
    %c0_i32_1 = arith.constant 0 : i32
    %c0_i32_2 = arith.constant 0 : i32
    return %c0_i32, %c0_i32_0, %c0_i32_1 : i32, i32, i32
  }
  func.func @transform_18(%arg0: i32) -> (i32, i32) {
    %c0_i32 = arith.constant 0 : i32
    %c0_i32_0 = arith.constant 0 : i32
    %c0_i32_1 = arith.constant 0 : i32
    return %c0_i32, %c0_i32_0 : i32, i32
  }
  func.func @transform_19(%arg0: i32) -> (i32, i32) {
    %c0_i32 = arith.constant 0 : i32
    %c0_i32_0 = arith.constant 0 : i32
    %c0_i32_1 = arith.constant 0 : i32
    return %c0_i32, %c0_i32_0 : i32, i32
  }
  func.func @transform_20(%arg0: i32) -> (i32, i32, i32) {
    %c0_i32 = arith.constant 0 : i32
    %c0_i32_0 = arith.constant 0 : i32
    %c0_i32_1 = arith.constant 0 : i32
    return %arg0, %c0_i32, %c0_i32_0 : i32, i32, i32
  }
}

</mosaic_0001>

<llo_original>
// kernel: bert_forward.1
$region0: #{bert_forward.1}
  #allocation0 [shape = 'u32[]', space=smem, size = 0x4, offset = 0x4, fixed_abs, tag = 'smem constant byte address 0x4 - core index']
  #allocation1 [shape = 'u32[72,128]{1,0:T(1,128)}', space=vmem, size = 0x9000, scoped, tag = 'internal scratch']
  #allocation2 [shape = 'bf16[128,256]{1,0:T(8,128)(2,1)}', space=vmem, size = 0x10000, scoped, tag = 'scratch operand']
  %s0 = inlined_call_operand.vmem [shape: s32[2,128,1], index: 0, kind: input, shape index: {}]
  %s1 = inlined_call_operand.vmem [shape: f32[2,128,128], index: 1, kind: input, shape index: {}]
  %s2 = inlined_call_operand.vmem [shape: bf16[128,128], index: 2, kind: input, shape index: {}]
  %s3 = inlined_call_operand.vmem [shape: f32[128,128], index: 3, kind: input, shape index: {}]
  %s4 = inlined_call_operand.vmem [shape: f32[1,128], index: 4, kind: input, shape index: {}]
  %s5 = inlined_call_operand.vmem [shape: f32[1,128], index: 5, kind: input, shape index: {}]
  %s6 = inlined_call_operand.hbm [shape: bf16[2,128,768], index: 6, kind: input, shape index: {}]
  %s7 = inlined_call_operand.vmem [shape: f32[2,1,768], index: 7, kind: input, shape index: {}]
  %s8 = inlined_call_operand.vmem [shape: bf16[2,256,128], index: 8, kind: input, shape index: {}]
  %s9 = inlined_call_operand.vmem [shape: f32[2,1,128], index: 9, kind: input, shape index: {}]
  %s10 = inlined_call_operand.vmem [shape: f32[2,1,128], index: 10, kind: input, shape index: {}]
  %s11 = inlined_call_operand.vmem [shape: f32[2,1,128], index: 11, kind: input, shape index: {}]
  %s12 = inlined_call_operand.vmem [shape: bf16[2,128,256], index: 12, kind: input, shape index: {}]
  %s13 = inlined_call_operand.vmem [shape: f32[2,1,256], index: 13, kind: input, shape index: {}]
  %s14 = inlined_call_operand.hbm [shape: bf16[2,256,128], index: 14, kind: input, shape index: {}]
  %s15 = inlined_call_operand.vmem [shape: f32[2,1,128], index: 15, kind: input, shape index: {}]
  %s16 = inlined_call_operand.vmem [shape: f32[2,1,128], index: 16, kind: input, shape index: {}]
  %s17 = inlined_call_operand.vmem [shape: f32[2,1,128], index: 17, kind: input, shape index: {}]
  %s18 = inlined_call_operand.vmem [shape: bf16[128,128], index: 18, kind: input, shape index: {}]
  %s19 = inlined_call_operand.vmem [shape: f32[1,128], index: 19, kind: input, shape index: {}]
  %s20 = inlined_call_operand.vmem [shape: s32[2,1,128], index: 20, kind: output, shape index: {}]
  %s21 = sld [smem:[#allocation0]]
  $region121: #{bert_forward.1} parent=0
    _
  %s23 = ssub.s32 1, %s21
  %s24 = scalar_select 0, %s23, %s21
  $region1: #{bert_forward.1} parent=0
    #allocation3 [shape = 'u8[393216]{0}', space=vmem, size = 0x60000, scoped, tag = 'input window, operand 6, single buffered']
    #allocation4 [shape = 's32[2]{0}', space=sflag, size = 0x8, scoped, tag = 'scoped memory for bert_forward.1']
    #allocation5 [shape = 'u8[131072]{0}', space=vmem, size = 0x20000, scoped, tag = 'input window, operand 14, single buffered']
    #allocation6 [shape = 's32[1]{0}', space=sflag, size = 0x4, scoped, tag = 'scoped memory for bert_forward.1']
    %25 = vsyncpa [#allocation4], 0
    %26 = vsyncpa [#allocation6], 0
    loop: start=0, step=1, limit=4
    $region2: #{bert_forward.1} parent=1 // loop_pre_header
      _
    $region3: #{bert_forward.1} parent=1 // loop_header
      %s28 = sphi 0, %s32
      %p29 = scmp.ge.s32.totalorder %s28, 4
      %s38 = sphi 0, %s40
      %s41 = sphi 0, %s38
      %s42 = sphi 0, %s41
      %s58 = sphi 0, %s42
      %s64 = sphi 0, %s66
      %s67 = sphi 0, %s64
      %s68 = sphi 0, %s67
      %s84 = sphi 0, %s68
      %s88 = sphi 0, %s88
      %s90 = sphi 0, %s88
      %s91 = sphi 0, %s90
      %s105 = sphi 0, %s91
      %s109 = sphi 0, %s109
      %s111 = sphi 0, %s109
      %s112 = sphi 0, %s111
      %s126 = sphi 0, %s112
      %s130 = sphi 0, %s130
      %s132 = sphi 0, %s130
      %s133 = sphi 0, %s132
      %s147 = sphi 0, %s133
      %s151 = sphi 0, %s151
      %s153 = sphi 0, %s151
      %s154 = sphi 0, %s153
      %s168 = sphi 0, %s154
      %s172 = sphi 0, %s172
      %s174 = sphi 0, %s172
      %s175 = sphi 0, %s174
      %s189 = sphi 0, %s175
      %s193 = sphi 0, %s193
      %s195 = sphi 0, %s193
      %s196 = sphi 0, %s195
      %s210 = sphi 0, %s196
      %s214 = sphi 0, %s214
      %s216 = sphi 0, %s214
      %s217 = sphi 0, %s216
      %s231 = sphi 0, %s217
      %s235 = sphi 0, %s235
      %s237 = sphi 0, %s235
      %s238 = sphi 0, %s237
      %s252 = sphi 0, %s238
      %s256 = sphi 0, %s256
      %s258 = sphi 0, %s256
      %s259 = sphi 0, %s258
      %s273 = sphi 0, %s259
      %s277 = sphi 0, %s277
      %s279 = sphi 0, %s277
      %s280 = sphi 0, %s279
      %s294 = sphi 0, %s280
      %s298 = sphi 0, %s298
      %s300 = sphi 0, %s298
      %s301 = sphi 0, %s300
      %s315 = sphi 0, %s301
      %s319 = sphi 0, %s319
      %s321 = sphi 0, %s319
      %s322 = sphi 0, %s321
      %s336 = sphi 0, %s322
      %s340 = sphi 0, %s340
      %s342 = sphi 0, %s340
      %s343 = sphi 0, %s342
      %s357 = sphi 0, %s343
      %s361 = sphi 0, %s361
      %s363 = sphi 0, %s361
      %s364 = sphi 0, %s363
      %s378 = sphi 0, %s364
      %s382 = sphi 0, %s382
      %s384 = sphi 0, %s382
      %s385 = sphi 0, %s384
      %s399 = sphi 0, %s385
      %s403 = sphi 0, %s403
      %s405 = sphi 0, %s403
      %s406 = sphi 0, %s405
      %s420 = sphi 0, %s406
      %s424 = sphi 0, %s424
      %s426 = sphi 0, %s424
      %s427 = sphi 0, %s426
      %s441 = sphi 0, %s427
      %s445 = sphi 0, %s445
      %s447 = sphi 0, %s445
      %s448 = sphi 0, %s447
      %s462 = sphi 0, %s448
      %s468 = sphi 0, %s470
      %s471 = sphi 0, %s468
      %s472 = sphi 0, %s471
      %s488 = sphi 0, %s472
    $region4: #{bert_forward.1} parent=1 // loop_header_branch
      %31 = sbr.rel (%p29) target = $region8
    $region5: #{bert_forward.1} parent=1 // loop_body
      %s33 = ssub.s32 %s28, 1
      %s34 = ssub.s32 %s28, 2
      %s35 = sadd.s32 %s28, 1
      %s36 = ssub.s32 %s28, %s35
      %p37 = scmp.eq.s32.totalorder %s36, 0
      %s39 = sadd.s32 %s38, 1
      %s40 = scalar_select %p37, %s38, %s39
      %p43 = pneg %p37
      %p44 = scmp.eq.s32.totalorder %s28, 1
      %p45 = por %p43, %p44
      %p46 = scmp.ne.s32.totalorder %s38, %s41
      %p47 = scmp.eq.s32.totalorder %s28, 0
      %p48 = por %p46, %p47
      %p49 = scmp.ne.s32.totalorder %s38, %s41
      %p50 = scmp.eq.s32.totalorder %s33, 1
      %p51 = por %p49, %p50
      %p52 = scmp.ne.s32.totalorder %s41, %s42
      %p53 = scmp.eq.s32.totalorder %s33, 0
      %p54 = por %p52, %p53
      %p55 = scmp.ne.s32.totalorder %s41, %s42
      %p56 = scmp.eq.s32.totalorder %s34, 1
      %p57 = por %p55, %p56
      %p59 = scmp.ne.s32.totalorder %s42, %s58
      %p60 = scmp.eq.s32.totalorder %s34, 0
      %p61 = por %p59, %p60
      %s62 = ssub.s32 %s28, %s35
      %p63 = scmp.eq.s32.totalorder %s62, 0
      %s65 = sadd.s32 %s64, 1
      %s66 = scalar_select %p63, %s64, %s65
      %p69 = pneg %p63
      %p70 = scmp.eq.s32.totalorder %s28, 1
      %p71 = por %p69, %p70
      %p72 = scmp.ne.s32.totalorder %s64, %s67
      %p73 = scmp.eq.s32.totalorder %s28, 0
      %p74 = por %p72, %p73
      %p75 = scmp.ne.s32.totalorder %s64, %s67
      %p76 = scmp.eq.s32.totalorder %s33, 1
      %p77 = por %p75, %p76
      %p78 = scmp.ne.s32.totalorder %s67, %s68
      %p79 = scmp.eq.s32.totalorder %s33, 0
      %p80 = por %p78, %p79
      %p81 = scmp.ne.s32.totalorder %s67, %s68
      %p82 = scmp.eq.s32.totalorder %s34, 1
      %p83 = por %p81, %p82
      %p85 = scmp.ne.s32.totalorder %s68, %s84
      %p86 = scmp.eq.s32.totalorder %s34, 0
      %p87 = por %p85, %p86
      %s89 = sadd.s32 %s88, 1
      %p92 = scmp.eq.s32.totalorder %s28, 1
      %p93 = scmp.ne.s32.totalorder %s88, %s90
      %p94 = scmp.eq.s32.totalorder %s28, 0
      %p95 = por %p93, %p94
      %p96 = scmp.ne.s32.totalorder %s88, %s90
      %p97 = scmp.eq.s32.totalorder %s33, 1
      %p98 = por %p96, %p97
      %p99 = scmp.ne.s32.totalorder %s90, %s91
      %p100 = scmp.eq.s32.totalorder %s33, 0
      %p101 = por %p99, %p100
      %p102 = scmp.ne.s32.totalorder %s90, %s91
      %p103 = scmp.eq.s32.totalorder %s34, 1
      %p104 = por %p102, %p103
      %p106 = scmp.ne.s32.totalorder %s91, %s105
      %p107 = scmp.eq.s32.totalorder %s34, 0
      %p108 = por %p106, %p107
      %s110 = sadd.s32 %s109, 1
      %p113 = scmp.eq.s32.totalorder %s28, 1
      %p114 = scmp.ne.s32.totalorder %s109, %s111
      %p115 = scmp.eq.s32.totalorder %s28, 0
      %p116 = por %p114, %p115
      %p117 = scmp.ne.s32.totalorder %s109, %s111
      %p118 = scmp.eq.s32.totalorder %s33, 1
      %p119 = por %p117, %p118
      %p120 = scmp.ne.s32.totalorder %s111, %s112
      %p121 = scmp.eq.s32.totalorder %s33, 0
      %p122 = por %p120, %p121
      %p123 = scmp.ne.s32.totalorder %s111, %s112
      %p124 = scmp.eq.s32.totalorder %s34, 1
      %p125 = por %p123, %p124
      %p127 = scmp.ne.s32.totalorder %s112, %s126
      %p128 = scmp.eq.s32.totalorder %s34, 0
      %p129 = por %p127, %p128
      %s131 = sadd.s32 %s130, 1
      %p134 = scmp.eq.s32.totalorder %s28, 1
      %p135 = scmp.ne.s32.totalorder %s130, %s132
      %p136 = scmp.eq.s32.totalorder %s28, 0
      %p137 = por %p135, %p136
      %p138 = scmp.ne.s32.totalorder %s130, %s132
      %p139 = scmp.eq.s32.totalorder %s33, 1
      %p140 = por %p138, %p139
      %p141 = scmp.ne.s32.totalorder %s132, %s133
      %p142 = scmp.eq.s32.totalorder %s33, 0
      %p143 = por %p141, %p142
      %p144 = scmp.ne.s32.totalorder %s132, %s133
      %p145 = scmp.eq.s32.totalorder %s34, 1
      %p146 = por %p144, %p145
      %p148 = scmp.ne.s32.totalorder %s133, %s147
      %p149 = scmp.eq.s32.totalorder %s34, 0
      %p150 = por %p148, %p149
      %s152 = sadd.s32 %s151, 1
      %p155 = scmp.eq.s32.totalorder %s28, 1
      %p156 = scmp.ne.s32.totalorder %s151, %s153
      %p157 = scmp.eq.s32.totalorder %s28, 0
      %p158 = por %p156, %p157
      %p159 = scmp.ne.s32.totalorder %s151, %s153
      %p160 = scmp.eq.s32.totalorder %s33, 1
      %p161 = por %p159, %p160
      %p162 = scmp.ne.s32.totalorder %s153, %s154
      %p163 = scmp.eq.s32.totalorder %s33, 0
      %p164 = por %p162, %p163
      %p165 = scmp.ne.s32.totalorder %s153, %s154
      %p166 = scmp.eq.s32.totalorder %s34, 1
      %p167 = por %p165, %p166
      %p169 = scmp.ne.s32.totalorder %s154, %s168
      %p170 = scmp.eq.s32.totalorder %s34, 0
      %p171 = por %p169, %p170
      %s173 = sadd.s32 %s172, 1
      %p176 = scmp.eq.s32.totalorder %s28, 1
      %p177 = scmp.ne.s32.totalorder %s172, %s174
      %p178 = scmp.eq.s32.totalorder %s28, 0
      %p179 = por %p177, %p178
      %p180 = scmp.ne.s32.totalorder %s172, %s174
      %p181 = scmp.eq.s32.totalorder %s33, 1
      %p182 = por %p180, %p181
      %p183 = scmp.ne.s32.totalorder %s174, %s175
      %p184 = scmp.eq.s32.totalorder %s33, 0
      %p185 = por %p183, %p184
      %p186 = scmp.ne.s32.totalorder %s174, %s175
      %p187 = scmp.eq.s32.totalorder %s34, 1
      %p188 = por %p186, %p187
      %p190 = scmp.ne.s32.totalorder %s175, %s189
      %p191 = scmp.eq.s32.totalorder %s34, 0
      %p192 = por %p190, %p191
      %s194 = sadd.s32 %s193, 1
      %p197 = scmp.eq.s32.totalorder %s28, 1
      %p198 = scmp.ne.s32.totalorder %s193, %s195
      %p199 = scmp.eq.s32.totalorder %s28, 0
      %p200 = por %p198, %p199
      %p201 = scmp.ne.s32.totalorder %s193, %s195
      %p202 = scmp.eq.s32.totalorder %s33, 1
      %p203 = por %p201, %p202
      %p204 = scmp.ne.s32.totalorder %s195, %s196
      %p205 = scmp.eq.s32.totalorder %s33, 0
      %p206 = por %p204, %p205
      %p207 = scmp.ne.s32.totalorder %s195, %s196
      %p208 = scmp.eq.s32.totalorder %s34, 1
      %p209 = por %p207, %p208
      %p211 = scmp.ne.s32.totalorder %s196, %s210
      %p212 = scmp.eq.s32.totalorder %s34, 0
      %p213 = por %p211, %p212
      %s215 = sadd.s32 %s214, 1
      %p218 = scmp.eq.s32.totalorder %s28, 1
      %p219 = scmp.ne.s32.totalorder %s214, %s216
      %p220 = scmp.eq.s32.totalorder %s28, 0
      %p221 = por %p219, %p220
      %p222 = scmp.ne.s32.totalorder %s214, %s216
      %p223 = scmp.eq.s32.totalorder %s33, 1
      %p224 = por %p222, %p223
      %p225 = scmp.ne.s32.totalorder %s216, %s217
      %p226 = scmp.eq.s32.totalorder %s33, 0
      %p227 = por %p225, %p226
      %p228 = scmp.ne.s32.totalorder %s216, %s217
      %p229 = scmp.eq.s32.totalorder %s34, 1
      %p230 = por %p228, %p229
      %p232 = scmp.ne.s32.totalorder %s217, %s231
      %p233 = scmp.eq.s32.totalorder %s34, 0
      %p234 = por %p232, %p233
      %s236 = sadd.s32 %s235, 1
      %p239 = scmp.eq.s32.totalorder %s28, 1
      %p240 = scmp.ne.s32.totalorder %s235, %s237
      %p241 = scmp.eq.s32.totalorder %s28, 0
      %p242 = por %p240, %p241
      %p243 = scmp.ne.s32.totalorder %s235, %s237
      %p244 = scmp.eq.s32.totalorder %s33, 1
      %p245 = por %p243, %p244
      %p246 = scmp.ne.s32.totalorder %s237, %s238
      %p247 = scmp.eq.s32.totalorder %s33, 0
      %p248 = por %p246, %p247
      %p249 = scmp.ne.s32.totalorder %s237, %s238
      %p250 = scmp.eq.s32.totalorder %s34, 1
      %p251 = por %p249, %p250
      %p253 = scmp.ne.s32.totalorder %s238, %s252
      %p254 = scmp.eq.s32.totalorder %s34, 0
      %p255 = por %p253, %p254
      %s257 = sadd.s32 %s256, 1
      %p260 = scmp.eq.s32.totalorder %s28, 1
      %p261 = scmp.ne.s32.totalorder %s256, %s258
      %p262 = scmp.eq.s32.totalorder %s28, 0
      %p263 = por %p261, %p262
      %p264 = scmp.ne.s32.totalorder %s256, %s258
      %p265 = scmp.eq.s32.totalorder %s33, 1
      %p266 = por %p264, %p265
      %p267 = scmp.ne.s32.totalorder %s258, %s259
      %p268 = scmp.eq.s32.totalorder %s33, 0
      %p269 = por %p267, %p268
      %p270 = scmp.ne.s32.totalorder %s258, %s259
      %p271 = scmp.eq.s32.totalorder %s34, 1
      %p272 = por %p270, %p271
      %p274 = scmp.ne.s32.totalorder %s259, %s273
      %p275 = scmp.eq.s32.totalorder %s34, 0
      %p276 = por %p274, %p275
      %s278 = sadd.s32 %s277, 1
      %p281 = scmp.eq.s32.totalorder %s28, 1
      %p282 = scmp.ne.s32.totalorder %s277, %s279
      %p283 = scmp.eq.s32.totalorder %s28, 0
      %p284 = por %p282, %p283
      %p285 = scmp.ne.s32.totalorder %s277, %s279
      %p286 = scmp.eq.s32.totalorder %s33, 1
      %p287 = por %p285, %p286
      %p288 = scmp.ne.s32.totalorder %s279, %s280
      %p289 = scmp.eq.s32.totalorder %s33, 0
      %p290 = por %p288, %p289
      %p291 = scmp.ne.s32.totalorder %s279, %s280
      %p292 = scmp.eq.s32.totalorder %s34, 1
      %p293 = por %p291, %p292
      %p295 = scmp.ne.s32.totalorder %s280, %s294
      %p296 = scmp.eq.s32.totalorder %s34, 0
      %p297 = por %p295, %p296
      %s299 = sadd.s32 %s298, 1
      %p302 = scmp.eq.s32.totalorder %s28, 1
      %p303 = scmp.ne.s32.totalorder %s298, %s300
      %p304 = scmp.eq.s32.totalorder %s28, 0
      %p305 = por %p303, %p304
      %p306 = scmp.ne.s32.totalorder %s298, %s300
      %p307 = scmp.eq.s32.totalorder %s33, 1
      %p308 = por %p306, %p307
      %p309 = scmp.ne.s32.totalorder %s300, %s301
      %p310 = scmp.eq.s32.totalorder %s33, 0
      %p311 = por %p309, %p310
      %p312 = scmp.ne.s32.totalorder %s300, %s301
      %p313 = scmp.eq.s32.totalorder %s34, 1
      %p314 = por %p312, %p313
      %p316 = scmp.ne.s32.totalorder %s301, %s315
      %p317 = scmp.eq.s32.totalorder %s34, 0
      %p318 = por %p316, %p317
      %s320 = sadd.s32 %s319, 1
      %p323 = scmp.eq.s32.totalorder %s28, 1
      %p324 = scmp.ne.s32.totalorder %s319, %s321
      %p325 = scmp.eq.s32.totalorder %s28, 0
      %p326 = por %p324, %p325
      %p327 = scmp.ne.s32.totalorder %s319, %s321
      %p328 = scmp.eq.s32.totalorder %s33, 1
      %p329 = por %p327, %p328
      %p330 = scmp.ne.s32.totalorder %s321, %s322
      %p331 = scmp.eq.s32.totalorder %s33, 0
      %p332 = por %p330, %p331
      %p333 = scmp.ne.s32.totalorder %s321, %s322
      %p334 = scmp.eq.s32.totalorder %s34, 1
      %p335 = por %p333, %p334
      %p337 = scmp.ne.s32.totalorder %s322, %s336
      %p338 = scmp.eq.s32.totalorder %s34, 0
      %p339 = por %p337, %p338
      %s341 = sadd.s32 %s340, 1
      %p344 = scmp.eq.s32.totalorder %s28, 1
      %p345 = scmp.ne.s32.totalorder %s340, %s342
      %p346 = scmp.eq.s32.totalorder %s28, 0
      %p347 = por %p345, %p346
      %p348 = scmp.ne.s32.totalorder %s340, %s342
      %p349 = scmp.eq.s32.totalorder %s33, 1
      %p350 = por %p348, %p349
      %p351 = scmp.ne.s32.totalorder %s342, %s343
      %p352 = scmp.eq.s32.totalorder %s33, 0
      %p353 = por %p351, %p352
      %p354 = scmp.ne.s32.totalorder %s342, %s343
      %p355 = scmp.eq.s32.totalorder %s34, 1
      %p356 = por %p354, %p355
      %p358 = scmp.ne.s32.totalorder %s343, %s357
      %p359 = scmp.eq.s32.totalorder %s34, 0
      %p360 = por %p358, %p359
      %s362 = sadd.s32 %s361, 1
      %p365 = scmp.eq.s32.totalorder %s28, 1
      %p366 = scmp.ne.s32.totalorder %s361, %s363
      %p367 = scmp.eq.s32.totalorder %s28, 0
      %p368 = por %p366, %p367
      %p369 = scmp.ne.s32.totalorder %s361, %s363
      %p370 = scmp.eq.s32.totalorder %s33, 1
      %p371 = por %p369, %p370
      %p372 = scmp.ne.s32.totalorder %s363, %s364
      %p373 = scmp.eq.s32.totalorder %s33, 0
      %p374 = por %p372, %p373
      %p375 = scmp.ne.s32.totalorder %s363, %s364
      %p376 = scmp.eq.s32.totalorder %s34, 1
      %p377 = por %p375, %p376
      %p379 = scmp.ne.s32.totalorder %s364, %s378
      %p380 = scmp.eq.s32.totalorder %s34, 0
      %p381 = por %p379, %p380
      %s383 = sadd.s32 %s382, 1
      %p386 = scmp.eq.s32.totalorder %s28, 1
      %p387 = scmp.ne.s32.totalorder %s382, %s384
      %p388 = scmp.eq.s32.totalorder %s28, 0
      %p389 = por %p387, %p388
      %p390 = scmp.ne.s32.totalorder %s382, %s384
      %p391 = scmp.eq.s32.totalorder %s33, 1
      %p392 = por %p390, %p391
      %p393 = scmp.ne.s32.totalorder %s384, %s385
      %p394 = scmp.eq.s32.totalorder %s33, 0
      %p395 = por %p393, %p394
      %p396 = scmp.ne.s32.totalorder %s384, %s385
      %p397 = scmp.eq.s32.totalorder %s34, 1
      %p398 = por %p396, %p397
      %p400 = scmp.ne.s32.totalorder %s385, %s399
      %p401 = scmp.eq.s32.totalorder %s34, 0
      %p402 = por %p400, %p401
      %s404 = sadd.s32 %s403, 1
      %p407 = scmp.eq.s32.totalorder %s28, 1
      %p408 = scmp.ne.s32.totalorder %s403, %s405
      %p409 = scmp.eq.s32.totalorder %s28, 0
      %p410 = por %p408, %p409
      %p411 = scmp.ne.s32.totalorder %s403, %s405
      %p412 = scmp.eq.s32.totalorder %s33, 1
      %p413 = por %p411, %p412
      %p414 = scmp.ne.s32.totalorder %s405, %s406
      %p415 = scmp.eq.s32.totalorder %s33, 0
      %p416 = por %p414, %p415
      %p417 = scmp.ne.s32.totalorder %s405, %s406
      %p418 = scmp.eq.s32.totalorder %s34, 1
      %p419 = por %p417, %p418
      %p421 = scmp.ne.s32.totalorder %s406, %s420
      %p422 = scmp.eq.s32.totalorder %s34, 0
      %p423 = por %p421, %p422
      %s425 = sadd.s32 %s424, 1
      %p428 = scmp.eq.s32.totalorder %s28, 1
      %p429 = scmp.ne.s32.totalorder %s424, %s426
      %p430 = scmp.eq.s32.totalorder %s28, 0
      %p431 = por %p429, %p430
      %p432 = scmp.ne.s32.totalorder %s424, %s426
      %p433 = scmp.eq.s32.totalorder %s33, 1
      %p434 = por %p432, %p433
      %p435 = scmp.ne.s32.totalorder %s426, %s427
      %p436 = scmp.eq.s32.totalorder %s33, 0
      %p437 = por %p435, %p436
      %p438 = scmp.ne.s32.totalorder %s426, %s427
      %p439 = scmp.eq.s32.totalorder %s34, 1
      %p440 = por %p438, %p439
      %p442 = scmp.ne.s32.totalorder %s427, %s441
      %p443 = scmp.eq.s32.totalorder %s34, 0
      %p444 = por %p442, %p443
      %s446 = sadd.s32 %s445, 1
      %p449 = scmp.eq.s32.totalorder %s28, 1
      %p450 = scmp.ne.s32.totalorder %s445, %s447
      %p451 = scmp.eq.s32.totalorder %s28, 0
      %p452 = por %p450, %p451
      %p453 = scmp.ne.s32.totalorder %s445, %s447
      %p454 = scmp.eq.s32.totalorder %s33, 1
      %p455 = por %p453, %p454
      %p456 = scmp.ne.s32.totalorder %s447, %s448
      %p457 = scmp.eq.s32.totalorder %s33, 0
      %p458 = por %p456, %p457
      %p459 = scmp.ne.s32.totalorder %s447, %s448
      %p460 = scmp.eq.s32.totalorder %s34, 1
      %p461 = por %p459, %p460
      %p463 = scmp.ne.s32.totalorder %s448, %s462
      %p464 = scmp.eq.s32.totalorder %s34, 0
      %p465 = por %p463, %p464
      %s466 = ssub.s32 %s28, %s35
      %p467 = scmp.eq.s32.totalorder %s466, 0
      %s469 = sadd.s32 %s468, 1
      %s470 = scalar_select %p467, %s468, %s469
      %p473 = pneg %p467
      %p474 = scmp.eq.s32.totalorder %s28, 1
      %p475 = por %p473, %p474
      %p476 = scmp.ne.s32.totalorder %s468, %s471
      %p477 = scmp.eq.s32.totalorder %s28, 0
      %p478 = por %p476, %p477
      %p479 = scmp.ne.s32.totalorder %s468, %s471
      %p480 = scmp.eq.s32.totalorder %s33, 1
      %p481 = por %p479, %p480
      %p482 = scmp.ne.s32.totalorder %s471, %s472
      %p483 = scmp.eq.s32.totalorder %s33, 0
      %p484 = por %p482, %p483
      %p485 = scmp.ne.s32.totalorder %s471, %s472
      %p486 = scmp.eq.s32.totalorder %s34, 1
      %p487 = por %p485, %p486
      %p489 = scmp.ne.s32.totalorder %s472, %s488
      %p490 = scmp.eq.s32.totalorder %s34, 0
      %p491 = por %p489, %p490
      %p492 = scmp.le.s32.totalorder 1, %s28
      %p493 = scmp.lt.s32.totalorder %s28, 3
      %p494 = pnand %p492, %p493
      %p495 = pneg %p494
      // Predicated region
      $region9: #{bert_forward.1} parent=5 // pred_check
        _
      $region10: #{bert_forward.1} parent=5 // pred_check_branch
        %497 = sbr.rel (%p494) target = $region12
      $region11: #{bert_forward.1} parent=5 // pred_region
        %s498 = ssub.s32 %s28, 1
        // Predicated region
        $region13: #{bert_forward.1} parent=11 // pred_check
          %p499 = pneg %p101
        $region14: #{bert_forward.1} parent=11 // pred_check_branch
          %501 = sbr.rel (%p499) target = $region16
        $region15: #{bert_forward.1} parent=11 // pred_region
          _
        $region16: #{bert_forward.1} parent=11 // pred_fallthru
          _
        // Predicated region
        $region17: #{bert_forward.1} parent=11 // pred_check
          %p502 = pneg %p122
        $region18: #{bert_forward.1} parent=11 // pred_check_branch
          %504 = sbr.rel (%p502) target = $region20
        $region19: #{bert_forward.1} parent=11 // pred_region
          _
        $region20: #{bert_forward.1} parent=11 // pred_fallthru
          _
        // Predicated region
        $region21: #{bert_forward.1} parent=11 // pred_check
          %p505 = pneg %p143
        $region22: #{bert_forward.1} parent=11 // pred_check_branch
          %507 = sbr.rel (%p505) target = $region24
        $region23: #{bert_forward.1} parent=11 // pred_region
          _
        $region24: #{bert_forward.1} parent=11 // pred_fallthru
          _
        // Predicated region
        $region25: #{bert_forward.1} parent=11 // pred_check
          %p508 = pneg %p164
        $region26: #{bert_forward.1} parent=11 // pred_check_branch
          %510 = sbr.rel (%p508) target = $region28
        $region27: #{bert_forward.1} parent=11 // pred_region
          _
        $region28: #{bert_forward.1} parent=11 // pred_fallthru
          _
        // Predicated region
        $region29: #{bert_forward.1} parent=11 // pred_check
          %p511 = pneg %p185
        $region30: #{bert_forward.1} parent=11 // pred_check_branch
          %513 = sbr.rel (%p511) target = $region32
        $region31: #{bert_forward.1} parent=11 // pred_region
          %515 = vsyncadd [#allocation4], 0
          %s516 = sshll.u32 %s6, 4
          %s517 = int_to_ptr.hbm [resolvable:$true] %s516
          %s518 = sshll.u32 [#allocation3], 4
          %s519 = int_to_ptr.vmem [resolvable:$true] %s518
          %524 = dma.hbm_to_vmem [thread:$0]  %s517, 12288, %s519, [#allocation4], 384, 384, 24
        $region32: #{bert_forward.1} parent=11 // pred_fallthru
          _
        // Predicated region
        $region33: #{bert_forward.1} parent=11 // pred_check
          %p525 = pneg %p206
        $region34: #{bert_forward.1} parent=11 // pred_check_branch
          %527 = sbr.rel (%p525) target = $region36
        $region35: #{bert_forward.1} parent=11 // pred_region
          _
        $region36: #{bert_forward.1} parent=11 // pred_fallthru
          _
        // Predicated region
        $region37: #{bert_forward.1} parent=11 // pred_check
          %p528 = pneg %p227
        $region38: #{bert_forward.1} parent=11 // pred_check_branch
          %530 = sbr.rel (%p528) target = $region40
        $region39: #{bert_forward.1} parent=11 // pred_region
          _
        $region40: #{bert_forward.1} parent=11 // pred_fallthru
          _
        // Predicated region
        $region41: #{bert_forward.1} parent=11 // pred_check
          %p531 = pneg %p248
        $region42: #{bert_forward.1} parent=11 // pred_check_branch
          %533 = sbr.rel (%p531) target = $region44
        $region43: #{bert_forward.1} parent=11 // pred_region
          _
        $region44: #{bert_forward.1} parent=11 // pred_fallthru
          _
        // Predicated region
        $region45: #{bert_forward.1} parent=11 // pred_check
          %p534 = pneg %p269
        $region46: #{bert_forward.1} parent=11 // pred_check_branch
          %536 = sbr.rel (%p534) target = $region48
        $region47: #{bert_forward.1} parent=11 // pred_region
          _
        $region48: #{bert_forward.1} parent=11 // pred_fallthru
          _
        // Predicated region
        $region49: #{bert_forward.1} parent=11 // pred_check
          %p537 = pneg %p290
        $region50: #{bert_forward.1} parent=11 // pred_check_branch
          %539 = sbr.rel (%p537) target = $region52
        $region51: #{bert_forward.1} parent=11 // pred_region
          _
        $region52: #{bert_forward.1} parent=11 // pred_fallthru
          _
        // Predicated region
        $region53: #{bert_forward.1} parent=11 // pred_check
          %p540 = pneg %p311
        $region54: #{bert_forward.1} parent=11 // pred_check_branch
          %542 = sbr.rel (%p540) target = $region56
        $region55: #{bert_forward.1} parent=11 // pred_region
          _
        $region56: #{bert_forward.1} parent=11 // pred_fallthru
          _
        // Predicated region
        $region57: #{bert_forward.1} parent=11 // pred_check
          %p543 = pneg %p332
        $region58: #{bert_forward.1} parent=11 // pred_check_branch
          %545 = sbr.rel (%p543) target = $region60
        $region59: #{bert_forward.1} parent=11 // pred_region
          _
        $region60: #{bert_forward.1} parent=11 // pred_fallthru
          _
        // Predicated region
        $region61: #{bert_forward.1} parent=11 // pred_check
          %p546 = pneg %p353
        $region62: #{bert_forward.1} parent=11 // pred_check_branch
          %548 = sbr.rel (%p546) target = $region64
        $region63: #{bert_forward.1} parent=11 // pred_region
          %550 = vsyncadd [#allocation6], 0
          %s551 = sshll.u32 %s14, 4
          %s552 = int_to_ptr.hbm [resolvable:$true] %s551
          %s553 = sshll.u32 [#allocation5], 4
          %s554 = int_to_ptr.vmem [resolvable:$true] %s553
          %559 = dma.hbm_to_vmem [thread:$0]  %s552, 4096, %s554, [#allocation6], 64, 64, 4
        $region64: #{bert_forward.1} parent=11 // pred_fallthru
          _
        // Predicated region
        $region65: #{bert_forward.1} parent=11 // pred_check
          %p560 = pneg %p374
        $region66: #{bert_forward.1} parent=11 // pred_check_branch
          %562 = sbr.rel (%p560) target = $region68
        $region67: #{bert_forward.1} parent=11 // pred_region
          _
        $region68: #{bert_forward.1} parent=11 // pred_fallthru
          _
        // Predicated region
        $region69: #{bert_forward.1} parent=11 // pred_check
          %p563 = pneg %p395
        $region70: #{bert_forward.1} parent=11 // pred_check_branch
          %565 = sbr.rel (%p563) target = $region72
        $region71: #{bert_forward.1} parent=11 // pred_region
          _
        $region72: #{bert_forward.1} parent=11 // pred_fallthru
          _
        // Predicated region
        $region73: #{bert_forward.1} parent=11 // pred_check
          %p566 = pneg %p416
        $region74: #{bert_forward.1} parent=11 // pred_check_branch
          %568 = sbr.rel (%p566) target = $region76
        $region75: #{bert_forward.1} parent=11 // pred_region
          _
        $region76: #{bert_forward.1} parent=11 // pred_fallthru
          _
        // Predicated region
        $region77: #{bert_forward.1} parent=11 // pred_check
          %p569 = pneg %p437
        $region78: #{bert_forward.1} parent=11 // pred_check_branch
          %571 = sbr.rel (%p569) target = $region80
        $region79: #{bert_forward.1} parent=11 // pred_region
          _
        $region80: #{bert_forward.1} parent=11 // pred_fallthru
          _
        // Predicated region
        $region81: #{bert_forward.1} parent=11 // pred_check
          %p572 = pneg %p458
        $region82: #{bert_forward.1} parent=11 // pred_check_branch
          %574 = sbr.rel (%p572) target = $region84
        $region83: #{bert_forward.1} parent=11 // pred_region
          _
        $region84: #{bert_forward.1} parent=11 // pred_fallthru
          _
      $region12: #{bert_forward.1} parent=5 // pred_fallthru
        _
      %p575 = scmp.lt.s32.totalorder %s28, 2
      // Predicated region
      $region85: #{bert_forward.1} parent=5 // pred_check
        %p576 = pneg %p575
      $region86: #{bert_forward.1} parent=5 // pred_check_branch
        %578 = sbr.rel (%p576) target = $region88
      $region87: #{bert_forward.1} parent=5 // pred_region
        // Predicated region
        $region89: #{bert_forward.1} parent=87 // pred_check
          %p579 = pneg %p48
        $region90: #{bert_forward.1} parent=87 // pred_check_branch
          %581 = sbr.rel (%p579) target = $region92
        $region91: #{bert_forward.1} parent=87 // pred_region
          %p582 = scmp.lt.s32.totalorder %s28, 1
          %s583 = scalar_select %p582, %s28, 1
          %s584 = smul.addr %s583, 16
          %s585 = smul.addr %s584, 8
          %s586 = scalar_lea.vmem %s0, %s585
        $region92: #{bert_forward.1} parent=87 // pred_fallthru
          _
        // Predicated region
        $region93: #{bert_forward.1} parent=87 // pred_check
          %p587 = pneg %p74
        $region94: #{bert_forward.1} parent=87 // pred_check_branch
          %589 = sbr.rel (%p587) target = $region96
        $region95: #{bert_forward.1} parent=87 // pred_region
          %p590 = scmp.lt.s32.totalorder %s28, 1
          %s591 = scalar_select %p590, %s28, 1
          %s592 = smul.addr %s591, 16
          %s593 = smul.addr %s592, 8
          %s594 = scalar_lea.vmem %s1, %s593
        $region96: #{bert_forward.1} parent=87 // pred_fallthru
          _
      $region88: #{bert_forward.1} parent=5 // pred_fallthru
        _
      %p595 = scmp.le.s32.totalorder 1, %s28
      %p596 = scmp.lt.s32.totalorder %s28, 3
      %p597 = pnand %p595, %p596
      %p598 = pneg %p597
      // Predicated region
      $region97: #{bert_forward.1} parent=5 // pred_check
        _
      $region98: #{bert_forward.1} parent=5 // pred_check_branch
        %600 = sbr.rel (%p597) target = $region100
      $region99: #{bert_forward.1} parent=5 // pred_region
        %s601 = ssub.s32 %s28, 1
        // Predicated region
        $region101: #{bert_forward.1} parent=99 // pred_check
          %p602 = pneg %p185
        $region102: #{bert_forward.1} parent=99 // pred_check_branch
          %604 = sbr.rel (%p602) target = $region104
        $region103: #{bert_forward.1} parent=99 // pred_region
          %606 = dma.done [#allocation4], 12288
        $region104: #{bert_forward.1} parent=99 // pred_fallthru
          _
        // Predicated region
        $region105: #{bert_forward.1} parent=99 // pred_check
          %p607 = pneg %p353
        $region106: #{bert_forward.1} parent=99 // pred_check_branch
          %609 = sbr.rel (%p607) target = $region108
        $region107: #{bert_forward.1} parent=99 // pred_region
          %611 = dma.done [#allocation6], 4096
        $region108: #{bert_forward.1} parent=99 // pred_fallthru
          _
        %p612 = scmp.lt.s32.totalorder %s33, 1
        %s613 = scalar_select %p612, %s33, 1
        %s614 = smul.addr %s613, 16
        %s615 = smul.addr %s614, 8
        %s616 = scalar_lea.vmem %s0, %s615
        %p617 = pneg %p54
        %p618 = pneg %p51
        %p619 = scmp.lt.s32.totalorder %s33, 1
        %s620 = scalar_select %p619, %s33, 1
        %s621 = smul.addr %s620, 16
        %s622 = smul.addr %s621, 8
        %s623 = scalar_lea.vmem %s1, %s622
        %p624 = pneg %p80
        %p625 = pneg %p77
        %p626 = pneg %p101
        %p627 = pneg %p98
        %p628 = pneg %p122
        %p629 = pneg %p119
        %p630 = pneg %p143
        %p631 = pneg %p140
        %p632 = pneg %p164
        %p633 = pneg %p161
        %p634 = pneg %p185
        %p635 = pneg %p182
        %p636 = pneg %p206
        %p637 = pneg %p203
        %p638 = pneg %p227
        %p639 = pneg %p224
        %p640 = pneg %p248
        %p641 = pneg %p245
        %p642 = pneg %p269
        %p643 = pneg %p266
        %p644 = pneg %p290
        %p645 = pneg %p287
        %p646 = pneg %p311
        %p647 = pneg %p308
        %p648 = pneg %p332
        %p649 = pneg %p329
        %p650 = pneg %p353
        %p651 = pneg %p350
        %p652 = pneg %p374
        %p653 = pneg %p371
        %p654 = pneg %p395
        %p655 = pneg %p392
        %p656 = pneg %p416
        %p657 = pneg %p413
        %p658 = pneg %p437
        %p659 = pneg %p434
        %p660 = pneg %p458
        %p661 = pneg %p455
        %p662 = pneg %p484
        %p663 = pneg %p481
        %p664 = scmp.lt.s32.totalorder %s33, 1
        %s665 = scalar_select %p664, %s33, 1
        %s666 = scalar_lea.vmem %s20, %s665
        %p667 = scmp.lt.s32.totalorder %s33, 1
        %s668 = scalar_select %p667, %s33, 1
        %s669 = smul.addr %s668, 16
        %s670 = smul.addr %s669, 8
        %s671 = scalar_lea.vmem %s0, %s670
        %p672 = scmp.lt.s32.totalorder %s33, 1
        %s673 = scalar_select %p672, %s33, 1
        %s674 = smul.addr %s673, 16
        %s675 = smul.addr %s674, 8
        %s676 = scalar_lea.vmem %s1, %s675
        %p677 = scmp.lt.s32.totalorder %s33, 1
        %s678 = scalar_select %p677, %s33, 1
        %s679 = scalar_lea.vmem %s20, %s678
        %v680 = vld [vmem:[%s671] sm:$0xff]
        %v681 = vld [vmem:[%s671 + $0x8] sm:$0xff]
        %v682 = vld [vmem:[%s671 + $0x10] sm:$0xff]
        %v683 = vld [vmem:[%s671 + $0x18] sm:$0xff]
        %v684 = vld [vmem:[%s671 + $0x20] sm:$0xff]
        %v685 = vld [vmem:[%s671 + $0x28] sm:$0xff]
        %v686 = vld [vmem:[%s671 + $0x30] sm:$0xff]
        %v687 = vld [vmem:[%s671 + $0x38] sm:$0xff]
        %v688 = vld [vmem:[%s671 + $0x40] sm:$0xff]
        %v689 = vld [vmem:[%s671 + $0x48] sm:$0xff]
        %v690 = vld [vmem:[%s671 + $0x50] sm:$0xff]
        %v691 = vld [vmem:[%s671 + $0x58] sm:$0xff]
        %v692 = vld [vmem:[%s671 + $0x60] sm:$0xff]
        %v693 = vld [vmem:[%s671 + $0x68] sm:$0xff]
        %v694 = vld [vmem:[%s671 + $0x70] sm:$0xff]
        %v695 = vld [vmem:[%s671 + $0x78] sm:$0xff]
        %v696 = vlaneseq
        %v697 = vand.u32 %v696, 127
        %698 = vset.pattern.permute.xlu0 0
        %699 = vperm.xlu0 %698, %v680
        %v700 = vpop.permute.xlu0 %699
        %701 = vset.pattern.permute.xlu0 0
        %702 = vperm.xlu0 %701, %v681
        %v703 = vpop.permute.xlu0 %702
        %704 = vset.pattern.permute.xlu0 0
        %705 = vperm.xlu0 %704, %v682
        %v706 = vpop.permute.xlu0 %705
        %707 = vset.pattern.permute.xlu0 0
        %708 = vperm.xlu0 %707, %v683
        %v709 = vpop.permute.xlu0 %708
        %710 = vset.pattern.permute.xlu0 0
        %711 = vperm.xlu0 %710, %v684
        %v712 = vpop.permute.xlu0 %711
        %713 = vset.pattern.permute.xlu0 0
        %714 = vperm.xlu0 %713, %v685
        %v715 = vpop.permute.xlu0 %714
        %716 = vset.pattern.permute.xlu0 0
        %717 = vperm.xlu0 %716, %v686
        %v718 = vpop.permute.xlu0 %717
        %719 = vset.pattern.permute.xlu0 0
        %720 = vperm.xlu0 %719, %v687
        %v721 = vpop.permute.xlu0 %720
        %722 = vset.pattern.permute.xlu0 0
        %723 = vperm.xlu0 %722, %v688
        %v724 = vpop.permute.xlu0 %723
        %725 = vset.pattern.permute.xlu0 0
        %726 = vperm.xlu0 %725, %v689
        %v727 = vpop.permute.xlu0 %726
        %728 = vset.pattern.permute.xlu0 0
        %729 = vperm.xlu0 %728, %v690
        %v730 = vpop.permute.xlu0 %729
        %731 = vset.pattern.permute.xlu0 0
        %732 = vperm.xlu0 %731, %v691
        %v733 = vpop.permute.xlu0 %732
        %734 = vset.pattern.permute.xlu0 0
        %735 = vperm.xlu0 %734, %v692
        %v736 = vpop.permute.xlu0 %735
        %737 = vset.pattern.permute.xlu0 0
        %738 = vperm.xlu0 %737, %v693
        %v739 = vpop.permute.xlu0 %738
        %740 = vset.pattern.permute.xlu0 0
        %741 = vperm.xlu0 %740, %v694
        %v742 = vpop.permute.xlu0 %741
        %743 = vset.pattern.permute.xlu0 0
        %744 = vperm.xlu0 %743, %v695
        %v745 = vpop.permute.xlu0 %744
        %vm746 = vcmp.eq.s32.totalorder %v700, %v697
        %vm747 = vcmp.eq.s32.totalorder %v703, %v697
        %vm748 = vcmp.eq.s32.totalorder %v706, %v697
        %vm749 = vcmp.eq.s32.totalorder %v709, %v697
        %vm750 = vcmp.eq.s32.totalorder %v712, %v697
        %vm751 = vcmp.eq.s32.totalorder %v715, %v697
        %vm752 = vcmp.eq.s32.totalorder %v718, %v697
        %vm753 = vcmp.eq.s32.totalorder %v721, %v697
        %vm754 = vcmp.eq.s32.totalorder %v724, %v697
        %vm755 = vcmp.eq.s32.totalorder %v727, %v697
        %vm756 = vcmp.eq.s32.totalorder %v730, %v697
        %vm757 = vcmp.eq.s32.totalorder %v733, %v697
        %vm758 = vcmp.eq.s32.totalorder %v736, %v697
        %vm759 = vcmp.eq.s32.totalorder %v739, %v697
        %vm760 = vcmp.eq.s32.totalorder %v742, %v697
        %vm761 = vcmp.eq.s32.totalorder %v745, %v697
        %v762 = vsel %vm746, 1.0, 0.0
        %v763 = vsel %vm747, 1.0, 0.0
        %v764 = vsel %vm748, 1.0, 0.0
        %v765 = vsel %vm749, 1.0, 0.0
        %v766 = vsel %vm750, 1.0, 0.0
        %v767 = vsel %vm751, 1.0, 0.0
        %v768 = vsel %vm752, 1.0, 0.0
        %v769 = vsel %vm753, 1.0, 0.0
        %v770 = vsel %vm754, 1.0, 0.0
        %v771 = vsel %vm755, 1.0, 0.0
        %v772 = vsel %vm756, 1.0, 0.0
        %v773 = vsel %vm757, 1.0, 0.0
        %v774 = vsel %vm758, 1.0, 0.0
        %v775 = vsel %vm759, 1.0, 0.0
        %v776 = vsel %vm760, 1.0, 0.0
        %v777 = vsel %vm761, 1.0, 0.0
        %v778 = vpack.c.bf16 %v763, %v762
        %v779 = vpack.c.bf16 %v765, %v764
        %v780 = vpack.c.bf16 %v767, %v766
        %v781 = vpack.c.bf16 %v769, %v768
        %v782 = vpack.c.bf16 %v771, %v770
        %v783 = vpack.c.bf16 %v773, %v772
        %v784 = vpack.c.bf16 %v775, %v774
        %v785 = vpack.c.bf16 %v777, %v776
        %v786 = vld [vmem:[%s2] sm:$0xf]
        %v787 = vld [vmem:[%s2 + $0x4] sm:$0xf]
        %v788 = vld [vmem:[%s2 + $0x8] sm:$0xf]
        %v789 = vld [vmem:[%s2 + $0xc] sm:$0xf]
        %v790 = vld [vmem:[%s2 + $0x10] sm:$0xf]
        %v791 = vld [vmem:[%s2 + $0x14] sm:$0xf]
        %v792 = vld [vmem:[%s2 + $0x18] sm:$0xf]
        %v793 = vld [vmem:[%s2 + $0x1c] sm:$0xf]
        %v794 = vld [vmem:[%s2 + $0x20] sm:$0xf]
        %v795 = vld [vmem:[%s2 + $0x24] sm:$0xf]
        %v796 = vld [vmem:[%s2 + $0x28] sm:$0xf]
        %v797 = vld [vmem:[%s2 + $0x2c] sm:$0xf]
        %v798 = vld [vmem:[%s2 + $0x30] sm:$0xf]
        %v799 = vld [vmem:[%s2 + $0x34] sm:$0xf]
        %v800 = vld [vmem:[%s2 + $0x38] sm:$0xf]
        %v801 = vld [vmem:[%s2 + $0x3c] sm:$0xf]
        %v802 = vld [vmem:[%s3] sm:$0xff]
        %v803 = vld [vmem:[%s3 + $0x8] sm:$0xff]
        %v804 = vld [vmem:[%s3 + $0x10] sm:$0xff]
        %v805 = vld [vmem:[%s3 + $0x18] sm:$0xff]
        %v806 = vld [vmem:[%s3 + $0x20] sm:$0xff]
        %v807 = vld [vmem:[%s3 + $0x28] sm:$0xff]
        %v808 = vld [vmem:[%s3 + $0x30] sm:$0xff]
        %v809 = vld [vmem:[%s3 + $0x38] sm:$0xff]
        %v810 = vld [vmem:[%s3 + $0x40] sm:$0xff]
        %v811 = vld [vmem:[%s3 + $0x48] sm:$0xff]
        %v812 = vld [vmem:[%s3 + $0x50] sm:$0xff]
        %v813 = vld [vmem:[%s3 + $0x58] sm:$0xff]
        %v814 = vld [vmem:[%s3 + $0x60] sm:$0xff]
        %v815 = vld [vmem:[%s3 + $0x68] sm:$0xff]
        %v816 = vld [vmem:[%s3 + $0x70] sm:$0xff]
        %v817 = vld [vmem:[%s3 + $0x78] sm:$0xff]
        %v834 = vunpack.c.l.b16 %v786
        %v835 = vunpack.c.l.b16 %v787
        %v836 = vunpack.c.l.b16 %v788
        %v837 = vunpack.c.l.b16 %v789
        %v838 = vunpack.c.l.b16 %v790
        %v839 = vunpack.c.l.b16 %v791
        %v840 = vunpack.c.l.b16 %v792
        %v841 = vunpack.c.l.b16 %v793
        %v842 = vunpack.c.l.b16 %v794
        %v843 = vunpack.c.l.b16 %v795
        %v844 = vunpack.c.l.b16 %v796
        %v845 = vunpack.c.l.b16 %v797
        %v846 = vunpack.c.l.b16 %v798
        %v847 = vunpack.c.l.b16 %v799
        %v848 = vunpack.c.l.b16 %v800
        %v849 = vunpack.c.l.b16 %v801
        %v850 = vpack.c.b16 %v835, %v834
        %v851 = vpack.c.b16 %v837, %v836
        %v852 = vpack.c.b16 %v839, %v838
        %v853 = vpack.c.b16 %v841, %v840
        %v854 = vpack.c.b16 %v843, %v842
        %v855 = vpack.c.b16 %v845, %v844
        %v856 = vpack.c.b16 %v847, %v846
        %v857 = vpack.c.b16 %v849, %v848
        %866 = vmatpush.bf16.msra.mxu0 %v857
        %867 = vmatpush.bf16.msra.mxu0 %v856
        %868 = vmatpush.bf16.msra.mxu0 %v855
        %869 = vmatpush.bf16.msra.mxu0 %v854
        %870 = vmatpush.bf16.msra.mxu0 %v853
        %871 = vmatpush.bf16.msra.mxu0 %v852
        %872 = vmatpush.bf16.msra.mxu0 %v851
        %873 = vmatpush.bf16.msra.mxu0 %v850
        %874 = vmatmul.bf16.gmra.mxu0 %v778
        %v875 = vpop.f32.mrf.mxu0
        %v876 = vadd.f32 %v802, %v875
        %v877 = vpop.f32.mrf.mxu0
        %v878 = vadd.f32 %v803, %v877
        %879 = vmatmul.bf16.gmra.mxu0 %v779
        %v880 = vpop.f32.mrf.mxu0
        %v881 = vadd.f32 %v804, %v880
        %v882 = vpop.f32.mrf.mxu0
        %v883 = vadd.f32 %v805, %v882
        %884 = vmatmul.bf16.gmra.mxu0 %v780
        %v885 = vpop.f32.mrf.mxu0
        %v886 = vadd.f32 %v806, %v885
        %v887 = vpop.f32.mrf.mxu0
        %v888 = vadd.f32 %v807, %v887
        %889 = vmatmul.bf16.gmra.mxu0 %v781
        %v890 = vpop.f32.mrf.mxu0
        %v891 = vadd.f32 %v808, %v890
        %v892 = vpop.f32.mrf.mxu0
        %v893 = vadd.f32 %v809, %v892
        %894 = vmatmul.bf16.gmra.mxu0 %v782
        %v895 = vpop.f32.mrf.mxu0
        %v896 = vadd.f32 %v810, %v895
        %v897 = vpop.f32.mrf.mxu0
        %v898 = vadd.f32 %v811, %v897
        %899 = vmatmul.bf16.gmra.mxu0 %v783
        %v900 = vpop.f32.mrf.mxu0
        %v901 = vadd.f32 %v812, %v900
        %v902 = vpop.f32.mrf.mxu0
        %v903 = vadd.f32 %v813, %v902
        %904 = vmatmul.bf16.gmra.mxu0 %v784
        %v905 = vpop.f32.mrf.mxu0
        %v906 = vadd.f32 %v814, %v905
        %v907 = vpop.f32.mrf.mxu0
        %v908 = vadd.f32 %v815, %v907
        %909 = vmatmul.bf16.gmra.mxu0 %v785
        %v910 = vpop.f32.mrf.mxu0
        %v911 = vadd.f32 %v816, %v910
        %v912 = vpop.f32.mrf.mxu0
        %v913 = vadd.f32 %v817, %v912
        %914 = vdwg.mxu0
        %v915 = vld [vmem:[%s4] sm:$0x1]
        %v916 = vld [vmem:[%s5] sm:$0x1]
        %917 = vadd.xlane.f32.xlu0 %v876
        %v918 = vpop.xlane.xlu0 %917
        %919 = vadd.xlane.f32.xlu0 %v878
        %v920 = vpop.xlane.xlu0 %919
        %921 = vadd.xlane.f32.xlu0 %v881
        %v922 = vpop.xlane.xlu0 %921
        %923 = vadd.xlane.f32.xlu0 %v883
        %v924 = vpop.xlane.xlu0 %923
        %925 = vadd.xlane.f32.xlu0 %v886
        %v926 = vpop.xlane.xlu0 %925
        %927 = vadd.xlane.f32.xlu0 %v888
        %v928 = vpop.xlane.xlu0 %927
        %929 = vadd.xlane.f32.xlu0 %v891
        %v930 = vpop.xlane.xlu0 %929
        %931 = vadd.xlane.f32.xlu0 %v893
        %v932 = vpop.xlane.xlu0 %931
        %933 = vadd.xlane.f32.xlu0 %v896
        %v934 = vpop.xlane.xlu0 %933
        %935 = vadd.xlane.f32.xlu0 %v898
        %v936 = vpop.xlane.xlu0 %935
        %937 = vadd.xlane.f32.xlu0 %v901
        %v938 = vpop.xlane.xlu0 %937
        %939 = vadd.xlane.f32.xlu0 %v903
        %v940 = vpop.xlane.xlu0 %939
        %941 = vadd.xlane.f32.xlu0 %v906
        %v942 = vpop.xlane.xlu0 %941
        %943 = vadd.xlane.f32.xlu0 %v908
        %v944 = vpop.xlane.xlu0 %943
        %945 = vadd.xlane.f32.xlu0 %v911
        %v946 = vpop.xlane.xlu0 %945
        %947 = vadd.xlane.f32.xlu0 %v913
        %v948 = vpop.xlane.xlu0 %947
        %v949 = vrcp.pop 128.0
        %v950 = vmul.f32 128.0, %v949
        %v951 = vsub.f32 1.0, %v950
        %v952 = vmul.f32 %v949, %v951
        %v953 = vadd.f32 %v949, %v952
        %vm954 = vweird.f32 %v949
        %v955 = vsel %vm954, %v949, %v953
        %v956 = vmul.f32 %v918, %v955
        %v957 = vmul.f32 %v920, %v955
        %v958 = vmul.f32 %v922, %v955
        %v959 = vmul.f32 %v924, %v955
        %v960 = vmul.f32 %v926, %v955
        %v961 = vmul.f32 %v928, %v955
        %v962 = vmul.f32 %v930, %v955
        %v963 = vmul.f32 %v932, %v955
        %v964 = vmul.f32 %v934, %v955
        %v965 = vmul.f32 %v936, %v955
        %v966 = vmul.f32 %v938, %v955
        %v967 = vmul.f32 %v940, %v955
        %v968 = vmul.f32 %v942, %v955
        %v969 = vmul.f32 %v944, %v955
        %v970 = vmul.f32 %v946, %v955
        %v971 = vmul.f32 %v948, %v955
        %v972 = vsub.f32 %v876, %v956
        %v973 = vsub.f32 %v878, %v957
        %v974 = vsub.f32 %v881, %v958
        %v975 = vsub.f32 %v883, %v959
        %v976 = vsub.f32 %v886, %v960
        %v977 = vsub.f32 %v888, %v961
        %v978 = vsub.f32 %v891, %v962
        %v979 = vsub.f32 %v893, %v963
        %v980 = vsub.f32 %v896, %v964
        %v981 = vsub.f32 %v898, %v965
        %v982 = vsub.f32 %v901, %v966
        %v983 = vsub.f32 %v903, %v967
        %v984 = vsub.f32 %v906, %v968
        %v985 = vsub.f32 %v908, %v969
        %v986 = vsub.f32 %v911, %v970
        %v987 = vsub.f32 %v913, %v971
        %v988 = vmul.f32 %v972, %v972
        %v989 = vmul.f32 %v973, %v973
        %v990 = vmul.f32 %v974, %v974
        %v991 = vmul.f32 %v975, %v975
        %v992 = vmul.f32 %v976, %v976
        %v993 = vmul.f32 %v977, %v977
        %v994 = vmul.f32 %v978, %v978
        %v995 = vmul.f32 %v979, %v979
        %v996 = vmul.f32 %v980, %v980
        %v997 = vmul.f32 %v981, %v981
        %v998 = vmul.f32 %v982, %v982
        %v999 = vmul.f32 %v983, %v983
        %v1000 = vmul.f32 %v984, %v984
        %v1001 = vmul.f32 %v985, %v985
        %v1002 = vmul.f32 %v986, %v986
        %v1003 = vmul.f32 %v987, %v987
        %1004 = vadd.xlane.f32.xlu0 %v988
        %v1005 = vpop.xlane.xlu0 %1004
        %1006 = vadd.xlane.f32.xlu0 %v989
        %v1007 = vpop.xlane.xlu0 %1006
        %1008 = vadd.xlane.f32.xlu0 %v990
        %v1009 = vpop.xlane.xlu0 %1008
        %1010 = vadd.xlane.f32.xlu0 %v991
        %v1011 = vpop.xlane.xlu0 %1010
        %1012 = vadd.xlane.f32.xlu0 %v992
        %v1013 = vpop.xlane.xlu0 %1012
        %1014 = vadd.xlane.f32.xlu0 %v993
        %v1015 = vpop.xlane.xlu0 %1014
        %1016 = vadd.xlane.f32.xlu0 %v994
        %v1017 = vpop.xlane.xlu0 %1016
        %1018 = vadd.xlane.f32.xlu0 %v995
        %v1019 = vpop.xlane.xlu0 %1018
        %1020 = vadd.xlane.f32.xlu0 %v996
        %v1021 = vpop.xlane.xlu0 %1020
        %1022 = vadd.xlane.f32.xlu0 %v997
        %v1023 = vpop.xlane.xlu0 %1022
        %1024 = vadd.xlane.f32.xlu0 %v998
        %v1025 = vpop.xlane.xlu0 %1024
        %1026 = vadd.xlane.f32.xlu0 %v999
        %v1027 = vpop.xlane.xlu0 %1026
        %1028 = vadd.xlane.f32.xlu0 %v1000
        %v1029 = vpop.xlane.xlu0 %1028
        %1030 = vadd.xlane.f32.xlu0 %v1001
        %v1031 = vpop.xlane.xlu0 %1030
        %1032 = vadd.xlane.f32.xlu0 %v1002
        %v1033 = vpop.xlane.xlu0 %1032
        %1034 = vadd.xlane.f32.xlu0 %v1003
        %v1035 = vpop.xlane.xlu0 %1034
        %v1036 = vmul.f32 %v1005, %v955
        %v1037 = vmul.f32 %v1007, %v955
        %v1038 = vmul.f32 %v1009, %v955
        %v1039 = vmul.f32 %v1011, %v955
        %v1040 = vmul.f32 %v1013, %v955
        %v1041 = vmul.f32 %v1015, %v955
        %v1042 = vmul.f32 %v1017, %v955
        %v1043 = vmul.f32 %v1019, %v955
        %v1044 = vmul.f32 %v1021, %v955
        %v1045 = vmul.f32 %v1023, %v955
        %v1046 = vmul.f32 %v1025, %v955
        %v1047 = vmul.f32 %v1027, %v955
        %v1048 = vmul.f32 %v1029, %v955
        %v1049 = vmul.f32 %v1031, %v955
        %v1050 = vmul.f32 %v1033, %v955
        %v1051 = vmul.f32 %v1035, %v955
        %v1052 = vadd.f32 %v1036, 1e-12
        %v1053 = vadd.f32 %v1037, 1e-12
        %v1054 = vadd.f32 %v1038, 1e-12
        %v1055 = vadd.f32 %v1039, 1e-12
        %v1056 = vadd.f32 %v1040, 1e-12
        %v1057 = vadd.f32 %v1041, 1e-12
        %v1058 = vadd.f32 %v1042, 1e-12
        %v1059 = vadd.f32 %v1043, 1e-12
        %v1060 = vadd.f32 %v1044, 1e-12
        %v1061 = vadd.f32 %v1045, 1e-12
        %v1062 = vadd.f32 %v1046, 1e-12
        %v1063 = vadd.f32 %v1047, 1e-12
        %v1064 = vadd.f32 %v1048, 1e-12
        %v1065 = vadd.f32 %v1049, 1e-12
        %v1066 = vadd.f32 %v1050, 1e-12
        %v1067 = vadd.f32 %v1051, 1e-12
        %v1068 = vrsqrt.pop %v1052
        %v1069 = vmul.f32 %v1068, %v1052
        %v1070 = vmul.f32 %v1069, %v1068
        %v1071 = vmul.f32 0.5, %v1070
        %v1072 = vsub.f32 1.5, %v1071
        %v1073 = vmul.f32 %v1068, %v1072
        %vm1074 = vweird.f32 %v1052
        %vm1075 = vweird.f32 %v1068
        %vm1076 = vmor %vm1074, %vm1075
        %v1077 = vsel %vm1076, %v1068, %v1073
        %v1078 = vrsqrt.pop %v1053
        %v1079 = vmul.f32 %v1078, %v1053
        %v1080 = vmul.f32 %v1079, %v1078
        %v1081 = vmul.f32 0.5, %v1080
        %v1082 = vsub.f32 1.5, %v1081
        %v1083 = vmul.f32 %v1078, %v1082
        %vm1084 = vweird.f32 %v1053
        %vm1085 = vweird.f32 %v1078
        %vm1086 = vmor %vm1084, %vm1085
        %v1087 = vsel %vm1086, %v1078, %v1083
        %v1088 = vrsqrt.pop %v1054
        %v1089 = vmul.f32 %v1088, %v1054
        %v1090 = vmul.f32 %v1089, %v1088
        %v1091 = vmul.f32 0.5, %v1090
        %v1092 = vsub.f32 1.5, %v1091
        %v1093 = vmul.f32 %v1088, %v1092
        %vm1094 = vweird.f32 %v1054
        %vm1095 = vweird.f32 %v1088
        %vm1096 = vmor %vm1094, %vm1095
        %v1097 = vsel %vm1096, %v1088, %v1093
        %v1098 = vrsqrt.pop %v1055
        %v1099 = vmul.f32 %v1098, %v1055
        %v1100 = vmul.f32 %v1099, %v1098
        %v1101 = vmul.f32 0.5, %v1100
        %v1102 = vsub.f32 1.5, %v1101
        %v1103 = vmul.f32 %v1098, %v1102
        %vm1104 = vweird.f32 %v1055
        %vm1105 = vweird.f32 %v1098
        %vm1106 = vmor %vm1104, %vm1105
        %v1107 = vsel %vm1106, %v1098, %v1103
        %v1108 = vrsqrt.pop %v1056
        %v1109 = vmul.f32 %v1108, %v1056
        %v1110 = vmul.f32 %v1109, %v1108
        %v1111 = vmul.f32 0.5, %v1110
        %v1112 = vsub.f32 1.5, %v1111
        %v1113 = vmul.f32 %v1108, %v1112
        %vm1114 = vweird.f32 %v1056
        %vm1115 = vweird.f32 %v1108
        %vm1116 = vmor %vm1114, %vm1115
        %v1117 = vsel %vm1116, %v1108, %v1113
        %v1118 = vrsqrt.pop %v1057
        %v1119 = vmul.f32 %v1118, %v1057
        %v1120 = vmul.f32 %v1119, %v1118
        %v1121 = vmul.f32 0.5, %v1120
        %v1122 = vsub.f32 1.5, %v1121
        %v1123 = vmul.f32 %v1118, %v1122
        %vm1124 = vweird.f32 %v1057
        %vm1125 = vweird.f32 %v1118
        %vm1126 = vmor %vm1124, %vm1125
        %v1127 = vsel %vm1126, %v1118, %v1123
        %v1128 = vrsqrt.pop %v1058
        %v1129 = vmul.f32 %v1128, %v1058
        %v1130 = vmul.f32 %v1129, %v1128
        %v1131 = vmul.f32 0.5, %v1130
        %v1132 = vsub.f32 1.5, %v1131
        %v1133 = vmul.f32 %v1128, %v1132
        %vm1134 = vweird.f32 %v1058
        %vm1135 = vweird.f32 %v1128
        %vm1136 = vmor %vm1134, %vm1135
        %v1137 = vsel %vm1136, %v1128, %v1133
        %v1138 = vrsqrt.pop %v1059
        %v1139 = vmul.f32 %v1138, %v1059
        %v1140 = vmul.f32 %v1139, %v1138
        %v1141 = vmul.f32 0.5, %v1140
        %v1142 = vsub.f32 1.5, %v1141
        %v1143 = vmul.f32 %v1138, %v1142
        %vm1144 = vweird.f32 %v1059
        %vm1145 = vweird.f32 %v1138
        %vm1146 = vmor %vm1144, %vm1145
        %v1147 = vsel %vm1146, %v1138, %v1143
        %v1148 = vrsqrt.pop %v1060
        %v1149 = vmul.f32 %v1148, %v1060
        %v1150 = vmul.f32 %v1149, %v1148
        %v1151 = vmul.f32 0.5, %v1150
        %v1152 = vsub.f32 1.5, %v1151
        %v1153 = vmul.f32 %v1148, %v1152
        %vm1154 = vweird.f32 %v1060
        %vm1155 = vweird.f32 %v1148
        %vm1156 = vmor %vm1154, %vm1155
        %v1157 = vsel %vm1156, %v1148, %v1153
        %v1158 = vrsqrt.pop %v1061
        %v1159 = vmul.f32 %v1158, %v1061
        %v1160 = vmul.f32 %v1159, %v1158
        %v1161 = vmul.f32 0.5, %v1160
        %v1162 = vsub.f32 1.5, %v1161
        %v1163 = vmul.f32 %v1158, %v1162
        %vm1164 = vweird.f32 %v1061
        %vm1165 = vweird.f32 %v1158
        %vm1166 = vmor %vm1164, %vm1165
        %v1167 = vsel %vm1166, %v1158, %v1163
        %v1168 = vrsqrt.pop %v1062
        %v1169 = vmul.f32 %v1168, %v1062
        %v1170 = vmul.f32 %v1169, %v1168
        %v1171 = vmul.f32 0.5, %v1170
        %v1172 = vsub.f32 1.5, %v1171
        %v1173 = vmul.f32 %v1168, %v1172
        %vm1174 = vweird.f32 %v1062
        %vm1175 = vweird.f32 %v1168
        %vm1176 = vmor %vm1174, %vm1175
        %v1177 = vsel %vm1176, %v1168, %v1173
        %v1178 = vrsqrt.pop %v1063
        %v1179 = vmul.f32 %v1178, %v1063
        %v1180 = vmul.f32 %v1179, %v1178
        %v1181 = vmul.f32 0.5, %v1180
        %v1182 = vsub.f32 1.5, %v1181
        %v1183 = vmul.f32 %v1178, %v1182
        %vm1184 = vweird.f32 %v1063
        %vm1185 = vweird.f32 %v1178
        %vm1186 = vmor %vm1184, %vm1185
        %v1187 = vsel %vm1186, %v1178, %v1183
        %v1188 = vrsqrt.pop %v1064
        %v1189 = vmul.f32 %v1188, %v1064
        %v1190 = vmul.f32 %v1189, %v1188
        %v1191 = vmul.f32 0.5, %v1190
        %v1192 = vsub.f32 1.5, %v1191
        %v1193 = vmul.f32 %v1188, %v1192
        %vm1194 = vweird.f32 %v1064
        %vm1195 = vweird.f32 %v1188
        %vm1196 = vmor %vm1194, %vm1195
        %v1197 = vsel %vm1196, %v1188, %v1193
        %v1198 = vrsqrt.pop %v1065
        %v1199 = vmul.f32 %v1198, %v1065
        %v1200 = vmul.f32 %v1199, %v1198
        %v1201 = vmul.f32 0.5, %v1200
        %v1202 = vsub.f32 1.5, %v1201
        %v1203 = vmul.f32 %v1198, %v1202
        %vm1204 = vweird.f32 %v1065
        %vm1205 = vweird.f32 %v1198
        %vm1206 = vmor %vm1204, %vm1205
        %v1207 = vsel %vm1206, %v1198, %v1203
        %v1208 = vrsqrt.pop %v1066
        %v1209 = vmul.f32 %v1208, %v1066
        %v1210 = vmul.f32 %v1209, %v1208
        %v1211 = vmul.f32 0.5, %v1210
        %v1212 = vsub.f32 1.5, %v1211
        %v1213 = vmul.f32 %v1208, %v1212
        %vm1214 = vweird.f32 %v1066
        %vm1215 = vweird.f32 %v1208
        %vm1216 = vmor %vm1214, %vm1215
        %v1217 = vsel %vm1216, %v1208, %v1213
        %v1218 = vrsqrt.pop %v1067
        %v1219 = vmul.f32 %v1218, %v1067
        %v1220 = vmul.f32 %v1219, %v1218
        %v1221 = vmul.f32 0.5, %v1220
        %v1222 = vsub.f32 1.5, %v1221
        %v1223 = vmul.f32 %v1218, %v1222
        %vm1224 = vweird.f32 %v1067
        %vm1225 = vweird.f32 %v1218
        %vm1226 = vmor %vm1224, %vm1225
        %v1227 = vsel %vm1226, %v1218, %v1223
        %v1228 = vmul.f32 %v972, %v1077
        %v1229 = vmul.f32 %v973, %v1087
        %v1230 = vmul.f32 %v974, %v1097
        %v1231 = vmul.f32 %v975, %v1107
        %v1232 = vmul.f32 %v976, %v1117
        %v1233 = vmul.f32 %v977, %v1127
        %v1234 = vmul.f32 %v978, %v1137
        %v1235 = vmul.f32 %v979, %v1147
        %v1236 = vmul.f32 %v980, %v1157
        %v1237 = vmul.f32 %v981, %v1167
        %v1238 = vmul.f32 %v982, %v1177
        %v1239 = vmul.f32 %v983, %v1187
        %v1240 = vmul.f32 %v984, %v1197
        %v1241 = vmul.f32 %v985, %v1207
        %v1242 = vmul.f32 %v986, %v1217
        %v1243 = vmul.f32 %v987, %v1227
        %v1245 = vperm.slane %v915, 0
        %v1247 = vmul.f32 %v1228, %v1245
        %v1248 = vmul.f32 %v1229, %v1245
        %v1249 = vmul.f32 %v1230, %v1245
        %v1250 = vmul.f32 %v1231, %v1245
        %v1251 = vmul.f32 %v1232, %v1245
        %v1252 = vmul.f32 %v1233, %v1245
        %v1253 = vmul.f32 %v1234, %v1245
        %v1254 = vmul.f32 %v1235, %v1245
        %v1255 = vmul.f32 %v1236, %v1245
        %v1256 = vmul.f32 %v1237, %v1245
        %v1257 = vmul.f32 %v1238, %v1245
        %v1258 = vmul.f32 %v1239, %v1245
        %v1259 = vmul.f32 %v1240, %v1245
        %v1260 = vmul.f32 %v1241, %v1245
        %v1261 = vmul.f32 %v1242, %v1245
        %v1262 = vmul.f32 %v1243, %v1245
        %v1264 = vperm.slane %v916, 0
        %v1266 = vadd.f32 %v1247, %v1264
        %v1267 = vadd.f32 %v1248, %v1264
        %v1268 = vadd.f32 %v1249, %v1264
        %v1269 = vadd.f32 %v1250, %v1264
        %v1270 = vadd.f32 %v1251, %v1264
        %v1271 = vadd.f32 %v1252, %v1264
        %v1272 = vadd.f32 %v1253, %v1264
        %v1273 = vadd.f32 %v1254, %v1264
        %v1274 = vadd.f32 %v1255, %v1264
        %v1275 = vadd.f32 %v1256, %v1264
        %v1276 = vadd.f32 %v1257, %v1264
        %v1277 = vadd.f32 %v1258, %v1264
        %v1278 = vadd.f32 %v1259, %v1264
        %v1279 = vadd.f32 %v1260, %v1264
        %v1280 = vadd.f32 %v1261, %v1264
        %v1281 = vadd.f32 %v1262, %v1264
        %v1282 = vld [vmem:[%s676] sm:$0xff]
        %v1283 = vld [vmem:[%s676 + $0x8] sm:$0xff]
        %v1284 = vld [vmem:[%s676 + $0x10] sm:$0xff]
        %v1285 = vld [vmem:[%s676 + $0x18] sm:$0xff]
        %v1286 = vld [vmem:[%s676 + $0x20] sm:$0xff]
        %v1287 = vld [vmem:[%s676 + $0x28] sm:$0xff]
        %v1288 = vld [vmem:[%s676 + $0x30] sm:$0xff]
        %v1289 = vld [vmem:[%s676 + $0x38] sm:$0xff]
        %v1290 = vld [vmem:[%s676 + $0x40] sm:$0xff]
        %v1291 = vld [vmem:[%s676 + $0x48] sm:$0xff]
        %v1292 = vld [vmem:[%s676 + $0x50] sm:$0xff]
        %v1293 = vld [vmem:[%s676 + $0x58] sm:$0xff]
        %v1294 = vld [vmem:[%s676 + $0x60] sm:$0xff]
        %v1295 = vld [vmem:[%s676 + $0x68] sm:$0xff]
        %v1296 = vld [vmem:[%s676 + $0x70] sm:$0xff]
        %v1297 = vld [vmem:[%s676 + $0x78] sm:$0xff]
        %v1298 = vpack.c.bf16 %v1267, %v1266
        %v1299 = vpack.c.bf16 %v1269, %v1268
        %v1300 = vpack.c.bf16 %v1271, %v1270
        %v1301 = vpack.c.bf16 %v1273, %v1272
        %v1302 = vpack.c.bf16 %v1275, %v1274
        %v1303 = vpack.c.bf16 %v1277, %v1276
        %v1304 = vpack.c.bf16 %v1279, %v1278
        %v1305 = vpack.c.bf16 %v1281, %v1280
        %v1306 = vld [vmem:[#allocation3] sm:$0xff]
        %v1307 = vld [vmem:[#allocation3 + $0x8] sm:$0xff]
        %v1308 = vld [vmem:[#allocation3 + $0x10] sm:$0xff]
        %v1309 = vld [vmem:[#allocation3 + $0x18] sm:$0xff]
        %v1310 = vld [vmem:[#allocation3 + $0x20] sm:$0xff]
        %v1311 = vld [vmem:[#allocation3 + $0x28] sm:$0xff]
        %v1312 = vld [vmem:[#allocation3 + $0x30] sm:$0xff]
        %v1313 = vld [vmem:[#allocation3 + $0x38] sm:$0xff]
        %v1314 = vld [vmem:[#allocation3 + $0x40] sm:$0xff]
        %v1315 = vld [vmem:[#allocation3 + $0x48] sm:$0xff]
        %v1316 = vld [vmem:[#allocation3 + $0x50] sm:$0xff]
        %v1317 = vld [vmem:[#allocation3 + $0x58] sm:$0xff]
        %v1318 = vld [vmem:[#allocation3 + $0x60] sm:$0xff]
        %v1319 = vld [vmem:[#allocation3 + $0x68] sm:$0xff]
        %v1320 = vld [vmem:[#allocation3 + $0x70] sm:$0xff]
        %v1321 = vld [vmem:[#allocation3 + $0x78] sm:$0xff]
        %v1322 = vld [vmem:[#allocation3 + $0x80] sm:$0xff]
        %v1323 = vld [vmem:[#allocation3 + $0x88] sm:$0xff]
        %v1324 = vld [vmem:[#allocation3 + $0x90] sm:$0xff]
        %v1325 = vld [vmem:[#allocation3 + $0x98] sm:$0xff]
        %v1326 = vld [vmem:[#allocation3 + $0xa0] sm:$0xff]
        %v1327 = vld [vmem:[#allocation3 + $0xa8] sm:$0xff]
        %v1328 = vld [vmem:[#allocation3 + $0xb0] sm:$0xff]
        %v1329 = vld [vmem:[#allocation3 + $0xb8] sm:$0xff]
        %v1330 = vld [vmem:[#allocation3 + $0xc0] sm:$0xff]
        %v1331 = vld [vmem:[#allocation3 + $0xc8] sm:$0xff]
        %v1332 = vld [vmem:[#allocation3 + $0xd0] sm:$0xff]
        %v1333 = vld [vmem:[#allocation3 + $0xd8] sm:$0xff]
        %v1334 = vld [vmem:[#allocation3 + $0xe0] sm:$0xff]
        %v1335 = vld [vmem:[#allocation3 + $0xe8] sm:$0xff]
        %v1336 = vld [vmem:[#allocation3 + $0xf0] sm:$0xff]
        %v1337 = vld [vmem:[#allocation3 + $0xf8] sm:$0xff]
        %v1338 = vld [vmem:[#allocation3 + $0x100] sm:$0xff]
        %v1339 = vld [vmem:[#allocation3 + $0x108] sm:$0xff]
        %v1340 = vld [vmem:[#allocation3 + $0x110] sm:$0xff]
        %v1341 = vld [vmem:[#allocation3 + $0x118] sm:$0xff]
        %v1342 = vld [vmem:[#allocation3 + $0x120] sm:$0xff]
        %v1343 = vld [vmem:[#allocation3 + $0x128] sm:$0xff]
        %v1344 = vld [vmem:[#allocation3 + $0x130] sm:$0xff]
        %v1345 = vld [vmem:[#allocation3 + $0x138] sm:$0xff]
        %v1346 = vld [vmem:[#allocation3 + $0x140] sm:$0xff]
        %v1347 = vld [vmem:[#allocation3 + $0x148] sm:$0xff]
        %v1348 = vld [vmem:[#allocation3 + $0x150] sm:$0xff]
        %v1349 = vld [vmem:[#allocation3 + $0x158] sm:$0xff]
        %v1350 = vld [vmem:[#allocation3 + $0x160] sm:$0xff]
        %v1351 = vld [vmem:[#allocation3 + $0x168] sm:$0xff]
        %v1352 = vld [vmem:[#allocation3 + $0x170] sm:$0xff]
        %v1353 = vld [vmem:[#allocation3 + $0x178] sm:$0xff]
        %v1354 = vld [vmem:[%s7] sm:$0x3f]
        %v1356 = vperm.slane %v1354, 0
        %v1357 = vperm.slane %v1354, 1
        %v1358 = vperm.slane %v1354, 2
        %v1359 = vperm.slane %v1354, 3
        %v1360 = vperm.slane %v1354, 4
        %v1361 = vperm.slane %v1354, 5
        %v1416 = vunpack.c.l.b16 %v1306
        %v1417 = vunpack.c.h.b16 %v1306
        %v1418 = vunpack.c.l.b16 %v1307
        %v1419 = vunpack.c.h.b16 %v1307
        %v1420 = vunpack.c.l.b16 %v1308
        %v1421 = vunpack.c.h.b16 %v1308
        %v1422 = vunpack.c.l.b16 %v1309
        %v1423 = vunpack.c.h.b16 %v1309
        %v1424 = vunpack.c.l.b16 %v1310
        %v1425 = vunpack.c.h.b16 %v1310
        %v1426 = vunpack.c.l.b16 %v1311
        %v1427 = vunpack.c.h.b16 %v1311
        %v1428 = vunpack.c.l.b16 %v1312
        %v1429 = vunpack.c.h.b16 %v1312
        %v1430 = vunpack.c.l.b16 %v1313
        %v1431 = vunpack.c.h.b16 %v1313
        %v1432 = vunpack.c.l.b16 %v1314
        %v1433 = vunpack.c.h.b16 %v1314
        %v1434 = vunpack.c.l.b16 %v1315
        %v1435 = vunpack.c.h.b16 %v1315
        %v1436 = vunpack.c.l.b16 %v1316
        %v1437 = vunpack.c.h.b16 %v1316
        %v1438 = vunpack.c.l.b16 %v1317
        %v1439 = vunpack.c.h.b16 %v1317
        %v1440 = vunpack.c.l.b16 %v1318
        %v1441 = vunpack.c.h.b16 %v1318
        %v1442 = vunpack.c.l.b16 %v1319
        %v1443 = vunpack.c.h.b16 %v1319
        %v1444 = vunpack.c.l.b16 %v1320
        %v1445 = vunpack.c.h.b16 %v1320
        %v1446 = vunpack.c.l.b16 %v1321
        %v1447 = vunpack.c.h.b16 %v1321
        %v1448 = vunpack.c.l.b16 %v1322
        %v1449 = vunpack.c.h.b16 %v1322
        %v1450 = vunpack.c.l.b16 %v1323
        %v1451 = vunpack.c.h.b16 %v1323
        %v1452 = vunpack.c.l.b16 %v1324
        %v1453 = vunpack.c.h.b16 %v1324
        %v1454 = vunpack.c.l.b16 %v1325
        %v1455 = vunpack.c.h.b16 %v1325
        %v1456 = vunpack.c.l.b16 %v1326
        %v1457 = vunpack.c.h.b16 %v1326
        %v1458 = vunpack.c.l.b16 %v1327
        %v1459 = vunpack.c.h.b16 %v1327
        %v1460 = vunpack.c.l.b16 %v1328
        %v1461 = vunpack.c.h.b16 %v1328
        %v1462 = vunpack.c.l.b16 %v1329
        %v1463 = vunpack.c.h.b16 %v1329
        %v1464 = vunpack.c.l.b16 %v1330
        %v1465 = vunpack.c.h.b16 %v1330
        %v1466 = vunpack.c.l.b16 %v1331
        %v1467 = vunpack.c.h.b16 %v1331
        %v1468 = vunpack.c.l.b16 %v1332
        %v1469 = vunpack.c.h.b16 %v1332
        %v1470 = vunpack.c.l.b16 %v1333
        %v1471 = vunpack.c.h.b16 %v1333
        %v1472 = vunpack.c.l.b16 %v1334
        %v1473 = vunpack.c.h.b16 %v1334
        %v1474 = vunpack.c.l.b16 %v1335
        %v1475 = vunpack.c.h.b16 %v1335
        %v1476 = vunpack.c.l.b16 %v1336
        %v1477 = vunpack.c.h.b16 %v1336
        %v1478 = vunpack.c.l.b16 %v1337
        %v1479 = vunpack.c.h.b16 %v1337
        %v1480 = vunpack.c.l.b16 %v1338
        %v1481 = vunpack.c.h.b16 %v1338
        %v1482 = vunpack.c.l.b16 %v1339
        %v1483 = vunpack.c.h.b16 %v1339
        %v1484 = vunpack.c.l.b16 %v1340
        %v1485 = vunpack.c.h.b16 %v1340
        %v1486 = vunpack.c.l.b16 %v1341
        %v1487 = vunpack.c.h.b16 %v1341
        %v1488 = vunpack.c.l.b16 %v1342
        %v1489 = vunpack.c.h.b16 %v1342
        %v1490 = vunpack.c.l.b16 %v1343
        %v1491 = vunpack.c.h.b16 %v1343
        %v1492 = vunpack.c.l.b16 %v1344
        %v1493 = vunpack.c.h.b16 %v1344
        %v1494 = vunpack.c.l.b16 %v1345
        %v1495 = vunpack.c.h.b16 %v1345
        %v1496 = vunpack.c.l.b16 %v1346
        %v1497 = vunpack.c.h.b16 %v1346
        %v1498 = vunpack.c.l.b16 %v1347
        %v1499 = vunpack.c.h.b16 %v1347
        %v1500 = vunpack.c.l.b16 %v1348
        %v1501 = vunpack.c.h.b16 %v1348
        %v1502 = vunpack.c.l.b16 %v1349
        %v1503 = vunpack.c.h.b16 %v1349
        %v1504 = vunpack.c.l.b16 %v1350
        %v1505 = vunpack.c.h.b16 %v1350
        %v1506 = vunpack.c.l.b16 %v1351
        %v1507 = vunpack.c.h.b16 %v1351
        %v1508 = vunpack.c.l.b16 %v1352
        %v1509 = vunpack.c.h.b16 %v1352
        %v1510 = vunpack.c.l.b16 %v1353
        %v1511 = vunpack.c.h.b16 %v1353
        %v1512 = vpack.c.b16 %v1422, %v1416
        %v1513 = vpack.c.b16 %v1423, %v1417
        %v1514 = vpack.c.b16 %v1424, %v1418
        %v1515 = vpack.c.b16 %v1425, %v1419
        %v1516 = vpack.c.b16 %v1426, %v1420
        %v1517 = vpack.c.b16 %v1427, %v1421
        %v1518 = vpack.c.b16 %v1434, %v1428
        %v1519 = vpack.c.b16 %v1435, %v1429
        %v1520 = vpack.c.b16 %v1436, %v1430
        %v1521 = vpack.c.b16 %v1437, %v1431
        %v1522 = vpack.c.b16 %v1438, %v1432
        %v1523 = vpack.c.b16 %v1439, %v1433
        %v1524 = vpack.c.b16 %v1446, %v1440
        %v1525 = vpack.c.b16 %v1447, %v1441
        %v1526 = vpack.c.b16 %v1448, %v1442
        %v1527 = vpack.c.b16 %v1449, %v1443
        %v1528 = vpack.c.b16 %v1450, %v1444
        %v1529 = vpack.c.b16 %v1451, %v1445
        %v1530 = vpack.c.b16 %v1458, %v1452
        %v1531 = vpack.c.b16 %v1459, %v1453
        %v1532 = vpack.c.b16 %v1460, %v1454
        %v1533 = vpack.c.b16 %v1461, %v1455
        %v1534 = vpack.c.b16 %v1462, %v1456
        %v1535 = vpack.c.b16 %v1463, %v1457
        %v1536 = vpack.c.b16 %v1470, %v1464
        %v1537 = vpack.c.b16 %v1471, %v1465
        %v1538 = vpack.c.b16 %v1472, %v1466
        %v1539 = vpack.c.b16 %v1473, %v1467
        %v1540 = vpack.c.b16 %v1474, %v1468
        %v1541 = vpack.c.b16 %v1475, %v1469
        %v1542 = vpack.c.b16 %v1482, %v1476
        %v1543 = vpack.c.b16 %v1483, %v1477
        %v1544 = vpack.c.b16 %v1484, %v1478
        %v1545 = vpack.c.b16 %v1485, %v1479
        %v1546 = vpack.c.b16 %v1486, %v1480
        %v1547 = vpack.c.b16 %v1487, %v1481
        %v1548 = vpack.c.b16 %v1494, %v1488
        %v1549 = vpack.c.b16 %v1495, %v1489
        %v1550 = vpack.c.b16 %v1496, %v1490
        %v1551 = vpack.c.b16 %v1497, %v1491
        %v1552 = vpack.c.b16 %v1498, %v1492
        %v1553 = vpack.c.b16 %v1499, %v1493
        %v1554 = vpack.c.b16 %v1506, %v1500
        %v1555 = vpack.c.b16 %v1507, %v1501
        %v1556 = vpack.c.b16 %v1508, %v1502
        %v1557 = vpack.c.b16 %v1509, %v1503
        %v1558 = vpack.c.b16 %v1510, %v1504
        %v1559 = vpack.c.b16 %v1511, %v1505
        %1608 = vmatpush.bf16.msra.mxu0 %v1554
        %1609 = vmatpush.bf16.msra.mxu0 %v1548
        %1610 = vmatpush.bf16.msra.mxu0 %v1542
        %1611 = vmatpush.bf16.msra.mxu0 %v1536
        %1612 = vmatpush.bf16.msra.mxu0 %v1530
        %1613 = vmatpush.bf16.msra.mxu0 %v1524
        %1614 = vmatpush.bf16.msra.mxu0 %v1518
        %1615 = vmatpush.bf16.msra.mxu0 %v1512
        %1616 = vmatmul.bf16.gmra.mxu0 %v1298
        %v1617 = vpop.f32.mrf.mxu0
        %v1618 = vadd.f32 %v1356, %v1617
        %v1619 = vpop.f32.mrf.mxu0
        %v1620 = vadd.f32 %v1356, %v1619
        %1621 = vmatmul.bf16.gmra.mxu0 %v1299
        %v1622 = vpop.f32.mrf.mxu0
        %v1623 = vadd.f32 %v1356, %v1622
        %v1624 = vpop.f32.mrf.mxu0
        %v1625 = vadd.f32 %v1356, %v1624
        %1626 = vmatmul.bf16.gmra.mxu0 %v1300
        %v1627 = vpop.f32.mrf.mxu0
        %v1628 = vadd.f32 %v1356, %v1627
        %v1629 = vpop.f32.mrf.mxu0
        %v1630 = vadd.f32 %v1356, %v1629
        %1631 = vmatmul.bf16.gmra.mxu0 %v1301
        %v1632 = vpop.f32.mrf.mxu0
        %v1633 = vadd.f32 %v1356, %v1632
        %v1634 = vpop.f32.mrf.mxu0
        %v1635 = vadd.f32 %v1356, %v1634
        %1636 = vmatmul.bf16.gmra.mxu0 %v1302
        %v1637 = vpop.f32.mrf.mxu0
        %v1638 = vadd.f32 %v1356, %v1637
        %v1639 = vpop.f32.mrf.mxu0
        %v1640 = vadd.f32 %v1356, %v1639
        %1641 = vmatmul.bf16.gmra.mxu0 %v1303
        %v1642 = vpop.f32.mrf.mxu0
        %v1643 = vadd.f32 %v1356, %v1642
        %v1644 = vpop.f32.mrf.mxu0
        %v1645 = vadd.f32 %v1356, %v1644
        %1646 = vmatmul.bf16.gmra.mxu0 %v1304
        %v1647 = vpop.f32.mrf.mxu0
        %v1648 = vadd.f32 %v1356, %v1647
        %v1649 = vpop.f32.mrf.mxu0
        %v1650 = vadd.f32 %v1356, %v1649
        %1651 = vmatmul.bf16.gmra.mxu0 %v1305
        %v1652 = vpop.f32.mrf.mxu0
        %v1653 = vadd.f32 %v1356, %v1652
        %v1654 = vpop.f32.mrf.mxu0
        %v1655 = vadd.f32 %v1356, %v1654
        %1656 = vdwg.mxu0
        %1657 = vmatpush.bf16.msra.mxu0 %v1555
        %1658 = vmatpush.bf16.msra.mxu0 %v1549
        %1659 = vmatpush.bf16.msra.mxu0 %v1543
        %1660 = vmatpush.bf16.msra.mxu0 %v1537
        %1661 = vmatpush.bf16.msra.mxu0 %v1531
        %1662 = vmatpush.bf16.msra.mxu0 %v1525
        %1663 = vmatpush.bf16.msra.mxu0 %v1519
        %1664 = vmatpush.bf16.msra.mxu0 %v1513
        %1665 = vmatmul.bf16.gmra.mxu0 %v1298
        %v1666 = vpop.f32.mrf.mxu0
        %v1667 = vadd.f32 %v1357, %v1666
        %v1668 = vpop.f32.mrf.mxu0
        %v1669 = vadd.f32 %v1357, %v1668
        %1670 = vmatmul.bf16.gmra.mxu0 %v1299
        %v1671 = vpop.f32.mrf.mxu0
        %v1672 = vadd.f32 %v1357, %v1671
        %v1673 = vpop.f32.mrf.mxu0
        %v1674 = vadd.f32 %v1357, %v1673
        %1675 = vmatmul.bf16.gmra.mxu0 %v1300
        %v1676 = vpop.f32.mrf.mxu0
        %v1677 = vadd.f32 %v1357, %v1676
        %v1678 = vpop.f32.mrf.mxu0
        %v1679 = vadd.f32 %v1357, %v1678
        %1680 = vmatmul.bf16.gmra.mxu0 %v1301
        %v1681 = vpop.f32.mrf.mxu0
        %v1682 = vadd.f32 %v1357, %v1681
        %v1683 = vpop.f32.mrf.mxu0
        %v1684 = vadd.f32 %v1357, %v1683
        %1685 = vmatmul.bf16.gmra.mxu0 %v1302
        %v1686 = vpop.f32.mrf.mxu0
        %v1687 = vadd.f32 %v1357, %v1686
        %v1688 = vpop.f32.mrf.mxu0
        %v1689 = vadd.f32 %v1357, %v1688
        %1690 = vmatmul.bf16.gmra.mxu0 %v1303
        %v1691 = vpop.f32.mrf.mxu0
        %v1692 = vadd.f32 %v1357, %v1691
        %v1693 = vpop.f32.mrf.mxu0
        %v1694 = vadd.f32 %v1357, %v1693
        %1695 = vmatmul.bf16.gmra.mxu0 %v1304
        %v1696 = vpop.f32.mrf.mxu0
        %v1697 = vadd.f32 %v1357, %v1696
        %v1698 = vpop.f32.mrf.mxu0
        %v1699 = vadd.f32 %v1357, %v1698
        %1700 = vmatmul.bf16.gmra.mxu0 %v1305
        %v1701 = vpop.f32.mrf.mxu0
        %v1702 = vadd.f32 %v1357, %v1701
        %v1703 = vpop.f32.mrf.mxu0
        %v1704 = vadd.f32 %v1357, %v1703
        %1705 = vdwg.mxu0
        %1706 = vmatpush.bf16.msra.mxu0 %v1556
        %1707 = vmatpush.bf16.msra.mxu0 %v1550
        %1708 = vmatpush.bf16.msra.mxu0 %v1544
        %1709 = vmatpush.bf16.msra.mxu0 %v1538
        %1710 = vmatpush.bf16.msra.mxu0 %v1532
        %1711 = vmatpush.bf16.msra.mxu0 %v1526
        %1712 = vmatpush.bf16.msra.mxu0 %v1520
        %1713 = vmatpush.bf16.msra.mxu0 %v1514
        %1714 = vmatmul.bf16.gmra.mxu0 %v1298
        %v1715 = vpop.f32.mrf.mxu0
        %v1716 = vadd.f32 %v1358, %v1715
        %v1717 = vpop.f32.mrf.mxu0
        %v1718 = vadd.f32 %v1358, %v1717
        %1719 = vmatmul.bf16.gmra.mxu0 %v1299
        %v1720 = vpop.f32.mrf.mxu0
        %v1721 = vadd.f32 %v1358, %v1720
        %v1722 = vpop.f32.mrf.mxu0
        %v1723 = vadd.f32 %v1358, %v1722
        %1724 = vmatmul.bf16.gmra.mxu0 %v1300
        %v1725 = vpop.f32.mrf.mxu0
        %v1726 = vadd.f32 %v1358, %v1725
        %v1727 = vpop.f32.mrf.mxu0
        %v1728 = vadd.f32 %v1358, %v1727
        %1729 = vmatmul.bf16.gmra.mxu0 %v1301
        %v1730 = vpop.f32.mrf.mxu0
        %v1731 = vadd.f32 %v1358, %v1730
        %v1732 = vpop.f32.mrf.mxu0
        %v1733 = vadd.f32 %v1358, %v1732
        %1734 = vmatmul.bf16.gmra.mxu0 %v1302
        %v1735 = vpop.f32.mrf.mxu0
        %v1736 = vadd.f32 %v1358, %v1735
        %v1737 = vpop.f32.mrf.mxu0
        %v1738 = vadd.f32 %v1358, %v1737
        %1739 = vmatmul.bf16.gmra.mxu0 %v1303
        %v1740 = vpop.f32.mrf.mxu0
        %v1741 = vadd.f32 %v1358, %v1740
        %v1742 = vpop.f32.mrf.mxu0
        %v1743 = vadd.f32 %v1358, %v1742
        %1744 = vmatmul.bf16.gmra.mxu0 %v1304
        %v1745 = vpop.f32.mrf.mxu0
        %v1746 = vadd.f32 %v1358, %v1745
        %v1747 = vpop.f32.mrf.mxu0
        %v1748 = vadd.f32 %v1358, %v1747
        %1749 = vmatmul.bf16.gmra.mxu0 %v1305
        %v1750 = vpop.f32.mrf.mxu0
        %v1751 = vadd.f32 %v1358, %v1750
        %v1752 = vpop.f32.mrf.mxu0
        %v1753 = vadd.f32 %v1358, %v1752
        %1754 = vdwg.mxu0
        %1755 = vmatpush.bf16.msra.mxu0 %v1557
        %1756 = vmatpush.bf16.msra.mxu0 %v1551
        %1757 = vmatpush.bf16.msra.mxu0 %v1545
        %1758 = vmatpush.bf16.msra.mxu0 %v1539
        %1759 = vmatpush.bf16.msra.mxu0 %v1533
        %1760 = vmatpush.bf16.msra.mxu0 %v1527
        %1761 = vmatpush.bf16.msra.mxu0 %v1521
        %1762 = vmatpush.bf16.msra.mxu0 %v1515
        %1763 = vmatmul.bf16.gmra.mxu0 %v1298
        %v1764 = vpop.f32.mrf.mxu0
        %v1765 = vadd.f32 %v1359, %v1764
        %v1766 = vpop.f32.mrf.mxu0
        %v1767 = vadd.f32 %v1359, %v1766
        %1768 = vmatmul.bf16.gmra.mxu0 %v1299
        %v1769 = vpop.f32.mrf.mxu0
        %v1770 = vadd.f32 %v1359, %v1769
        %v1771 = vpop.f32.mrf.mxu0
        %v1772 = vadd.f32 %v1359, %v1771
        %1773 = vmatmul.bf16.gmra.mxu0 %v1300
        %v1774 = vpop.f32.mrf.mxu0
        %v1775 = vadd.f32 %v1359, %v1774
        %v1776 = vpop.f32.mrf.mxu0
        %v1777 = vadd.f32 %v1359, %v1776
        %1778 = vmatmul.bf16.gmra.mxu0 %v1301
        %v1779 = vpop.f32.mrf.mxu0
        %v1780 = vadd.f32 %v1359, %v1779
        %v1781 = vpop.f32.mrf.mxu0
        %v1782 = vadd.f32 %v1359, %v1781
        %1783 = vmatmul.bf16.gmra.mxu0 %v1302
        %v1784 = vpop.f32.mrf.mxu0
        %v1785 = vadd.f32 %v1359, %v1784
        %v1786 = vpop.f32.mrf.mxu0
        %v1787 = vadd.f32 %v1359, %v1786
        %1788 = vmatmul.bf16.gmra.mxu0 %v1303
        %v1789 = vpop.f32.mrf.mxu0
        %v1790 = vadd.f32 %v1359, %v1789
        %v1791 = vpop.f32.mrf.mxu0
        %v1792 = vadd.f32 %v1359, %v1791
        %1793 = vmatmul.bf16.gmra.mxu0 %v1304
        %v1794 = vpop.f32.mrf.mxu0
        %v1795 = vadd.f32 %v1359, %v1794
        %v1796 = vpop.f32.mrf.mxu0
        %v1797 = vadd.f32 %v1359, %v1796
        %1798 = vmatmul.bf16.gmra.mxu0 %v1305
        %v1799 = vpop.f32.mrf.mxu0
        %v1800 = vadd.f32 %v1359, %v1799
        %v1801 = vpop.f32.mrf.mxu0
        %v1802 = vadd.f32 %v1359, %v1801
        %1803 = vdwg.mxu0
        %1804 = vmatpush.bf16.msra.mxu0 %v1558
        %1805 = vmatpush.bf16.msra.mxu0 %v1552
        %1806 = vmatpush.bf16.msra.mxu0 %v1546
        %1807 = vmatpush.bf16.msra.mxu0 %v1540
        %1808 = vmatpush.bf16.msra.mxu0 %v1534
        %1809 = vmatpush.bf16.msra.mxu0 %v1528
        %1810 = vmatpush.bf16.msra.mxu0 %v1522
        %1811 = vmatpush.bf16.msra.mxu0 %v1516
        %1812 = vmatmul.bf16.gmra.mxu0 %v1298
        %v1813 = vpop.f32.mrf.mxu0
        %v1814 = vadd.f32 %v1360, %v1813
        %v1815 = vpop.f32.mrf.mxu0
        %v1816 = vadd.f32 %v1360, %v1815
        %1817 = vmatmul.bf16.gmra.mxu0 %v1299
        %v1818 = vpop.f32.mrf.mxu0
        %v1819 = vadd.f32 %v1360, %v1818
        %v1820 = vpop.f32.mrf.mxu0
        %v1821 = vadd.f32 %v1360, %v1820
        %1822 = vmatmul.bf16.gmra.mxu0 %v1300
        %v1823 = vpop.f32.mrf.mxu0
        %v1824 = vadd.f32 %v1360, %v1823
        %v1825 = vpop.f32.mrf.mxu0
        %v1826 = vadd.f32 %v1360, %v1825
        %1827 = vmatmul.bf16.gmra.mxu0 %v1301
        %v1828 = vpop.f32.mrf.mxu0
        %v1829 = vadd.f32 %v1360, %v1828
        %v1830 = vpop.f32.mrf.mxu0
        %v1831 = vadd.f32 %v1360, %v1830
        %1832 = vmatmul.bf16.gmra.mxu0 %v1302
        %v1833 = vpop.f32.mrf.mxu0
        %v1834 = vadd.f32 %v1360, %v1833
        %v1835 = vpop.f32.mrf.mxu0
        %v1836 = vadd.f32 %v1360, %v1835
        %1837 = vmatmul.bf16.gmra.mxu0 %v1303
        %v1838 = vpop.f32.mrf.mxu0
        %v1839 = vadd.f32 %v1360, %v1838
        %v1840 = vpop.f32.mrf.mxu0
        %v1841 = vadd.f32 %v1360, %v1840
        %1842 = vmatmul.bf16.gmra.mxu0 %v1304
        %v1843 = vpop.f32.mrf.mxu0
        %v1844 = vadd.f32 %v1360, %v1843
        %v1845 = vpop.f32.mrf.mxu0
        %v1846 = vadd.f32 %v1360, %v1845
        %1847 = vmatmul.bf16.gmra.mxu0 %v1305
        %v1848 = vpop.f32.mrf.mxu0
        %v1849 = vadd.f32 %v1360, %v1848
        %v1850 = vpop.f32.mrf.mxu0
        %v1851 = vadd.f32 %v1360, %v1850
        %1852 = vdwg.mxu0
        %1853 = vmatpush.bf16.msra.mxu0 %v1559
        %1854 = vmatpush.bf16.msra.mxu0 %v1553
        %1855 = vmatpush.bf16.msra.mxu0 %v1547
        %1856 = vmatpush.bf16.msra.mxu0 %v1541
        %1857 = vmatpush.bf16.msra.mxu0 %v1535
        %1858 = vmatpush.bf16.msra.mxu0 %v1529
        %1859 = vmatpush.bf16.msra.mxu0 %v1523
        %1860 = vmatpush.bf16.msra.mxu0 %v1517
        %1861 = vmatmul.bf16.gmra.mxu0 %v1298
        %v1862 = vpop.f32.mrf.mxu0
        %v1863 = vadd.f32 %v1361, %v1862
        %v1864 = vpop.f32.mrf.mxu0
        %v1865 = vadd.f32 %v1361, %v1864
        %1866 = vmatmul.bf16.gmra.mxu0 %v1299
        %v1867 = vpop.f32.mrf.mxu0
        %v1868 = vadd.f32 %v1361, %v1867
        %v1869 = vpop.f32.mrf.mxu0
        %v1870 = vadd.f32 %v1361, %v1869
        %1871 = vmatmul.bf16.gmra.mxu0 %v1300
        %v1872 = vpop.f32.mrf.mxu0
        %v1873 = vadd.f32 %v1361, %v1872
        %v1874 = vpop.f32.mrf.mxu0
        %v1875 = vadd.f32 %v1361, %v1874
        %1876 = vmatmul.bf16.gmra.mxu0 %v1301
        %v1877 = vpop.f32.mrf.mxu0
        %v1878 = vadd.f32 %v1361, %v1877
        %v1879 = vpop.f32.mrf.mxu0
        %v1880 = vadd.f32 %v1361, %v1879
        %1881 = vmatmul.bf16.gmra.mxu0 %v1302
        %v1882 = vpop.f32.mrf.mxu0
        %v1883 = vadd.f32 %v1361, %v1882
        %v1884 = vpop.f32.mrf.mxu0
        %v1885 = vadd.f32 %v1361, %v1884
        %1886 = vmatmul.bf16.gmra.mxu0 %v1303
        %v1887 = vpop.f32.mrf.mxu0
        %v1888 = vadd.f32 %v1361, %v1887
        %v1889 = vpop.f32.mrf.mxu0
        %v1890 = vadd.f32 %v1361, %v1889
        %1891 = vmatmul.bf16.gmra.mxu0 %v1304
        %v1892 = vpop.f32.mrf.mxu0
        %v1893 = vadd.f32 %v1361, %v1892
        %v1894 = vpop.f32.mrf.mxu0
        %v1895 = vadd.f32 %v1361, %v1894
        %1896 = vmatmul.bf16.gmra.mxu0 %v1305
        %v1897 = vpop.f32.mrf.mxu0
        %v1898 = vadd.f32 %v1361, %v1897
        %v1899 = vpop.f32.mrf.mxu0
        %v1900 = vadd.f32 %v1361, %v1899
        %1901 = vdwg.mxu0
        %v1902 = vpack.c.bf16 %v1620, %v1618
        %v1903 = vpack.c.bf16 %v1625, %v1623
        %v1904 = vpack.c.bf16 %v1630, %v1628
        %v1905 = vpack.c.bf16 %v1635, %v1633
        %v1906 = vpack.c.bf16 %v1640, %v1638
        %v1907 = vpack.c.bf16 %v1645, %v1643
        %v1908 = vpack.c.bf16 %v1650, %v1648
        %v1909 = vpack.c.bf16 %v1655, %v1653
        %v1910 = vpack.c.bf16 %v1718, %v1716
        %v1911 = vpack.c.bf16 %v1723, %v1721
        %v1912 = vpack.c.bf16 %v1728, %v1726
        %v1913 = vpack.c.bf16 %v1733, %v1731
        %v1914 = vpack.c.bf16 %v1738, %v1736
        %v1915 = vpack.c.bf16 %v1743, %v1741
        %v1916 = vpack.c.bf16 %v1748, %v1746
        %v1917 = vpack.c.bf16 %v1753, %v1751
        %1918 = vmatpush.bf16.xpose.msra.mxu0 %v1917
        %1919 = vmatpush.bf16.xpose.msra.mxu0 %v1916
        %1920 = vmatpush.bf16.xpose.msra.mxu0 %v1915
        %1921 = vmatpush.bf16.xpose.msra.mxu0 %v1914
        %1922 = vmatpush.bf16.xpose.msra.mxu0 %v1913
        %1923 = vmatpush.bf16.xpose.msra.mxu0 %v1912
        %1924 = vmatpush.bf16.xpose.msra.mxu0 %v1911
        %1925 = vmatpush.bf16.xpose.msra.mxu0 %v1910
        %1926 = vmatmul.bf16.gmra.mxu0 %v1902
        %v1927 = vpop.f32.mrf.mxu0
        %v1928 = vadd.f32 0.0, %v1927
        %v1929 = vpop.f32.mrf.mxu0
        %v1930 = vadd.f32 0.0, %v1929
        %1931 = vmatmul.bf16.gmra.mxu0 %v1903
        %v1932 = vpop.f32.mrf.mxu0
        %v1933 = vadd.f32 0.0, %v1932
        %v1934 = vpop.f32.mrf.mxu0
        %v1935 = vadd.f32 0.0, %v1934
        %1936 = vmatmul.bf16.gmra.mxu0 %v1904
        %v1937 = vpop.f32.mrf.mxu0
        %v1938 = vadd.f32 0.0, %v1937
        %v1939 = vpop.f32.mrf.mxu0
        %v1940 = vadd.f32 0.0, %v1939
        %1941 = vmatmul.bf16.gmra.mxu0 %v1905
        %v1942 = vpop.f32.mrf.mxu0
        %v1943 = vadd.f32 0.0, %v1942
        %v1944 = vpop.f32.mrf.mxu0
        %v1945 = vadd.f32 0.0, %v1944
        %1946 = vmatmul.bf16.gmra.mxu0 %v1906
        %v1947 = vpop.f32.mrf.mxu0
        %v1948 = vadd.f32 0.0, %v1947
        %v1949 = vpop.f32.mrf.mxu0
        %v1950 = vadd.f32 0.0, %v1949
        %1951 = vmatmul.bf16.gmra.mxu0 %v1907
        %v1952 = vpop.f32.mrf.mxu0
        %v1953 = vadd.f32 0.0, %v1952
        %v1954 = vpop.f32.mrf.mxu0
        %v1955 = vadd.f32 0.0, %v1954
        %1956 = vmatmul.bf16.gmra.mxu0 %v1908
        %v1957 = vpop.f32.mrf.mxu0
        %v1958 = vadd.f32 0.0, %v1957
        %v1959 = vpop.f32.mrf.mxu0
        %v1960 = vadd.f32 0.0, %v1959
        %1961 = vmatmul.bf16.gmra.mxu0 %v1909
        %v1962 = vpop.f32.mrf.mxu0
        %v1963 = vadd.f32 0.0, %v1962
        %v1964 = vpop.f32.mrf.mxu0
        %v1965 = vadd.f32 0.0, %v1964
        %1966 = vdwg.mxu0
        %v1967 = vmul.f32 %v1928, 0.125
        %v1968 = vmul.f32 %v1930, 0.125
        %v1969 = vmul.f32 %v1933, 0.125
        %v1970 = vmul.f32 %v1935, 0.125
        %v1971 = vmul.f32 %v1938, 0.125
        %v1972 = vmul.f32 %v1940, 0.125
        %v1973 = vmul.f32 %v1943, 0.125
        %v1974 = vmul.f32 %v1945, 0.125
        %v1975 = vmul.f32 %v1948, 0.125
        %v1976 = vmul.f32 %v1950, 0.125
        %v1977 = vmul.f32 %v1953, 0.125
        %v1978 = vmul.f32 %v1955, 0.125
        %v1979 = vmul.f32 %v1958, 0.125
        %v1980 = vmul.f32 %v1960, 0.125
        %v1981 = vmul.f32 %v1963, 0.125
        %v1982 = vmul.f32 %v1965, 0.125
        %v1983 = vadd.f32 %v1967, %v1282
        %v1984 = vadd.f32 %v1968, %v1283
        %v1985 = vadd.f32 %v1969, %v1284
        %v1986 = vadd.f32 %v1970, %v1285
        %v1987 = vadd.f32 %v1971, %v1286
        %v1988 = vadd.f32 %v1972, %v1287
        %v1989 = vadd.f32 %v1973, %v1288
        %v1990 = vadd.f32 %v1974, %v1289
        %v1991 = vadd.f32 %v1975, %v1290
        %v1992 = vadd.f32 %v1976, %v1291
        %v1993 = vadd.f32 %v1977, %v1292
        %v1994 = vadd.f32 %v1978, %v1293
        %v1995 = vadd.f32 %v1979, %v1294
        %v1996 = vadd.f32 %v1980, %v1295
        %v1997 = vadd.f32 %v1981, %v1296
        %v1998 = vadd.f32 %v1982, %v1297
        %1999 = vmax.xlane.f32.xlu0 %v1983
        %v2000 = vpop.xlane.xlu0 %1999
        %2001 = vmax.xlane.f32.xlu0 %v1984
        %v2002 = vpop.xlane.xlu0 %2001
        %2003 = vmax.xlane.f32.xlu0 %v1985
        %v2004 = vpop.xlane.xlu0 %2003
        %2005 = vmax.xlane.f32.xlu0 %v1986
        %v2006 = vpop.xlane.xlu0 %2005
        %2007 = vmax.xlane.f32.xlu0 %v1987
        %v2008 = vpop.xlane.xlu0 %2007
        %2009 = vmax.xlane.f32.xlu0 %v1988
        %v2010 = vpop.xlane.xlu0 %2009
        %2011 = vmax.xlane.f32.xlu0 %v1989
        %v2012 = vpop.xlane.xlu0 %2011
        %2013 = vmax.xlane.f32.xlu0 %v1990
        %v2014 = vpop.xlane.xlu0 %2013
        %2015 = vmax.xlane.f32.xlu0 %v1991
        %v2016 = vpop.xlane.xlu0 %2015
        %2017 = vmax.xlane.f32.xlu0 %v1992
        %v2018 = vpop.xlane.xlu0 %2017
        %2019 = vmax.xlane.f32.xlu0 %v1993
        %v2020 = vpop.xlane.xlu0 %2019
        %2021 = vmax.xlane.f32.xlu0 %v1994
        %v2022 = vpop.xlane.xlu0 %2021
        %2023 = vmax.xlane.f32.xlu0 %v1995
        %v2024 = vpop.xlane.xlu0 %2023
        %2025 = vmax.xlane.f32.xlu0 %v1996
        %v2026 = vpop.xlane.xlu0 %2025
        %2027 = vmax.xlane.f32.xlu0 %v1997
        %v2028 = vpop.xlane.xlu0 %2027
        %2029 = vmax.xlane.f32.xlu0 %v1998
        %v2030 = vpop.xlane.xlu0 %2029
        %v2031 = vsub.f32 %v1983, %v2000
        %v2032 = vsub.f32 %v1984, %v2002
        %v2033 = vsub.f32 %v1985, %v2004
        %v2034 = vsub.f32 %v1986, %v2006
        %v2035 = vsub.f32 %v1987, %v2008
        %v2036 = vsub.f32 %v1988, %v2010
        %v2037 = vsub.f32 %v1989, %v2012
        %v2038 = vsub.f32 %v1990, %v2014
        %v2039 = vsub.f32 %v1991, %v2016
        %v2040 = vsub.f32 %v1992, %v2018
        %v2041 = vsub.f32 %v1993, %v2020
        %v2042 = vsub.f32 %v1994, %v2022
        %v2043 = vsub.f32 %v1995, %v2024
        %v2044 = vsub.f32 %v1996, %v2026
        %v2045 = vsub.f32 %v1997, %v2028
        %v2046 = vsub.f32 %v1998, %v2030
        %v2047 = vmul.f32 %v2031, 1.442695
        %v2048 = vpow.pop %v2047
        %v2049 = vmul.f32 %v2032, 1.442695
        %v2050 = vpow.pop %v2049
        %v2051 = vmul.f32 %v2033, 1.442695
        %v2052 = vpow.pop %v2051
        %v2053 = vmul.f32 %v2034, 1.442695
        %v2054 = vpow.pop %v2053
        %v2055 = vmul.f32 %v2035, 1.442695
        %v2056 = vpow.pop %v2055
        %v2057 = vmul.f32 %v2036, 1.442695
        %v2058 = vpow.pop %v2057
        %v2059 = vmul.f32 %v2037, 1.442695
        %v2060 = vpow.pop %v2059
        %v2061 = vmul.f32 %v2038, 1.442695
        %v2062 = vpow.pop %v2061
        %v2063 = vmul.f32 %v2039, 1.442695
        %v2064 = vpow.pop %v2063
        %v2065 = vmul.f32 %v2040, 1.442695
        %v2066 = vpow.pop %v2065
        %v2067 = vmul.f32 %v2041, 1.442695
        %v2068 = vpow.pop %v2067
        %v2069 = vmul.f32 %v2042, 1.442695
        %v2070 = vpow.pop %v2069
        %v2071 = vmul.f32 %v2043, 1.442695
        %v2072 = vpow.pop %v2071
        %v2073 = vmul.f32 %v2044, 1.442695
        %v2074 = vpow.pop %v2073
        %v2075 = vmul.f32 %v2045, 1.442695
        %v2076 = vpow.pop %v2075
        %v2077 = vmul.f32 %v2046, 1.442695
        %v2078 = vpow.pop %v2077
        %2079 = vadd.xlane.f32.xlu0 %v2048
        %v2080 = vpop.xlane.xlu0 %2079
        %2081 = vadd.xlane.f32.xlu0 %v2050
        %v2082 = vpop.xlane.xlu0 %2081
        %2083 = vadd.xlane.f32.xlu0 %v2052
        %v2084 = vpop.xlane.xlu0 %2083
        %2085 = vadd.xlane.f32.xlu0 %v2054
        %v2086 = vpop.xlane.xlu0 %2085
        %2087 = vadd.xlane.f32.xlu0 %v2056
        %v2088 = vpop.xlane.xlu0 %2087
        %2089 = vadd.xlane.f32.xlu0 %v2058
        %v2090 = vpop.xlane.xlu0 %2089
        %2091 = vadd.xlane.f32.xlu0 %v2060
        %v2092 = vpop.xlane.xlu0 %2091
        %2093 = vadd.xlane.f32.xlu0 %v2062
        %v2094 = vpop.xlane.xlu0 %2093
        %2095 = vadd.xlane.f32.xlu0 %v2064
        %v2096 = vpop.xlane.xlu0 %2095
        %2097 = vadd.xlane.f32.xlu0 %v2066
        %v2098 = vpop.xlane.xlu0 %2097
        %2099 = vadd.xlane.f32.xlu0 %v2068
        %v2100 = vpop.xlane.xlu0 %2099
        %2101 = vadd.xlane.f32.xlu0 %v2070
        %v2102 = vpop.xlane.xlu0 %2101
        %2103 = vadd.xlane.f32.xlu0 %v2072
        %v2104 = vpop.xlane.xlu0 %2103
        %2105 = vadd.xlane.f32.xlu0 %v2074
        %v2106 = vpop.xlane.xlu0 %2105
        %2107 = vadd.xlane.f32.xlu0 %v2076
        %v2108 = vpop.xlane.xlu0 %2107
        %2109 = vadd.xlane.f32.xlu0 %v2078
        %v2110 = vpop.xlane.xlu0 %2109
        %v2111 = vrcp.pop %v2080
        %v2112 = vrcp.pop %v2082
        %v2113 = vrcp.pop %v2084
        %v2114 = vrcp.pop %v2086
        %v2115 = vrcp.pop %v2088
        %v2116 = vrcp.pop %v2090
        %v2117 = vrcp.pop %v2092
        %v2118 = vrcp.pop %v2094
        %v2119 = vrcp.pop %v2096
        %v2120 = vrcp.pop %v2098
        %v2121 = vrcp.pop %v2100
        %v2122 = vrcp.pop %v2102
        %v2123 = vrcp.pop %v2104
        %v2124 = vrcp.pop %v2106
        %v2125 = vrcp.pop %v2108
        %v2126 = vrcp.pop %v2110
        %v2127 = vmul.f32 %v2048, %v2111
        %v2128 = vmul.f32 %v2050, %v2112
        %v2129 = vmul.f32 %v2052, %v2113
        %v2130 = vmul.f32 %v2054, %v2114
        %v2131 = vmul.f32 %v2056, %v2115
        %v2132 = vmul.f32 %v2058, %v2116
        %v2133 = vmul.f32 %v2060, %v2117
        %v2134 = vmul.f32 %v2062, %v2118
        %v2135 = vmul.f32 %v2064, %v2119
        %v2136 = vmul.f32 %v2066, %v2120
        %v2137 = vmul.f32 %v2068, %v2121
        %v2138 = vmul.f32 %v2070, %v2122
        %v2139 = vmul.f32 %v2072, %v2123
        %v2140 = vmul.f32 %v2074, %v2124
        %v2141 = vmul.f32 %v2076, %v2125
        %v2142 = vmul.f32 %v2078, %v2126
        %v2143 = vpack.c.bf16 %v2128, %v2127
        %v2144 = vpack.c.bf16 %v2130, %v2129
        %v2145 = vpack.c.bf16 %v2132, %v2131
        %v2146 = vpack.c.bf16 %v2134, %v2133
        %v2147 = vpack.c.bf16 %v2136, %v2135
        %v2148 = vpack.c.bf16 %v2138, %v2137
        %v2149 = vpack.c.bf16 %v2140, %v2139
        %v2150 = vpack.c.bf16 %v2142, %v2141
        %v2151 = vpack.c.bf16 %v1816, %v1814
        %v2152 = vpack.c.bf16 %v1821, %v1819
        %v2153 = vpack.c.bf16 %v1826, %v1824
        %v2154 = vpack.c.bf16 %v1831, %v1829
        %v2155 = vpack.c.bf16 %v1836, %v1834
        %v2156 = vpack.c.bf16 %v1841, %v1839
        %v2157 = vpack.c.bf16 %v1846, %v1844
        %v2158 = vpack.c.bf16 %v1851, %v1849
        %2159 = vmatpush.bf16.msra.mxu0 %v2158
        %2160 = vmatpush.bf16.msra.mxu0 %v2157
        %2161 = vmatpush.bf16.msra.mxu0 %v2156
        %2162 = vmatpush.bf16.msra.mxu0 %v2155
        %2163 = vmatpush.bf16.msra.mxu0 %v2154
        %2164 = vmatpush.bf16.msra.mxu0 %v2153
        %2165 = vmatpush.bf16.msra.mxu0 %v2152
        %2166 = vmatpush.bf16.msra.mxu0 %v2151
        %2167 = vmatmul.bf16.gmra.mxu0 %v2143
        %v2168 = vpop.f32.mrf.mxu0
        %v2169 = vadd.f32 0.0, %v2168
        %v2170 = vpop.f32.mrf.mxu0
        %v2171 = vadd.f32 0.0, %v2170
        %2172 = vmatmul.bf16.gmra.mxu0 %v2144
        %v2173 = vpop.f32.mrf.mxu0
        %v2174 = vadd.f32 0.0, %v2173
        %v2175 = vpop.f32.mrf.mxu0
        %v2176 = vadd.f32 0.0, %v2175
        %2177 = vmatmul.bf16.gmra.mxu0 %v2145
        %v2178 = vpop.f32.mrf.mxu0
        %v2179 = vadd.f32 0.0, %v2178
        %v2180 = vpop.f32.mrf.mxu0
        %v2181 = vadd.f32 0.0, %v2180
        %2182 = vmatmul.bf16.gmra.mxu0 %v2146
        %v2183 = vpop.f32.mrf.mxu0
        %v2184 = vadd.f32 0.0, %v2183
        %v2185 = vpop.f32.mrf.mxu0
        %v2186 = vadd.f32 0.0, %v2185
        %2187 = vmatmul.bf16.gmra.mxu0 %v2147
        %v2188 = vpop.f32.mrf.mxu0
        %v2189 = vadd.f32 0.0, %v2188
        %v2190 = vpop.f32.mrf.mxu0
        %v2191 = vadd.f32 0.0, %v2190
        %2192 = vmatmul.bf16.gmra.mxu0 %v2148
        %v2193 = vpop.f32.mrf.mxu0
        %v2194 = vadd.f32 0.0, %v2193
        %v2195 = vpop.f32.mrf.mxu0
        %v2196 = vadd.f32 0.0, %v2195
        %2197 = vmatmul.bf16.gmra.mxu0 %v2149
        %v2198 = vpop.f32.mrf.mxu0
        %v2199 = vadd.f32 0.0, %v2198
        %v2200 = vpop.f32.mrf.mxu0
        %v2201 = vadd.f32 0.0, %v2200
        %2202 = vmatmul.bf16.gmra.mxu0 %v2150
        %v2203 = vpop.f32.mrf.mxu0
        %v2204 = vadd.f32 0.0, %v2203
        %v2205 = vpop.f32.mrf.mxu0
        %v2206 = vadd.f32 0.0, %v2205
        %2207 = vdwg.mxu0
        %v2208 = vpack.c.bf16 %v2169, %v2169
        %v2209 = vpack.c.bf16 %v2171, %v2171
        %v2210 = vpack.c.bf16 %v2174, %v2174
        %v2211 = vpack.c.bf16 %v2176, %v2176
        %v2212 = vpack.c.bf16 %v2179, %v2179
        %v2213 = vpack.c.bf16 %v2181, %v2181
        %v2214 = vpack.c.bf16 %v2184, %v2184
        %v2215 = vpack.c.bf16 %v2186, %v2186
        %v2216 = vpack.c.bf16 %v2189, %v2189
        %v2217 = vpack.c.bf16 %v2191, %v2191
        %v2218 = vpack.c.bf16 %v2194, %v2194
        %v2219 = vpack.c.bf16 %v2196, %v2196
        %v2220 = vpack.c.bf16 %v2199, %v2199
        %v2221 = vpack.c.bf16 %v2201, %v2201
        %v2222 = vpack.c.bf16 %v2204, %v2204
        %v2223 = vpack.c.bf16 %v2206, %v2206
        %2224 = vst [vmem:[#allocation2] sm:$0xf] %v2208
        %2225 = vst [vmem:[#allocation2 + $0x8] sm:$0xf] %v2209
        %2226 = vst [vmem:[#allocation2 + $0x10] sm:$0xf] %v2210
        %2227 = vst [vmem:[#allocation2 + $0x18] sm:$0xf] %v2211
        %2228 = vst [vmem:[#allocation2 + $0x20] sm:$0xf] %v2212
        %2229 = vst [vmem:[#allocation2 + $0x28] sm:$0xf] %v2213
        %2230 = vst [vmem:[#allocation2 + $0x30] sm:$0xf] %v2214
        %2231 = vst [vmem:[#allocation2 + $0x38] sm:$0xf] %v2215
        %2232 = vst [vmem:[#allocation2 + $0x40] sm:$0xf] %v2216
        %2233 = vst [vmem:[#allocation2 + $0x48] sm:$0xf] %v2217
        %2234 = vst [vmem:[#allocation2 + $0x50] sm:$0xf] %v2218
        %2235 = vst [vmem:[#allocation2 + $0x58] sm:$0xf] %v2219
        %2236 = vst [vmem:[#allocation2 + $0x60] sm:$0xf] %v2220
        %2237 = vst [vmem:[#allocation2 + $0x68] sm:$0xf] %v2221
        %2238 = vst [vmem:[#allocation2 + $0x70] sm:$0xf] %v2222
        %2239 = vst [vmem:[#allocation2 + $0x78] sm:$0xf] %v2223
        %v2240 = vpack.c.bf16 %v1669, %v1667
        %v2241 = vpack.c.bf16 %v1674, %v1672
        %v2242 = vpack.c.bf16 %v1679, %v1677
        %v2243 = vpack.c.bf16 %v1684, %v1682
        %v2244 = vpack.c.bf16 %v1689, %v1687
        %v2245 = vpack.c.bf16 %v1694, %v1692
        %v2246 = vpack.c.bf16 %v1699, %v1697
        %v2247 = vpack.c.bf16 %v1704, %v1702
        %v2248 = vpack.c.bf16 %v1767, %v1765
        %v2249 = vpack.c.bf16 %v1772, %v1770
        %v2250 = vpack.c.bf16 %v1777, %v1775
        %v2251 = vpack.c.bf16 %v1782, %v1780
        %v2252 = vpack.c.bf16 %v1787, %v1785
        %v2253 = vpack.c.bf16 %v1792, %v1790
        %v2254 = vpack.c.bf16 %v1797, %v1795
        %v2255 = vpack.c.bf16 %v1802, %v1800
        %2256 = vmatpush.bf16.xpose.msra.mxu0 %v2255
        %2257 = vmatpush.bf16.xpose.msra.mxu0 %v2254
        %2258 = vmatpush.bf16.xpose.msra.mxu0 %v2253
        %2259 = vmatpush.bf16.xpose.msra.mxu0 %v2252
        %2260 = vmatpush.bf16.xpose.msra.mxu0 %v2251
        %2261 = vmatpush.bf16.xpose.msra.mxu0 %v2250
        %2262 = vmatpush.bf16.xpose.msra.mxu0 %v2249
        %2263 = vmatpush.bf16.xpose.msra.mxu0 %v2248
        %2264 = vmatmul.bf16.gmra.mxu0 %v2240
        %v2265 = vpop.f32.mrf.mxu0
        %v2266 = vadd.f32 0.0, %v2265
        %v2267 = vpop.f32.mrf.mxu0
        %v2268 = vadd.f32 0.0, %v2267
        %2269 = vmatmul.bf16.gmra.mxu0 %v2241
        %v2270 = vpop.f32.mrf.mxu0
        %v2271 = vadd.f32 0.0, %v2270
        %v2272 = vpop.f32.mrf.mxu0
        %v2273 = vadd.f32 0.0, %v2272
        %2274 = vmatmul.bf16.gmra.mxu0 %v2242
        %v2275 = vpop.f32.mrf.mxu0
        %v2276 = vadd.f32 0.0, %v2275
        %v2277 = vpop.f32.mrf.mxu0
        %v2278 = vadd.f32 0.0, %v2277
        %2279 = vmatmul.bf16.gmra.mxu0 %v2243
        %v2280 = vpop.f32.mrf.mxu0
        %v2281 = vadd.f32 0.0, %v2280
        %v2282 = vpop.f32.mrf.mxu0
        %v2283 = vadd.f32 0.0, %v2282
        %2284 = vmatmul.bf16.gmra.mxu0 %v2244
        %v2285 = vpop.f32.mrf.mxu0
        %v2286 = vadd.f32 0.0, %v2285
        %v2287 = vpop.f32.mrf.mxu0
        %v2288 = vadd.f32 0.0, %v2287
        %2289 = vmatmul.bf16.gmra.mxu0 %v2245
        %v2290 = vpop.f32.mrf.mxu0
        %v2291 = vadd.f32 0.0, %v2290
        %v2292 = vpop.f32.mrf.mxu0
        %v2293 = vadd.f32 0.0, %v2292
        %2294 = vmatmul.bf16.gmra.mxu0 %v2246
        %v2295 = vpop.f32.mrf.mxu0
        %v2296 = vadd.f32 0.0, %v2295
        %v2297 = vpop.f32.mrf.mxu0
        %v2298 = vadd.f32 0.0, %v2297
        %2299 = vmatmul.bf16.gmra.mxu0 %v2247
        %v2300 = vpop.f32.mrf.mxu0
        %v2301 = vadd.f32 0.0, %v2300
        %v2302 = vpop.f32.mrf.mxu0
        %v2303 = vadd.f32 0.0, %v2302
        %2304 = vdwg.mxu0
        %v2305 = vmul.f32 %v2266, 0.125
        %v2306 = vmul.f32 %v2268, 0.125
        %v2307 = vmul.f32 %v2271, 0.125
        %v2308 = vmul.f32 %v2273, 0.125
        %v2309 = vmul.f32 %v2276, 0.125
        %v2310 = vmul.f32 %v2278, 0.125
        %v2311 = vmul.f32 %v2281, 0.125
        %v2312 = vmul.f32 %v2283, 0.125
        %v2313 = vmul.f32 %v2286, 0.125
        %v2314 = vmul.f32 %v2288, 0.125
        %v2315 = vmul.f32 %v2291, 0.125
        %v2316 = vmul.f32 %v2293, 0.125
        %v2317 = vmul.f32 %v2296, 0.125
        %v2318 = vmul.f32 %v2298, 0.125
        %v2319 = vmul.f32 %v2301, 0.125
        %v2320 = vmul.f32 %v2303, 0.125
        %v2321 = vadd.f32 %v2305, %v1282
        %v2322 = vadd.f32 %v2306, %v1283
        %v2323 = vadd.f32 %v2307, %v1284
        %v2324 = vadd.f32 %v2308, %v1285
        %v2325 = vadd.f32 %v2309, %v1286
        %v2326 = vadd.f32 %v2310, %v1287
        %v2327 = vadd.f32 %v2311, %v1288
        %v2328 = vadd.f32 %v2312, %v1289
        %v2329 = vadd.f32 %v2313, %v1290
        %v2330 = vadd.f32 %v2314, %v1291
        %v2331 = vadd.f32 %v2315, %v1292
        %v2332 = vadd.f32 %v2316, %v1293
        %v2333 = vadd.f32 %v2317, %v1294
        %v2334 = vadd.f32 %v2318, %v1295
        %v2335 = vadd.f32 %v2319, %v1296
        %v2336 = vadd.f32 %v2320, %v1297
        %2337 = vmax.xlane.f32.xlu0 %v2321
        %v2338 = vpop.xlane.xlu0 %2337
        %2339 = vmax.xlane.f32.xlu0 %v2322
        %v2340 = vpop.xlane.xlu0 %2339
        %2341 = vmax.xlane.f32.xlu0 %v2323
        %v2342 = vpop.xlane.xlu0 %2341
        %2343 = vmax.xlane.f32.xlu0 %v2324
        %v2344 = vpop.xlane.xlu0 %2343
        %2345 = vmax.xlane.f32.xlu0 %v2325
        %v2346 = vpop.xlane.xlu0 %2345
        %2347 = vmax.xlane.f32.xlu0 %v2326
        %v2348 = vpop.xlane.xlu0 %2347
        %2349 = vmax.xlane.f32.xlu0 %v2327
        %v2350 = vpop.xlane.xlu0 %2349
        %2351 = vmax.xlane.f32.xlu0 %v2328
        %v2352 = vpop.xlane.xlu0 %2351
        %2353 = vmax.xlane.f32.xlu0 %v2329
        %v2354 = vpop.xlane.xlu0 %2353
        %2355 = vmax.xlane.f32.xlu0 %v2330
        %v2356 = vpop.xlane.xlu0 %2355
        %2357 = vmax.xlane.f32.xlu0 %v2331
        %v2358 = vpop.xlane.xlu0 %2357
        %2359 = vmax.xlane.f32.xlu0 %v2332
        %v2360 = vpop.xlane.xlu0 %2359
        %2361 = vmax.xlane.f32.xlu0 %v2333
        %v2362 = vpop.xlane.xlu0 %2361
        %2363 = vmax.xlane.f32.xlu0 %v2334
        %v2364 = vpop.xlane.xlu0 %2363
        %2365 = vmax.xlane.f32.xlu0 %v2335
        %v2366 = vpop.xlane.xlu0 %2365
        %2367 = vmax.xlane.f32.xlu0 %v2336
        %v2368 = vpop.xlane.xlu0 %2367
        %v2369 = vsub.f32 %v2321, %v2338
        %v2370 = vsub.f32 %v2322, %v2340
        %v2371 = vsub.f32 %v2323, %v2342
        %v2372 = vsub.f32 %v2324, %v2344
        %v2373 = vsub.f32 %v2325, %v2346
        %v2374 = vsub.f32 %v2326, %v2348
        %v2375 = vsub.f32 %v2327, %v2350
        %v2376 = vsub.f32 %v2328, %v2352
        %v2377 = vsub.f32 %v2329, %v2354
        %v2378 = vsub.f32 %v2330, %v2356
        %v2379 = vsub.f32 %v2331, %v2358
        %v2380 = vsub.f32 %v2332, %v2360
        %v2381 = vsub.f32 %v2333, %v2362
        %v2382 = vsub.f32 %v2334, %v2364
        %v2383 = vsub.f32 %v2335, %v2366
        %v2384 = vsub.f32 %v2336, %v2368
        %v2385 = vmul.f32 %v2369, 1.442695
        %v2386 = vpow.pop %v2385
        %v2387 = vmul.f32 %v2370, 1.442695
        %v2388 = vpow.pop %v2387
        %v2389 = vmul.f32 %v2371, 1.442695
        %v2390 = vpow.pop %v2389
        %v2391 = vmul.f32 %v2372, 1.442695
        %v2392 = vpow.pop %v2391
        %v2393 = vmul.f32 %v2373, 1.442695
        %v2394 = vpow.pop %v2393
        %v2395 = vmul.f32 %v2374, 1.442695
        %v2396 = vpow.pop %v2395
        %v2397 = vmul.f32 %v2375, 1.442695
        %v2398 = vpow.pop %v2397
        %v2399 = vmul.f32 %v2376, 1.442695
        %v2400 = vpow.pop %v2399
        %v2401 = vmul.f32 %v2377, 1.442695
        %v2402 = vpow.pop %v2401
        %v2403 = vmul.f32 %v2378, 1.442695
        %v2404 = vpow.pop %v2403
        %v2405 = vmul.f32 %v2379, 1.442695
        %v2406 = vpow.pop %v2405
        %v2407 = vmul.f32 %v2380, 1.442695
        %v2408 = vpow.pop %v2407
        %v2409 = vmul.f32 %v2381, 1.442695
        %v2410 = vpow.pop %v2409
        %v2411 = vmul.f32 %v2382, 1.442695
        %v2412 = vpow.pop %v2411
        %v2413 = vmul.f32 %v2383, 1.442695
        %v2414 = vpow.pop %v2413
        %v2415 = vmul.f32 %v2384, 1.442695
        %v2416 = vpow.pop %v2415
        %2417 = vadd.xlane.f32.xlu0 %v2386
        %v2418 = vpop.xlane.xlu0 %2417
        %2419 = vadd.xlane.f32.xlu0 %v2388
        %v2420 = vpop.xlane.xlu0 %2419
        %2421 = vadd.xlane.f32.xlu0 %v2390
        %v2422 = vpop.xlane.xlu0 %2421
        %2423 = vadd.xlane.f32.xlu0 %v2392
        %v2424 = vpop.xlane.xlu0 %2423
        %2425 = vadd.xlane.f32.xlu0 %v2394
        %v2426 = vpop.xlane.xlu0 %2425
        %2427 = vadd.xlane.f32.xlu0 %v2396
        %v2428 = vpop.xlane.xlu0 %2427
        %2429 = vadd.xlane.f32.xlu0 %v2398
        %v2430 = vpop.xlane.xlu0 %2429
        %2431 = vadd.xlane.f32.xlu0 %v2400
        %v2432 = vpop.xlane.xlu0 %2431
        %2433 = vadd.xlane.f32.xlu0 %v2402
        %v2434 = vpop.xlane.xlu0 %2433
        %2435 = vadd.xlane.f32.xlu0 %v2404
        %v2436 = vpop.xlane.xlu0 %2435
        %2437 = vadd.xlane.f32.xlu0 %v2406
        %v2438 = vpop.xlane.xlu0 %2437
        %2439 = vadd.xlane.f32.xlu0 %v2408
        %v2440 = vpop.xlane.xlu0 %2439
        %2441 = vadd.xlane.f32.xlu0 %v2410
        %v2442 = vpop.xlane.xlu0 %2441
        %2443 = vadd.xlane.f32.xlu0 %v2412
        %v2444 = vpop.xlane.xlu0 %2443
        %2445 = vadd.xlane.f32.xlu0 %v2414
        %v2446 = vpop.xlane.xlu0 %2445
        %2447 = vadd.xlane.f32.xlu0 %v2416
        %v2448 = vpop.xlane.xlu0 %2447
        %v2449 = vrcp.pop %v2418
        %v2450 = vrcp.pop %v2420
        %v2451 = vrcp.pop %v2422
        %v2452 = vrcp.pop %v2424
        %v2453 = vrcp.pop %v2426
        %v2454 = vrcp.pop %v2428
        %v2455 = vrcp.pop %v2430
        %v2456 = vrcp.pop %v2432
        %v2457 = vrcp.pop %v2434
        %v2458 = vrcp.pop %v2436
        %v2459 = vrcp.pop %v2438
        %v2460 = vrcp.pop %v2440
        %v2461 = vrcp.pop %v2442
        %v2462 = vrcp.pop %v2444
        %v2463 = vrcp.pop %v2446
        %v2464 = vrcp.pop %v2448
        %v2465 = vmul.f32 %v2386, %v2449
        %v2466 = vmul.f32 %v2388, %v2450
        %v2467 = vmul.f32 %v2390, %v2451
        %v2468 = vmul.f32 %v2392, %v2452
        %v2469 = vmul.f32 %v2394, %v2453
        %v2470 = vmul.f32 %v2396, %v2454
        %v2471 = vmul.f32 %v2398, %v2455
        %v2472 = vmul.f32 %v2400, %v2456
        %v2473 = vmul.f32 %v2402, %v2457
        %v2474 = vmul.f32 %v2404, %v2458
        %v2475 = vmul.f32 %v2406, %v2459
        %v2476 = vmul.f32 %v2408, %v2460
        %v2477 = vmul.f32 %v2410, %v2461
        %v2478 = vmul.f32 %v2412, %v2462
        %v2479 = vmul.f32 %v2414, %v2463
        %v2480 = vmul.f32 %v2416, %v2464
        %v2481 = vpack.c.bf16 %v2466, %v2465
        %v2482 = vpack.c.bf16 %v2468, %v2467
        %v2483 = vpack.c.bf16 %v2470, %v2469
        %v2484 = vpack.c.bf16 %v2472, %v2471
        %v2485 = vpack.c.bf16 %v2474, %v2473
        %v2486 = vpack.c.bf16 %v2476, %v2475
        %v2487 = vpack.c.bf16 %v2478, %v2477
        %v2488 = vpack.c.bf16 %v2480, %v2479
        %v2489 = vpack.c.bf16 %v1865, %v1863
        %v2490 = vpack.c.bf16 %v1870, %v1868
        %v2491 = vpack.c.bf16 %v1875, %v1873
        %v2492 = vpack.c.bf16 %v1880, %v1878
        %v2493 = vpack.c.bf16 %v1885, %v1883
        %v2494 = vpack.c.bf16 %v1890, %v1888
        %v2495 = vpack.c.bf16 %v1895, %v1893
        %v2496 = vpack.c.bf16 %v1900, %v1898
        %2497 = vmatpush.bf16.msra.mxu0 %v2496
        %2498 = vmatpush.bf16.msra.mxu0 %v2495
        %2499 = vmatpush.bf16.msra.mxu0 %v2494
        %2500 = vmatpush.bf16.msra.mxu0 %v2493
        %2501 = vmatpush.bf16.msra.mxu0 %v2492
        %2502 = vmatpush.bf16.msra.mxu0 %v2491
        %2503 = vmatpush.bf16.msra.mxu0 %v2490
        %2504 = vmatpush.bf16.msra.mxu0 %v2489
        %2505 = vmatmul.bf16.gmra.mxu0 %v2481
        %v2506 = vpop.f32.mrf.mxu0
        %v2507 = vadd.f32 0.0, %v2506
        %v2508 = vpop.f32.mrf.mxu0
        %v2509 = vadd.f32 0.0, %v2508
        %2510 = vmatmul.bf16.gmra.mxu0 %v2482
        %v2511 = vpop.f32.mrf.mxu0
        %v2512 = vadd.f32 0.0, %v2511
        %v2513 = vpop.f32.mrf.mxu0
        %v2514 = vadd.f32 0.0, %v2513
        %2515 = vmatmul.bf16.gmra.mxu0 %v2483
        %v2516 = vpop.f32.mrf.mxu0
        %v2517 = vadd.f32 0.0, %v2516
        %v2518 = vpop.f32.mrf.mxu0
        %v2519 = vadd.f32 0.0, %v2518
        %2520 = vmatmul.bf16.gmra.mxu0 %v2484
        %v2521 = vpop.f32.mrf.mxu0
        %v2522 = vadd.f32 0.0, %v2521
        %v2523 = vpop.f32.mrf.mxu0
        %v2524 = vadd.f32 0.0, %v2523
        %2525 = vmatmul.bf16.gmra.mxu0 %v2485
        %v2526 = vpop.f32.mrf.mxu0
        %v2527 = vadd.f32 0.0, %v2526
        %v2528 = vpop.f32.mrf.mxu0
        %v2529 = vadd.f32 0.0, %v2528
        %2530 = vmatmul.bf16.gmra.mxu0 %v2486
        %v2531 = vpop.f32.mrf.mxu0
        %v2532 = vadd.f32 0.0, %v2531
        %v2533 = vpop.f32.mrf.mxu0
        %v2534 = vadd.f32 0.0, %v2533
        %2535 = vmatmul.bf16.gmra.mxu0 %v2487
        %v2536 = vpop.f32.mrf.mxu0
        %v2537 = vadd.f32 0.0, %v2536
        %v2538 = vpop.f32.mrf.mxu0
        %v2539 = vadd.f32 0.0, %v2538
        %2540 = vmatmul.bf16.gmra.mxu0 %v2488
        %v2541 = vpop.f32.mrf.mxu0
        %v2542 = vadd.f32 0.0, %v2541
        %v2543 = vpop.f32.mrf.mxu0
        %v2544 = vadd.f32 0.0, %v2543
        %2545 = vdwg.mxu0
        %v2546 = vpack.c.bf16 %v2507, %v2507
        %v2547 = vpack.c.bf16 %v2509, %v2509
        %v2548 = vpack.c.bf16 %v2512, %v2512
        %v2549 = vpack.c.bf16 %v2514, %v2514
        %v2550 = vpack.c.bf16 %v2517, %v2517
        %v2551 = vpack.c.bf16 %v2519, %v2519
        %v2552 = vpack.c.bf16 %v2522, %v2522
        %v2553 = vpack.c.bf16 %v2524, %v2524
        %v2554 = vpack.c.bf16 %v2527, %v2527
        %v2555 = vpack.c.bf16 %v2529, %v2529
        %v2556 = vpack.c.bf16 %v2532, %v2532
        %v2557 = vpack.c.bf16 %v2534, %v2534
        %v2558 = vpack.c.bf16 %v2537, %v2537
        %v2559 = vpack.c.bf16 %v2539, %v2539
        %v2560 = vpack.c.bf16 %v2542, %v2542
        %v2561 = vpack.c.bf16 %v2544, %v2544
        %2562 = vst [vmem:[#allocation2 + $0x4] sm:$0xf] %v2546
        %2563 = vst [vmem:[#allocation2 + $0xc] sm:$0xf] %v2547
        %2564 = vst [vmem:[#allocation2 + $0x14] sm:$0xf] %v2548
        %2565 = vst [vmem:[#allocation2 + $0x1c] sm:$0xf] %v2549
        %2566 = vst [vmem:[#allocation2 + $0x24] sm:$0xf] %v2550
        %2567 = vst [vmem:[#allocation2 + $0x2c] sm:$0xf] %v2551
        %2568 = vst [vmem:[#allocation2 + $0x34] sm:$0xf] %v2552
        %2569 = vst [vmem:[#allocation2 + $0x3c] sm:$0xf] %v2553
        %2570 = vst [vmem:[#allocation2 + $0x44] sm:$0xf] %v2554
        %2571 = vst [vmem:[#allocation2 + $0x4c] sm:$0xf] %v2555
        %2572 = vst [vmem:[#allocation2 + $0x54] sm:$0xf] %v2556
        %2573 = vst [vmem:[#allocation2 + $0x5c] sm:$0xf] %v2557
        %2574 = vst [vmem:[#allocation2 + $0x64] sm:$0xf] %v2558
        %2575 = vst [vmem:[#allocation2 + $0x6c] sm:$0xf] %v2559
        %2576 = vst [vmem:[#allocation2 + $0x74] sm:$0xf] %v2560
        %2577 = vst [vmem:[#allocation2 + $0x7c] sm:$0xf] %v2561
        %v2578 = vld [vmem:[#allocation2] sm:$0xff]
        %v2579 = vld [vmem:[#allocation2 + $0x8] sm:$0xff]
        %v2580 = vld [vmem:[#allocation2 + $0x10] sm:$0xff]
        %v2581 = vld [vmem:[#allocation2 + $0x18] sm:$0xff]
        %v2582 = vld [vmem:[#allocation2 + $0x20] sm:$0xff]
        %v2583 = vld [vmem:[#allocation2 + $0x28] sm:$0xff]
        %v2584 = vld [vmem:[#allocation2 + $0x30] sm:$0xff]
        %v2585 = vld [vmem:[#allocation2 + $0x38] sm:$0xff]
        %v2586 = vld [vmem:[#allocation2 + $0x40] sm:$0xff]
        %v2587 = vld [vmem:[#allocation2 + $0x48] sm:$0xff]
        %v2588 = vld [vmem:[#allocation2 + $0x50] sm:$0xff]
        %v2589 = vld [vmem:[#allocation2 + $0x58] sm:$0xff]
        %v2590 = vld [vmem:[#allocation2 + $0x60] sm:$0xff]
        %v2591 = vld [vmem:[#allocation2 + $0x68] sm:$0xff]
        %v2592 = vld [vmem:[#allocation2 + $0x70] sm:$0xff]
        %v2593 = vld [vmem:[#allocation2 + $0x78] sm:$0xff]
        %v2594 = vld [vmem:[%s8] sm:$0xf]
        %v2595 = vld [vmem:[%s8 + $0x4] sm:$0xf]
        %v2596 = vld [vmem:[%s8 + $0x8] sm:$0xf]
        %v2597 = vld [vmem:[%s8 + $0xc] sm:$0xf]
        %v2598 = vld [vmem:[%s8 + $0x10] sm:$0xf]
        %v2599 = vld [vmem:[%s8 + $0x14] sm:$0xf]
        %v2600 = vld [vmem:[%s8 + $0x18] sm:$0xf]
        %v2601 = vld [vmem:[%s8 + $0x1c] sm:$0xf]
        %v2602 = vld [vmem:[%s8 + $0x20] sm:$0xf]
        %v2603 = vld [vmem:[%s8 + $0x24] sm:$0xf]
        %v2604 = vld [vmem:[%s8 + $0x28] sm:$0xf]
        %v2605 = vld [vmem:[%s8 + $0x2c] sm:$0xf]
        %v2606 = vld [vmem:[%s8 + $0x30] sm:$0xf]
        %v2607 = vld [vmem:[%s8 + $0x34] sm:$0xf]
        %v2608 = vld [vmem:[%s8 + $0x38] sm:$0xf]
        %v2609 = vld [vmem:[%s8 + $0x3c] sm:$0xf]
        %v2610 = vld [vmem:[%s8 + $0x40] sm:$0xf]
        %v2611 = vld [vmem:[%s8 + $0x44] sm:$0xf]
        %v2612 = vld [vmem:[%s8 + $0x48] sm:$0xf]
        %v2613 = vld [vmem:[%s8 + $0x4c] sm:$0xf]
        %v2614 = vld [vmem:[%s8 + $0x50] sm:$0xf]
        %v2615 = vld [vmem:[%s8 + $0x54] sm:$0xf]
        %v2616 = vld [vmem:[%s8 + $0x58] sm:$0xf]
        %v2617 = vld [vmem:[%s8 + $0x5c] sm:$0xf]
        %v2618 = vld [vmem:[%s8 + $0x60] sm:$0xf]
        %v2619 = vld [vmem:[%s8 + $0x64] sm:$0xf]
        %v2620 = vld [vmem:[%s8 + $0x68] sm:$0xf]
        %v2621 = vld [vmem:[%s8 + $0x6c] sm:$0xf]
        %v2622 = vld [vmem:[%s8 + $0x70] sm:$0xf]
        %v2623 = vld [vmem:[%s8 + $0x74] sm:$0xf]
        %v2624 = vld [vmem:[%s8 + $0x78] sm:$0xf]
        %v2625 = vld [vmem:[%s8 + $0x7c] sm:$0xf]
        %v2626 = vld [vmem:[%s9] sm:$0x1]
        %v2628 = vperm.slane %v2626, 0
        %v2646 = vunpack.c.l.b16 %v2578
        %v2647 = vunpack.c.h.b16 %v2578
        %v2648 = vunpack.c.l.b16 %v2579
        %v2649 = vunpack.c.h.b16 %v2579
        %v2650 = vunpack.c.l.b16 %v2580
        %v2651 = vunpack.c.h.b16 %v2580
        %v2652 = vunpack.c.l.b16 %v2581
        %v2653 = vunpack.c.h.b16 %v2581
        %v2654 = vunpack.c.l.b16 %v2582
        %v2655 = vunpack.c.h.b16 %v2582
        %v2656 = vunpack.c.l.b16 %v2583
        %v2657 = vunpack.c.h.b16 %v2583
        %v2658 = vunpack.c.l.b16 %v2584
        %v2659 = vunpack.c.h.b16 %v2584
        %v2660 = vunpack.c.l.b16 %v2585
        %v2661 = vunpack.c.h.b16 %v2585
        %v2662 = vunpack.c.l.b16 %v2586
        %v2663 = vunpack.c.h.b16 %v2586
        %v2664 = vunpack.c.l.b16 %v2587
        %v2665 = vunpack.c.h.b16 %v2587
        %v2666 = vunpack.c.l.b16 %v2588
        %v2667 = vunpack.c.h.b16 %v2588
        %v2668 = vunpack.c.l.b16 %v2589
        %v2669 = vunpack.c.h.b16 %v2589
        %v2670 = vunpack.c.l.b16 %v2590
        %v2671 = vunpack.c.h.b16 %v2590
        %v2672 = vunpack.c.l.b16 %v2591
        %v2673 = vunpack.c.h.b16 %v2591
        %v2674 = vunpack.c.l.b16 %v2592
        %v2675 = vunpack.c.h.b16 %v2592
        %v2676 = vunpack.c.l.b16 %v2593
        %v2677 = vunpack.c.h.b16 %v2593
        %v2678 = vpack.c.b16 %v2648, %v2646
        %v2679 = vpack.c.b16 %v2649, %v2647
        %v2680 = vpack.c.b16 %v2652, %v2650
        %v2681 = vpack.c.b16 %v2653, %v2651
        %v2682 = vpack.c.b16 %v2656, %v2654
        %v2683 = vpack.c.b16 %v2657, %v2655
        %v2684 = vpack.c.b16 %v2660, %v2658
        %v2685 = vpack.c.b16 %v2661, %v2659
        %v2686 = vpack.c.b16 %v2664, %v2662
        %v2687 = vpack.c.b16 %v2665, %v2663
        %v2688 = vpack.c.b16 %v2668, %v2666
        %v2689 = vpack.c.b16 %v2669, %v2667
        %v2690 = vpack.c.b16 %v2672, %v2670
        %v2691 = vpack.c.b16 %v2673, %v2671
        %v2692 = vpack.c.b16 %v2676, %v2674
        %v2693 = vpack.c.b16 %v2677, %v2675
        %v2742 = vunpack.c.l.b16 %v2594
        %v2743 = vunpack.c.l.b16 %v2595
        %v2744 = vunpack.c.l.b16 %v2596
        %v2745 = vunpack.c.l.b16 %v2597
        %v2746 = vunpack.c.l.b16 %v2598
        %v2747 = vunpack.c.l.b16 %v2599
        %v2748 = vunpack.c.l.b16 %v2600
        %v2749 = vunpack.c.l.b16 %v2601
        %v2750 = vunpack.c.l.b16 %v2602
        %v2751 = vunpack.c.l.b16 %v2603
        %v2752 = vunpack.c.l.b16 %v2604
        %v2753 = vunpack.c.l.b16 %v2605
        %v2754 = vunpack.c.l.b16 %v2606
        %v2755 = vunpack.c.l.b16 %v2607
        %v2756 = vunpack.c.l.b16 %v2608
        %v2757 = vunpack.c.l.b16 %v2609
        %v2758 = vunpack.c.l.b16 %v2610
        %v2759 = vunpack.c.l.b16 %v2611
        %v2760 = vunpack.c.l.b16 %v2612
        %v2761 = vunpack.c.l.b16 %v2613
        %v2762 = vunpack.c.l.b16 %v2614
        %v2763 = vunpack.c.l.b16 %v2615
        %v2764 = vunpack.c.l.b16 %v2616
        %v2765 = vunpack.c.l.b16 %v2617
        %v2766 = vunpack.c.l.b16 %v2618
        %v2767 = vunpack.c.l.b16 %v2619
        %v2768 = vunpack.c.l.b16 %v2620
        %v2769 = vunpack.c.l.b16 %v2621
        %v2770 = vunpack.c.l.b16 %v2622
        %v2771 = vunpack.c.l.b16 %v2623
        %v2772 = vunpack.c.l.b16 %v2624
        %v2773 = vunpack.c.l.b16 %v2625
        %v2774 = vpack.c.b16 %v2743, %v2742
        %v2775 = vpack.c.b16 %v2745, %v2744
        %v2776 = vpack.c.b16 %v2747, %v2746
        %v2777 = vpack.c.b16 %v2749, %v2748
        %v2778 = vpack.c.b16 %v2751, %v2750
        %v2779 = vpack.c.b16 %v2753, %v2752
        %v2780 = vpack.c.b16 %v2755, %v2754
        %v2781 = vpack.c.b16 %v2757, %v2756
        %v2782 = vpack.c.b16 %v2759, %v2758
        %v2783 = vpack.c.b16 %v2761, %v2760
        %v2784 = vpack.c.b16 %v2763, %v2762
        %v2785 = vpack.c.b16 %v2765, %v2764
        %v2786 = vpack.c.b16 %v2767, %v2766
        %v2787 = vpack.c.b16 %v2769, %v2768
        %v2788 = vpack.c.b16 %v2771, %v2770
        %v2789 = vpack.c.b16 %v2773, %v2772
        %2806 = vmatpush.bf16.msra.mxu0 %v2781
        %2807 = vmatpush.bf16.msra.mxu0 %v2780
        %2808 = vmatpush.bf16.msra.mxu0 %v2779
        %2809 = vmatpush.bf16.msra.mxu0 %v2778
        %2810 = vmatpush.bf16.msra.mxu0 %v2777
        %2811 = vmatpush.bf16.msra.mxu0 %v2776
        %2812 = vmatpush.bf16.msra.mxu0 %v2775
        %2813 = vmatpush.bf16.msra.mxu0 %v2774
        %2814 = vmatmul.bf16.gmra.mxu0 %v2678
        %v2815 = vpop.f32.mrf.mxu0
        %v2816 = vadd.f32 %v2628, %v2815
        %v2817 = vpop.f32.mrf.mxu0
        %v2818 = vadd.f32 %v2628, %v2817
        %2819 = vmatmul.bf16.gmra.mxu0 %v2680
        %v2820 = vpop.f32.mrf.mxu0
        %v2821 = vadd.f32 %v2628, %v2820
        %v2822 = vpop.f32.mrf.mxu0
        %v2823 = vadd.f32 %v2628, %v2822
        %2824 = vmatmul.bf16.gmra.mxu0 %v2682
        %v2825 = vpop.f32.mrf.mxu0
        %v2826 = vadd.f32 %v2628, %v2825
        %v2827 = vpop.f32.mrf.mxu0
        %v2828 = vadd.f32 %v2628, %v2827
        %2829 = vmatmul.bf16.gmra.mxu0 %v2684
        %v2830 = vpop.f32.mrf.mxu0
        %v2831 = vadd.f32 %v2628, %v2830
        %v2832 = vpop.f32.mrf.mxu0
        %v2833 = vadd.f32 %v2628, %v2832
        %2834 = vmatmul.bf16.gmra.mxu0 %v2686
        %v2835 = vpop.f32.mrf.mxu0
        %v2836 = vadd.f32 %v2628, %v2835
        %v2837 = vpop.f32.mrf.mxu0
        %v2838 = vadd.f32 %v2628, %v2837
        %2839 = vmatmul.bf16.gmra.mxu0 %v2688
        %v2840 = vpop.f32.mrf.mxu0
        %v2841 = vadd.f32 %v2628, %v2840
        %v2842 = vpop.f32.mrf.mxu0
        %v2843 = vadd.f32 %v2628, %v2842
        %2844 = vmatmul.bf16.gmra.mxu0 %v2690
        %v2845 = vpop.f32.mrf.mxu0
        %v2846 = vadd.f32 %v2628, %v2845
        %v2847 = vpop.f32.mrf.mxu0
        %v2848 = vadd.f32 %v2628, %v2847
        %2849 = vmatmul.bf16.gmra.mxu0 %v2692
        %v2850 = vpop.f32.mrf.mxu0
        %v2851 = vadd.f32 %v2628, %v2850
        %v2852 = vpop.f32.mrf.mxu0
        %v2853 = vadd.f32 %v2628, %v2852
        %2854 = vdwg.mxu0
        %2855 = vmatpush.bf16.msra.mxu0 %v2789
        %2856 = vmatpush.bf16.msra.mxu0 %v2788
        %2857 = vmatpush.bf16.msra.mxu0 %v2787
        %2858 = vmatpush.bf16.msra.mxu0 %v2786
        %2859 = vmatpush.bf16.msra.mxu0 %v2785
        %2860 = vmatpush.bf16.msra.mxu0 %v2784
        %2861 = vmatpush.bf16.msra.mxu0 %v2783
        %2862 = vmatpush.bf16.msra.mxu0 %v2782
        %2863 = vmatmul.bf16.gmra.mxu0 %v2679
        %v2864 = vpop.f32.mrf.mxu0
        %v2865 = vadd.f32 %v2816, %v2864
        %v2866 = vpop.f32.mrf.mxu0
        %v2867 = vadd.f32 %v2818, %v2866
        %2868 = vmatmul.bf16.gmra.mxu0 %v2681
        %v2869 = vpop.f32.mrf.mxu0
        %v2870 = vadd.f32 %v2821, %v2869
        %v2871 = vpop.f32.mrf.mxu0
        %v2872 = vadd.f32 %v2823, %v2871
        %2873 = vmatmul.bf16.gmra.mxu0 %v2683
        %v2874 = vpop.f32.mrf.mxu0
        %v2875 = vadd.f32 %v2826, %v2874
        %v2876 = vpop.f32.mrf.mxu0
        %v2877 = vadd.f32 %v2828, %v2876
        %2878 = vmatmul.bf16.gmra.mxu0 %v2685
        %v2879 = vpop.f32.mrf.mxu0
        %v2880 = vadd.f32 %v2831, %v2879
        %v2881 = vpop.f32.mrf.mxu0
        %v2882 = vadd.f32 %v2833, %v2881
        %2883 = vmatmul.bf16.gmra.mxu0 %v2687
        %v2884 = vpop.f32.mrf.mxu0
        %v2885 = vadd.f32 %v2836, %v2884
        %v2886 = vpop.f32.mrf.mxu0
        %v2887 = vadd.f32 %v2838, %v2886
        %2888 = vmatmul.bf16.gmra.mxu0 %v2689
        %v2889 = vpop.f32.mrf.mxu0
        %v2890 = vadd.f32 %v2841, %v2889
        %v2891 = vpop.f32.mrf.mxu0
        %v2892 = vadd.f32 %v2843, %v2891
        %2893 = vmatmul.bf16.gmra.mxu0 %v2691
        %v2894 = vpop.f32.mrf.mxu0
        %v2895 = vadd.f32 %v2846, %v2894
        %v2896 = vpop.f32.mrf.mxu0
        %v2897 = vadd.f32 %v2848, %v2896
        %2898 = vmatmul.bf16.gmra.mxu0 %v2693
        %v2899 = vpop.f32.mrf.mxu0
        %v2900 = vadd.f32 %v2851, %v2899
        %v2901 = vpop.f32.mrf.mxu0
        %v2902 = vadd.f32 %v2853, %v2901
        %2903 = vdwg.mxu0
        %v2904 = vadd.f32 %v1266, %v2865
        %v2905 = vadd.f32 %v1267, %v2867
        %v2906 = vadd.f32 %v1268, %v2870
        %v2907 = vadd.f32 %v1269, %v2872
        %v2908 = vadd.f32 %v1270, %v2875
        %v2909 = vadd.f32 %v1271, %v2877
        %v2910 = vadd.f32 %v1272, %v2880
        %v2911 = vadd.f32 %v1273, %v2882
        %v2912 = vadd.f32 %v1274, %v2885
        %v2913 = vadd.f32 %v1275, %v2887
        %v2914 = vadd.f32 %v1276, %v2890
        %v2915 = vadd.f32 %v1277, %v2892
        %v2916 = vadd.f32 %v1278, %v2895
        %v2917 = vadd.f32 %v1279, %v2897
        %v2918 = vadd.f32 %v1280, %v2900
        %v2919 = vadd.f32 %v1281, %v2902
        %v2920 = vld [vmem:[%s10] sm:$0x1]
        %v2921 = vld [vmem:[%s11] sm:$0x1]
        %2922 = vadd.xlane.f32.xlu0 %v2904
        %v2923 = vpop.xlane.xlu0 %2922
        %2924 = vadd.xlane.f32.xlu0 %v2905
        %v2925 = vpop.xlane.xlu0 %2924
        %2926 = vadd.xlane.f32.xlu0 %v2906
        %v2927 = vpop.xlane.xlu0 %2926
        %2928 = vadd.xlane.f32.xlu0 %v2907
        %v2929 = vpop.xlane.xlu0 %2928
        %2930 = vadd.xlane.f32.xlu0 %v2908
        %v2931 = vpop.xlane.xlu0 %2930
        %2932 = vadd.xlane.f32.xlu0 %v2909
        %v2933 = vpop.xlane.xlu0 %2932
        %2934 = vadd.xlane.f32.xlu0 %v2910
        %v2935 = vpop.xlane.xlu0 %2934
        %2936 = vadd.xlane.f32.xlu0 %v2911
        %v2937 = vpop.xlane.xlu0 %2936
        %2938 = vadd.xlane.f32.xlu0 %v2912
        %v2939 = vpop.xlane.xlu0 %2938
        %2940 = vadd.xlane.f32.xlu0 %v2913
        %v2941 = vpop.xlane.xlu0 %2940
        %2942 = vadd.xlane.f32.xlu0 %v2914
        %v2943 = vpop.xlane.xlu0 %2942
        %2944 = vadd.xlane.f32.xlu0 %v2915
        %v2945 = vpop.xlane.xlu0 %2944
        %2946 = vadd.xlane.f32.xlu0 %v2916
        %v2947 = vpop.xlane.xlu0 %2946
        %2948 = vadd.xlane.f32.xlu0 %v2917
        %v2949 = vpop.xlane.xlu0 %2948
        %2950 = vadd.xlane.f32.xlu0 %v2918
        %v2951 = vpop.xlane.xlu0 %2950
        %2952 = vadd.xlane.f32.xlu0 %v2919
        %v2953 = vpop.xlane.xlu0 %2952
        %v2954 = vmul.f32 %v2923, %v955
        %v2955 = vmul.f32 %v2925, %v955
        %v2956 = vmul.f32 %v2927, %v955
        %v2957 = vmul.f32 %v2929, %v955
        %v2958 = vmul.f32 %v2931, %v955
        %v2959 = vmul.f32 %v2933, %v955
        %v2960 = vmul.f32 %v2935, %v955
        %v2961 = vmul.f32 %v2937, %v955
        %v2962 = vmul.f32 %v2939, %v955
        %v2963 = vmul.f32 %v2941, %v955
        %v2964 = vmul.f32 %v2943, %v955
        %v2965 = vmul.f32 %v2945, %v955
        %v2966 = vmul.f32 %v2947, %v955
        %v2967 = vmul.f32 %v2949, %v955
        %v2968 = vmul.f32 %v2951, %v955
        %v2969 = vmul.f32 %v2953, %v955
        %v2970 = vsub.f32 %v2904, %v2954
        %v2971 = vsub.f32 %v2905, %v2955
        %v2972 = vsub.f32 %v2906, %v2956
        %v2973 = vsub.f32 %v2907, %v2957
        %v2974 = vsub.f32 %v2908, %v2958
        %v2975 = vsub.f32 %v2909, %v2959
        %v2976 = vsub.f32 %v2910, %v2960
        %v2977 = vsub.f32 %v2911, %v2961
        %v2978 = vsub.f32 %v2912, %v2962
        %v2979 = vsub.f32 %v2913, %v2963
        %v2980 = vsub.f32 %v2914, %v2964
        %v2981 = vsub.f32 %v2915, %v2965
        %v2982 = vsub.f32 %v2916, %v2966
        %v2983 = vsub.f32 %v2917, %v2967
        %v2984 = vsub.f32 %v2918, %v2968
        %v2985 = vsub.f32 %v2919, %v2969
        %v2986 = vmul.f32 %v2970, %v2970
        %v2987 = vmul.f32 %v2971, %v2971
        %v2988 = vmul.f32 %v2972, %v2972
        %v2989 = vmul.f32 %v2973, %v2973
        %v2990 = vmul.f32 %v2974, %v2974
        %v2991 = vmul.f32 %v2975, %v2975
        %v2992 = vmul.f32 %v2976, %v2976
        %v2993 = vmul.f32 %v2977, %v2977
        %v2994 = vmul.f32 %v2978, %v2978
        %v2995 = vmul.f32 %v2979, %v2979
        %v2996 = vmul.f32 %v2980, %v2980
        %v2997 = vmul.f32 %v2981, %v2981
        %v2998 = vmul.f32 %v2982, %v2982
        %v2999 = vmul.f32 %v2983, %v2983
        %v3000 = vmul.f32 %v2984, %v2984
        %v3001 = vmul.f32 %v2985, %v2985
        %3002 = vadd.xlane.f32.xlu0 %v2986
        %v3003 = vpop.xlane.xlu0 %3002
        %3004 = vadd.xlane.f32.xlu0 %v2987
        %v3005 = vpop.xlane.xlu0 %3004
        %3006 = vadd.xlane.f32.xlu0 %v2988
        %v3007 = vpop.xlane.xlu0 %3006
        %3008 = vadd.xlane.f32.xlu0 %v2989
        %v3009 = vpop.xlane.xlu0 %3008
        %3010 = vadd.xlane.f32.xlu0 %v2990
        %v3011 = vpop.xlane.xlu0 %3010
        %3012 = vadd.xlane.f32.xlu0 %v2991
        %v3013 = vpop.xlane.xlu0 %3012
        %3014 = vadd.xlane.f32.xlu0 %v2992
        %v3015 = vpop.xlane.xlu0 %3014
        %3016 = vadd.xlane.f32.xlu0 %v2993
        %v3017 = vpop.xlane.xlu0 %3016
        %3018 = vadd.xlane.f32.xlu0 %v2994
        %v3019 = vpop.xlane.xlu0 %3018
        %3020 = vadd.xlane.f32.xlu0 %v2995
        %v3021 = vpop.xlane.xlu0 %3020
        %3022 = vadd.xlane.f32.xlu0 %v2996
        %v3023 = vpop.xlane.xlu0 %3022
        %3024 = vadd.xlane.f32.xlu0 %v2997
        %v3025 = vpop.xlane.xlu0 %3024
        %3026 = vadd.xlane.f32.xlu0 %v2998
        %v3027 = vpop.xlane.xlu0 %3026
        %3028 = vadd.xlane.f32.xlu0 %v2999
        %v3029 = vpop.xlane.xlu0 %3028
        %3030 = vadd.xlane.f32.xlu0 %v3000
        %v3031 = vpop.xlane.xlu0 %3030
        %3032 = vadd.xlane.f32.xlu0 %v3001
        %v3033 = vpop.xlane.xlu0 %3032
        %v3034 = vmul.f32 %v3003, %v955
        %v3035 = vmul.f32 %v3005, %v955
        %v3036 = vmul.f32 %v3007, %v955
        %v3037 = vmul.f32 %v3009, %v955
        %v3038 = vmul.f32 %v3011, %v955
        %v3039 = vmul.f32 %v3013, %v955
        %v3040 = vmul.f32 %v3015, %v955
        %v3041 = vmul.f32 %v3017, %v955
        %v3042 = vmul.f32 %v3019, %v955
        %v3043 = vmul.f32 %v3021, %v955
        %v3044 = vmul.f32 %v3023, %v955
        %v3045 = vmul.f32 %v3025, %v955
        %v3046 = vmul.f32 %v3027, %v955
        %v3047 = vmul.f32 %v3029, %v955
        %v3048 = vmul.f32 %v3031, %v955
        %v3049 = vmul.f32 %v3033, %v955
        %v3050 = vadd.f32 %v3034, 1e-12
        %v3051 = vadd.f32 %v3035, 1e-12
        %v3052 = vadd.f32 %v3036, 1e-12
        %v3053 = vadd.f32 %v3037, 1e-12
        %v3054 = vadd.f32 %v3038, 1e-12
        %v3055 = vadd.f32 %v3039, 1e-12
        %v3056 = vadd.f32 %v3040, 1e-12
        %v3057 = vadd.f32 %v3041, 1e-12
        %v3058 = vadd.f32 %v3042, 1e-12
        %v3059 = vadd.f32 %v3043, 1e-12
        %v3060 = vadd.f32 %v3044, 1e-12
        %v3061 = vadd.f32 %v3045, 1e-12
        %v3062 = vadd.f32 %v3046, 1e-12
        %v3063 = vadd.f32 %v3047, 1e-12
        %v3064 = vadd.f32 %v3048, 1e-12
        %v3065 = vadd.f32 %v3049, 1e-12
        %v3066 = vrsqrt.pop %v3050
        %v3067 = vmul.f32 %v3066, %v3050
        %v3068 = vmul.f32 %v3067, %v3066
        %v3069 = vmul.f32 0.5, %v3068
        %v3070 = vsub.f32 1.5, %v3069
        %v3071 = vmul.f32 %v3066, %v3070
        %vm3072 = vweird.f32 %v3050
        %vm3073 = vweird.f32 %v3066
        %vm3074 = vmor %vm3072, %vm3073
        %v3075 = vsel %vm3074, %v3066, %v3071
        %v3076 = vrsqrt.pop %v3051
        %v3077 = vmul.f32 %v3076, %v3051
        %v3078 = vmul.f32 %v3077, %v3076
        %v3079 = vmul.f32 0.5, %v3078
        %v3080 = vsub.f32 1.5, %v3079
        %v3081 = vmul.f32 %v3076, %v3080
        %vm3082 = vweird.f32 %v3051
        %vm3083 = vweird.f32 %v3076
        %vm3084 = vmor %vm3082, %vm3083
        %v3085 = vsel %vm3084, %v3076, %v3081
        %v3086 = vrsqrt.pop %v3052
        %v3087 = vmul.f32 %v3086, %v3052
        %v3088 = vmul.f32 %v3087, %v3086
        %v3089 = vmul.f32 0.5, %v3088
        %v3090 = vsub.f32 1.5, %v3089
        %v3091 = vmul.f32 %v3086, %v3090
        %vm3092 = vweird.f32 %v3052
        %vm3093 = vweird.f32 %v3086
        %vm3094 = vmor %vm3092, %vm3093
        %v3095 = vsel %vm3094, %v3086, %v3091
        %v3096 = vrsqrt.pop %v3053
        %v3097 = vmul.f32 %v3096, %v3053
        %v3098 = vmul.f32 %v3097, %v3096
        %v3099 = vmul.f32 0.5, %v3098
        %v3100 = vsub.f32 1.5, %v3099
        %v3101 = vmul.f32 %v3096, %v3100
        %vm3102 = vweird.f32 %v3053
        %vm3103 = vweird.f32 %v3096
        %vm3104 = vmor %vm3102, %vm3103
        %v3105 = vsel %vm3104, %v3096, %v3101
        %v3106 = vrsqrt.pop %v3054
        %v3107 = vmul.f32 %v3106, %v3054
        %v3108 = vmul.f32 %v3107, %v3106
        %v3109 = vmul.f32 0.5, %v3108
        %v3110 = vsub.f32 1.5, %v3109
        %v3111 = vmul.f32 %v3106, %v3110
        %vm3112 = vweird.f32 %v3054
        %vm3113 = vweird.f32 %v3106
        %vm3114 = vmor %vm3112, %vm3113
        %v3115 = vsel %vm3114, %v3106, %v3111
        %v3116 = vrsqrt.pop %v3055
        %v3117 = vmul.f32 %v3116, %v3055
        %v3118 = vmul.f32 %v3117, %v3116
        %v3119 = vmul.f32 0.5, %v3118
        %v3120 = vsub.f32 1.5, %v3119
        %v3121 = vmul.f32 %v3116, %v3120
        %vm3122 = vweird.f32 %v3055
        %vm3123 = vweird.f32 %v3116
        %vm3124 = vmor %vm3122, %vm3123
        %v3125 = vsel %vm3124, %v3116, %v3121
        %v3126 = vrsqrt.pop %v3056
        %v3127 = vmul.f32 %v3126, %v3056
        %v3128 = vmul.f32 %v3127, %v3126
        %v3129 = vmul.f32 0.5, %v3128
        %v3130 = vsub.f32 1.5, %v3129
        %v3131 = vmul.f32 %v3126, %v3130
        %vm3132 = vweird.f32 %v3056
        %vm3133 = vweird.f32 %v3126
        %vm3134 = vmor %vm3132, %vm3133
        %v3135 = vsel %vm3134, %v3126, %v3131
        %v3136 = vrsqrt.pop %v3057
        %v3137 = vmul.f32 %v3136, %v3057
        %v3138 = vmul.f32 %v3137, %v3136
        %v3139 = vmul.f32 0.5, %v3138
        %v3140 = vsub.f32 1.5, %v3139
        %v3141 = vmul.f32 %v3136, %v3140
        %vm3142 = vweird.f32 %v3057
        %vm3143 = vweird.f32 %v3136
        %vm3144 = vmor %vm3142, %vm3143
        %v3145 = vsel %vm3144, %v3136, %v3141
        %v3146 = vrsqrt.pop %v3058
        %v3147 = vmul.f32 %v3146, %v3058
        %v3148 = vmul.f32 %v3147, %v3146
        %v3149 = vmul.f32 0.5, %v3148
        %v3150 = vsub.f32 1.5, %v3149
        %v3151 = vmul.f32 %v3146, %v3150
        %vm3152 = vweird.f32 %v3058
        %vm3153 = vweird.f32 %v3146
        %vm3154 = vmor %vm3152, %vm3153
        %v3155 = vsel %vm3154, %v3146, %v3151
        %v3156 = vrsqrt.pop %v3059
        %v3157 = vmul.f32 %v3156, %v3059
        %v3158 = vmul.f32 %v3157, %v3156
        %v3159 = vmul.f32 0.5, %v3158
        %v3160 = vsub.f32 1.5, %v3159
        %v3161 = vmul.f32 %v3156, %v3160
        %vm3162 = vweird.f32 %v3059
        %vm3163 = vweird.f32 %v3156
        %vm3164 = vmor %vm3162, %vm3163
        %v3165 = vsel %vm3164, %v3156, %v3161
        %v3166 = vrsqrt.pop %v3060
        %v3167 = vmul.f32 %v3166, %v3060
        %v3168 = vmul.f32 %v3167, %v3166
        %v3169 = vmul.f32 0.5, %v3168
        %v3170 = vsub.f32 1.5, %v3169
        %v3171 = vmul.f32 %v3166, %v3170
        %vm3172 = vweird.f32 %v3060
        %vm3173 = vweird.f32 %v3166
        %vm3174 = vmor %vm3172, %vm3173
        %v3175 = vsel %vm3174, %v3166, %v3171
        %v3176 = vrsqrt.pop %v3061
        %v3177 = vmul.f32 %v3176, %v3061
        %v3178 = vmul.f32 %v3177, %v3176
        %v3179 = vmul.f32 0.5, %v3178
        %v3180 = vsub.f32 1.5, %v3179
        %v3181 = vmul.f32 %v3176, %v3180
        %vm3182 = vweird.f32 %v3061
        %vm3183 = vweird.f32 %v3176
        %vm3184 = vmor %vm3182, %vm3183
        %v3185 = vsel %vm3184, %v3176, %v3181
        %v3186 = vrsqrt.pop %v3062
        %v3187 = vmul.f32 %v3186, %v3062
        %v3188 = vmul.f32 %v3187, %v3186
        %v3189 = vmul.f32 0.5, %v3188
        %v3190 = vsub.f32 1.5, %v3189
        %v3191 = vmul.f32 %v3186, %v3190
        %vm3192 = vweird.f32 %v3062
        %vm3193 = vweird.f32 %v3186
        %vm3194 = vmor %vm3192, %vm3193
        %v3195 = vsel %vm3194, %v3186, %v3191
        %v3196 = vrsqrt.pop %v3063
        %v3197 = vmul.f32 %v3196, %v3063
        %v3198 = vmul.f32 %v3197, %v3196
        %v3199 = vmul.f32 0.5, %v3198
        %v3200 = vsub.f32 1.5, %v3199
        %v3201 = vmul.f32 %v3196, %v3200
        %vm3202 = vweird.f32 %v3063
        %vm3203 = vweird.f32 %v3196
        %vm3204 = vmor %vm3202, %vm3203
        %v3205 = vsel %vm3204, %v3196, %v3201
        %v3206 = vrsqrt.pop %v3064
        %v3207 = vmul.f32 %v3206, %v3064
        %v3208 = vmul.f32 %v3207, %v3206
        %v3209 = vmul.f32 0.5, %v3208
        %v3210 = vsub.f32 1.5, %v3209
        %v3211 = vmul.f32 %v3206, %v3210
        %vm3212 = vweird.f32 %v3064
        %vm3213 = vweird.f32 %v3206
        %vm3214 = vmor %vm3212, %vm3213
        %v3215 = vsel %vm3214, %v3206, %v3211
        %v3216 = vrsqrt.pop %v3065
        %v3217 = vmul.f32 %v3216, %v3065
        %v3218 = vmul.f32 %v3217, %v3216
        %v3219 = vmul.f32 0.5, %v3218
        %v3220 = vsub.f32 1.5, %v3219
        %v3221 = vmul.f32 %v3216, %v3220
        %vm3222 = vweird.f32 %v3065
        %vm3223 = vweird.f32 %v3216
        %vm3224 = vmor %vm3222, %vm3223
        %v3225 = vsel %vm3224, %v3216, %v3221
        %v3226 = vmul.f32 %v2970, %v3075
        %v3227 = vmul.f32 %v2971, %v3085
        %v3228 = vmul.f32 %v2972, %v3095
        %v3229 = vmul.f32 %v2973, %v3105
        %v3230 = vmul.f32 %v2974, %v3115
        %v3231 = vmul.f32 %v2975, %v3125
        %v3232 = vmul.f32 %v2976, %v3135
        %v3233 = vmul.f32 %v2977, %v3145
        %v3234 = vmul.f32 %v2978, %v3155
        %v3235 = vmul.f32 %v2979, %v3165
        %v3236 = vmul.f32 %v2980, %v3175
        %v3237 = vmul.f32 %v2981, %v3185
        %v3238 = vmul.f32 %v2982, %v3195
        %v3239 = vmul.f32 %v2983, %v3205
        %v3240 = vmul.f32 %v2984, %v3215
        %v3241 = vmul.f32 %v2985, %v3225
        %v3243 = vperm.slane %v2920, 0
        %v3245 = vmul.f32 %v3226, %v3243
        %v3246 = vmul.f32 %v3227, %v3243
        %v3247 = vmul.f32 %v3228, %v3243
        %v3248 = vmul.f32 %v3229, %v3243
        %v3249 = vmul.f32 %v3230, %v3243
        %v3250 = vmul.f32 %v3231, %v3243
        %v3251 = vmul.f32 %v3232, %v3243
        %v3252 = vmul.f32 %v3233, %v3243
        %v3253 = vmul.f32 %v3234, %v3243
        %v3254 = vmul.f32 %v3235, %v3243
        %v3255 = vmul.f32 %v3236, %v3243
        %v3256 = vmul.f32 %v3237, %v3243
        %v3257 = vmul.f32 %v3238, %v3243
        %v3258 = vmul.f32 %v3239, %v3243
        %v3259 = vmul.f32 %v3240, %v3243
        %v3260 = vmul.f32 %v3241, %v3243
        %v3262 = vperm.slane %v2921, 0
        %v3264 = vadd.f32 %v3245, %v3262
        %v3265 = vadd.f32 %v3246, %v3262
        %v3266 = vadd.f32 %v3247, %v3262
        %v3267 = vadd.f32 %v3248, %v3262
        %v3268 = vadd.f32 %v3249, %v3262
        %v3269 = vadd.f32 %v3250, %v3262
        %v3270 = vadd.f32 %v3251, %v3262
        %v3271 = vadd.f32 %v3252, %v3262
        %v3272 = vadd.f32 %v3253, %v3262
        %v3273 = vadd.f32 %v3254, %v3262
        %v3274 = vadd.f32 %v3255, %v3262
        %v3275 = vadd.f32 %v3256, %v3262
        %v3276 = vadd.f32 %v3257, %v3262
        %v3277 = vadd.f32 %v3258, %v3262
        %v3278 = vadd.f32 %v3259, %v3262
        %v3279 = vadd.f32 %v3260, %v3262
        %v3280 = vpack.c.bf16 %v3265, %v3264
        %v3281 = vpack.c.bf16 %v3267, %v3266
        %v3282 = vpack.c.bf16 %v3269, %v3268
        %v3283 = vpack.c.bf16 %v3271, %v3270
        %v3284 = vpack.c.bf16 %v3273, %v3272
        %v3285 = vpack.c.bf16 %v3275, %v3274
        %v3286 = vpack.c.bf16 %v3277, %v3276
        %v3287 = vpack.c.bf16 %v3279, %v3278
        %v3288 = vld [vmem:[%s12] sm:$0xff]
        %v3289 = vld [vmem:[%s12 + $0x8] sm:$0xff]
        %v3290 = vld [vmem:[%s12 + $0x10] sm:$0xff]
        %v3291 = vld [vmem:[%s12 + $0x18] sm:$0xff]
        %v3292 = vld [vmem:[%s12 + $0x20] sm:$0xff]
        %v3293 = vld [vmem:[%s12 + $0x28] sm:$0xff]
        %v3294 = vld [vmem:[%s12 + $0x30] sm:$0xff]
        %v3295 = vld [vmem:[%s12 + $0x38] sm:$0xff]
        %v3296 = vld [vmem:[%s12 + $0x40] sm:$0xff]
        %v3297 = vld [vmem:[%s12 + $0x48] sm:$0xff]
        %v3298 = vld [vmem:[%s12 + $0x50] sm:$0xff]
        %v3299 = vld [vmem:[%s12 + $0x58] sm:$0xff]
        %v3300 = vld [vmem:[%s12 + $0x60] sm:$0xff]
        %v3301 = vld [vmem:[%s12 + $0x68] sm:$0xff]
        %v3302 = vld [vmem:[%s12 + $0x70] sm:$0xff]
        %v3303 = vld [vmem:[%s12 + $0x78] sm:$0xff]
        %v3304 = vld [vmem:[%s13] sm:$0x3]
        %v3306 = vperm.slane %v3304, 0
        %v3307 = vperm.slane %v3304, 1
        %v3326 = vunpack.c.l.b16 %v3288
        %v3327 = vunpack.c.h.b16 %v3288
        %v3328 = vunpack.c.l.b16 %v3289
        %v3329 = vunpack.c.h.b16 %v3289
        %v3330 = vunpack.c.l.b16 %v3290
        %v3331 = vunpack.c.h.b16 %v3290
        %v3332 = vunpack.c.l.b16 %v3291
        %v3333 = vunpack.c.h.b16 %v3291
        %v3334 = vunpack.c.l.b16 %v3292
        %v3335 = vunpack.c.h.b16 %v3292
        %v3336 = vunpack.c.l.b16 %v3293
        %v3337 = vunpack.c.h.b16 %v3293
        %v3338 = vunpack.c.l.b16 %v3294
        %v3339 = vunpack.c.h.b16 %v3294
        %v3340 = vunpack.c.l.b16 %v3295
        %v3341 = vunpack.c.h.b16 %v3295
        %v3342 = vunpack.c.l.b16 %v3296
        %v3343 = vunpack.c.h.b16 %v3296
        %v3344 = vunpack.c.l.b16 %v3297
        %v3345 = vunpack.c.h.b16 %v3297
        %v3346 = vunpack.c.l.b16 %v3298
        %v3347 = vunpack.c.h.b16 %v3298
        %v3348 = vunpack.c.l.b16 %v3299
        %v3349 = vunpack.c.h.b16 %v3299
        %v3350 = vunpack.c.l.b16 %v3300
        %v3351 = vunpack.c.h.b16 %v3300
        %v3352 = vunpack.c.l.b16 %v3301
        %v3353 = vunpack.c.h.b16 %v3301
        %v3354 = vunpack.c.l.b16 %v3302
        %v3355 = vunpack.c.h.b16 %v3302
        %v3356 = vunpack.c.l.b16 %v3303
        %v3357 = vunpack.c.h.b16 %v3303
        %v3358 = vpack.c.b16 %v3328, %v3326
        %v3359 = vpack.c.b16 %v3329, %v3327
        %v3360 = vpack.c.b16 %v3332, %v3330
        %v3361 = vpack.c.b16 %v3333, %v3331
        %v3362 = vpack.c.b16 %v3336, %v3334
        %v3363 = vpack.c.b16 %v3337, %v3335
        %v3364 = vpack.c.b16 %v3340, %v3338
        %v3365 = vpack.c.b16 %v3341, %v3339
        %v3366 = vpack.c.b16 %v3344, %v3342
        %v3367 = vpack.c.b16 %v3345, %v3343
        %v3368 = vpack.c.b16 %v3348, %v3346
        %v3369 = vpack.c.b16 %v3349, %v3347
        %v3370 = vpack.c.b16 %v3352, %v3350
        %v3371 = vpack.c.b16 %v3353, %v3351
        %v3372 = vpack.c.b16 %v3356, %v3354
        %v3373 = vpack.c.b16 %v3357, %v3355
        %3390 = vmatpush.bf16.msra.mxu0 %v3372
        %3391 = vmatpush.bf16.msra.mxu0 %v3370
        %3392 = vmatpush.bf16.msra.mxu0 %v3368
        %3393 = vmatpush.bf16.msra.mxu0 %v3366
        %3394 = vmatpush.bf16.msra.mxu0 %v3364
        %3395 = vmatpush.bf16.msra.mxu0 %v3362
        %3396 = vmatpush.bf16.msra.mxu0 %v3360
        %3397 = vmatpush.bf16.msra.mxu0 %v3358
        %3398 = vmatmul.bf16.gmra.mxu0 %v3280
        %v3399 = vpop.f32.mrf.mxu0
        %v3400 = vadd.f32 %v3306, %v3399
        %v3401 = vpop.f32.mrf.mxu0
        %v3402 = vadd.f32 %v3306, %v3401
        %3403 = vmatmul.bf16.gmra.mxu0 %v3281
        %v3404 = vpop.f32.mrf.mxu0
        %v3405 = vadd.f32 %v3306, %v3404
        %v3406 = vpop.f32.mrf.mxu0
        %v3407 = vadd.f32 %v3306, %v3406
        %3408 = vmatmul.bf16.gmra.mxu0 %v3282
        %v3409 = vpop.f32.mrf.mxu0
        %v3410 = vadd.f32 %v3306, %v3409
        %v3411 = vpop.f32.mrf.mxu0
        %v3412 = vadd.f32 %v3306, %v3411
        %3413 = vmatmul.bf16.gmra.mxu0 %v3283
        %v3414 = vpop.f32.mrf.mxu0
        %v3415 = vadd.f32 %v3306, %v3414
        %v3416 = vpop.f32.mrf.mxu0
        %v3417 = vadd.f32 %v3306, %v3416
        %3418 = vmatmul.bf16.gmra.mxu0 %v3284
        %v3419 = vpop.f32.mrf.mxu0
        %v3420 = vadd.f32 %v3306, %v3419
        %v3421 = vpop.f32.mrf.mxu0
        %v3422 = vadd.f32 %v3306, %v3421
        %3423 = vmatmul.bf16.gmra.mxu0 %v3285
        %v3424 = vpop.f32.mrf.mxu0
        %v3425 = vadd.f32 %v3306, %v3424
        %v3426 = vpop.f32.mrf.mxu0
        %v3427 = vadd.f32 %v3306, %v3426
        %3428 = vmatmul.bf16.gmra.mxu0 %v3286
        %v3429 = vpop.f32.mrf.mxu0
        %v3430 = vadd.f32 %v3306, %v3429
        %v3431 = vpop.f32.mrf.mxu0
        %v3432 = vadd.f32 %v3306, %v3431
        %3433 = vmatmul.bf16.gmra.mxu0 %v3287
        %v3434 = vpop.f32.mrf.mxu0
        %v3435 = vadd.f32 %v3306, %v3434
        %v3436 = vpop.f32.mrf.mxu0
        %v3437 = vadd.f32 %v3306, %v3436
        %3438 = vdwg.mxu0
        %3439 = vmatpush.bf16.msra.mxu0 %v3373
        %3440 = vmatpush.bf16.msra.mxu0 %v3371
        %3441 = vmatpush.bf16.msra.mxu0 %v3369
        %3442 = vmatpush.bf16.msra.mxu0 %v3367
        %3443 = vmatpush.bf16.msra.mxu0 %v3365
        %3444 = vmatpush.bf16.msra.mxu0 %v3363
        %3445 = vmatpush.bf16.msra.mxu0 %v3361
        %3446 = vmatpush.bf16.msra.mxu0 %v3359
        %3447 = vmatmul.bf16.gmra.mxu0 %v3280
        %v3448 = vpop.f32.mrf.mxu0
        %v3449 = vadd.f32 %v3307, %v3448
        %v3450 = vpop.f32.mrf.mxu0
        %v3451 = vadd.f32 %v3307, %v3450
        %3452 = vmatmul.bf16.gmra.mxu0 %v3281
        %v3453 = vpop.f32.mrf.mxu0
        %v3454 = vadd.f32 %v3307, %v3453
        %v3455 = vpop.f32.mrf.mxu0
        %v3456 = vadd.f32 %v3307, %v3455
        %3457 = vmatmul.bf16.gmra.mxu0 %v3282
        %v3458 = vpop.f32.mrf.mxu0
        %v3459 = vadd.f32 %v3307, %v3458
        %v3460 = vpop.f32.mrf.mxu0
        %v3461 = vadd.f32 %v3307, %v3460
        %3462 = vmatmul.bf16.gmra.mxu0 %v3283
        %v3463 = vpop.f32.mrf.mxu0
        %v3464 = vadd.f32 %v3307, %v3463
        %v3465 = vpop.f32.mrf.mxu0
        %v3466 = vadd.f32 %v3307, %v3465
        %3467 = vmatmul.bf16.gmra.mxu0 %v3284
        %v3468 = vpop.f32.mrf.mxu0
        %v3469 = vadd.f32 %v3307, %v3468
        %v3470 = vpop.f32.mrf.mxu0
        %v3471 = vadd.f32 %v3307, %v3470
        %3472 = vmatmul.bf16.gmra.mxu0 %v3285
        %v3473 = vpop.f32.mrf.mxu0
        %v3474 = vadd.f32 %v3307, %v3473
        %v3475 = vpop.f32.mrf.mxu0
        %v3476 = vadd.f32 %v3307, %v3475
        %3477 = vmatmul.bf16.gmra.mxu0 %v3286
        %v3478 = vpop.f32.mrf.mxu0
        %v3479 = vadd.f32 %v3307, %v3478
        %v3480 = vpop.f32.mrf.mxu0
        %v3481 = vadd.f32 %v3307, %v3480
        %3482 = vmatmul.bf16.gmra.mxu0 %v3287
        %v3483 = vpop.f32.mrf.mxu0
        %v3484 = vadd.f32 %v3307, %v3483
        %v3485 = vpop.f32.mrf.mxu0
        %v3486 = vadd.f32 %v3307, %v3485
        %3487 = vdwg.mxu0
        %v3488 = vmul.f32 %v3400, %v3400
        %v3489 = vmul.f32 %v3449, %v3449
        %v3490 = vmul.f32 %v3402, %v3402
        %v3491 = vmul.f32 %v3451, %v3451
        %v3492 = vmul.f32 %v3405, %v3405
        %v3493 = vmul.f32 %v3454, %v3454
        %v3494 = vmul.f32 %v3407, %v3407
        %v3495 = vmul.f32 %v3456, %v3456
        %v3496 = vmul.f32 %v3410, %v3410
        %v3497 = vmul.f32 %v3459, %v3459
        %v3498 = vmul.f32 %v3412, %v3412
        %v3499 = vmul.f32 %v3461, %v3461
        %v3500 = vmul.f32 %v3415, %v3415
        %v3501 = vmul.f32 %v3464, %v3464
        %v3502 = vmul.f32 %v3417, %v3417
        %v3503 = vmul.f32 %v3466, %v3466
        %v3504 = vmul.f32 %v3420, %v3420
        %v3505 = vmul.f32 %v3469, %v3469
        %v3506 = vmul.f32 %v3422, %v3422
        %v3507 = vmul.f32 %v3471, %v3471
        %v3508 = vmul.f32 %v3425, %v3425
        %v3509 = vmul.f32 %v3474, %v3474
        %v3510 = vmul.f32 %v3427, %v3427
        %v3511 = vmul.f32 %v3476, %v3476
        %v3512 = vmul.f32 %v3430, %v3430
        %v3513 = vmul.f32 %v3479, %v3479
        %v3514 = vmul.f32 %v3432, %v3432
        %v3515 = vmul.f32 %v3481, %v3481
        %v3516 = vmul.f32 %v3435, %v3435
        %v3517 = vmul.f32 %v3484, %v3484
        %v3518 = vmul.f32 %v3437, %v3437
        %v3519 = vmul.f32 %v3486, %v3486
        %v3520 = vmul.f32 %v3400, %v3488
        %v3521 = vmul.f32 %v3449, %v3489
        %v3522 = vmul.f32 %v3402, %v3490
        %v3523 = vmul.f32 %v3451, %v3491
        %v3524 = vmul.f32 %v3405, %v3492
        %v3525 = vmul.f32 %v3454, %v3493
        %v3526 = vmul.f32 %v3407, %v3494
        %v3527 = vmul.f32 %v3456, %v3495
        %v3528 = vmul.f32 %v3410, %v3496
        %v3529 = vmul.f32 %v3459, %v3497
        %v3530 = vmul.f32 %v3412, %v3498
        %v3531 = vmul.f32 %v3461, %v3499
        %v3532 = vmul.f32 %v3415, %v3500
        %v3533 = vmul.f32 %v3464, %v3501
        %v3534 = vmul.f32 %v3417, %v3502
        %v3535 = vmul.f32 %v3466, %v3503
        %v3536 = vmul.f32 %v3420, %v3504
        %v3537 = vmul.f32 %v3469, %v3505
        %v3538 = vmul.f32 %v3422, %v3506
        %v3539 = vmul.f32 %v3471, %v3507
        %v3540 = vmul.f32 %v3425, %v3508
        %v3541 = vmul.f32 %v3474, %v3509
        %v3542 = vmul.f32 %v3427, %v3510
        %v3543 = vmul.f32 %v3476, %v3511
        %v3544 = vmul.f32 %v3430, %v3512
        %v3545 = vmul.f32 %v3479, %v3513
        %v3546 = vmul.f32 %v3432, %v3514
        %v3547 = vmul.f32 %v3481, %v3515
        %v3548 = vmul.f32 %v3435, %v3516
        %v3549 = vmul.f32 %v3484, %v3517
        %v3550 = vmul.f32 %v3437, %v3518
        %v3551 = vmul.f32 %v3486, %v3519
        %v3552 = vmul.f32 %v3520, 0.044715
        %v3553 = vmul.f32 %v3521, 0.044715
        %v3554 = vmul.f32 %v3522, 0.044715
        %v3555 = vmul.f32 %v3523, 0.044715
        %v3556 = vmul.f32 %v3524, 0.044715
        %v3557 = vmul.f32 %v3525, 0.044715
        %v3558 = vmul.f32 %v3526, 0.044715
        %v3559 = vmul.f32 %v3527, 0.044715
        %v3560 = vmul.f32 %v3528, 0.044715
        %v3561 = vmul.f32 %v3529, 0.044715
        %v3562 = vmul.f32 %v3530, 0.044715
        %v3563 = vmul.f32 %v3531, 0.044715
        %v3564 = vmul.f32 %v3532, 0.044715
        %v3565 = vmul.f32 %v3533, 0.044715
        %v3566 = vmul.f32 %v3534, 0.044715
        %v3567 = vmul.f32 %v3535, 0.044715
        %v3568 = vmul.f32 %v3536, 0.044715
        %v3569 = vmul.f32 %v3537, 0.044715
        %v3570 = vmul.f32 %v3538, 0.044715
        %v3571 = vmul.f32 %v3539, 0.044715
        %v3572 = vmul.f32 %v3540, 0.044715
        %v3573 = vmul.f32 %v3541, 0.044715
        %v3574 = vmul.f32 %v3542, 0.044715
        %v3575 = vmul.f32 %v3543, 0.044715
        %v3576 = vmul.f32 %v3544, 0.044715
        %v3577 = vmul.f32 %v3545, 0.044715
        %v3578 = vmul.f32 %v3546, 0.044715
        %v3579 = vmul.f32 %v3547, 0.044715
        %v3580 = vmul.f32 %v3548, 0.044715
        %v3581 = vmul.f32 %v3549, 0.044715
        %v3582 = vmul.f32 %v3550, 0.044715
        %v3583 = vmul.f32 %v3551, 0.044715
        %v3584 = vadd.f32 %v3400, %v3552
        %v3585 = vadd.f32 %v3449, %v3553
        %v3586 = vadd.f32 %v3402, %v3554
        %v3587 = vadd.f32 %v3451, %v3555
        %v3588 = vadd.f32 %v3405, %v3556
        %v3589 = vadd.f32 %v3454, %v3557
        %v3590 = vadd.f32 %v3407, %v3558
        %v3591 = vadd.f32 %v3456, %v3559
        %v3592 = vadd.f32 %v3410, %v3560
        %v3593 = vadd.f32 %v3459, %v3561
        %v3594 = vadd.f32 %v3412, %v3562
        %v3595 = vadd.f32 %v3461, %v3563
        %v3596 = vadd.f32 %v3415, %v3564
        %v3597 = vadd.f32 %v3464, %v3565
        %v3598 = vadd.f32 %v3417, %v3566
        %v3599 = vadd.f32 %v3466, %v3567
        %v3600 = vadd.f32 %v3420, %v3568
        %v3601 = vadd.f32 %v3469, %v3569
        %v3602 = vadd.f32 %v3422, %v3570
        %v3603 = vadd.f32 %v3471, %v3571
        %v3604 = vadd.f32 %v3425, %v3572
        %v3605 = vadd.f32 %v3474, %v3573
        %v3606 = vadd.f32 %v3427, %v3574
        %v3607 = vadd.f32 %v3476, %v3575
        %v3608 = vadd.f32 %v3430, %v3576
        %v3609 = vadd.f32 %v3479, %v3577
        %v3610 = vadd.f32 %v3432, %v3578
        %v3611 = vadd.f32 %v3481, %v3579
        %v3612 = vadd.f32 %v3435, %v3580
        %v3613 = vadd.f32 %v3484, %v3581
        %v3614 = vadd.f32 %v3437, %v3582
        %v3615 = vadd.f32 %v3486, %v3583
        %v3616 = vmul.f32 %v3584, 0.7978846
        %v3617 = vmul.f32 %v3585, 0.7978846
        %v3618 = vmul.f32 %v3586, 0.7978846
        %v3619 = vmul.f32 %v3587, 0.7978846
        %v3620 = vmul.f32 %v3588, 0.7978846
        %v3621 = vmul.f32 %v3589, 0.7978846
        %v3622 = vmul.f32 %v3590, 0.7978846
        %v3623 = vmul.f32 %v3591, 0.7978846
        %v3624 = vmul.f32 %v3592, 0.7978846
        %v3625 = vmul.f32 %v3593, 0.7978846
        %v3626 = vmul.f32 %v3594, 0.7978846
        %v3627 = vmul.f32 %v3595, 0.7978846
        %v3628 = vmul.f32 %v3596, 0.7978846
        %v3629 = vmul.f32 %v3597, 0.7978846
        %v3630 = vmul.f32 %v3598, 0.7978846
        %v3631 = vmul.f32 %v3599, 0.7978846
        %v3632 = vmul.f32 %v3600, 0.7978846
        %v3633 = vmul.f32 %v3601, 0.7978846
        %v3634 = vmul.f32 %v3602, 0.7978846
        %v3635 = vmul.f32 %v3603, 0.7978846
        %v3636 = vmul.f32 %v3604, 0.7978846
        %v3637 = vmul.f32 %v3605, 0.7978846
        %v3638 = vmul.f32 %v3606, 0.7978846
        %v3639 = vmul.f32 %v3607, 0.7978846
        %v3640 = vmul.f32 %v3608, 0.7978846
        %v3641 = vmul.f32 %v3609, 0.7978846
        %v3642 = vmul.f32 %v3610, 0.7978846
        %v3643 = vmul.f32 %v3611, 0.7978846
        %v3644 = vmul.f32 %v3612, 0.7978846
        %v3645 = vmul.f32 %v3613, 0.7978846
        %v3646 = vmul.f32 %v3614, 0.7978846
        %v3647 = vmul.f32 %v3615, 0.7978846
        %v3648 = vtanh.pop %v3616
        %v3649 = vtanh.pop %v3617
        %v3650 = vtanh.pop %v3618
        %v3651 = vtanh.pop %v3619
        %v3652 = vtanh.pop %v3620
        %v3653 = vtanh.pop %v3621
        %v3654 = vtanh.pop %v3622
        %v3655 = vtanh.pop %v3623
        %v3656 = vtanh.pop %v3624
        %v3657 = vtanh.pop %v3625
        %v3658 = vtanh.pop %v3626
        %v3659 = vtanh.pop %v3627
        %v3660 = vtanh.pop %v3628
        %v3661 = vtanh.pop %v3629
        %v3662 = vtanh.pop %v3630
        %v3663 = vtanh.pop %v3631
        %v3664 = vtanh.pop %v3632
        %v3665 = vtanh.pop %v3633
        %v3666 = vtanh.pop %v3634
        %v3667 = vtanh.pop %v3635
        %v3668 = vtanh.pop %v3636
        %v3669 = vtanh.pop %v3637
        %v3670 = vtanh.pop %v3638
        %v3671 = vtanh.pop %v3639
        %v3672 = vtanh.pop %v3640
        %v3673 = vtanh.pop %v3641
        %v3674 = vtanh.pop %v3642
        %v3675 = vtanh.pop %v3643
        %v3676 = vtanh.pop %v3644
        %v3677 = vtanh.pop %v3645
        %v3678 = vtanh.pop %v3646
        %v3679 = vtanh.pop %v3647
        %v3680 = vadd.f32 %v3648, 1.0
        %v3681 = vadd.f32 %v3649, 1.0
        %v3682 = vadd.f32 %v3650, 1.0
        %v3683 = vadd.f32 %v3651, 1.0
        %v3684 = vadd.f32 %v3652, 1.0
        %v3685 = vadd.f32 %v3653, 1.0
        %v3686 = vadd.f32 %v3654, 1.0
        %v3687 = vadd.f32 %v3655, 1.0
        %v3688 = vadd.f32 %v3656, 1.0
        %v3689 = vadd.f32 %v3657, 1.0
        %v3690 = vadd.f32 %v3658, 1.0
        %v3691 = vadd.f32 %v3659, 1.0
        %v3692 = vadd.f32 %v3660, 1.0
        %v3693 = vadd.f32 %v3661, 1.0
        %v3694 = vadd.f32 %v3662, 1.0
        %v3695 = vadd.f32 %v3663, 1.0
        %v3696 = vadd.f32 %v3664, 1.0
        %v3697 = vadd.f32 %v3665, 1.0
        %v3698 = vadd.f32 %v3666, 1.0
        %v3699 = vadd.f32 %v3667, 1.0
        %v3700 = vadd.f32 %v3668, 1.0
        %v3701 = vadd.f32 %v3669, 1.0
        %v3702 = vadd.f32 %v3670, 1.0
        %v3703 = vadd.f32 %v3671, 1.0
        %v3704 = vadd.f32 %v3672, 1.0
        %v3705 = vadd.f32 %v3673, 1.0
        %v3706 = vadd.f32 %v3674, 1.0
        %v3707 = vadd.f32 %v3675, 1.0
        %v3708 = vadd.f32 %v3676, 1.0
        %v3709 = vadd.f32 %v3677, 1.0
        %v3710 = vadd.f32 %v3678, 1.0
        %v3711 = vadd.f32 %v3679, 1.0
        %v3712 = vmul.f32 %v3680, 0.5
        %v3713 = vmul.f32 %v3681, 0.5
        %v3714 = vmul.f32 %v3682, 0.5
        %v3715 = vmul.f32 %v3683, 0.5
        %v3716 = vmul.f32 %v3684, 0.5
        %v3717 = vmul.f32 %v3685, 0.5
        %v3718 = vmul.f32 %v3686, 0.5
        %v3719 = vmul.f32 %v3687, 0.5
        %v3720 = vmul.f32 %v3688, 0.5
        %v3721 = vmul.f32 %v3689, 0.5
        %v3722 = vmul.f32 %v3690, 0.5
        %v3723 = vmul.f32 %v3691, 0.5
        %v3724 = vmul.f32 %v3692, 0.5
        %v3725 = vmul.f32 %v3693, 0.5
        %v3726 = vmul.f32 %v3694, 0.5
        %v3727 = vmul.f32 %v3695, 0.5
        %v3728 = vmul.f32 %v3696, 0.5
        %v3729 = vmul.f32 %v3697, 0.5
        %v3730 = vmul.f32 %v3698, 0.5
        %v3731 = vmul.f32 %v3699, 0.5
        %v3732 = vmul.f32 %v3700, 0.5
        %v3733 = vmul.f32 %v3701, 0.5
        %v3734 = vmul.f32 %v3702, 0.5
        %v3735 = vmul.f32 %v3703, 0.5
        %v3736 = vmul.f32 %v3704, 0.5
        %v3737 = vmul.f32 %v3705, 0.5
        %v3738 = vmul.f32 %v3706, 0.5
        %v3739 = vmul.f32 %v3707, 0.5
        %v3740 = vmul.f32 %v3708, 0.5
        %v3741 = vmul.f32 %v3709, 0.5
        %v3742 = vmul.f32 %v3710, 0.5
        %v3743 = vmul.f32 %v3711, 0.5
        %v3744 = vmul.f32 %v3400, %v3712
        %v3745 = vmul.f32 %v3449, %v3713
        %v3746 = vmul.f32 %v3402, %v3714
        %v3747 = vmul.f32 %v3451, %v3715
        %v3748 = vmul.f32 %v3405, %v3716
        %v3749 = vmul.f32 %v3454, %v3717
        %v3750 = vmul.f32 %v3407, %v3718
        %v3751 = vmul.f32 %v3456, %v3719
        %v3752 = vmul.f32 %v3410, %v3720
        %v3753 = vmul.f32 %v3459, %v3721
        %v3754 = vmul.f32 %v3412, %v3722
        %v3755 = vmul.f32 %v3461, %v3723
        %v3756 = vmul.f32 %v3415, %v3724
        %v3757 = vmul.f32 %v3464, %v3725
        %v3758 = vmul.f32 %v3417, %v3726
        %v3759 = vmul.f32 %v3466, %v3727
        %v3760 = vmul.f32 %v3420, %v3728
        %v3761 = vmul.f32 %v3469, %v3729
        %v3762 = vmul.f32 %v3422, %v3730
        %v3763 = vmul.f32 %v3471, %v3731
        %v3764 = vmul.f32 %v3425, %v3732
        %v3765 = vmul.f32 %v3474, %v3733
        %v3766 = vmul.f32 %v3427, %v3734
        %v3767 = vmul.f32 %v3476, %v3735
        %v3768 = vmul.f32 %v3430, %v3736
        %v3769 = vmul.f32 %v3479, %v3737
        %v3770 = vmul.f32 %v3432, %v3738
        %v3771 = vmul.f32 %v3481, %v3739
        %v3772 = vmul.f32 %v3435, %v3740
        %v3773 = vmul.f32 %v3484, %v3741
        %v3774 = vmul.f32 %v3437, %v3742
        %v3775 = vmul.f32 %v3486, %v3743
        %v3776 = vpack.c.bf16 %v3746, %v3744
        %v3777 = vpack.c.bf16 %v3747, %v3745
        %v3778 = vpack.c.bf16 %v3750, %v3748
        %v3779 = vpack.c.bf16 %v3751, %v3749
        %v3780 = vpack.c.bf16 %v3754, %v3752
        %v3781 = vpack.c.bf16 %v3755, %v3753
        %v3782 = vpack.c.bf16 %v3758, %v3756
        %v3783 = vpack.c.bf16 %v3759, %v3757
        %v3784 = vpack.c.bf16 %v3762, %v3760
        %v3785 = vpack.c.bf16 %v3763, %v3761
        %v3786 = vpack.c.bf16 %v3766, %v3764
        %v3787 = vpack.c.bf16 %v3767, %v3765
        %v3788 = vpack.c.bf16 %v3770, %v3768
        %v3789 = vpack.c.bf16 %v3771, %v3769
        %v3790 = vpack.c.bf16 %v3774, %v3772
        %v3791 = vpack.c.bf16 %v3775, %v3773
        %v3792 = vld [vmem:[#allocation5] sm:$0xf]
        %v3793 = vld [vmem:[#allocation5 + $0x4] sm:$0xf]
        %v3794 = vld [vmem:[#allocation5 + $0x8] sm:$0xf]
        %v3795 = vld [vmem:[#allocation5 + $0xc] sm:$0xf]
        %v3796 = vld [vmem:[#allocation5 + $0x10] sm:$0xf]
        %v3797 = vld [vmem:[#allocation5 + $0x14] sm:$0xf]
        %v3798 = vld [vmem:[#allocation5 + $0x18] sm:$0xf]
        %v3799 = vld [vmem:[#allocation5 + $0x1c] sm:$0xf]
        %v3800 = vld [vmem:[#allocation5 + $0x20] sm:$0xf]
        %v3801 = vld [vmem:[#allocation5 + $0x24] sm:$0xf]
        %v3802 = vld [vmem:[#allocation5 + $0x28] sm:$0xf]
        %v3803 = vld [vmem:[#allocation5 + $0x2c] sm:$0xf]
        %v3804 = vld [vmem:[#allocation5 + $0x30] sm:$0xf]
        %v3805 = vld [vmem:[#allocation5 + $0x34] sm:$0xf]
        %v3806 = vld [vmem:[#allocation5 + $0x38] sm:$0xf]
        %v3807 = vld [vmem:[#allocation5 + $0x3c] sm:$0xf]
        %v3808 = vld [vmem:[#allocation5 + $0x40] sm:$0xf]
        %v3809 = vld [vmem:[#allocation5 + $0x44] sm:$0xf]
        %v3810 = vld [vmem:[#allocation5 + $0x48] sm:$0xf]
        %v3811 = vld [vmem:[#allocation5 + $0x4c] sm:$0xf]
        %v3812 = vld [vmem:[#allocation5 + $0x50] sm:$0xf]
        %v3813 = vld [vmem:[#allocation5 + $0x54] sm:$0xf]
        %v3814 = vld [vmem:[#allocation5 + $0x58] sm:$0xf]
        %v3815 = vld [vmem:[#allocation5 + $0x5c] sm:$0xf]
        %v3816 = vld [vmem:[#allocation5 + $0x60] sm:$0xf]
        %v3817 = vld [vmem:[#allocation5 + $0x64] sm:$0xf]
        %v3818 = vld [vmem:[#allocation5 + $0x68] sm:$0xf]
        %v3819 = vld [vmem:[#allocation5 + $0x6c] sm:$0xf]
        %v3820 = vld [vmem:[#allocation5 + $0x70] sm:$0xf]
        %v3821 = vld [vmem:[#allocation5 + $0x74] sm:$0xf]
        %v3822 = vld [vmem:[#allocation5 + $0x78] sm:$0xf]
        %v3823 = vld [vmem:[#allocation5 + $0x7c] sm:$0xf]
        %v3824 = vld [vmem:[%s15] sm:$0x1]
        %v3826 = vperm.slane %v3824, 0
        %v3860 = vunpack.c.l.b16 %v3792
        %v3861 = vunpack.c.l.b16 %v3793
        %v3862 = vunpack.c.l.b16 %v3794
        %v3863 = vunpack.c.l.b16 %v3795
        %v3864 = vunpack.c.l.b16 %v3796
        %v3865 = vunpack.c.l.b16 %v3797
        %v3866 = vunpack.c.l.b16 %v3798
        %v3867 = vunpack.c.l.b16 %v3799
        %v3868 = vunpack.c.l.b16 %v3800
        %v3869 = vunpack.c.l.b16 %v3801
        %v3870 = vunpack.c.l.b16 %v3802
        %v3871 = vunpack.c.l.b16 %v3803
        %v3872 = vunpack.c.l.b16 %v3804
        %v3873 = vunpack.c.l.b16 %v3805
        %v3874 = vunpack.c.l.b16 %v3806
        %v3875 = vunpack.c.l.b16 %v3807
        %v3876 = vunpack.c.l.b16 %v3808
        %v3877 = vunpack.c.l.b16 %v3809
        %v3878 = vunpack.c.l.b16 %v3810
        %v3879 = vunpack.c.l.b16 %v3811
        %v3880 = vunpack.c.l.b16 %v3812
        %v3881 = vunpack.c.l.b16 %v3813
        %v3882 = vunpack.c.l.b16 %v3814
        %v3883 = vunpack.c.l.b16 %v3815
        %v3884 = vunpack.c.l.b16 %v3816
        %v3885 = vunpack.c.l.b16 %v3817
        %v3886 = vunpack.c.l.b16 %v3818
        %v3887 = vunpack.c.l.b16 %v3819
        %v3888 = vunpack.c.l.b16 %v3820
        %v3889 = vunpack.c.l.b16 %v3821
        %v3890 = vunpack.c.l.b16 %v3822
        %v3891 = vunpack.c.l.b16 %v3823
        %v3892 = vpack.c.b16 %v3861, %v3860
        %v3893 = vpack.c.b16 %v3863, %v3862
        %v3894 = vpack.c.b16 %v3865, %v3864
        %v3895 = vpack.c.b16 %v3867, %v3866
        %v3896 = vpack.c.b16 %v3869, %v3868
        %v3897 = vpack.c.b16 %v3871, %v3870
        %v3898 = vpack.c.b16 %v3873, %v3872
        %v3899 = vpack.c.b16 %v3875, %v3874
        %v3900 = vpack.c.b16 %v3877, %v3876
        %v3901 = vpack.c.b16 %v3879, %v3878
        %v3902 = vpack.c.b16 %v3881, %v3880
        %v3903 = vpack.c.b16 %v3883, %v3882
        %v3904 = vpack.c.b16 %v3885, %v3884
        %v3905 = vpack.c.b16 %v3887, %v3886
        %v3906 = vpack.c.b16 %v3889, %v3888
        %v3907 = vpack.c.b16 %v3891, %v3890
        %3924 = vmatpush.bf16.msra.mxu0 %v3899
        %3925 = vmatpush.bf16.msra.mxu0 %v3898
        %3926 = vmatpush.bf16.msra.mxu0 %v3897
        %3927 = vmatpush.bf16.msra.mxu0 %v3896
        %3928 = vmatpush.bf16.msra.mxu0 %v3895
        %3929 = vmatpush.bf16.msra.mxu0 %v3894
        %3930 = vmatpush.bf16.msra.mxu0 %v3893
        %3931 = vmatpush.bf16.msra.mxu0 %v3892
        %3932 = vmatmul.bf16.gmra.mxu0 %v3776
        %v3933 = vpop.f32.mrf.mxu0
        %v3934 = vadd.f32 %v3826, %v3933
        %v3935 = vpop.f32.mrf.mxu0
        %v3936 = vadd.f32 %v3826, %v3935
        %3937 = vmatmul.bf16.gmra.mxu0 %v3778
        %v3938 = vpop.f32.mrf.mxu0
        %v3939 = vadd.f32 %v3826, %v3938
        %v3940 = vpop.f32.mrf.mxu0
        %v3941 = vadd.f32 %v3826, %v3940
        %3942 = vmatmul.bf16.gmra.mxu0 %v3780
        %v3943 = vpop.f32.mrf.mxu0
        %v3944 = vadd.f32 %v3826, %v3943
        %v3945 = vpop.f32.mrf.mxu0
        %v3946 = vadd.f32 %v3826, %v3945
        %3947 = vmatmul.bf16.gmra.mxu0 %v3782
        %v3948 = vpop.f32.mrf.mxu0
        %v3949 = vadd.f32 %v3826, %v3948
        %v3950 = vpop.f32.mrf.mxu0
        %v3951 = vadd.f32 %v3826, %v3950
        %3952 = vmatmul.bf16.gmra.mxu0 %v3784
        %v3953 = vpop.f32.mrf.mxu0
        %v3954 = vadd.f32 %v3826, %v3953
        %v3955 = vpop.f32.mrf.mxu0
        %v3956 = vadd.f32 %v3826, %v3955
        %3957 = vmatmul.bf16.gmra.mxu0 %v3786
        %v3958 = vpop.f32.mrf.mxu0
        %v3959 = vadd.f32 %v3826, %v3958
        %v3960 = vpop.f32.mrf.mxu0
        %v3961 = vadd.f32 %v3826, %v3960
        %3962 = vmatmul.bf16.gmra.mxu0 %v3788
        %v3963 = vpop.f32.mrf.mxu0
        %v3964 = vadd.f32 %v3826, %v3963
        %v3965 = vpop.f32.mrf.mxu0
        %v3966 = vadd.f32 %v3826, %v3965
        %3967 = vmatmul.bf16.gmra.mxu0 %v3790
        %v3968 = vpop.f32.mrf.mxu0
        %v3969 = vadd.f32 %v3826, %v3968
        %v3970 = vpop.f32.mrf.mxu0
        %v3971 = vadd.f32 %v3826, %v3970
        %3972 = vdwg.mxu0
        %3973 = vmatpush.bf16.msra.mxu0 %v3907
        %3974 = vmatpush.bf16.msra.mxu0 %v3906
        %3975 = vmatpush.bf16.msra.mxu0 %v3905
        %3976 = vmatpush.bf16.msra.mxu0 %v3904
        %3977 = vmatpush.bf16.msra.mxu0 %v3903
        %3978 = vmatpush.bf16.msra.mxu0 %v3902
        %3979 = vmatpush.bf16.msra.mxu0 %v3901
        %3980 = vmatpush.bf16.msra.mxu0 %v3900
        %3981 = vmatmul.bf16.gmra.mxu0 %v3777
        %v3982 = vpop.f32.mrf.mxu0
        %v3983 = vadd.f32 %v3934, %v3982
        %v3984 = vpop.f32.mrf.mxu0
        %v3985 = vadd.f32 %v3936, %v3984
        %3986 = vmatmul.bf16.gmra.mxu0 %v3779
        %v3987 = vpop.f32.mrf.mxu0
        %v3988 = vadd.f32 %v3939, %v3987
        %v3989 = vpop.f32.mrf.mxu0
        %v3990 = vadd.f32 %v3941, %v3989
        %3991 = vmatmul.bf16.gmra.mxu0 %v3781
        %v3992 = vpop.f32.mrf.mxu0
        %v3993 = vadd.f32 %v3944, %v3992
        %v3994 = vpop.f32.mrf.mxu0
        %v3995 = vadd.f32 %v3946, %v3994
        %3996 = vmatmul.bf16.gmra.mxu0 %v3783
        %v3997 = vpop.f32.mrf.mxu0
        %v3998 = vadd.f32 %v3949, %v3997
        %v3999 = vpop.f32.mrf.mxu0
        %v4000 = vadd.f32 %v3951, %v3999
        %4001 = vmatmul.bf16.gmra.mxu0 %v3785
        %v4002 = vpop.f32.mrf.mxu0
        %v4003 = vadd.f32 %v3954, %v4002
        %v4004 = vpop.f32.mrf.mxu0
        %v4005 = vadd.f32 %v3956, %v4004
        %4006 = vmatmul.bf16.gmra.mxu0 %v3787
        %v4007 = vpop.f32.mrf.mxu0
        %v4008 = vadd.f32 %v3959, %v4007
        %v4009 = vpop.f32.mrf.mxu0
        %v4010 = vadd.f32 %v3961, %v4009
        %4011 = vmatmul.bf16.gmra.mxu0 %v3789
        %v4012 = vpop.f32.mrf.mxu0
        %v4013 = vadd.f32 %v3964, %v4012
        %v4014 = vpop.f32.mrf.mxu0
        %v4015 = vadd.f32 %v3966, %v4014
        %4016 = vmatmul.bf16.gmra.mxu0 %v3791
        %v4017 = vpop.f32.mrf.mxu0
        %v4018 = vadd.f32 %v3969, %v4017
        %v4019 = vpop.f32.mrf.mxu0
        %v4020 = vadd.f32 %v3971, %v4019
        %4021 = vdwg.mxu0
        %v4022 = vadd.f32 %v3264, %v3983
        %v4023 = vadd.f32 %v3265, %v3985
        %v4024 = vadd.f32 %v3266, %v3988
        %v4025 = vadd.f32 %v3267, %v3990
        %v4026 = vadd.f32 %v3268, %v3993
        %v4027 = vadd.f32 %v3269, %v3995
        %v4028 = vadd.f32 %v3270, %v3998
        %v4029 = vadd.f32 %v3271, %v4000
        %v4030 = vadd.f32 %v3272, %v4003
        %v4031 = vadd.f32 %v3273, %v4005
        %v4032 = vadd.f32 %v3274, %v4008
        %v4033 = vadd.f32 %v3275, %v4010
        %v4034 = vadd.f32 %v3276, %v4013
        %v4035 = vadd.f32 %v3277, %v4015
        %v4036 = vadd.f32 %v3278, %v4018
        %v4037 = vadd.f32 %v3279, %v4020
        %v4038 = vld [vmem:[%s16] sm:$0x1]
        %v4039 = vld [vmem:[%s17] sm:$0x1]
        %4040 = vadd.xlane.f32.xlu0 %v4022
        %v4041 = vpop.xlane.xlu0 %4040
        %4042 = vadd.xlane.f32.xlu0 %v4023
        %v4043 = vpop.xlane.xlu0 %4042
        %4044 = vadd.xlane.f32.xlu0 %v4024
        %v4045 = vpop.xlane.xlu0 %4044
        %4046 = vadd.xlane.f32.xlu0 %v4025
        %v4047 = vpop.xlane.xlu0 %4046
        %4048 = vadd.xlane.f32.xlu0 %v4026
        %v4049 = vpop.xlane.xlu0 %4048
        %4050 = vadd.xlane.f32.xlu0 %v4027
        %v4051 = vpop.xlane.xlu0 %4050
        %4052 = vadd.xlane.f32.xlu0 %v4028
        %v4053 = vpop.xlane.xlu0 %4052
        %4054 = vadd.xlane.f32.xlu0 %v4029
        %v4055 = vpop.xlane.xlu0 %4054
        %4056 = vadd.xlane.f32.xlu0 %v4030
        %v4057 = vpop.xlane.xlu0 %4056
        %4058 = vadd.xlane.f32.xlu0 %v4031
        %v4059 = vpop.xlane.xlu0 %4058
        %4060 = vadd.xlane.f32.xlu0 %v4032
        %v4061 = vpop.xlane.xlu0 %4060
        %4062 = vadd.xlane.f32.xlu0 %v4033
        %v4063 = vpop.xlane.xlu0 %4062
        %4064 = vadd.xlane.f32.xlu0 %v4034
        %v4065 = vpop.xlane.xlu0 %4064
        %4066 = vadd.xlane.f32.xlu0 %v4035
        %v4067 = vpop.xlane.xlu0 %4066
        %4068 = vadd.xlane.f32.xlu0 %v4036
        %v4069 = vpop.xlane.xlu0 %4068
        %4070 = vadd.xlane.f32.xlu0 %v4037
        %v4071 = vpop.xlane.xlu0 %4070
        %v4072 = vmul.f32 %v4041, %v955
        %v4073 = vmul.f32 %v4043, %v955
        %v4074 = vmul.f32 %v4045, %v955
        %v4075 = vmul.f32 %v4047, %v955
        %v4076 = vmul.f32 %v4049, %v955
        %v4077 = vmul.f32 %v4051, %v955
        %v4078 = vmul.f32 %v4053, %v955
        %v4079 = vmul.f32 %v4055, %v955
        %v4080 = vmul.f32 %v4057, %v955
        %v4081 = vmul.f32 %v4059, %v955
        %v4082 = vmul.f32 %v4061, %v955
        %v4083 = vmul.f32 %v4063, %v955
        %v4084 = vmul.f32 %v4065, %v955
        %v4085 = vmul.f32 %v4067, %v955
        %v4086 = vmul.f32 %v4069, %v955
        %v4087 = vmul.f32 %v4071, %v955
        %v4088 = vsub.f32 %v4022, %v4072
        %v4089 = vsub.f32 %v4023, %v4073
        %v4090 = vsub.f32 %v4024, %v4074
        %v4091 = vsub.f32 %v4025, %v4075
        %v4092 = vsub.f32 %v4026, %v4076
        %v4093 = vsub.f32 %v4027, %v4077
        %v4094 = vsub.f32 %v4028, %v4078
        %v4095 = vsub.f32 %v4029, %v4079
        %v4096 = vsub.f32 %v4030, %v4080
        %v4097 = vsub.f32 %v4031, %v4081
        %v4098 = vsub.f32 %v4032, %v4082
        %v4099 = vsub.f32 %v4033, %v4083
        %v4100 = vsub.f32 %v4034, %v4084
        %v4101 = vsub.f32 %v4035, %v4085
        %v4102 = vsub.f32 %v4036, %v4086
        %v4103 = vsub.f32 %v4037, %v4087
        %v4104 = vmul.f32 %v4088, %v4088
        %v4105 = vmul.f32 %v4089, %v4089
        %v4106 = vmul.f32 %v4090, %v4090
        %v4107 = vmul.f32 %v4091, %v4091
        %v4108 = vmul.f32 %v4092, %v4092
        %v4109 = vmul.f32 %v4093, %v4093
        %v4110 = vmul.f32 %v4094, %v4094
        %v4111 = vmul.f32 %v4095, %v4095
        %v4112 = vmul.f32 %v4096, %v4096
        %v4113 = vmul.f32 %v4097, %v4097
        %v4114 = vmul.f32 %v4098, %v4098
        %v4115 = vmul.f32 %v4099, %v4099
        %v4116 = vmul.f32 %v4100, %v4100
        %v4117 = vmul.f32 %v4101, %v4101
        %v4118 = vmul.f32 %v4102, %v4102
        %v4119 = vmul.f32 %v4103, %v4103
        %4120 = vadd.xlane.f32.xlu0 %v4104
        %v4121 = vpop.xlane.xlu0 %4120
        %4122 = vadd.xlane.f32.xlu0 %v4105
        %v4123 = vpop.xlane.xlu0 %4122
        %4124 = vadd.xlane.f32.xlu0 %v4106
        %v4125 = vpop.xlane.xlu0 %4124
        %4126 = vadd.xlane.f32.xlu0 %v4107
        %v4127 = vpop.xlane.xlu0 %4126
        %4128 = vadd.xlane.f32.xlu0 %v4108
        %v4129 = vpop.xlane.xlu0 %4128
        %4130 = vadd.xlane.f32.xlu0 %v4109
        %v4131 = vpop.xlane.xlu0 %4130
        %4132 = vadd.xlane.f32.xlu0 %v4110
        %v4133 = vpop.xlane.xlu0 %4132
        %4134 = vadd.xlane.f32.xlu0 %v4111
        %v4135 = vpop.xlane.xlu0 %4134
        %4136 = vadd.xlane.f32.xlu0 %v4112
        %v4137 = vpop.xlane.xlu0 %4136
        %4138 = vadd.xlane.f32.xlu0 %v4113
        %v4139 = vpop.xlane.xlu0 %4138
        %4140 = vadd.xlane.f32.xlu0 %v4114
        %v4141 = vpop.xlane.xlu0 %4140
        %4142 = vadd.xlane.f32.xlu0 %v4115
        %v4143 = vpop.xlane.xlu0 %4142
        %4144 = vadd.xlane.f32.xlu0 %v4116
        %v4145 = vpop.xlane.xlu0 %4144
        %4146 = vadd.xlane.f32.xlu0 %v4117
        %v4147 = vpop.xlane.xlu0 %4146
        %4148 = vadd.xlane.f32.xlu0 %v4118
        %v4149 = vpop.xlane.xlu0 %4148
        %4150 = vadd.xlane.f32.xlu0 %v4119
        %v4151 = vpop.xlane.xlu0 %4150
        %v4152 = vmul.f32 %v4121, %v955
        %v4153 = vmul.f32 %v4123, %v955
        %v4154 = vmul.f32 %v4125, %v955
        %v4155 = vmul.f32 %v4127, %v955
        %v4156 = vmul.f32 %v4129, %v955
        %v4157 = vmul.f32 %v4131, %v955
        %v4158 = vmul.f32 %v4133, %v955
        %v4159 = vmul.f32 %v4135, %v955
        %v4160 = vmul.f32 %v4137, %v955
        %v4161 = vmul.f32 %v4139, %v955
        %v4162 = vmul.f32 %v4141, %v955
        %v4163 = vmul.f32 %v4143, %v955
        %v4164 = vmul.f32 %v4145, %v955
        %v4165 = vmul.f32 %v4147, %v955
        %v4166 = vmul.f32 %v4149, %v955
        %v4167 = vmul.f32 %v4151, %v955
        %v4168 = vadd.f32 %v4152, 1e-12
        %v4169 = vadd.f32 %v4153, 1e-12
        %v4170 = vadd.f32 %v4154, 1e-12
        %v4171 = vadd.f32 %v4155, 1e-12
        %v4172 = vadd.f32 %v4156, 1e-12
        %v4173 = vadd.f32 %v4157, 1e-12
        %v4174 = vadd.f32 %v4158, 1e-12
        %v4175 = vadd.f32 %v4159, 1e-12
        %v4176 = vadd.f32 %v4160, 1e-12
        %v4177 = vadd.f32 %v4161, 1e-12
        %v4178 = vadd.f32 %v4162, 1e-12
        %v4179 = vadd.f32 %v4163, 1e-12
        %v4180 = vadd.f32 %v4164, 1e-12
        %v4181 = vadd.f32 %v4165, 1e-12
        %v4182 = vadd.f32 %v4166, 1e-12
        %v4183 = vadd.f32 %v4167, 1e-12
        %v4184 = vrsqrt.pop %v4168
        %v4185 = vmul.f32 %v4184, %v4168
        %v4186 = vmul.f32 %v4185, %v4184
        %v4187 = vmul.f32 0.5, %v4186
        %v4188 = vsub.f32 1.5, %v4187
        %v4189 = vmul.f32 %v4184, %v4188
        %vm4190 = vweird.f32 %v4168
        %vm4191 = vweird.f32 %v4184
        %vm4192 = vmor %vm4190, %vm4191
        %v4193 = vsel %vm4192, %v4184, %v4189
        %v4194 = vrsqrt.pop %v4169
        %v4195 = vmul.f32 %v4194, %v4169
        %v4196 = vmul.f32 %v4195, %v4194
        %v4197 = vmul.f32 0.5, %v4196
        %v4198 = vsub.f32 1.5, %v4197
        %v4199 = vmul.f32 %v4194, %v4198
        %vm4200 = vweird.f32 %v4169
        %vm4201 = vweird.f32 %v4194
        %vm4202 = vmor %vm4200, %vm4201
        %v4203 = vsel %vm4202, %v4194, %v4199
        %v4204 = vrsqrt.pop %v4170
        %v4205 = vmul.f32 %v4204, %v4170
        %v4206 = vmul.f32 %v4205, %v4204
        %v4207 = vmul.f32 0.5, %v4206
        %v4208 = vsub.f32 1.5, %v4207
        %v4209 = vmul.f32 %v4204, %v4208
        %vm4210 = vweird.f32 %v4170
        %vm4211 = vweird.f32 %v4204
        %vm4212 = vmor %vm4210, %vm4211
        %v4213 = vsel %vm4212, %v4204, %v4209
        %v4214 = vrsqrt.pop %v4171
        %v4215 = vmul.f32 %v4214, %v4171
        %v4216 = vmul.f32 %v4215, %v4214
        %v4217 = vmul.f32 0.5, %v4216
        %v4218 = vsub.f32 1.5, %v4217
        %v4219 = vmul.f32 %v4214, %v4218
        %vm4220 = vweird.f32 %v4171
        %vm4221 = vweird.f32 %v4214
        %vm4222 = vmor %vm4220, %vm4221
        %v4223 = vsel %vm4222, %v4214, %v4219
        %v4224 = vrsqrt.pop %v4172
        %v4225 = vmul.f32 %v4224, %v4172
        %v4226 = vmul.f32 %v4225, %v4224
        %v4227 = vmul.f32 0.5, %v4226
        %v4228 = vsub.f32 1.5, %v4227
        %v4229 = vmul.f32 %v4224, %v4228
        %vm4230 = vweird.f32 %v4172
        %vm4231 = vweird.f32 %v4224
        %vm4232 = vmor %vm4230, %vm4231
        %v4233 = vsel %vm4232, %v4224, %v4229
        %v4234 = vrsqrt.pop %v4173
        %v4235 = vmul.f32 %v4234, %v4173
        %v4236 = vmul.f32 %v4235, %v4234
        %v4237 = vmul.f32 0.5, %v4236
        %v4238 = vsub.f32 1.5, %v4237
        %v4239 = vmul.f32 %v4234, %v4238
        %vm4240 = vweird.f32 %v4173
        %vm4241 = vweird.f32 %v4234
        %vm4242 = vmor %vm4240, %vm4241
        %v4243 = vsel %vm4242, %v4234, %v4239
        %v4244 = vrsqrt.pop %v4174
        %v4245 = vmul.f32 %v4244, %v4174
        %v4246 = vmul.f32 %v4245, %v4244
        %v4247 = vmul.f32 0.5, %v4246
        %v4248 = vsub.f32 1.5, %v4247
        %v4249 = vmul.f32 %v4244, %v4248
        %vm4250 = vweird.f32 %v4174
        %vm4251 = vweird.f32 %v4244
        %vm4252 = vmor %vm4250, %vm4251
        %v4253 = vsel %vm4252, %v4244, %v4249
        %v4254 = vrsqrt.pop %v4175
        %v4255 = vmul.f32 %v4254, %v4175
        %v4256 = vmul.f32 %v4255, %v4254
        %v4257 = vmul.f32 0.5, %v4256
        %v4258 = vsub.f32 1.5, %v4257
        %v4259 = vmul.f32 %v4254, %v4258
        %vm4260 = vweird.f32 %v4175
        %vm4261 = vweird.f32 %v4254
        %vm4262 = vmor %vm4260, %vm4261
        %v4263 = vsel %vm4262, %v4254, %v4259
        %v4264 = vrsqrt.pop %v4176
        %v4265 = vmul.f32 %v4264, %v4176
        %v4266 = vmul.f32 %v4265, %v4264
        %v4267 = vmul.f32 0.5, %v4266
        %v4268 = vsub.f32 1.5, %v4267
        %v4269 = vmul.f32 %v4264, %v4268
        %vm4270 = vweird.f32 %v4176
        %vm4271 = vweird.f32 %v4264
        %vm4272 = vmor %vm4270, %vm4271
        %v4273 = vsel %vm4272, %v4264, %v4269
        %v4274 = vrsqrt.pop %v4177
        %v4275 = vmul.f32 %v4274, %v4177
        %v4276 = vmul.f32 %v4275, %v4274
        %v4277 = vmul.f32 0.5, %v4276
        %v4278 = vsub.f32 1.5, %v4277
        %v4279 = vmul.f32 %v4274, %v4278
        %vm4280 = vweird.f32 %v4177
        %vm4281 = vweird.f32 %v4274
        %vm4282 = vmor %vm4280, %vm4281
        %v4283 = vsel %vm4282, %v4274, %v4279
        %v4284 = vrsqrt.pop %v4178
        %v4285 = vmul.f32 %v4284, %v4178
        %v4286 = vmul.f32 %v4285, %v4284
        %v4287 = vmul.f32 0.5, %v4286
        %v4288 = vsub.f32 1.5, %v4287
        %v4289 = vmul.f32 %v4284, %v4288
        %vm4290 = vweird.f32 %v4178
        %vm4291 = vweird.f32 %v4284
        %vm4292 = vmor %vm4290, %vm4291
        %v4293 = vsel %vm4292, %v4284, %v4289
        %v4294 = vrsqrt.pop %v4179
        %v4295 = vmul.f32 %v4294, %v4179
        %v4296 = vmul.f32 %v4295, %v4294
        %v4297 = vmul.f32 0.5, %v4296
        %v4298 = vsub.f32 1.5, %v4297
        %v4299 = vmul.f32 %v4294, %v4298
        %vm4300 = vweird.f32 %v4179
        %vm4301 = vweird.f32 %v4294
        %vm4302 = vmor %vm4300, %vm4301
        %v4303 = vsel %vm4302, %v4294, %v4299
        %v4304 = vrsqrt.pop %v4180
        %v4305 = vmul.f32 %v4304, %v4180
        %v4306 = vmul.f32 %v4305, %v4304
        %v4307 = vmul.f32 0.5, %v4306
        %v4308 = vsub.f32 1.5, %v4307
        %v4309 = vmul.f32 %v4304, %v4308
        %vm4310 = vweird.f32 %v4180
        %vm4311 = vweird.f32 %v4304
        %vm4312 = vmor %vm4310, %vm4311
        %v4313 = vsel %vm4312, %v4304, %v4309
        %v4314 = vrsqrt.pop %v4181
        %v4315 = vmul.f32 %v4314, %v4181
        %v4316 = vmul.f32 %v4315, %v4314
        %v4317 = vmul.f32 0.5, %v4316
        %v4318 = vsub.f32 1.5, %v4317
        %v4319 = vmul.f32 %v4314, %v4318
        %vm4320 = vweird.f32 %v4181
        %vm4321 = vweird.f32 %v4314
        %vm4322 = vmor %vm4320, %vm4321
        %v4323 = vsel %vm4322, %v4314, %v4319
        %v4324 = vrsqrt.pop %v4182
        %v4325 = vmul.f32 %v4324, %v4182
        %v4326 = vmul.f32 %v4325, %v4324
        %v4327 = vmul.f32 0.5, %v4326
        %v4328 = vsub.f32 1.5, %v4327
        %v4329 = vmul.f32 %v4324, %v4328
        %vm4330 = vweird.f32 %v4182
        %vm4331 = vweird.f32 %v4324
        %vm4332 = vmor %vm4330, %vm4331
        %v4333 = vsel %vm4332, %v4324, %v4329
        %v4334 = vrsqrt.pop %v4183
        %v4335 = vmul.f32 %v4334, %v4183
        %v4336 = vmul.f32 %v4335, %v4334
        %v4337 = vmul.f32 0.5, %v4336
        %v4338 = vsub.f32 1.5, %v4337
        %v4339 = vmul.f32 %v4334, %v4338
        %vm4340 = vweird.f32 %v4183
        %vm4341 = vweird.f32 %v4334
        %vm4342 = vmor %vm4340, %vm4341
        %v4343 = vsel %vm4342, %v4334, %v4339
        %v4344 = vmul.f32 %v4088, %v4193
        %v4345 = vmul.f32 %v4089, %v4203
        %v4346 = vmul.f32 %v4090, %v4213
        %v4347 = vmul.f32 %v4091, %v4223
        %v4348 = vmul.f32 %v4092, %v4233
        %v4349 = vmul.f32 %v4093, %v4243
        %v4350 = vmul.f32 %v4094, %v4253
        %v4351 = vmul.f32 %v4095, %v4263
        %v4352 = vmul.f32 %v4096, %v4273
        %v4353 = vmul.f32 %v4097, %v4283
        %v4354 = vmul.f32 %v4098, %v4293
        %v4355 = vmul.f32 %v4099, %v4303
        %v4356 = vmul.f32 %v4100, %v4313
        %v4357 = vmul.f32 %v4101, %v4323
        %v4358 = vmul.f32 %v4102, %v4333
        %v4359 = vmul.f32 %v4103, %v4343
        %v4361 = vperm.slane %v4038, 0
        %v4363 = vmul.f32 %v4344, %v4361
        %v4364 = vmul.f32 %v4345, %v4361
        %v4365 = vmul.f32 %v4346, %v4361
        %v4366 = vmul.f32 %v4347, %v4361
        %v4367 = vmul.f32 %v4348, %v4361
        %v4368 = vmul.f32 %v4349, %v4361
        %v4369 = vmul.f32 %v4350, %v4361
        %v4370 = vmul.f32 %v4351, %v4361
        %v4371 = vmul.f32 %v4352, %v4361
        %v4372 = vmul.f32 %v4353, %v4361
        %v4373 = vmul.f32 %v4354, %v4361
        %v4374 = vmul.f32 %v4355, %v4361
        %v4375 = vmul.f32 %v4356, %v4361
        %v4376 = vmul.f32 %v4357, %v4361
        %v4377 = vmul.f32 %v4358, %v4361
        %v4378 = vmul.f32 %v4359, %v4361
        %v4380 = vperm.slane %v4039, 0
        %v4382 = vadd.f32 %v4363, %v4380
        %v4383 = vadd.f32 %v4364, %v4380
        %v4384 = vadd.f32 %v4365, %v4380
        %v4385 = vadd.f32 %v4366, %v4380
        %v4386 = vadd.f32 %v4367, %v4380
        %v4387 = vadd.f32 %v4368, %v4380
        %v4388 = vadd.f32 %v4369, %v4380
        %v4389 = vadd.f32 %v4370, %v4380
        %v4390 = vadd.f32 %v4371, %v4380
        %v4391 = vadd.f32 %v4372, %v4380
        %v4392 = vadd.f32 %v4373, %v4380
        %v4393 = vadd.f32 %v4374, %v4380
        %v4394 = vadd.f32 %v4375, %v4380
        %v4395 = vadd.f32 %v4376, %v4380
        %v4396 = vadd.f32 %v4377, %v4380
        %v4397 = vadd.f32 %v4378, %v4380
        %v4398 = vpack.c.bf16 %v4383, %v4382
        %v4399 = vpack.c.bf16 %v4385, %v4384
        %v4400 = vpack.c.bf16 %v4387, %v4386
        %v4401 = vpack.c.bf16 %v4389, %v4388
        %v4402 = vpack.c.bf16 %v4391, %v4390
        %v4403 = vpack.c.bf16 %v4393, %v4392
        %v4404 = vpack.c.bf16 %v4395, %v4394
        %v4405 = vpack.c.bf16 %v4397, %v4396
        %s4406 = scalar_lea.vmem [#allocation3], 384
        %v4407 = vld [vmem:[%s4406] sm:$0xff]
        %v4408 = vld [vmem:[%s4406 + $0x8] sm:$0xff]
        %v4409 = vld [vmem:[%s4406 + $0x10] sm:$0xff]
        %v4410 = vld [vmem:[%s4406 + $0x18] sm:$0xff]
        %v4411 = vld [vmem:[%s4406 + $0x20] sm:$0xff]
        %v4412 = vld [vmem:[%s4406 + $0x28] sm:$0xff]
        %v4413 = vld [vmem:[%s4406 + $0x30] sm:$0xff]
        %v4414 = vld [vmem:[%s4406 + $0x38] sm:$0xff]
        %v4415 = vld [vmem:[%s4406 + $0x40] sm:$0xff]
        %v4416 = vld [vmem:[%s4406 + $0x48] sm:$0xff]
        %v4417 = vld [vmem:[%s4406 + $0x50] sm:$0xff]
        %v4418 = vld [vmem:[%s4406 + $0x58] sm:$0xff]
        %v4419 = vld [vmem:[%s4406 + $0x60] sm:$0xff]
        %v4420 = vld [vmem:[%s4406 + $0x68] sm:$0xff]
        %v4421 = vld [vmem:[%s4406 + $0x70] sm:$0xff]
        %v4422 = vld [vmem:[%s4406 + $0x78] sm:$0xff]
        %v4423 = vld [vmem:[%s4406 + $0x80] sm:$0xff]
        %v4424 = vld [vmem:[%s4406 + $0x88] sm:$0xff]
        %v4425 = vld [vmem:[%s4406 + $0x90] sm:$0xff]
        %v4426 = vld [vmem:[%s4406 + $0x98] sm:$0xff]
        %v4427 = vld [vmem:[%s4406 + $0xa0] sm:$0xff]
        %v4428 = vld [vmem:[%s4406 + $0xa8] sm:$0xff]
        %v4429 = vld [vmem:[%s4406 + $0xb0] sm:$0xff]
        %v4430 = vld [vmem:[%s4406 + $0xb8] sm:$0xff]
        %v4431 = vld [vmem:[%s4406 + $0xc0] sm:$0xff]
        %v4432 = vld [vmem:[%s4406 + $0xc8] sm:$0xff]
        %v4433 = vld [vmem:[%s4406 + $0xd0] sm:$0xff]
        %v4434 = vld [vmem:[%s4406 + $0xd8] sm:$0xff]
        %v4435 = vld [vmem:[%s4406 + $0xe0] sm:$0xff]
        %v4436 = vld [vmem:[%s4406 + $0xe8] sm:$0xff]
        %v4437 = vld [vmem:[%s4406 + $0xf0] sm:$0xff]
        %v4438 = vld [vmem:[%s4406 + $0xf8] sm:$0xff]
        %v4439 = vld [vmem:[%s4406 + $0x100] sm:$0xff]
        %v4440 = vld [vmem:[%s4406 + $0x108] sm:$0xff]
        %v4441 = vld [vmem:[%s4406 + $0x110] sm:$0xff]
        %v4442 = vld [vmem:[%s4406 + $0x118] sm:$0xff]
        %v4443 = vld [vmem:[%s4406 + $0x120] sm:$0xff]
        %v4444 = vld [vmem:[%s4406 + $0x128] sm:$0xff]
        %v4445 = vld [vmem:[%s4406 + $0x130] sm:$0xff]
        %v4446 = vld [vmem:[%s4406 + $0x138] sm:$0xff]
        %v4447 = vld [vmem:[%s4406 + $0x140] sm:$0xff]
        %v4448 = vld [vmem:[%s4406 + $0x148] sm:$0xff]
        %v4449 = vld [vmem:[%s4406 + $0x150] sm:$0xff]
        %v4450 = vld [vmem:[%s4406 + $0x158] sm:$0xff]
        %v4451 = vld [vmem:[%s4406 + $0x160] sm:$0xff]
        %v4452 = vld [vmem:[%s4406 + $0x168] sm:$0xff]
        %v4453 = vld [vmem:[%s4406 + $0x170] sm:$0xff]
        %v4454 = vld [vmem:[%s4406 + $0x178] sm:$0xff]
        %s4455 = scalar_lea.vmem %s7, 6
        %v4456 = vld [vmem:[%s4455] sm:$0x3f]
        %v4458 = vperm.slane %v4456, 0
        %v4459 = vperm.slane %v4456, 1
        %v4460 = vperm.slane %v4456, 2
        %v4461 = vperm.slane %v4456, 3
        %v4462 = vperm.slane %v4456, 4
        %v4463 = vperm.slane %v4456, 5
        %v4518 = vunpack.c.l.b16 %v4407
        %v4519 = vunpack.c.h.b16 %v4407
        %v4520 = vunpack.c.l.b16 %v4408
        %v4521 = vunpack.c.h.b16 %v4408
        %v4522 = vunpack.c.l.b16 %v4409
        %v4523 = vunpack.c.h.b16 %v4409
        %v4524 = vunpack.c.l.b16 %v4410
        %v4525 = vunpack.c.h.b16 %v4410
        %v4526 = vunpack.c.l.b16 %v4411
        %v4527 = vunpack.c.h.b16 %v4411
        %v4528 = vunpack.c.l.b16 %v4412
        %v4529 = vunpack.c.h.b16 %v4412
        %v4530 = vunpack.c.l.b16 %v4413
        %v4531 = vunpack.c.h.b16 %v4413
        %v4532 = vunpack.c.l.b16 %v4414
        %v4533 = vunpack.c.h.b16 %v4414
        %v4534 = vunpack.c.l.b16 %v4415
        %v4535 = vunpack.c.h.b16 %v4415
        %v4536 = vunpack.c.l.b16 %v4416
        %v4537 = vunpack.c.h.b16 %v4416
        %v4538 = vunpack.c.l.b16 %v4417
        %v4539 = vunpack.c.h.b16 %v4417
        %v4540 = vunpack.c.l.b16 %v4418
        %v4541 = vunpack.c.h.b16 %v4418
        %v4542 = vunpack.c.l.b16 %v4419
        %v4543 = vunpack.c.h.b16 %v4419
        %v4544 = vunpack.c.l.b16 %v4420
        %v4545 = vunpack.c.h.b16 %v4420
        %v4546 = vunpack.c.l.b16 %v4421
        %v4547 = vunpack.c.h.b16 %v4421
        %v4548 = vunpack.c.l.b16 %v4422
        %v4549 = vunpack.c.h.b16 %v4422
        %v4550 = vunpack.c.l.b16 %v4423
        %v4551 = vunpack.c.h.b16 %v4423
        %v4552 = vunpack.c.l.b16 %v4424
        %v4553 = vunpack.c.h.b16 %v4424
        %v4554 = vunpack.c.l.b16 %v4425
        %v4555 = vunpack.c.h.b16 %v4425
        %v4556 = vunpack.c.l.b16 %v4426
        %v4557 = vunpack.c.h.b16 %v4426
        %v4558 = vunpack.c.l.b16 %v4427
        %v4559 = vunpack.c.h.b16 %v4427
        %v4560 = vunpack.c.l.b16 %v4428
        %v4561 = vunpack.c.h.b16 %v4428
        %v4562 = vunpack.c.l.b16 %v4429
        %v4563 = vunpack.c.h.b16 %v4429
        %v4564 = vunpack.c.l.b16 %v4430
        %v4565 = vunpack.c.h.b16 %v4430
        %v4566 = vunpack.c.l.b16 %v4431
        %v4567 = vunpack.c.h.b16 %v4431
        %v4568 = vunpack.c.l.b16 %v4432
        %v4569 = vunpack.c.h.b16 %v4432
        %v4570 = vunpack.c.l.b16 %v4433
        %v4571 = vunpack.c.h.b16 %v4433
        %v4572 = vunpack.c.l.b16 %v4434
        %v4573 = vunpack.c.h.b16 %v4434
        %v4574 = vunpack.c.l.b16 %v4435
        %v4575 = vunpack.c.h.b16 %v4435
        %v4576 = vunpack.c.l.b16 %v4436
        %v4577 = vunpack.c.h.b16 %v4436
        %v4578 = vunpack.c.l.b16 %v4437
        %v4579 = vunpack.c.h.b16 %v4437
        %v4580 = vunpack.c.l.b16 %v4438
        %v4581 = vunpack.c.h.b16 %v4438
        %v4582 = vunpack.c.l.b16 %v4439
        %v4583 = vunpack.c.h.b16 %v4439
        %v4584 = vunpack.c.l.b16 %v4440
        %v4585 = vunpack.c.h.b16 %v4440
        %v4586 = vunpack.c.l.b16 %v4441
        %v4587 = vunpack.c.h.b16 %v4441
        %v4588 = vunpack.c.l.b16 %v4442
        %v4589 = vunpack.c.h.b16 %v4442
        %v4590 = vunpack.c.l.b16 %v4443
        %v4591 = vunpack.c.h.b16 %v4443
        %v4592 = vunpack.c.l.b16 %v4444
        %v4593 = vunpack.c.h.b16 %v4444
        %v4594 = vunpack.c.l.b16 %v4445
        %v4595 = vunpack.c.h.b16 %v4445
        %v4596 = vunpack.c.l.b16 %v4446
        %v4597 = vunpack.c.h.b16 %v4446
        %v4598 = vunpack.c.l.b16 %v4447
        %v4599 = vunpack.c.h.b16 %v4447
        %v4600 = vunpack.c.l.b16 %v4448
        %v4601 = vunpack.c.h.b16 %v4448
        %v4602 = vunpack.c.l.b16 %v4449
        %v4603 = vunpack.c.h.b16 %v4449
        %v4604 = vunpack.c.l.b16 %v4450
        %v4605 = vunpack.c.h.b16 %v4450
        %v4606 = vunpack.c.l.b16 %v4451
        %v4607 = vunpack.c.h.b16 %v4451
        %v4608 = vunpack.c.l.b16 %v4452
        %v4609 = vunpack.c.h.b16 %v4452
        %v4610 = vunpack.c.l.b16 %v4453
        %v4611 = vunpack.c.h.b16 %v4453
        %v4612 = vunpack.c.l.b16 %v4454
        %v4613 = vunpack.c.h.b16 %v4454
        %v4614 = vpack.c.b16 %v4524, %v4518
        %v4615 = vpack.c.b16 %v4525, %v4519
        %v4616 = vpack.c.b16 %v4526, %v4520
        %v4617 = vpack.c.b16 %v4527, %v4521
        %v4618 = vpack.c.b16 %v4528, %v4522
        %v4619 = vpack.c.b16 %v4529, %v4523
        %v4620 = vpack.c.b16 %v4536, %v4530
        %v4621 = vpack.c.b16 %v4537, %v4531
        %v4622 = vpack.c.b16 %v4538, %v4532
        %v4623 = vpack.c.b16 %v4539, %v4533
        %v4624 = vpack.c.b16 %v4540, %v4534
        %v4625 = vpack.c.b16 %v4541, %v4535
        %v4626 = vpack.c.b16 %v4548, %v4542
        %v4627 = vpack.c.b16 %v4549, %v4543
        %v4628 = vpack.c.b16 %v4550, %v4544
        %v4629 = vpack.c.b16 %v4551, %v4545
        %v4630 = vpack.c.b16 %v4552, %v4546
        %v4631 = vpack.c.b16 %v4553, %v4547
        %v4632 = vpack.c.b16 %v4560, %v4554
        %v4633 = vpack.c.b16 %v4561, %v4555
        %v4634 = vpack.c.b16 %v4562, %v4556
        %v4635 = vpack.c.b16 %v4563, %v4557
        %v4636 = vpack.c.b16 %v4564, %v4558
        %v4637 = vpack.c.b16 %v4565, %v4559
        %v4638 = vpack.c.b16 %v4572, %v4566
        %v4639 = vpack.c.b16 %v4573, %v4567
        %v4640 = vpack.c.b16 %v4574, %v4568
        %v4641 = vpack.c.b16 %v4575, %v4569
        %v4642 = vpack.c.b16 %v4576, %v4570
        %v4643 = vpack.c.b16 %v4577, %v4571
        %v4644 = vpack.c.b16 %v4584, %v4578
        %v4645 = vpack.c.b16 %v4585, %v4579
        %v4646 = vpack.c.b16 %v4586, %v4580
        %v4647 = vpack.c.b16 %v4587, %v4581
        %v4648 = vpack.c.b16 %v4588, %v4582
        %v4649 = vpack.c.b16 %v4589, %v4583
        %v4650 = vpack.c.b16 %v4596, %v4590
        %v4651 = vpack.c.b16 %v4597, %v4591
        %v4652 = vpack.c.b16 %v4598, %v4592
        %v4653 = vpack.c.b16 %v4599, %v4593
        %v4654 = vpack.c.b16 %v4600, %v4594
        %v4655 = vpack.c.b16 %v4601, %v4595
        %v4656 = vpack.c.b16 %v4608, %v4602
        %v4657 = vpack.c.b16 %v4609, %v4603
        %v4658 = vpack.c.b16 %v4610, %v4604
        %v4659 = vpack.c.b16 %v4611, %v4605
        %v4660 = vpack.c.b16 %v4612, %v4606
        %v4661 = vpack.c.b16 %v4613, %v4607
        %4710 = vmatpush.bf16.msra.mxu0 %v4656
        %4711 = vmatpush.bf16.msra.mxu0 %v4650
        %4712 = vmatpush.bf16.msra.mxu0 %v4644
        %4713 = vmatpush.bf16.msra.mxu0 %v4638
        %4714 = vmatpush.bf16.msra.mxu0 %v4632
        %4715 = vmatpush.bf16.msra.mxu0 %v4626
        %4716 = vmatpush.bf16.msra.mxu0 %v4620
        %4717 = vmatpush.bf16.msra.mxu0 %v4614
        %4718 = vmatmul.bf16.gmra.mxu0 %v4398
        %v4719 = vpop.f32.mrf.mxu0
        %v4720 = vadd.f32 %v4458, %v4719
        %v4721 = vpop.f32.mrf.mxu0
        %v4722 = vadd.f32 %v4458, %v4721
        %4723 = vmatmul.bf16.gmra.mxu0 %v4399
        %v4724 = vpop.f32.mrf.mxu0
        %v4725 = vadd.f32 %v4458, %v4724
        %v4726 = vpop.f32.mrf.mxu0
        %v4727 = vadd.f32 %v4458, %v4726
        %4728 = vmatmul.bf16.gmra.mxu0 %v4400
        %v4729 = vpop.f32.mrf.mxu0
        %v4730 = vadd.f32 %v4458, %v4729
        %v4731 = vpop.f32.mrf.mxu0
        %v4732 = vadd.f32 %v4458, %v4731
        %4733 = vmatmul.bf16.gmra.mxu0 %v4401
        %v4734 = vpop.f32.mrf.mxu0
        %v4735 = vadd.f32 %v4458, %v4734
        %v4736 = vpop.f32.mrf.mxu0
        %v4737 = vadd.f32 %v4458, %v4736
        %4738 = vmatmul.bf16.gmra.mxu0 %v4402
        %v4739 = vpop.f32.mrf.mxu0
        %v4740 = vadd.f32 %v4458, %v4739
        %v4741 = vpop.f32.mrf.mxu0
        %v4742 = vadd.f32 %v4458, %v4741
        %4743 = vmatmul.bf16.gmra.mxu0 %v4403
        %v4744 = vpop.f32.mrf.mxu0
        %v4745 = vadd.f32 %v4458, %v4744
        %v4746 = vpop.f32.mrf.mxu0
        %v4747 = vadd.f32 %v4458, %v4746
        %4748 = vmatmul.bf16.gmra.mxu0 %v4404
        %v4749 = vpop.f32.mrf.mxu0
        %v4750 = vadd.f32 %v4458, %v4749
        %v4751 = vpop.f32.mrf.mxu0
        %v4752 = vadd.f32 %v4458, %v4751
        %4753 = vmatmul.bf16.gmra.mxu0 %v4405
        %v4754 = vpop.f32.mrf.mxu0
        %v4755 = vadd.f32 %v4458, %v4754
        %v4756 = vpop.f32.mrf.mxu0
        %v4757 = vadd.f32 %v4458, %v4756
        %4758 = vdwg.mxu0
        %4759 = vmatpush.bf16.msra.mxu0 %v4657
        %4760 = vmatpush.bf16.msra.mxu0 %v4651
        %4761 = vmatpush.bf16.msra.mxu0 %v4645
        %4762 = vmatpush.bf16.msra.mxu0 %v4639
        %4763 = vmatpush.bf16.msra.mxu0 %v4633
        %4764 = vmatpush.bf16.msra.mxu0 %v4627
        %4765 = vmatpush.bf16.msra.mxu0 %v4621
        %4766 = vmatpush.bf16.msra.mxu0 %v4615
        %4767 = vmatmul.bf16.gmra.mxu0 %v4398
        %v4768 = vpop.f32.mrf.mxu0
        %v4769 = vadd.f32 %v4459, %v4768
        %v4770 = vpop.f32.mrf.mxu0
        %v4771 = vadd.f32 %v4459, %v4770
        %4772 = vmatmul.bf16.gmra.mxu0 %v4399
        %v4773 = vpop.f32.mrf.mxu0
        %v4774 = vadd.f32 %v4459, %v4773
        %v4775 = vpop.f32.mrf.mxu0
        %v4776 = vadd.f32 %v4459, %v4775
        %4777 = vmatmul.bf16.gmra.mxu0 %v4400
        %v4778 = vpop.f32.mrf.mxu0
        %v4779 = vadd.f32 %v4459, %v4778
        %v4780 = vpop.f32.mrf.mxu0
        %v4781 = vadd.f32 %v4459, %v4780
        %4782 = vmatmul.bf16.gmra.mxu0 %v4401
        %v4783 = vpop.f32.mrf.mxu0
        %v4784 = vadd.f32 %v4459, %v4783
        %v4785 = vpop.f32.mrf.mxu0
        %v4786 = vadd.f32 %v4459, %v4785
        %4787 = vmatmul.bf16.gmra.mxu0 %v4402
        %v4788 = vpop.f32.mrf.mxu0
        %v4789 = vadd.f32 %v4459, %v4788
        %v4790 = vpop.f32.mrf.mxu0
        %v4791 = vadd.f32 %v4459, %v4790
        %4792 = vmatmul.bf16.gmra.mxu0 %v4403
        %v4793 = vpop.f32.mrf.mxu0
        %v4794 = vadd.f32 %v4459, %v4793
        %v4795 = vpop.f32.mrf.mxu0
        %v4796 = vadd.f32 %v4459, %v4795
        %4797 = vmatmul.bf16.gmra.mxu0 %v4404
        %v4798 = vpop.f32.mrf.mxu0
        %v4799 = vadd.f32 %v4459, %v4798
        %v4800 = vpop.f32.mrf.mxu0
        %v4801 = vadd.f32 %v4459, %v4800
        %4802 = vmatmul.bf16.gmra.mxu0 %v4405
        %v4803 = vpop.f32.mrf.mxu0
        %v4804 = vadd.f32 %v4459, %v4803
        %v4805 = vpop.f32.mrf.mxu0
        %v4806 = vadd.f32 %v4459, %v4805
        %4807 = vdwg.mxu0
        %4808 = vmatpush.bf16.msra.mxu0 %v4658
        %4809 = vmatpush.bf16.msra.mxu0 %v4652
        %4810 = vmatpush.bf16.msra.mxu0 %v4646
        %4811 = vmatpush.bf16.msra.mxu0 %v4640
        %4812 = vmatpush.bf16.msra.mxu0 %v4634
        %4813 = vmatpush.bf16.msra.mxu0 %v4628
        %4814 = vmatpush.bf16.msra.mxu0 %v4622
        %4815 = vmatpush.bf16.msra.mxu0 %v4616
        %4816 = vmatmul.bf16.gmra.mxu0 %v4398
        %v4817 = vpop.f32.mrf.mxu0
        %v4818 = vadd.f32 %v4460, %v4817
        %v4819 = vpop.f32.mrf.mxu0
        %v4820 = vadd.f32 %v4460, %v4819
        %4821 = vmatmul.bf16.gmra.mxu0 %v4399
        %v4822 = vpop.f32.mrf.mxu0
        %v4823 = vadd.f32 %v4460, %v4822
        %v4824 = vpop.f32.mrf.mxu0
        %v4825 = vadd.f32 %v4460, %v4824
        %4826 = vmatmul.bf16.gmra.mxu0 %v4400
        %v4827 = vpop.f32.mrf.mxu0
        %v4828 = vadd.f32 %v4460, %v4827
        %v4829 = vpop.f32.mrf.mxu0
        %v4830 = vadd.f32 %v4460, %v4829
        %4831 = vmatmul.bf16.gmra.mxu0 %v4401
        %v4832 = vpop.f32.mrf.mxu0
        %v4833 = vadd.f32 %v4460, %v4832
        %v4834 = vpop.f32.mrf.mxu0
        %v4835 = vadd.f32 %v4460, %v4834
        %4836 = vmatmul.bf16.gmra.mxu0 %v4402
        %v4837 = vpop.f32.mrf.mxu0
        %v4838 = vadd.f32 %v4460, %v4837
        %v4839 = vpop.f32.mrf.mxu0
        %v4840 = vadd.f32 %v4460, %v4839
        %4841 = vmatmul.bf16.gmra.mxu0 %v4403
        %v4842 = vpop.f32.mrf.mxu0
        %v4843 = vadd.f32 %v4460, %v4842
        %v4844 = vpop.f32.mrf.mxu0
        %v4845 = vadd.f32 %v4460, %v4844
        %4846 = vmatmul.bf16.gmra.mxu0 %v4404
        %v4847 = vpop.f32.mrf.mxu0
        %v4848 = vadd.f32 %v4460, %v4847
        %v4849 = vpop.f32.mrf.mxu0
        %v4850 = vadd.f32 %v4460, %v4849
        %4851 = vmatmul.bf16.gmra.mxu0 %v4405
        %v4852 = vpop.f32.mrf.mxu0
        %v4853 = vadd.f32 %v4460, %v4852
        %v4854 = vpop.f32.mrf.mxu0
        %v4855 = vadd.f32 %v4460, %v4854
        %4856 = vdwg.mxu0
        %4857 = vmatpush.bf16.msra.mxu0 %v4659
        %4858 = vmatpush.bf16.msra.mxu0 %v4653
        %4859 = vmatpush.bf16.msra.mxu0 %v4647
        %4860 = vmatpush.bf16.msra.mxu0 %v4641
        %4861 = vmatpush.bf16.msra.mxu0 %v4635
        %4862 = vmatpush.bf16.msra.mxu0 %v4629
        %4863 = vmatpush.bf16.msra.mxu0 %v4623
        %4864 = vmatpush.bf16.msra.mxu0 %v4617
        %4865 = vmatmul.bf16.gmra.mxu0 %v4398
        %v4866 = vpop.f32.mrf.mxu0
        %v4867 = vadd.f32 %v4461, %v4866
        %v4868 = vpop.f32.mrf.mxu0
        %v4869 = vadd.f32 %v4461, %v4868
        %4870 = vmatmul.bf16.gmra.mxu0 %v4399
        %v4871 = vpop.f32.mrf.mxu0
        %v4872 = vadd.f32 %v4461, %v4871
        %v4873 = vpop.f32.mrf.mxu0
        %v4874 = vadd.f32 %v4461, %v4873
        %4875 = vmatmul.bf16.gmra.mxu0 %v4400
        %v4876 = vpop.f32.mrf.mxu0
        %v4877 = vadd.f32 %v4461, %v4876
        %v4878 = vpop.f32.mrf.mxu0
        %v4879 = vadd.f32 %v4461, %v4878
        %4880 = vmatmul.bf16.gmra.mxu0 %v4401
        %v4881 = vpop.f32.mrf.mxu0
        %v4882 = vadd.f32 %v4461, %v4881
        %v4883 = vpop.f32.mrf.mxu0
        %v4884 = vadd.f32 %v4461, %v4883
        %4885 = vmatmul.bf16.gmra.mxu0 %v4402
        %v4886 = vpop.f32.mrf.mxu0
        %v4887 = vadd.f32 %v4461, %v4886
        %v4888 = vpop.f32.mrf.mxu0
        %v4889 = vadd.f32 %v4461, %v4888
        %4890 = vmatmul.bf16.gmra.mxu0 %v4403
        %v4891 = vpop.f32.mrf.mxu0
        %v4892 = vadd.f32 %v4461, %v4891
        %v4893 = vpop.f32.mrf.mxu0
        %v4894 = vadd.f32 %v4461, %v4893
        %4895 = vmatmul.bf16.gmra.mxu0 %v4404
        %v4896 = vpop.f32.mrf.mxu0
        %v4897 = vadd.f32 %v4461, %v4896
        %v4898 = vpop.f32.mrf.mxu0
        %v4899 = vadd.f32 %v4461, %v4898
        %4900 = vmatmul.bf16.gmra.mxu0 %v4405
        %v4901 = vpop.f32.mrf.mxu0
        %v4902 = vadd.f32 %v4461, %v4901
        %v4903 = vpop.f32.mrf.mxu0
        %v4904 = vadd.f32 %v4461, %v4903
        %4905 = vdwg.mxu0
        %4906 = vmatpush.bf16.msra.mxu0 %v4660
        %4907 = vmatpush.bf16.msra.mxu0 %v4654
        %4908 = vmatpush.bf16.msra.mxu0 %v4648
        %4909 = vmatpush.bf16.msra.mxu0 %v4642
        %4910 = vmatpush.bf16.msra.mxu0 %v4636
        %4911 = vmatpush.bf16.msra.mxu0 %v4630
        %4912 = vmatpush.bf16.msra.mxu0 %v4624
        %4913 = vmatpush.bf16.msra.mxu0 %v4618
        %4914 = vmatmul.bf16.gmra.mxu0 %v4398
        %v4915 = vpop.f32.mrf.mxu0
        %v4916 = vadd.f32 %v4462, %v4915
        %v4917 = vpop.f32.mrf.mxu0
        %v4918 = vadd.f32 %v4462, %v4917
        %4919 = vmatmul.bf16.gmra.mxu0 %v4399
        %v4920 = vpop.f32.mrf.mxu0
        %v4921 = vadd.f32 %v4462, %v4920
        %v4922 = vpop.f32.mrf.mxu0
        %v4923 = vadd.f32 %v4462, %v4922
        %4924 = vmatmul.bf16.gmra.mxu0 %v4400
        %v4925 = vpop.f32.mrf.mxu0
        %v4926 = vadd.f32 %v4462, %v4925
        %v4927 = vpop.f32.mrf.mxu0
        %v4928 = vadd.f32 %v4462, %v4927
        %4929 = vmatmul.bf16.gmra.mxu0 %v4401
        %v4930 = vpop.f32.mrf.mxu0
        %v4931 = vadd.f32 %v4462, %v4930
        %v4932 = vpop.f32.mrf.mxu0
        %v4933 = vadd.f32 %v4462, %v4932
        %4934 = vmatmul.bf16.gmra.mxu0 %v4402
        %v4935 = vpop.f32.mrf.mxu0
        %v4936 = vadd.f32 %v4462, %v4935
        %v4937 = vpop.f32.mrf.mxu0
        %v4938 = vadd.f32 %v4462, %v4937
        %4939 = vmatmul.bf16.gmra.mxu0 %v4403
        %v4940 = vpop.f32.mrf.mxu0
        %v4941 = vadd.f32 %v4462, %v4940
        %v4942 = vpop.f32.mrf.mxu0
        %v4943 = vadd.f32 %v4462, %v4942
        %4944 = vmatmul.bf16.gmra.mxu0 %v4404
        %v4945 = vpop.f32.mrf.mxu0
        %v4946 = vadd.f32 %v4462, %v4945
        %v4947 = vpop.f32.mrf.mxu0
        %v4948 = vadd.f32 %v4462, %v4947
        %4949 = vmatmul.bf16.gmra.mxu0 %v4405
        %v4950 = vpop.f32.mrf.mxu0
        %v4951 = vadd.f32 %v4462, %v4950
        %v4952 = vpop.f32.mrf.mxu0
        %v4953 = vadd.f32 %v4462, %v4952
        %4954 = vdwg.mxu0
        %4955 = vmatpush.bf16.msra.mxu0 %v4661
        %4956 = vmatpush.bf16.msra.mxu0 %v4655
        %4957 = vmatpush.bf16.msra.mxu0 %v4649
        %4958 = vmatpush.bf16.msra.mxu0 %v4643
        %4959 = vmatpush.bf16.msra.mxu0 %v4637
        %4960 = vmatpush.bf16.msra.mxu0 %v4631
        %4961 = vmatpush.bf16.msra.mxu0 %v4625
        %4962 = vmatpush.bf16.msra.mxu0 %v4619
        %4963 = vmatmul.bf16.gmra.mxu0 %v4398
        %v4964 = vpop.f32.mrf.mxu0
        %v4965 = vadd.f32 %v4463, %v4964
        %v4966 = vpop.f32.mrf.mxu0
        %v4967 = vadd.f32 %v4463, %v4966
        %4968 = vmatmul.bf16.gmra.mxu0 %v4399
        %v4969 = vpop.f32.mrf.mxu0
        %v4970 = vadd.f32 %v4463, %v4969
        %v4971 = vpop.f32.mrf.mxu0
        %v4972 = vadd.f32 %v4463, %v4971
        %4973 = vmatmul.bf16.gmra.mxu0 %v4400
        %v4974 = vpop.f32.mrf.mxu0
        %v4975 = vadd.f32 %v4463, %v4974
        %v4976 = vpop.f32.mrf.mxu0
        %v4977 = vadd.f32 %v4463, %v4976
        %4978 = vmatmul.bf16.gmra.mxu0 %v4401
        %v4979 = vpop.f32.mrf.mxu0
        %v4980 = vadd.f32 %v4463, %v4979
        %v4981 = vpop.f32.mrf.mxu0
        %v4982 = vadd.f32 %v4463, %v4981
        %4983 = vmatmul.bf16.gmra.mxu0 %v4402
        %v4984 = vpop.f32.mrf.mxu0
        %v4985 = vadd.f32 %v4463, %v4984
        %v4986 = vpop.f32.mrf.mxu0
        %v4987 = vadd.f32 %v4463, %v4986
        %4988 = vmatmul.bf16.gmra.mxu0 %v4403
        %v4989 = vpop.f32.mrf.mxu0
        %v4990 = vadd.f32 %v4463, %v4989
        %v4991 = vpop.f32.mrf.mxu0
        %v4992 = vadd.f32 %v4463, %v4991
        %4993 = vmatmul.bf16.gmra.mxu0 %v4404
        %v4994 = vpop.f32.mrf.mxu0
        %v4995 = vadd.f32 %v4463, %v4994
        %v4996 = vpop.f32.mrf.mxu0
        %v4997 = vadd.f32 %v4463, %v4996
        %4998 = vmatmul.bf16.gmra.mxu0 %v4405
        %v4999 = vpop.f32.mrf.mxu0
        %v5000 = vadd.f32 %v4463, %v4999
        %v5001 = vpop.f32.mrf.mxu0
        %v5002 = vadd.f32 %v4463, %v5001
        %5003 = vdwg.mxu0
        %v5004 = vpack.c.bf16 %v4722, %v4720
        %v5005 = vpack.c.bf16 %v4727, %v4725
        %v5006 = vpack.c.bf16 %v4732, %v4730
        %v5007 = vpack.c.bf16 %v4737, %v4735
        %v5008 = vpack.c.bf16 %v4742, %v4740
        %v5009 = vpack.c.bf16 %v4747, %v4745
        %v5010 = vpack.c.bf16 %v4752, %v4750
        %v5011 = vpack.c.bf16 %v4757, %v4755
        %v5012 = vpack.c.bf16 %v4820, %v4818
        %v5013 = vpack.c.bf16 %v4825, %v4823
        %v5014 = vpack.c.bf16 %v4830, %v4828
        %v5015 = vpack.c.bf16 %v4835, %v4833
        %v5016 = vpack.c.bf16 %v4840, %v4838
        %v5017 = vpack.c.bf16 %v4845, %v4843
        %v5018 = vpack.c.bf16 %v4850, %v4848
        %v5019 = vpack.c.bf16 %v4855, %v4853
        %5020 = vmatpush.bf16.xpose.msra.mxu0 %v5019
        %5021 = vmatpush.bf16.xpose.msra.mxu0 %v5018
        %5022 = vmatpush.bf16.xpose.msra.mxu0 %v5017
        %5023 = vmatpush.bf16.xpose.msra.mxu0 %v5016
        %5024 = vmatpush.bf16.xpose.msra.mxu0 %v5015
        %5025 = vmatpush.bf16.xpose.msra.mxu0 %v5014
        %5026 = vmatpush.bf16.xpose.msra.mxu0 %v5013
        %5027 = vmatpush.bf16.xpose.msra.mxu0 %v5012
        %5028 = vmatmul.bf16.gmra.mxu0 %v5004
        %v5029 = vpop.f32.mrf.mxu0
        %v5030 = vadd.f32 0.0, %v5029
        %v5031 = vpop.f32.mrf.mxu0
        %v5032 = vadd.f32 0.0, %v5031
        %5033 = vmatmul.bf16.gmra.mxu0 %v5005
        %v5034 = vpop.f32.mrf.mxu0
        %v5035 = vadd.f32 0.0, %v5034
        %v5036 = vpop.f32.mrf.mxu0
        %v5037 = vadd.f32 0.0, %v5036
        %5038 = vmatmul.bf16.gmra.mxu0 %v5006
        %v5039 = vpop.f32.mrf.mxu0
        %v5040 = vadd.f32 0.0, %v5039
        %v5041 = vpop.f32.mrf.mxu0
        %v5042 = vadd.f32 0.0, %v5041
        %5043 = vmatmul.bf16.gmra.mxu0 %v5007
        %v5044 = vpop.f32.mrf.mxu0
        %v5045 = vadd.f32 0.0, %v5044
        %v5046 = vpop.f32.mrf.mxu0
        %v5047 = vadd.f32 0.0, %v5046
        %5048 = vmatmul.bf16.gmra.mxu0 %v5008
        %v5049 = vpop.f32.mrf.mxu0
        %v5050 = vadd.f32 0.0, %v5049
        %v5051 = vpop.f32.mrf.mxu0
        %v5052 = vadd.f32 0.0, %v5051
        %5053 = vmatmul.bf16.gmra.mxu0 %v5009
        %v5054 = vpop.f32.mrf.mxu0
        %v5055 = vadd.f32 0.0, %v5054
        %v5056 = vpop.f32.mrf.mxu0
        %v5057 = vadd.f32 0.0, %v5056
        %5058 = vmatmul.bf16.gmra.mxu0 %v5010
        %v5059 = vpop.f32.mrf.mxu0
        %v5060 = vadd.f32 0.0, %v5059
        %v5061 = vpop.f32.mrf.mxu0
        %v5062 = vadd.f32 0.0, %v5061
        %5063 = vmatmul.bf16.gmra.mxu0 %v5011
        %v5064 = vpop.f32.mrf.mxu0
        %v5065 = vadd.f32 0.0, %v5064
        %v5066 = vpop.f32.mrf.mxu0
        %v5067 = vadd.f32 0.0, %v5066
        %5068 = vdwg.mxu0
        %v5069 = vmul.f32 %v5030, 0.125
        %v5070 = vmul.f32 %v5032, 0.125
        %v5071 = vmul.f32 %v5035, 0.125
        %v5072 = vmul.f32 %v5037, 0.125
        %v5073 = vmul.f32 %v5040, 0.125
        %v5074 = vmul.f32 %v5042, 0.125
        %v5075 = vmul.f32 %v5045, 0.125
        %v5076 = vmul.f32 %v5047, 0.125
        %v5077 = vmul.f32 %v5050, 0.125
        %v5078 = vmul.f32 %v5052, 0.125
        %v5079 = vmul.f32 %v5055, 0.125
        %v5080 = vmul.f32 %v5057, 0.125
        %v5081 = vmul.f32 %v5060, 0.125
        %v5082 = vmul.f32 %v5062, 0.125
        %v5083 = vmul.f32 %v5065, 0.125
        %v5084 = vmul.f32 %v5067, 0.125
        %v5085 = vadd.f32 %v5069, %v1282
        %v5086 = vadd.f32 %v5070, %v1283
        %v5087 = vadd.f32 %v5071, %v1284
        %v5088 = vadd.f32 %v5072, %v1285
        %v5089 = vadd.f32 %v5073, %v1286
        %v5090 = vadd.f32 %v5074, %v1287
        %v5091 = vadd.f32 %v5075, %v1288
        %v5092 = vadd.f32 %v5076, %v1289
        %v5093 = vadd.f32 %v5077, %v1290
        %v5094 = vadd.f32 %v5078, %v1291
        %v5095 = vadd.f32 %v5079, %v1292
        %v5096 = vadd.f32 %v5080, %v1293
        %v5097 = vadd.f32 %v5081, %v1294
        %v5098 = vadd.f32 %v5082, %v1295
        %v5099 = vadd.f32 %v5083, %v1296
        %v5100 = vadd.f32 %v5084, %v1297
        %5101 = vmax.xlane.f32.xlu0 %v5085
        %v5102 = vpop.xlane.xlu0 %5101
        %5103 = vmax.xlane.f32.xlu0 %v5086
        %v5104 = vpop.xlane.xlu0 %5103
        %5105 = vmax.xlane.f32.xlu0 %v5087
        %v5106 = vpop.xlane.xlu0 %5105
        %5107 = vmax.xlane.f32.xlu0 %v5088
        %v5108 = vpop.xlane.xlu0 %5107
        %5109 = vmax.xlane.f32.xlu0 %v5089
        %v5110 = vpop.xlane.xlu0 %5109
        %5111 = vmax.xlane.f32.xlu0 %v5090
        %v5112 = vpop.xlane.xlu0 %5111
        %5113 = vmax.xlane.f32.xlu0 %v5091
        %v5114 = vpop.xlane.xlu0 %5113
        %5115 = vmax.xlane.f32.xlu0 %v5092
        %v5116 = vpop.xlane.xlu0 %5115
        %5117 = vmax.xlane.f32.xlu0 %v5093
        %v5118 = vpop.xlane.xlu0 %5117
        %5119 = vmax.xlane.f32.xlu0 %v5094
        %v5120 = vpop.xlane.xlu0 %5119
        %5121 = vmax.xlane.f32.xlu0 %v5095
        %v5122 = vpop.xlane.xlu0 %5121
        %5123 = vmax.xlane.f32.xlu0 %v5096
        %v5124 = vpop.xlane.xlu0 %5123
        %5125 = vmax.xlane.f32.xlu0 %v5097
        %v5126 = vpop.xlane.xlu0 %5125
        %5127 = vmax.xlane.f32.xlu0 %v5098
        %v5128 = vpop.xlane.xlu0 %5127
        %5129 = vmax.xlane.f32.xlu0 %v5099
        %v5130 = vpop.xlane.xlu0 %5129
        %5131 = vmax.xlane.f32.xlu0 %v5100
        %v5132 = vpop.xlane.xlu0 %5131
        %v5133 = vsub.f32 %v5085, %v5102
        %v5134 = vsub.f32 %v5086, %v5104
        %v5135 = vsub.f32 %v5087, %v5106
        %v5136 = vsub.f32 %v5088, %v5108
        %v5137 = vsub.f32 %v5089, %v5110
        %v5138 = vsub.f32 %v5090, %v5112
        %v5139 = vsub.f32 %v5091, %v5114
        %v5140 = vsub.f32 %v5092, %v5116
        %v5141 = vsub.f32 %v5093, %v5118
        %v5142 = vsub.f32 %v5094, %v5120
        %v5143 = vsub.f32 %v5095, %v5122
        %v5144 = vsub.f32 %v5096, %v5124
        %v5145 = vsub.f32 %v5097, %v5126
        %v5146 = vsub.f32 %v5098, %v5128
        %v5147 = vsub.f32 %v5099, %v5130
        %v5148 = vsub.f32 %v5100, %v5132
        %v5149 = vmul.f32 %v5133, 1.442695
        %v5150 = vpow.pop %v5149
        %v5151 = vmul.f32 %v5134, 1.442695
        %v5152 = vpow.pop %v5151
        %v5153 = vmul.f32 %v5135, 1.442695
        %v5154 = vpow.pop %v5153
        %v5155 = vmul.f32 %v5136, 1.442695
        %v5156 = vpow.pop %v5155
        %v5157 = vmul.f32 %v5137, 1.442695
        %v5158 = vpow.pop %v5157
        %v5159 = vmul.f32 %v5138, 1.442695
        %v5160 = vpow.pop %v5159
        %v5161 = vmul.f32 %v5139, 1.442695
        %v5162 = vpow.pop %v5161
        %v5163 = vmul.f32 %v5140, 1.442695
        %v5164 = vpow.pop %v5163
        %v5165 = vmul.f32 %v5141, 1.442695
        %v5166 = vpow.pop %v5165
        %v5167 = vmul.f32 %v5142, 1.442695
        %v5168 = vpow.pop %v5167
        %v5169 = vmul.f32 %v5143, 1.442695
        %v5170 = vpow.pop %v5169
        %v5171 = vmul.f32 %v5144, 1.442695
        %v5172 = vpow.pop %v5171
        %v5173 = vmul.f32 %v5145, 1.442695
        %v5174 = vpow.pop %v5173
        %v5175 = vmul.f32 %v5146, 1.442695
        %v5176 = vpow.pop %v5175
        %v5177 = vmul.f32 %v5147, 1.442695
        %v5178 = vpow.pop %v5177
        %v5179 = vmul.f32 %v5148, 1.442695
        %v5180 = vpow.pop %v5179
        %5181 = vadd.xlane.f32.xlu0 %v5150
        %v5182 = vpop.xlane.xlu0 %5181
        %5183 = vadd.xlane.f32.xlu0 %v5152
        %v5184 = vpop.xlane.xlu0 %5183
        %5185 = vadd.xlane.f32.xlu0 %v5154
        %v5186 = vpop.xlane.xlu0 %5185
        %5187 = vadd.xlane.f32.xlu0 %v5156
        %v5188 = vpop.xlane.xlu0 %5187
        %5189 = vadd.xlane.f32.xlu0 %v5158
        %v5190 = vpop.xlane.xlu0 %5189
        %5191 = vadd.xlane.f32.xlu0 %v5160
        %v5192 = vpop.xlane.xlu0 %5191
        %5193 = vadd.xlane.f32.xlu0 %v5162
        %v5194 = vpop.xlane.xlu0 %5193
        %5195 = vadd.xlane.f32.xlu0 %v5164
        %v5196 = vpop.xlane.xlu0 %5195
        %5197 = vadd.xlane.f32.xlu0 %v5166
        %v5198 = vpop.xlane.xlu0 %5197
        %5199 = vadd.xlane.f32.xlu0 %v5168
        %v5200 = vpop.xlane.xlu0 %5199
        %5201 = vadd.xlane.f32.xlu0 %v5170
        %v5202 = vpop.xlane.xlu0 %5201
        %5203 = vadd.xlane.f32.xlu0 %v5172
        %v5204 = vpop.xlane.xlu0 %5203
        %5205 = vadd.xlane.f32.xlu0 %v5174
        %v5206 = vpop.xlane.xlu0 %5205
        %5207 = vadd.xlane.f32.xlu0 %v5176
        %v5208 = vpop.xlane.xlu0 %5207
        %5209 = vadd.xlane.f32.xlu0 %v5178
        %v5210 = vpop.xlane.xlu0 %5209
        %5211 = vadd.xlane.f32.xlu0 %v5180
        %v5212 = vpop.xlane.xlu0 %5211
        %v5213 = vrcp.pop %v5182
        %v5214 = vrcp.pop %v5184
        %v5215 = vrcp.pop %v5186
        %v5216 = vrcp.pop %v5188
        %v5217 = vrcp.pop %v5190
        %v5218 = vrcp.pop %v5192
        %v5219 = vrcp.pop %v5194
        %v5220 = vrcp.pop %v5196
        %v5221 = vrcp.pop %v5198
        %v5222 = vrcp.pop %v5200
        %v5223 = vrcp.pop %v5202
        %v5224 = vrcp.pop %v5204
        %v5225 = vrcp.pop %v5206
        %v5226 = vrcp.pop %v5208
        %v5227 = vrcp.pop %v5210
        %v5228 = vrcp.pop %v5212
        %v5229 = vmul.f32 %v5150, %v5213
        %v5230 = vmul.f32 %v5152, %v5214
        %v5231 = vmul.f32 %v5154, %v5215
        %v5232 = vmul.f32 %v5156, %v5216
        %v5233 = vmul.f32 %v5158, %v5217
        %v5234 = vmul.f32 %v5160, %v5218
        %v5235 = vmul.f32 %v5162, %v5219
        %v5236 = vmul.f32 %v5164, %v5220
        %v5237 = vmul.f32 %v5166, %v5221
        %v5238 = vmul.f32 %v5168, %v5222
        %v5239 = vmul.f32 %v5170, %v5223
        %v5240 = vmul.f32 %v5172, %v5224
        %v5241 = vmul.f32 %v5174, %v5225
        %v5242 = vmul.f32 %v5176, %v5226
        %v5243 = vmul.f32 %v5178, %v5227
        %v5244 = vmul.f32 %v5180, %v5228
        %v5245 = vpack.c.bf16 %v5230, %v5229
        %v5246 = vpack.c.bf16 %v5232, %v5231
        %v5247 = vpack.c.bf16 %v5234, %v5233
        %v5248 = vpack.c.bf16 %v5236, %v5235
        %v5249 = vpack.c.bf16 %v5238, %v5237
        %v5250 = vpack.c.bf16 %v5240, %v5239
        %v5251 = vpack.c.bf16 %v5242, %v5241
        %v5252 = vpack.c.bf16 %v5244, %v5243
        %v5253 = vpack.c.bf16 %v4918, %v4916
        %v5254 = vpack.c.bf16 %v4923, %v4921
        %v5255 = vpack.c.bf16 %v4928, %v4926
        %v5256 = vpack.c.bf16 %v4933, %v4931
        %v5257 = vpack.c.bf16 %v4938, %v4936
        %v5258 = vpack.c.bf16 %v4943, %v4941
        %v5259 = vpack.c.bf16 %v4948, %v4946
        %v5260 = vpack.c.bf16 %v4953, %v4951
        %5261 = vmatpush.bf16.msra.mxu0 %v5260
        %5262 = vmatpush.bf16.msra.mxu0 %v5259
        %5263 = vmatpush.bf16.msra.mxu0 %v5258
        %5264 = vmatpush.bf16.msra.mxu0 %v5257
        %5265 = vmatpush.bf16.msra.mxu0 %v5256
        %5266 = vmatpush.bf16.msra.mxu0 %v5255
        %5267 = vmatpush.bf16.msra.mxu0 %v5254
        %5268 = vmatpush.bf16.msra.mxu0 %v5253
        %5269 = vmatmul.bf16.gmra.mxu0 %v5245
        %v5270 = vpop.f32.mrf.mxu0
        %v5271 = vadd.f32 0.0, %v5270
        %v5272 = vpop.f32.mrf.mxu0
        %v5273 = vadd.f32 0.0, %v5272
        %5274 = vmatmul.bf16.gmra.mxu0 %v5246
        %v5275 = vpop.f32.mrf.mxu0
        %v5276 = vadd.f32 0.0, %v5275
        %v5277 = vpop.f32.mrf.mxu0
        %v5278 = vadd.f32 0.0, %v5277
        %5279 = vmatmul.bf16.gmra.mxu0 %v5247
        %v5280 = vpop.f32.mrf.mxu0
        %v5281 = vadd.f32 0.0, %v5280
        %v5282 = vpop.f32.mrf.mxu0
        %v5283 = vadd.f32 0.0, %v5282
        %5284 = vmatmul.bf16.gmra.mxu0 %v5248
        %v5285 = vpop.f32.mrf.mxu0
        %v5286 = vadd.f32 0.0, %v5285
        %v5287 = vpop.f32.mrf.mxu0
        %v5288 = vadd.f32 0.0, %v5287
        %5289 = vmatmul.bf16.gmra.mxu0 %v5249
        %v5290 = vpop.f32.mrf.mxu0
        %v5291 = vadd.f32 0.0, %v5290
        %v5292 = vpop.f32.mrf.mxu0
        %v5293 = vadd.f32 0.0, %v5292
        %5294 = vmatmul.bf16.gmra.mxu0 %v5250
        %v5295 = vpop.f32.mrf.mxu0
        %v5296 = vadd.f32 0.0, %v5295
        %v5297 = vpop.f32.mrf.mxu0
        %v5298 = vadd.f32 0.0, %v5297
        %5299 = vmatmul.bf16.gmra.mxu0 %v5251
        %v5300 = vpop.f32.mrf.mxu0
        %v5301 = vadd.f32 0.0, %v5300
        %v5302 = vpop.f32.mrf.mxu0
        %v5303 = vadd.f32 0.0, %v5302
        %5304 = vmatmul.bf16.gmra.mxu0 %v5252
        %v5305 = vpop.f32.mrf.mxu0
        %v5306 = vadd.f32 0.0, %v5305
        %v5307 = vpop.f32.mrf.mxu0
        %v5308 = vadd.f32 0.0, %v5307
        %5309 = vdwg.mxu0
        %v5310 = vpack.c.bf16 %v5271, %v5271
        %v5311 = vpack.c.bf16 %v5273, %v5273
        %v5312 = vpack.c.bf16 %v5276, %v5276
        %v5313 = vpack.c.bf16 %v5278, %v5278
        %v5314 = vpack.c.bf16 %v5281, %v5281
        %v5315 = vpack.c.bf16 %v5283, %v5283
        %v5316 = vpack.c.bf16 %v5286, %v5286
        %v5317 = vpack.c.bf16 %v5288, %v5288
        %v5318 = vpack.c.bf16 %v5291, %v5291
        %v5319 = vpack.c.bf16 %v5293, %v5293
        %v5320 = vpack.c.bf16 %v5296, %v5296
        %v5321 = vpack.c.bf16 %v5298, %v5298
        %v5322 = vpack.c.bf16 %v5301, %v5301
        %v5323 = vpack.c.bf16 %v5303, %v5303
        %v5324 = vpack.c.bf16 %v5306, %v5306
        %v5325 = vpack.c.bf16 %v5308, %v5308
        %5326 = vst [vmem:[#allocation2] sm:$0xf] %v5310
        %5327 = vst [vmem:[#allocation2 + $0x8] sm:$0xf] %v5311
        %5328 = vst [vmem:[#allocation2 + $0x10] sm:$0xf] %v5312
        %5329 = vst [vmem:[#allocation2 + $0x18] sm:$0xf] %v5313
        %5330 = vst [vmem:[#allocation2 + $0x20] sm:$0xf] %v5314
        %5331 = vst [vmem:[#allocation2 + $0x28] sm:$0xf] %v5315
        %5332 = vst [vmem:[#allocation2 + $0x30] sm:$0xf] %v5316
        %5333 = vst [vmem:[#allocation2 + $0x38] sm:$0xf] %v5317
        %5334 = vst [vmem:[#allocation2 + $0x40] sm:$0xf] %v5318
        %5335 = vst [vmem:[#allocation2 + $0x48] sm:$0xf] %v5319
        %5336 = vst [vmem:[#allocation2 + $0x50] sm:$0xf] %v5320
        %5337 = vst [vmem:[#allocation2 + $0x58] sm:$0xf] %v5321
        %5338 = vst [vmem:[#allocation2 + $0x60] sm:$0xf] %v5322
        %5339 = vst [vmem:[#allocation2 + $0x68] sm:$0xf] %v5323
        %5340 = vst [vmem:[#allocation2 + $0x70] sm:$0xf] %v5324
        %5341 = vst [vmem:[#allocation2 + $0x78] sm:$0xf] %v5325
        %v5342 = vpack.c.bf16 %v4771, %v4769
        %v5343 = vpack.c.bf16 %v4776, %v4774
        %v5344 = vpack.c.bf16 %v4781, %v4779
        %v5345 = vpack.c.bf16 %v4786, %v4784
        %v5346 = vpack.c.bf16 %v4791, %v4789
        %v5347 = vpack.c.bf16 %v4796, %v4794
        %v5348 = vpack.c.bf16 %v4801, %v4799
        %v5349 = vpack.c.bf16 %v4806, %v4804
        %v5350 = vpack.c.bf16 %v4869, %v4867
        %v5351 = vpack.c.bf16 %v4874, %v4872
        %v5352 = vpack.c.bf16 %v4879, %v4877
        %v5353 = vpack.c.bf16 %v4884, %v4882
        %v5354 = vpack.c.bf16 %v4889, %v4887
        %v5355 = vpack.c.bf16 %v4894, %v4892
        %v5356 = vpack.c.bf16 %v4899, %v4897
        %v5357 = vpack.c.bf16 %v4904, %v4902
        %5358 = vmatpush.bf16.xpose.msra.mxu0 %v5357
        %5359 = vmatpush.bf16.xpose.msra.mxu0 %v5356
        %5360 = vmatpush.bf16.xpose.msra.mxu0 %v5355
        %5361 = vmatpush.bf16.xpose.msra.mxu0 %v5354
        %5362 = vmatpush.bf16.xpose.msra.mxu0 %v5353
        %5363 = vmatpush.bf16.xpose.msra.mxu0 %v5352
        %5364 = vmatpush.bf16.xpose.msra.mxu0 %v5351
        %5365 = vmatpush.bf16.xpose.msra.mxu0 %v5350
        %5366 = vmatmul.bf16.gmra.mxu0 %v5342
        %v5367 = vpop.f32.mrf.mxu0
        %v5368 = vadd.f32 0.0, %v5367
        %v5369 = vpop.f32.mrf.mxu0
        %v5370 = vadd.f32 0.0, %v5369
        %5371 = vmatmul.bf16.gmra.mxu0 %v5343
        %v5372 = vpop.f32.mrf.mxu0
        %v5373 = vadd.f32 0.0, %v5372
        %v5374 = vpop.f32.mrf.mxu0
        %v5375 = vadd.f32 0.0, %v5374
        %5376 = vmatmul.bf16.gmra.mxu0 %v5344
        %v5377 = vpop.f32.mrf.mxu0
        %v5378 = vadd.f32 0.0, %v5377
        %v5379 = vpop.f32.mrf.mxu0
        %v5380 = vadd.f32 0.0, %v5379
        %5381 = vmatmul.bf16.gmra.mxu0 %v5345
        %v5382 = vpop.f32.mrf.mxu0
        %v5383 = vadd.f32 0.0, %v5382
        %v5384 = vpop.f32.mrf.mxu0
        %v5385 = vadd.f32 0.0, %v5384
        %5386 = vmatmul.bf16.gmra.mxu0 %v5346
        %v5387 = vpop.f32.mrf.mxu0
        %v5388 = vadd.f32 0.0, %v5387
        %v5389 = vpop.f32.mrf.mxu0
        %v5390 = vadd.f32 0.0, %v5389
        %5391 = vmatmul.bf16.gmra.mxu0 %v5347
        %v5392 = vpop.f32.mrf.mxu0
        %v5393 = vadd.f32 0.0, %v5392
        %v5394 = vpop.f32.mrf.mxu0
        %v5395 = vadd.f32 0.0, %v5394
        %5396 = vmatmul.bf16.gmra.mxu0 %v5348
        %v5397 = vpop.f32.mrf.mxu0
        %v5398 = vadd.f32 0.0, %v5397
        %v5399 = vpop.f32.mrf.mxu0
        %v5400 = vadd.f32 0.0, %v5399
        %5401 = vmatmul.bf16.gmra.mxu0 %v5349
        %v5402 = vpop.f32.mrf.mxu0
        %v5403 = vadd.f32 0.0, %v5402
        %v5404 = vpop.f32.mrf.mxu0
        %v5405 = vadd.f32 0.0, %v5404
        %5406 = vdwg.mxu0
        %v5407 = vmul.f32 %v5368, 0.125
        %v5408 = vmul.f32 %v5370, 0.125
        %v5409 = vmul.f32 %v5373, 0.125
        %v5410 = vmul.f32 %v5375, 0.125
        %v5411 = vmul.f32 %v5378, 0.125
        %v5412 = vmul.f32 %v5380, 0.125
        %v5413 = vmul.f32 %v5383, 0.125
        %v5414 = vmul.f32 %v5385, 0.125
        %v5415 = vmul.f32 %v5388, 0.125
        %v5416 = vmul.f32 %v5390, 0.125
        %v5417 = vmul.f32 %v5393, 0.125
        %v5418 = vmul.f32 %v5395, 0.125
        %v5419 = vmul.f32 %v5398, 0.125
        %v5420 = vmul.f32 %v5400, 0.125
        %v5421 = vmul.f32 %v5403, 0.125
        %v5422 = vmul.f32 %v5405, 0.125
        %v5423 = vadd.f32 %v5407, %v1282
        %v5424 = vadd.f32 %v5408, %v1283
        %v5425 = vadd.f32 %v5409, %v1284
        %v5426 = vadd.f32 %v5410, %v1285
        %v5427 = vadd.f32 %v5411, %v1286
        %v5428 = vadd.f32 %v5412, %v1287
        %v5429 = vadd.f32 %v5413, %v1288
        %v5430 = vadd.f32 %v5414, %v1289
        %v5431 = vadd.f32 %v5415, %v1290
        %v5432 = vadd.f32 %v5416, %v1291
        %v5433 = vadd.f32 %v5417, %v1292
        %v5434 = vadd.f32 %v5418, %v1293
        %v5435 = vadd.f32 %v5419, %v1294
        %v5436 = vadd.f32 %v5420, %v1295
        %v5437 = vadd.f32 %v5421, %v1296
        %v5438 = vadd.f32 %v5422, %v1297
        %5439 = vmax.xlane.f32.xlu0 %v5423
        %v5440 = vpop.xlane.xlu0 %5439
        %5441 = vmax.xlane.f32.xlu0 %v5424
        %v5442 = vpop.xlane.xlu0 %5441
        %5443 = vmax.xlane.f32.xlu0 %v5425
        %v5444 = vpop.xlane.xlu0 %5443
        %5445 = vmax.xlane.f32.xlu0 %v5426
        %v5446 = vpop.xlane.xlu0 %5445
        %5447 = vmax.xlane.f32.xlu0 %v5427
        %v5448 = vpop.xlane.xlu0 %5447
        %5449 = vmax.xlane.f32.xlu0 %v5428
        %v5450 = vpop.xlane.xlu0 %5449
        %5451 = vmax.xlane.f32.xlu0 %v5429
        %v5452 = vpop.xlane.xlu0 %5451
        %5453 = vmax.xlane.f32.xlu0 %v5430
        %v5454 = vpop.xlane.xlu0 %5453
        %5455 = vmax.xlane.f32.xlu0 %v5431
        %v5456 = vpop.xlane.xlu0 %5455
        %5457 = vmax.xlane.f32.xlu0 %v5432
        %v5458 = vpop.xlane.xlu0 %5457
        %5459 = vmax.xlane.f32.xlu0 %v5433
        %v5460 = vpop.xlane.xlu0 %5459
        %5461 = vmax.xlane.f32.xlu0 %v5434
        %v5462 = vpop.xlane.xlu0 %5461
        %5463 = vmax.xlane.f32.xlu0 %v5435
        %v5464 = vpop.xlane.xlu0 %5463
        %5465 = vmax.xlane.f32.xlu0 %v5436
        %v5466 = vpop.xlane.xlu0 %5465
        %5467 = vmax.xlane.f32.xlu0 %v5437
        %v5468 = vpop.xlane.xlu0 %5467
        %5469 = vmax.xlane.f32.xlu0 %v5438
        %v5470 = vpop.xlane.xlu0 %5469
        %v5471 = vsub.f32 %v5423, %v5440
        %v5472 = vsub.f32 %v5424, %v5442
        %v5473 = vsub.f32 %v5425, %v5444
        %v5474 = vsub.f32 %v5426, %v5446
        %v5475 = vsub.f32 %v5427, %v5448
        %v5476 = vsub.f32 %v5428, %v5450
        %v5477 = vsub.f32 %v5429, %v5452
        %v5478 = vsub.f32 %v5430, %v5454
        %v5479 = vsub.f32 %v5431, %v5456
        %v5480 = vsub.f32 %v5432, %v5458
        %v5481 = vsub.f32 %v5433, %v5460
        %v5482 = vsub.f32 %v5434, %v5462
        %v5483 = vsub.f32 %v5435, %v5464
        %v5484 = vsub.f32 %v5436, %v5466
        %v5485 = vsub.f32 %v5437, %v5468
        %v5486 = vsub.f32 %v5438, %v5470
        %v5487 = vmul.f32 %v5471, 1.442695
        %v5488 = vpow.pop %v5487
        %v5489 = vmul.f32 %v5472, 1.442695
        %v5490 = vpow.pop %v5489
        %v5491 = vmul.f32 %v5473, 1.442695
        %v5492 = vpow.pop %v5491
        %v5493 = vmul.f32 %v5474, 1.442695
        %v5494 = vpow.pop %v5493
        %v5495 = vmul.f32 %v5475, 1.442695
        %v5496 = vpow.pop %v5495
        %v5497 = vmul.f32 %v5476, 1.442695
        %v5498 = vpow.pop %v5497
        %v5499 = vmul.f32 %v5477, 1.442695
        %v5500 = vpow.pop %v5499
        %v5501 = vmul.f32 %v5478, 1.442695
        %v5502 = vpow.pop %v5501
        %v5503 = vmul.f32 %v5479, 1.442695
        %v5504 = vpow.pop %v5503
        %v5505 = vmul.f32 %v5480, 1.442695
        %v5506 = vpow.pop %v5505
        %v5507 = vmul.f32 %v5481, 1.442695
        %v5508 = vpow.pop %v5507
        %v5509 = vmul.f32 %v5482, 1.442695
        %v5510 = vpow.pop %v5509
        %v5511 = vmul.f32 %v5483, 1.442695
        %v5512 = vpow.pop %v5511
        %v5513 = vmul.f32 %v5484, 1.442695
        %v5514 = vpow.pop %v5513
        %v5515 = vmul.f32 %v5485, 1.442695
        %v5516 = vpow.pop %v5515
        %v5517 = vmul.f32 %v5486, 1.442695
        %v5518 = vpow.pop %v5517
        %5519 = vadd.xlane.f32.xlu0 %v5488
        %v5520 = vpop.xlane.xlu0 %5519
        %5521 = vadd.xlane.f32.xlu0 %v5490
        %v5522 = vpop.xlane.xlu0 %5521
        %5523 = vadd.xlane.f32.xlu0 %v5492
        %v5524 = vpop.xlane.xlu0 %5523
        %5525 = vadd.xlane.f32.xlu0 %v5494
        %v5526 = vpop.xlane.xlu0 %5525
        %5527 = vadd.xlane.f32.xlu0 %v5496
        %v5528 = vpop.xlane.xlu0 %5527
        %5529 = vadd.xlane.f32.xlu0 %v5498
        %v5530 = vpop.xlane.xlu0 %5529
        %5531 = vadd.xlane.f32.xlu0 %v5500
        %v5532 = vpop.xlane.xlu0 %5531
        %5533 = vadd.xlane.f32.xlu0 %v5502
        %v5534 = vpop.xlane.xlu0 %5533
        %5535 = vadd.xlane.f32.xlu0 %v5504
        %v5536 = vpop.xlane.xlu0 %5535
        %5537 = vadd.xlane.f32.xlu0 %v5506
        %v5538 = vpop.xlane.xlu0 %5537
        %5539 = vadd.xlane.f32.xlu0 %v5508
        %v5540 = vpop.xlane.xlu0 %5539
        %5541 = vadd.xlane.f32.xlu0 %v5510
        %v5542 = vpop.xlane.xlu0 %5541
        %5543 = vadd.xlane.f32.xlu0 %v5512
        %v5544 = vpop.xlane.xlu0 %5543
        %5545 = vadd.xlane.f32.xlu0 %v5514
        %v5546 = vpop.xlane.xlu0 %5545
        %5547 = vadd.xlane.f32.xlu0 %v5516
        %v5548 = vpop.xlane.xlu0 %5547
        %5549 = vadd.xlane.f32.xlu0 %v5518
        %v5550 = vpop.xlane.xlu0 %5549
        %v5551 = vrcp.pop %v5520
        %v5552 = vrcp.pop %v5522
        %v5553 = vrcp.pop %v5524
        %v5554 = vrcp.pop %v5526
        %v5555 = vrcp.pop %v5528
        %v5556 = vrcp.pop %v5530
        %v5557 = vrcp.pop %v5532
        %v5558 = vrcp.pop %v5534
        %v5559 = vrcp.pop %v5536
        %v5560 = vrcp.pop %v5538
        %v5561 = vrcp.pop %v5540
        %v5562 = vrcp.pop %v5542
        %v5563 = vrcp.pop %v5544
        %v5564 = vrcp.pop %v5546
        %v5565 = vrcp.pop %v5548
        %v5566 = vrcp.pop %v5550
        %v5567 = vmul.f32 %v5488, %v5551
        %v5568 = vmul.f32 %v5490, %v5552
        %v5569 = vmul.f32 %v5492, %v5553
        %v5570 = vmul.f32 %v5494, %v5554
        %v5571 = vmul.f32 %v5496, %v5555
        %v5572 = vmul.f32 %v5498, %v5556
        %v5573 = vmul.f32 %v5500, %v5557
        %v5574 = vmul.f32 %v5502, %v5558
        %v5575 = vmul.f32 %v5504, %v5559
        %v5576 = vmul.f32 %v5506, %v5560
        %v5577 = vmul.f32 %v5508, %v5561
        %v5578 = vmul.f32 %v5510, %v5562
        %v5579 = vmul.f32 %v5512, %v5563
        %v5580 = vmul.f32 %v5514, %v5564
        %v5581 = vmul.f32 %v5516, %v5565
        %v5582 = vmul.f32 %v5518, %v5566
        %v5583 = vpack.c.bf16 %v5568, %v5567
        %v5584 = vpack.c.bf16 %v5570, %v5569
        %v5585 = vpack.c.bf16 %v5572, %v5571
        %v5586 = vpack.c.bf16 %v5574, %v5573
        %v5587 = vpack.c.bf16 %v5576, %v5575
        %v5588 = vpack.c.bf16 %v5578, %v5577
        %v5589 = vpack.c.bf16 %v5580, %v5579
        %v5590 = vpack.c.bf16 %v5582, %v5581
        %v5591 = vpack.c.bf16 %v4967, %v4965
        %v5592 = vpack.c.bf16 %v4972, %v4970
        %v5593 = vpack.c.bf16 %v4977, %v4975
        %v5594 = vpack.c.bf16 %v4982, %v4980
        %v5595 = vpack.c.bf16 %v4987, %v4985
        %v5596 = vpack.c.bf16 %v4992, %v4990
        %v5597 = vpack.c.bf16 %v4997, %v4995
        %v5598 = vpack.c.bf16 %v5002, %v5000
        %5599 = vmatpush.bf16.msra.mxu0 %v5598
        %5600 = vmatpush.bf16.msra.mxu0 %v5597
        %5601 = vmatpush.bf16.msra.mxu0 %v5596
        %5602 = vmatpush.bf16.msra.mxu0 %v5595
        %5603 = vmatpush.bf16.msra.mxu0 %v5594
        %5604 = vmatpush.bf16.msra.mxu0 %v5593
        %5605 = vmatpush.bf16.msra.mxu0 %v5592
        %5606 = vmatpush.bf16.msra.mxu0 %v5591
        %5607 = vmatmul.bf16.gmra.mxu0 %v5583
        %v5608 = vpop.f32.mrf.mxu0
        %v5609 = vadd.f32 0.0, %v5608
        %v5610 = vpop.f32.mrf.mxu0
        %v5611 = vadd.f32 0.0, %v5610
        %5612 = vmatmul.bf16.gmra.mxu0 %v5584
        %v5613 = vpop.f32.mrf.mxu0
        %v5614 = vadd.f32 0.0, %v5613
        %v5615 = vpop.f32.mrf.mxu0
        %v5616 = vadd.f32 0.0, %v5615
        %5617 = vmatmul.bf16.gmra.mxu0 %v5585
        %v5618 = vpop.f32.mrf.mxu0
        %v5619 = vadd.f32 0.0, %v5618
        %v5620 = vpop.f32.mrf.mxu0
        %v5621 = vadd.f32 0.0, %v5620
        %5622 = vmatmul.bf16.gmra.mxu0 %v5586
        %v5623 = vpop.f32.mrf.mxu0
        %v5624 = vadd.f32 0.0, %v5623
        %v5625 = vpop.f32.mrf.mxu0
        %v5626 = vadd.f32 0.0, %v5625
        %5627 = vmatmul.bf16.gmra.mxu0 %v5587
        %v5628 = vpop.f32.mrf.mxu0
        %v5629 = vadd.f32 0.0, %v5628
        %v5630 = vpop.f32.mrf.mxu0
        %v5631 = vadd.f32 0.0, %v5630
        %5632 = vmatmul.bf16.gmra.mxu0 %v5588
        %v5633 = vpop.f32.mrf.mxu0
        %v5634 = vadd.f32 0.0, %v5633
        %v5635 = vpop.f32.mrf.mxu0
        %v5636 = vadd.f32 0.0, %v5635
        %5637 = vmatmul.bf16.gmra.mxu0 %v5589
        %v5638 = vpop.f32.mrf.mxu0
        %v5639 = vadd.f32 0.0, %v5638
        %v5640 = vpop.f32.mrf.mxu0
        %v5641 = vadd.f32 0.0, %v5640
        %5642 = vmatmul.bf16.gmra.mxu0 %v5590
        %v5643 = vpop.f32.mrf.mxu0
        %v5644 = vadd.f32 0.0, %v5643
        %v5645 = vpop.f32.mrf.mxu0
        %v5646 = vadd.f32 0.0, %v5645
        %5647 = vdwg.mxu0
        %v5648 = vpack.c.bf16 %v5609, %v5609
        %v5649 = vpack.c.bf16 %v5611, %v5611
        %v5650 = vpack.c.bf16 %v5614, %v5614
        %v5651 = vpack.c.bf16 %v5616, %v5616
        %v5652 = vpack.c.bf16 %v5619, %v5619
        %v5653 = vpack.c.bf16 %v5621, %v5621
        %v5654 = vpack.c.bf16 %v5624, %v5624
        %v5655 = vpack.c.bf16 %v5626, %v5626
        %v5656 = vpack.c.bf16 %v5629, %v5629
        %v5657 = vpack.c.bf16 %v5631, %v5631
        %v5658 = vpack.c.bf16 %v5634, %v5634
        %v5659 = vpack.c.bf16 %v5636, %v5636
        %v5660 = vpack.c.bf16 %v5639, %v5639
        %v5661 = vpack.c.bf16 %v5641, %v5641
        %v5662 = vpack.c.bf16 %v5644, %v5644
        %v5663 = vpack.c.bf16 %v5646, %v5646
        %5664 = vst [vmem:[#allocation2 + $0x4] sm:$0xf] %v5648
        %5665 = vst [vmem:[#allocation2 + $0xc] sm:$0xf] %v5649
        %5666 = vst [vmem:[#allocation2 + $0x14] sm:$0xf] %v5650
        %5667 = vst [vmem:[#allocation2 + $0x1c] sm:$0xf] %v5651
        %5668 = vst [vmem:[#allocation2 + $0x24] sm:$0xf] %v5652
        %5669 = vst [vmem:[#allocation2 + $0x2c] sm:$0xf] %v5653
        %5670 = vst [vmem:[#allocation2 + $0x34] sm:$0xf] %v5654
        %5671 = vst [vmem:[#allocation2 + $0x3c] sm:$0xf] %v5655
        %5672 = vst [vmem:[#allocation2 + $0x44] sm:$0xf] %v5656
        %5673 = vst [vmem:[#allocation2 + $0x4c] sm:$0xf] %v5657
        %5674 = vst [vmem:[#allocation2 + $0x54] sm:$0xf] %v5658
        %5675 = vst [vmem:[#allocation2 + $0x5c] sm:$0xf] %v5659
        %5676 = vst [vmem:[#allocation2 + $0x64] sm:$0xf] %v5660
        %5677 = vst [vmem:[#allocation2 + $0x6c] sm:$0xf] %v5661
        %5678 = vst [vmem:[#allocation2 + $0x74] sm:$0xf] %v5662
        %5679 = vst [vmem:[#allocation2 + $0x7c] sm:$0xf] %v5663
        %v5680 = vld [vmem:[#allocation2] sm:$0xff]
        %v5681 = vld [vmem:[#allocation2 + $0x8] sm:$0xff]
        %v5682 = vld [vmem:[#allocation2 + $0x10] sm:$0xff]
        %v5683 = vld [vmem:[#allocation2 + $0x18] sm:$0xff]
        %v5684 = vld [vmem:[#allocation2 + $0x20] sm:$0xff]
        %v5685 = vld [vmem:[#allocation2 + $0x28] sm:$0xff]
        %v5686 = vld [vmem:[#allocation2 + $0x30] sm:$0xff]
        %v5687 = vld [vmem:[#allocation2 + $0x38] sm:$0xff]
        %v5688 = vld [vmem:[#allocation2 + $0x40] sm:$0xff]
        %v5689 = vld [vmem:[#allocation2 + $0x48] sm:$0xff]
        %v5690 = vld [vmem:[#allocation2 + $0x50] sm:$0xff]
        %v5691 = vld [vmem:[#allocation2 + $0x58] sm:$0xff]
        %v5692 = vld [vmem:[#allocation2 + $0x60] sm:$0xff]
        %v5693 = vld [vmem:[#allocation2 + $0x68] sm:$0xff]
        %v5694 = vld [vmem:[#allocation2 + $0x70] sm:$0xff]
        %v5695 = vld [vmem:[#allocation2 + $0x78] sm:$0xff]
        %s5696 = scalar_lea.vmem %s8, 128
        %v5697 = vld [vmem:[%s5696] sm:$0xf]
        %v5698 = vld [vmem:[%s5696 + $0x4] sm:$0xf]
        %v5699 = vld [vmem:[%s5696 + $0x8] sm:$0xf]
        %v5700 = vld [vmem:[%s5696 + $0xc] sm:$0xf]
        %v5701 = vld [vmem:[%s5696 + $0x10] sm:$0xf]
        %v5702 = vld [vmem:[%s5696 + $0x14] sm:$0xf]
        %v5703 = vld [vmem:[%s5696 + $0x18] sm:$0xf]
        %v5704 = vld [vmem:[%s5696 + $0x1c] sm:$0xf]
        %v5705 = vld [vmem:[%s5696 + $0x20] sm:$0xf]
        %v5706 = vld [vmem:[%s5696 + $0x24] sm:$0xf]
        %v5707 = vld [vmem:[%s5696 + $0x28] sm:$0xf]
        %v5708 = vld [vmem:[%s5696 + $0x2c] sm:$0xf]
        %v5709 = vld [vmem:[%s5696 + $0x30] sm:$0xf]
        %v5710 = vld [vmem:[%s5696 + $0x34] sm:$0xf]
        %v5711 = vld [vmem:[%s5696 + $0x38] sm:$0xf]
        %v5712 = vld [vmem:[%s5696 + $0x3c] sm:$0xf]
        %v5713 = vld [vmem:[%s5696 + $0x40] sm:$0xf]
        %v5714 = vld [vmem:[%s5696 + $0x44] sm:$0xf]
        %v5715 = vld [vmem:[%s5696 + $0x48] sm:$0xf]
        %v5716 = vld [vmem:[%s5696 + $0x4c] sm:$0xf]
        %v5717 = vld [vmem:[%s5696 + $0x50] sm:$0xf]
        %v5718 = vld [vmem:[%s5696 + $0x54] sm:$0xf]
        %v5719 = vld [vmem:[%s5696 + $0x58] sm:$0xf]
        %v5720 = vld [vmem:[%s5696 + $0x5c] sm:$0xf]
        %v5721 = vld [vmem:[%s5696 + $0x60] sm:$0xf]
        %v5722 = vld [vmem:[%s5696 + $0x64] sm:$0xf]
        %v5723 = vld [vmem:[%s5696 + $0x68] sm:$0xf]
        %v5724 = vld [vmem:[%s5696 + $0x6c] sm:$0xf]
        %v5725 = vld [vmem:[%s5696 + $0x70] sm:$0xf]
        %v5726 = vld [vmem:[%s5696 + $0x74] sm:$0xf]
        %v5727 = vld [vmem:[%s5696 + $0x78] sm:$0xf]
        %v5728 = vld [vmem:[%s5696 + $0x7c] sm:$0xf]
        %s5729 = scalar_lea.vmem %s9, 1
        %v5730 = vld [vmem:[%s5729] sm:$0x1]
        %v5732 = vperm.slane %v5730, 0
        %v5750 = vunpack.c.l.b16 %v5680
        %v5751 = vunpack.c.h.b16 %v5680
        %v5752 = vunpack.c.l.b16 %v5681
        %v5753 = vunpack.c.h.b16 %v5681
        %v5754 = vunpack.c.l.b16 %v5682
        %v5755 = vunpack.c.h.b16 %v5682
        %v5756 = vunpack.c.l.b16 %v5683
        %v5757 = vunpack.c.h.b16 %v5683
        %v5758 = vunpack.c.l.b16 %v5684
        %v5759 = vunpack.c.h.b16 %v5684
        %v5760 = vunpack.c.l.b16 %v5685
        %v5761 = vunpack.c.h.b16 %v5685
        %v5762 = vunpack.c.l.b16 %v5686
        %v5763 = vunpack.c.h.b16 %v5686
        %v5764 = vunpack.c.l.b16 %v5687
        %v5765 = vunpack.c.h.b16 %v5687
        %v5766 = vunpack.c.l.b16 %v5688
        %v5767 = vunpack.c.h.b16 %v5688
        %v5768 = vunpack.c.l.b16 %v5689
        %v5769 = vunpack.c.h.b16 %v5689
        %v5770 = vunpack.c.l.b16 %v5690
        %v5771 = vunpack.c.h.b16 %v5690
        %v5772 = vunpack.c.l.b16 %v5691
        %v5773 = vunpack.c.h.b16 %v5691
        %v5774 = vunpack.c.l.b16 %v5692
        %v5775 = vunpack.c.h.b16 %v5692
        %v5776 = vunpack.c.l.b16 %v5693
        %v5777 = vunpack.c.h.b16 %v5693
        %v5778 = vunpack.c.l.b16 %v5694
        %v5779 = vunpack.c.h.b16 %v5694
        %v5780 = vunpack.c.l.b16 %v5695
        %v5781 = vunpack.c.h.b16 %v5695
        %v5782 = vpack.c.b16 %v5752, %v5750
        %v5783 = vpack.c.b16 %v5753, %v5751
        %v5784 = vpack.c.b16 %v5756, %v5754
        %v5785 = vpack.c.b16 %v5757, %v5755
        %v5786 = vpack.c.b16 %v5760, %v5758
        %v5787 = vpack.c.b16 %v5761, %v5759
        %v5788 = vpack.c.b16 %v5764, %v5762
        %v5789 = vpack.c.b16 %v5765, %v5763
        %v5790 = vpack.c.b16 %v5768, %v5766
        %v5791 = vpack.c.b16 %v5769, %v5767
        %v5792 = vpack.c.b16 %v5772, %v5770
        %v5793 = vpack.c.b16 %v5773, %v5771
        %v5794 = vpack.c.b16 %v5776, %v5774
        %v5795 = vpack.c.b16 %v5777, %v5775
        %v5796 = vpack.c.b16 %v5780, %v5778
        %v5797 = vpack.c.b16 %v5781, %v5779
        %v5846 = vunpack.c.l.b16 %v5697
        %v5847 = vunpack.c.l.b16 %v5698
        %v5848 = vunpack.c.l.b16 %v5699
        %v5849 = vunpack.c.l.b16 %v5700
        %v5850 = vunpack.c.l.b16 %v5701
        %v5851 = vunpack.c.l.b16 %v5702
        %v5852 = vunpack.c.l.b16 %v5703
        %v5853 = vunpack.c.l.b16 %v5704
        %v5854 = vunpack.c.l.b16 %v5705
        %v5855 = vunpack.c.l.b16 %v5706
        %v5856 = vunpack.c.l.b16 %v5707
        %v5857 = vunpack.c.l.b16 %v5708
        %v5858 = vunpack.c.l.b16 %v5709
        %v5859 = vunpack.c.l.b16 %v5710
        %v5860 = vunpack.c.l.b16 %v5711
        %v5861 = vunpack.c.l.b16 %v5712
        %v5862 = vunpack.c.l.b16 %v5713
        %v5863 = vunpack.c.l.b16 %v5714
        %v5864 = vunpack.c.l.b16 %v5715
        %v5865 = vunpack.c.l.b16 %v5716
        %v5866 = vunpack.c.l.b16 %v5717
        %v5867 = vunpack.c.l.b16 %v5718
        %v5868 = vunpack.c.l.b16 %v5719
        %v5869 = vunpack.c.l.b16 %v5720
        %v5870 = vunpack.c.l.b16 %v5721
        %v5871 = vunpack.c.l.b16 %v5722
        %v5872 = vunpack.c.l.b16 %v5723
        %v5873 = vunpack.c.l.b16 %v5724
        %v5874 = vunpack.c.l.b16 %v5725
        %v5875 = vunpack.c.l.b16 %v5726
        %v5876 = vunpack.c.l.b16 %v5727
        %v5877 = vunpack.c.l.b16 %v5728
        %v5878 = vpack.c.b16 %v5847, %v5846
        %v5879 = vpack.c.b16 %v5849, %v5848
        %v5880 = vpack.c.b16 %v5851, %v5850
        %v5881 = vpack.c.b16 %v5853, %v5852
        %v5882 = vpack.c.b16 %v5855, %v5854
        %v5883 = vpack.c.b16 %v5857, %v5856
        %v5884 = vpack.c.b16 %v5859, %v5858
        %v5885 = vpack.c.b16 %v5861, %v5860
        %v5886 = vpack.c.b16 %v5863, %v5862
        %v5887 = vpack.c.b16 %v5865, %v5864
        %v5888 = vpack.c.b16 %v5867, %v5866
        %v5889 = vpack.c.b16 %v5869, %v5868
        %v5890 = vpack.c.b16 %v5871, %v5870
        %v5891 = vpack.c.b16 %v5873, %v5872
        %v5892 = vpack.c.b16 %v5875, %v5874
        %v5893 = vpack.c.b16 %v5877, %v5876
        %5910 = vmatpush.bf16.msra.mxu0 %v5885
        %5911 = vmatpush.bf16.msra.mxu0 %v5884
        %5912 = vmatpush.bf16.msra.mxu0 %v5883
        %5913 = vmatpush.bf16.msra.mxu0 %v5882
        %5914 = vmatpush.bf16.msra.mxu0 %v5881
        %5915 = vmatpush.bf16.msra.mxu0 %v5880
        %5916 = vmatpush.bf16.msra.mxu0 %v5879
        %5917 = vmatpush.bf16.msra.mxu0 %v5878
        %5918 = vmatmul.bf16.gmra.mxu0 %v5782
        %v5919 = vpop.f32.mrf.mxu0
        %v5920 = vadd.f32 %v5732, %v5919
        %v5921 = vpop.f32.mrf.mxu0
        %v5922 = vadd.f32 %v5732, %v5921
        %5923 = vmatmul.bf16.gmra.mxu0 %v5784
        %v5924 = vpop.f32.mrf.mxu0
        %v5925 = vadd.f32 %v5732, %v5924
        %v5926 = vpop.f32.mrf.mxu0
        %v5927 = vadd.f32 %v5732, %v5926
        %5928 = vmatmul.bf16.gmra.mxu0 %v5786
        %v5929 = vpop.f32.mrf.mxu0
        %v5930 = vadd.f32 %v5732, %v5929
        %v5931 = vpop.f32.mrf.mxu0
        %v5932 = vadd.f32 %v5732, %v5931
        %5933 = vmatmul.bf16.gmra.mxu0 %v5788
        %v5934 = vpop.f32.mrf.mxu0
        %v5935 = vadd.f32 %v5732, %v5934
        %v5936 = vpop.f32.mrf.mxu0
        %v5937 = vadd.f32 %v5732, %v5936
        %5938 = vmatmul.bf16.gmra.mxu0 %v5790
        %v5939 = vpop.f32.mrf.mxu0
        %v5940 = vadd.f32 %v5732, %v5939
        %v5941 = vpop.f32.mrf.mxu0
        %v5942 = vadd.f32 %v5732, %v5941
        %5943 = vmatmul.bf16.gmra.mxu0 %v5792
        %v5944 = vpop.f32.mrf.mxu0
        %v5945 = vadd.f32 %v5732, %v5944
        %v5946 = vpop.f32.mrf.mxu0
        %v5947 = vadd.f32 %v5732, %v5946
        %5948 = vmatmul.bf16.gmra.mxu0 %v5794
        %v5949 = vpop.f32.mrf.mxu0
        %v5950 = vadd.f32 %v5732, %v5949
        %v5951 = vpop.f32.mrf.mxu0
        %v5952 = vadd.f32 %v5732, %v5951
        %5953 = vmatmul.bf16.gmra.mxu0 %v5796
        %v5954 = vpop.f32.mrf.mxu0
        %v5955 = vadd.f32 %v5732, %v5954
        %v5956 = vpop.f32.mrf.mxu0
        %v5957 = vadd.f32 %v5732, %v5956
        %5958 = vdwg.mxu0
        %5959 = vmatpush.bf16.msra.mxu0 %v5893
        %5960 = vmatpush.bf16.msra.mxu0 %v5892
        %5961 = vmatpush.bf16.msra.mxu0 %v5891
        %5962 = vmatpush.bf16.msra.mxu0 %v5890
        %5963 = vmatpush.bf16.msra.mxu0 %v5889
        %5964 = vmatpush.bf16.msra.mxu0 %v5888
        %5965 = vmatpush.bf16.msra.mxu0 %v5887
        %5966 = vmatpush.bf16.msra.mxu0 %v5886
        %5967 = vmatmul.bf16.gmra.mxu0 %v5783
        %v5968 = vpop.f32.mrf.mxu0
        %v5969 = vadd.f32 %v5920, %v5968
        %v5970 = vpop.f32.mrf.mxu0
        %v5971 = vadd.f32 %v5922, %v5970
        %5972 = vmatmul.bf16.gmra.mxu0 %v5785
        %v5973 = vpop.f32.mrf.mxu0
        %v5974 = vadd.f32 %v5925, %v5973
        %v5975 = vpop.f32.mrf.mxu0
        %v5976 = vadd.f32 %v5927, %v5975
        %5977 = vmatmul.bf16.gmra.mxu0 %v5787
        %v5978 = vpop.f32.mrf.mxu0
        %v5979 = vadd.f32 %v5930, %v5978
        %v5980 = vpop.f32.mrf.mxu0
        %v5981 = vadd.f32 %v5932, %v5980
        %5982 = vmatmul.bf16.gmra.mxu0 %v5789
        %v5983 = vpop.f32.mrf.mxu0
        %v5984 = vadd.f32 %v5935, %v5983
        %v5985 = vpop.f32.mrf.mxu0
        %v5986 = vadd.f32 %v5937, %v5985
        %5987 = vmatmul.bf16.gmra.mxu0 %v5791
        %v5988 = vpop.f32.mrf.mxu0
        %v5989 = vadd.f32 %v5940, %v5988
        %v5990 = vpop.f32.mrf.mxu0
        %v5991 = vadd.f32 %v5942, %v5990
        %5992 = vmatmul.bf16.gmra.mxu0 %v5793
        %v5993 = vpop.f32.mrf.mxu0
        %v5994 = vadd.f32 %v5945, %v5993
        %v5995 = vpop.f32.mrf.mxu0
        %v5996 = vadd.f32 %v5947, %v5995
        %5997 = vmatmul.bf16.gmra.mxu0 %v5795
        %v5998 = vpop.f32.mrf.mxu0
        %v5999 = vadd.f32 %v5950, %v5998
        %v6000 = vpop.f32.mrf.mxu0
        %v6001 = vadd.f32 %v5952, %v6000
        %6002 = vmatmul.bf16.gmra.mxu0 %v5797
        %v6003 = vpop.f32.mrf.mxu0
        %v6004 = vadd.f32 %v5955, %v6003
        %v6005 = vpop.f32.mrf.mxu0
        %v6006 = vadd.f32 %v5957, %v6005
        %6007 = vdwg.mxu0
        %v6008 = vadd.f32 %v4382, %v5969
        %v6009 = vadd.f32 %v4383, %v5971
        %v6010 = vadd.f32 %v4384, %v5974
        %v6011 = vadd.f32 %v4385, %v5976
        %v6012 = vadd.f32 %v4386, %v5979
        %v6013 = vadd.f32 %v4387, %v5981
        %v6014 = vadd.f32 %v4388, %v5984
        %v6015 = vadd.f32 %v4389, %v5986
        %v6016 = vadd.f32 %v4390, %v5989
        %v6017 = vadd.f32 %v4391, %v5991
        %v6018 = vadd.f32 %v4392, %v5994
        %v6019 = vadd.f32 %v4393, %v5996
        %v6020 = vadd.f32 %v4394, %v5999
        %v6021 = vadd.f32 %v4395, %v6001
        %v6022 = vadd.f32 %v4396, %v6004
        %v6023 = vadd.f32 %v4397, %v6006
        %s6024 = scalar_lea.vmem %s10, 1
        %v6025 = vld [vmem:[%s6024] sm:$0x1]
        %s6026 = scalar_lea.vmem %s11, 1
        %v6027 = vld [vmem:[%s6026] sm:$0x1]
        %6028 = vadd.xlane.f32.xlu0 %v6008
        %v6029 = vpop.xlane.xlu0 %6028
        %6030 = vadd.xlane.f32.xlu0 %v6009
        %v6031 = vpop.xlane.xlu0 %6030
        %6032 = vadd.xlane.f32.xlu0 %v6010
        %v6033 = vpop.xlane.xlu0 %6032
        %6034 = vadd.xlane.f32.xlu0 %v6011
        %v6035 = vpop.xlane.xlu0 %6034
        %6036 = vadd.xlane.f32.xlu0 %v6012
        %v6037 = vpop.xlane.xlu0 %6036
        %6038 = vadd.xlane.f32.xlu0 %v6013
        %v6039 = vpop.xlane.xlu0 %6038
        %6040 = vadd.xlane.f32.xlu0 %v6014
        %v6041 = vpop.xlane.xlu0 %6040
        %6042 = vadd.xlane.f32.xlu0 %v6015
        %v6043 = vpop.xlane.xlu0 %6042
        %6044 = vadd.xlane.f32.xlu0 %v6016
        %v6045 = vpop.xlane.xlu0 %6044
        %6046 = vadd.xlane.f32.xlu0 %v6017
        %v6047 = vpop.xlane.xlu0 %6046
        %6048 = vadd.xlane.f32.xlu0 %v6018
        %v6049 = vpop.xlane.xlu0 %6048
        %6050 = vadd.xlane.f32.xlu0 %v6019
        %v6051 = vpop.xlane.xlu0 %6050
        %6052 = vadd.xlane.f32.xlu0 %v6020
        %v6053 = vpop.xlane.xlu0 %6052
        %6054 = vadd.xlane.f32.xlu0 %v6021
        %v6055 = vpop.xlane.xlu0 %6054
        %6056 = vadd.xlane.f32.xlu0 %v6022
        %v6057 = vpop.xlane.xlu0 %6056
        %6058 = vadd.xlane.f32.xlu0 %v6023
        %v6059 = vpop.xlane.xlu0 %6058
        %v6060 = vmul.f32 %v6029, %v955
        %v6061 = vmul.f32 %v6031, %v955
        %v6062 = vmul.f32 %v6033, %v955
        %v6063 = vmul.f32 %v6035, %v955
        %v6064 = vmul.f32 %v6037, %v955
        %v6065 = vmul.f32 %v6039, %v955
        %v6066 = vmul.f32 %v6041, %v955
        %v6067 = vmul.f32 %v6043, %v955
        %v6068 = vmul.f32 %v6045, %v955
        %v6069 = vmul.f32 %v6047, %v955
        %v6070 = vmul.f32 %v6049, %v955
        %v6071 = vmul.f32 %v6051, %v955
        %v6072 = vmul.f32 %v6053, %v955
        %v6073 = vmul.f32 %v6055, %v955
        %v6074 = vmul.f32 %v6057, %v955
        %v6075 = vmul.f32 %v6059, %v955
        %v6076 = vsub.f32 %v6008, %v6060
        %v6077 = vsub.f32 %v6009, %v6061
        %v6078 = vsub.f32 %v6010, %v6062
        %v6079 = vsub.f32 %v6011, %v6063
        %v6080 = vsub.f32 %v6012, %v6064
        %v6081 = vsub.f32 %v6013, %v6065
        %v6082 = vsub.f32 %v6014, %v6066
        %v6083 = vsub.f32 %v6015, %v6067
        %v6084 = vsub.f32 %v6016, %v6068
        %v6085 = vsub.f32 %v6017, %v6069
        %v6086 = vsub.f32 %v6018, %v6070
        %v6087 = vsub.f32 %v6019, %v6071
        %v6088 = vsub.f32 %v6020, %v6072
        %v6089 = vsub.f32 %v6021, %v6073
        %v6090 = vsub.f32 %v6022, %v6074
        %v6091 = vsub.f32 %v6023, %v6075
        %v6092 = vmul.f32 %v6076, %v6076
        %v6093 = vmul.f32 %v6077, %v6077
        %v6094 = vmul.f32 %v6078, %v6078
        %v6095 = vmul.f32 %v6079, %v6079
        %v6096 = vmul.f32 %v6080, %v6080
        %v6097 = vmul.f32 %v6081, %v6081
        %v6098 = vmul.f32 %v6082, %v6082
        %v6099 = vmul.f32 %v6083, %v6083
        %v6100 = vmul.f32 %v6084, %v6084
        %v6101 = vmul.f32 %v6085, %v6085
        %v6102 = vmul.f32 %v6086, %v6086
        %v6103 = vmul.f32 %v6087, %v6087
        %v6104 = vmul.f32 %v6088, %v6088
        %v6105 = vmul.f32 %v6089, %v6089
        %v6106 = vmul.f32 %v6090, %v6090
        %v6107 = vmul.f32 %v6091, %v6091
        %6108 = vadd.xlane.f32.xlu0 %v6092
        %v6109 = vpop.xlane.xlu0 %6108
        %6110 = vadd.xlane.f32.xlu0 %v6093
        %v6111 = vpop.xlane.xlu0 %6110
        %6112 = vadd.xlane.f32.xlu0 %v6094
        %v6113 = vpop.xlane.xlu0 %6112
        %6114 = vadd.xlane.f32.xlu0 %v6095
        %v6115 = vpop.xlane.xlu0 %6114
        %6116 = vadd.xlane.f32.xlu0 %v6096
        %v6117 = vpop.xlane.xlu0 %6116
        %6118 = vadd.xlane.f32.xlu0 %v6097
        %v6119 = vpop.xlane.xlu0 %6118
        %6120 = vadd.xlane.f32.xlu0 %v6098
        %v6121 = vpop.xlane.xlu0 %6120
        %6122 = vadd.xlane.f32.xlu0 %v6099
        %v6123 = vpop.xlane.xlu0 %6122
        %6124 = vadd.xlane.f32.xlu0 %v6100
        %v6125 = vpop.xlane.xlu0 %6124
        %6126 = vadd.xlane.f32.xlu0 %v6101
        %v6127 = vpop.xlane.xlu0 %6126
        %6128 = vadd.xlane.f32.xlu0 %v6102
        %v6129 = vpop.xlane.xlu0 %6128
        %6130 = vadd.xlane.f32.xlu0 %v6103
        %v6131 = vpop.xlane.xlu0 %6130
        %6132 = vadd.xlane.f32.xlu0 %v6104
        %v6133 = vpop.xlane.xlu0 %6132
        %6134 = vadd.xlane.f32.xlu0 %v6105
        %v6135 = vpop.xlane.xlu0 %6134
        %6136 = vadd.xlane.f32.xlu0 %v6106
        %v6137 = vpop.xlane.xlu0 %6136
        %6138 = vadd.xlane.f32.xlu0 %v6107
        %v6139 = vpop.xlane.xlu0 %6138
        %v6140 = vmul.f32 %v6109, %v955
        %v6141 = vmul.f32 %v6111, %v955
        %v6142 = vmul.f32 %v6113, %v955
        %v6143 = vmul.f32 %v6115, %v955
        %v6144 = vmul.f32 %v6117, %v955
        %v6145 = vmul.f32 %v6119, %v955
        %v6146 = vmul.f32 %v6121, %v955
        %v6147 = vmul.f32 %v6123, %v955
        %v6148 = vmul.f32 %v6125, %v955
        %v6149 = vmul.f32 %v6127, %v955
        %v6150 = vmul.f32 %v6129, %v955
        %v6151 = vmul.f32 %v6131, %v955
        %v6152 = vmul.f32 %v6133, %v955
        %v6153 = vmul.f32 %v6135, %v955
        %v6154 = vmul.f32 %v6137, %v955
        %v6155 = vmul.f32 %v6139, %v955
        %v6156 = vadd.f32 %v6140, 1e-12
        %v6157 = vadd.f32 %v6141, 1e-12
        %v6158 = vadd.f32 %v6142, 1e-12
        %v6159 = vadd.f32 %v6143, 1e-12
        %v6160 = vadd.f32 %v6144, 1e-12
        %v6161 = vadd.f32 %v6145, 1e-12
        %v6162 = vadd.f32 %v6146, 1e-12
        %v6163 = vadd.f32 %v6147, 1e-12
        %v6164 = vadd.f32 %v6148, 1e-12
        %v6165 = vadd.f32 %v6149, 1e-12
        %v6166 = vadd.f32 %v6150, 1e-12
        %v6167 = vadd.f32 %v6151, 1e-12
        %v6168 = vadd.f32 %v6152, 1e-12
        %v6169 = vadd.f32 %v6153, 1e-12
        %v6170 = vadd.f32 %v6154, 1e-12
        %v6171 = vadd.f32 %v6155, 1e-12
        %v6172 = vrsqrt.pop %v6156
        %v6173 = vmul.f32 %v6172, %v6156
        %v6174 = vmul.f32 %v6173, %v6172
        %v6175 = vmul.f32 0.5, %v6174
        %v6176 = vsub.f32 1.5, %v6175
        %v6177 = vmul.f32 %v6172, %v6176
        %vm6178 = vweird.f32 %v6156
        %vm6179 = vweird.f32 %v6172
        %vm6180 = vmor %vm6178, %vm6179
        %v6181 = vsel %vm6180, %v6172, %v6177
        %v6182 = vrsqrt.pop %v6157
        %v6183 = vmul.f32 %v6182, %v6157
        %v6184 = vmul.f32 %v6183, %v6182
        %v6185 = vmul.f32 0.5, %v6184
        %v6186 = vsub.f32 1.5, %v6185
        %v6187 = vmul.f32 %v6182, %v6186
        %vm6188 = vweird.f32 %v6157
        %vm6189 = vweird.f32 %v6182
        %vm6190 = vmor %vm6188, %vm6189
        %v6191 = vsel %vm6190, %v6182, %v6187
        %v6192 = vrsqrt.pop %v6158
        %v6193 = vmul.f32 %v6192, %v6158
        %v6194 = vmul.f32 %v6193, %v6192
        %v6195 = vmul.f32 0.5, %v6194
        %v6196 = vsub.f32 1.5, %v6195
        %v6197 = vmul.f32 %v6192, %v6196
        %vm6198 = vweird.f32 %v6158
        %vm6199 = vweird.f32 %v6192
        %vm6200 = vmor %vm6198, %vm6199
        %v6201 = vsel %vm6200, %v6192, %v6197
        %v6202 = vrsqrt.pop %v6159
        %v6203 = vmul.f32 %v6202, %v6159
        %v6204 = vmul.f32 %v6203, %v6202
        %v6205 = vmul.f32 0.5, %v6204
        %v6206 = vsub.f32 1.5, %v6205
        %v6207 = vmul.f32 %v6202, %v6206
        %vm6208 = vweird.f32 %v6159
        %vm6209 = vweird.f32 %v6202
        %vm6210 = vmor %vm6208, %vm6209
        %v6211 = vsel %vm6210, %v6202, %v6207
        %v6212 = vrsqrt.pop %v6160
        %v6213 = vmul.f32 %v6212, %v6160
        %v6214 = vmul.f32 %v6213, %v6212
        %v6215 = vmul.f32 0.5, %v6214
        %v6216 = vsub.f32 1.5, %v6215
        %v6217 = vmul.f32 %v6212, %v6216
        %vm6218 = vweird.f32 %v6160
        %vm6219 = vweird.f32 %v6212
        %vm6220 = vmor %vm6218, %vm6219
        %v6221 = vsel %vm6220, %v6212, %v6217
        %v6222 = vrsqrt.pop %v6161
        %v6223 = vmul.f32 %v6222, %v6161
        %v6224 = vmul.f32 %v6223, %v6222
        %v6225 = vmul.f32 0.5, %v6224
        %v6226 = vsub.f32 1.5, %v6225
        %v6227 = vmul.f32 %v6222, %v6226
        %vm6228 = vweird.f32 %v6161
        %vm6229 = vweird.f32 %v6222
        %vm6230 = vmor %vm6228, %vm6229
        %v6231 = vsel %vm6230, %v6222, %v6227
        %v6232 = vrsqrt.pop %v6162
        %v6233 = vmul.f32 %v6232, %v6162
        %v6234 = vmul.f32 %v6233, %v6232
        %v6235 = vmul.f32 0.5, %v6234
        %v6236 = vsub.f32 1.5, %v6235
        %v6237 = vmul.f32 %v6232, %v6236
        %vm6238 = vweird.f32 %v6162
        %vm6239 = vweird.f32 %v6232
        %vm6240 = vmor %vm6238, %vm6239
        %v6241 = vsel %vm6240, %v6232, %v6237
        %v6242 = vrsqrt.pop %v6163
        %v6243 = vmul.f32 %v6242, %v6163
        %v6244 = vmul.f32 %v6243, %v6242
        %v6245 = vmul.f32 0.5, %v6244
        %v6246 = vsub.f32 1.5, %v6245
        %v6247 = vmul.f32 %v6242, %v6246
        %vm6248 = vweird.f32 %v6163
        %vm6249 = vweird.f32 %v6242
        %vm6250 = vmor %vm6248, %vm6249
        %v6251 = vsel %vm6250, %v6242, %v6247
        %v6252 = vrsqrt.pop %v6164
        %v6253 = vmul.f32 %v6252, %v6164
        %v6254 = vmul.f32 %v6253, %v6252
        %v6255 = vmul.f32 0.5, %v6254
        %v6256 = vsub.f32 1.5, %v6255
        %v6257 = vmul.f32 %v6252, %v6256
        %vm6258 = vweird.f32 %v6164
        %vm6259 = vweird.f32 %v6252
        %vm6260 = vmor %vm6258, %vm6259
        %v6261 = vsel %vm6260, %v6252, %v6257
        %v6262 = vrsqrt.pop %v6165
        %v6263 = vmul.f32 %v6262, %v6165
        %v6264 = vmul.f32 %v6263, %v6262
        %v6265 = vmul.f32 0.5, %v6264
        %v6266 = vsub.f32 1.5, %v6265
        %v6267 = vmul.f32 %v6262, %v6266
        %vm6268 = vweird.f32 %v6165
        %vm6269 = vweird.f32 %v6262
        %vm6270 = vmor %vm6268, %vm6269
        %v6271 = vsel %vm6270, %v6262, %v6267
        %v6272 = vrsqrt.pop %v6166
        %v6273 = vmul.f32 %v6272, %v6166
        %v6274 = vmul.f32 %v6273, %v6272
        %v6275 = vmul.f32 0.5, %v6274
        %v6276 = vsub.f32 1.5, %v6275
        %v6277 = vmul.f32 %v6272, %v6276
        %vm6278 = vweird.f32 %v6166
        %vm6279 = vweird.f32 %v6272
        %vm6280 = vmor %vm6278, %vm6279
        %v6281 = vsel %vm6280, %v6272, %v6277
        %v6282 = vrsqrt.pop %v6167
        %v6283 = vmul.f32 %v6282, %v6167
        %v6284 = vmul.f32 %v6283, %v6282
        %v6285 = vmul.f32 0.5, %v6284
        %v6286 = vsub.f32 1.5, %v6285
        %v6287 = vmul.f32 %v6282, %v6286
        %vm6288 = vweird.f32 %v6167
        %vm6289 = vweird.f32 %v6282
        %vm6290 = vmor %vm6288, %vm6289
        %v6291 = vsel %vm6290, %v6282, %v6287
        %v6292 = vrsqrt.pop %v6168
        %v6293 = vmul.f32 %v6292, %v6168
        %v6294 = vmul.f32 %v6293, %v6292
        %v6295 = vmul.f32 0.5, %v6294
        %v6296 = vsub.f32 1.5, %v6295
        %v6297 = vmul.f32 %v6292, %v6296
        %vm6298 = vweird.f32 %v6168
        %vm6299 = vweird.f32 %v6292
        %vm6300 = vmor %vm6298, %vm6299
        %v6301 = vsel %vm6300, %v6292, %v6297
        %v6302 = vrsqrt.pop %v6169
        %v6303 = vmul.f32 %v6302, %v6169
        %v6304 = vmul.f32 %v6303, %v6302
        %v6305 = vmul.f32 0.5, %v6304
        %v6306 = vsub.f32 1.5, %v6305
        %v6307 = vmul.f32 %v6302, %v6306
        %vm6308 = vweird.f32 %v6169
        %vm6309 = vweird.f32 %v6302
        %vm6310 = vmor %vm6308, %vm6309
        %v6311 = vsel %vm6310, %v6302, %v6307
        %v6312 = vrsqrt.pop %v6170
        %v6313 = vmul.f32 %v6312, %v6170
        %v6314 = vmul.f32 %v6313, %v6312
        %v6315 = vmul.f32 0.5, %v6314
        %v6316 = vsub.f32 1.5, %v6315
        %v6317 = vmul.f32 %v6312, %v6316
        %vm6318 = vweird.f32 %v6170
        %vm6319 = vweird.f32 %v6312
        %vm6320 = vmor %vm6318, %vm6319
        %v6321 = vsel %vm6320, %v6312, %v6317
        %v6322 = vrsqrt.pop %v6171
        %v6323 = vmul.f32 %v6322, %v6171
        %v6324 = vmul.f32 %v6323, %v6322
        %v6325 = vmul.f32 0.5, %v6324
        %v6326 = vsub.f32 1.5, %v6325
        %v6327 = vmul.f32 %v6322, %v6326
        %vm6328 = vweird.f32 %v6171
        %vm6329 = vweird.f32 %v6322
        %vm6330 = vmor %vm6328, %vm6329
        %v6331 = vsel %vm6330, %v6322, %v6327
        %v6332 = vmul.f32 %v6076, %v6181
        %v6333 = vmul.f32 %v6077, %v6191
        %v6334 = vmul.f32 %v6078, %v6201
        %v6335 = vmul.f32 %v6079, %v6211
        %v6336 = vmul.f32 %v6080, %v6221
        %v6337 = vmul.f32 %v6081, %v6231
        %v6338 = vmul.f32 %v6082, %v6241
        %v6339 = vmul.f32 %v6083, %v6251
        %v6340 = vmul.f32 %v6084, %v6261
        %v6341 = vmul.f32 %v6085, %v6271
        %v6342 = vmul.f32 %v6086, %v6281
        %v6343 = vmul.f32 %v6087, %v6291
        %v6344 = vmul.f32 %v6088, %v6301
        %v6345 = vmul.f32 %v6089, %v6311
        %v6346 = vmul.f32 %v6090, %v6321
        %v6347 = vmul.f32 %v6091, %v6331
        %v6349 = vperm.slane %v6025, 0
        %v6351 = vmul.f32 %v6332, %v6349
        %v6352 = vmul.f32 %v6333, %v6349
        %v6353 = vmul.f32 %v6334, %v6349
        %v6354 = vmul.f32 %v6335, %v6349
        %v6355 = vmul.f32 %v6336, %v6349
        %v6356 = vmul.f32 %v6337, %v6349
        %v6357 = vmul.f32 %v6338, %v6349
        %v6358 = vmul.f32 %v6339, %v6349
        %v6359 = vmul.f32 %v6340, %v6349
        %v6360 = vmul.f32 %v6341, %v6349
        %v6361 = vmul.f32 %v6342, %v6349
        %v6362 = vmul.f32 %v6343, %v6349
        %v6363 = vmul.f32 %v6344, %v6349
        %v6364 = vmul.f32 %v6345, %v6349
        %v6365 = vmul.f32 %v6346, %v6349
        %v6366 = vmul.f32 %v6347, %v6349
        %v6368 = vperm.slane %v6027, 0
        %v6370 = vadd.f32 %v6351, %v6368
        %v6371 = vadd.f32 %v6352, %v6368
        %v6372 = vadd.f32 %v6353, %v6368
        %v6373 = vadd.f32 %v6354, %v6368
        %v6374 = vadd.f32 %v6355, %v6368
        %v6375 = vadd.f32 %v6356, %v6368
        %v6376 = vadd.f32 %v6357, %v6368
        %v6377 = vadd.f32 %v6358, %v6368
        %v6378 = vadd.f32 %v6359, %v6368
        %v6379 = vadd.f32 %v6360, %v6368
        %v6380 = vadd.f32 %v6361, %v6368
        %v6381 = vadd.f32 %v6362, %v6368
        %v6382 = vadd.f32 %v6363, %v6368
        %v6383 = vadd.f32 %v6364, %v6368
        %v6384 = vadd.f32 %v6365, %v6368
        %v6385 = vadd.f32 %v6366, %v6368
        %v6386 = vpack.c.bf16 %v6371, %v6370
        %v6387 = vpack.c.bf16 %v6373, %v6372
        %v6388 = vpack.c.bf16 %v6375, %v6374
        %v6389 = vpack.c.bf16 %v6377, %v6376
        %v6390 = vpack.c.bf16 %v6379, %v6378
        %v6391 = vpack.c.bf16 %v6381, %v6380
        %v6392 = vpack.c.bf16 %v6383, %v6382
        %v6393 = vpack.c.bf16 %v6385, %v6384
        %s6394 = scalar_lea.vmem %s12, 128
        %v6395 = vld [vmem:[%s6394] sm:$0xff]
        %v6396 = vld [vmem:[%s6394 + $0x8] sm:$0xff]
        %v6397 = vld [vmem:[%s6394 + $0x10] sm:$0xff]
        %v6398 = vld [vmem:[%s6394 + $0x18] sm:$0xff]
        %v6399 = vld [vmem:[%s6394 + $0x20] sm:$0xff]
        %v6400 = vld [vmem:[%s6394 + $0x28] sm:$0xff]
        %v6401 = vld [vmem:[%s6394 + $0x30] sm:$0xff]
        %v6402 = vld [vmem:[%s6394 + $0x38] sm:$0xff]
        %v6403 = vld [vmem:[%s6394 + $0x40] sm:$0xff]
        %v6404 = vld [vmem:[%s6394 + $0x48] sm:$0xff]
        %v6405 = vld [vmem:[%s6394 + $0x50] sm:$0xff]
        %v6406 = vld [vmem:[%s6394 + $0x58] sm:$0xff]
        %v6407 = vld [vmem:[%s6394 + $0x60] sm:$0xff]
        %v6408 = vld [vmem:[%s6394 + $0x68] sm:$0xff]
        %v6409 = vld [vmem:[%s6394 + $0x70] sm:$0xff]
        %v6410 = vld [vmem:[%s6394 + $0x78] sm:$0xff]
        %s6411 = scalar_lea.vmem %s13, 2
        %v6412 = vld [vmem:[%s6411] sm:$0x3]
        %v6414 = vperm.slane %v6412, 0
        %v6415 = vperm.slane %v6412, 1
        %v6434 = vunpack.c.l.b16 %v6395
        %v6435 = vunpack.c.h.b16 %v6395
        %v6436 = vunpack.c.l.b16 %v6396
        %v6437 = vunpack.c.h.b16 %v6396
        %v6438 = vunpack.c.l.b16 %v6397
        %v6439 = vunpack.c.h.b16 %v6397
        %v6440 = vunpack.c.l.b16 %v6398
        %v6441 = vunpack.c.h.b16 %v6398
        %v6442 = vunpack.c.l.b16 %v6399
        %v6443 = vunpack.c.h.b16 %v6399
        %v6444 = vunpack.c.l.b16 %v6400
        %v6445 = vunpack.c.h.b16 %v6400
        %v6446 = vunpack.c.l.b16 %v6401
        %v6447 = vunpack.c.h.b16 %v6401
        %v6448 = vunpack.c.l.b16 %v6402
        %v6449 = vunpack.c.h.b16 %v6402
        %v6450 = vunpack.c.l.b16 %v6403
        %v6451 = vunpack.c.h.b16 %v6403
        %v6452 = vunpack.c.l.b16 %v6404
        %v6453 = vunpack.c.h.b16 %v6404
        %v6454 = vunpack.c.l.b16 %v6405
        %v6455 = vunpack.c.h.b16 %v6405
        %v6456 = vunpack.c.l.b16 %v6406
        %v6457 = vunpack.c.h.b16 %v6406
        %v6458 = vunpack.c.l.b16 %v6407
        %v6459 = vunpack.c.h.b16 %v6407
        %v6460 = vunpack.c.l.b16 %v6408
        %v6461 = vunpack.c.h.b16 %v6408
        %v6462 = vunpack.c.l.b16 %v6409
        %v6463 = vunpack.c.h.b16 %v6409
        %v6464 = vunpack.c.l.b16 %v6410
        %v6465 = vunpack.c.h.b16 %v6410
        %v6466 = vpack.c.b16 %v6436, %v6434
        %v6467 = vpack.c.b16 %v6437, %v6435
        %v6468 = vpack.c.b16 %v6440, %v6438
        %v6469 = vpack.c.b16 %v6441, %v6439
        %v6470 = vpack.c.b16 %v6444, %v6442
        %v6471 = vpack.c.b16 %v6445, %v6443
        %v6472 = vpack.c.b16 %v6448, %v6446
        %v6473 = vpack.c.b16 %v6449, %v6447
        %v6474 = vpack.c.b16 %v6452, %v6450
        %v6475 = vpack.c.b16 %v6453, %v6451
        %v6476 = vpack.c.b16 %v6456, %v6454
        %v6477 = vpack.c.b16 %v6457, %v6455
        %v6478 = vpack.c.b16 %v6460, %v6458
        %v6479 = vpack.c.b16 %v6461, %v6459
        %v6480 = vpack.c.b16 %v6464, %v6462
        %v6481 = vpack.c.b16 %v6465, %v6463
        %6498 = vmatpush.bf16.msra.mxu0 %v6480
        %6499 = vmatpush.bf16.msra.mxu0 %v6478
        %6500 = vmatpush.bf16.msra.mxu0 %v6476
        %6501 = vmatpush.bf16.msra.mxu0 %v6474
        %6502 = vmatpush.bf16.msra.mxu0 %v6472
        %6503 = vmatpush.bf16.msra.mxu0 %v6470
        %6504 = vmatpush.bf16.msra.mxu0 %v6468
        %6505 = vmatpush.bf16.msra.mxu0 %v6466
        %6506 = vmatmul.bf16.gmra.mxu0 %v6386
        %v6507 = vpop.f32.mrf.mxu0
        %v6508 = vadd.f32 %v6414, %v6507
        %v6509 = vpop.f32.mrf.mxu0
        %v6510 = vadd.f32 %v6414, %v6509
        %6511 = vmatmul.bf16.gmra.mxu0 %v6387
        %v6512 = vpop.f32.mrf.mxu0
        %v6513 = vadd.f32 %v6414, %v6512
        %v6514 = vpop.f32.mrf.mxu0
        %v6515 = vadd.f32 %v6414, %v6514
        %6516 = vmatmul.bf16.gmra.mxu0 %v6388
        %v6517 = vpop.f32.mrf.mxu0
        %v6518 = vadd.f32 %v6414, %v6517
        %v6519 = vpop.f32.mrf.mxu0
        %v6520 = vadd.f32 %v6414, %v6519
        %6521 = vmatmul.bf16.gmra.mxu0 %v6389
        %v6522 = vpop.f32.mrf.mxu0
        %v6523 = vadd.f32 %v6414, %v6522
        %v6524 = vpop.f32.mrf.mxu0
        %v6525 = vadd.f32 %v6414, %v6524
        %6526 = vmatmul.bf16.gmra.mxu0 %v6390
        %v6527 = vpop.f32.mrf.mxu0
        %v6528 = vadd.f32 %v6414, %v6527
        %v6529 = vpop.f32.mrf.mxu0
        %v6530 = vadd.f32 %v6414, %v6529
        %6531 = vmatmul.bf16.gmra.mxu0 %v6391
        %v6532 = vpop.f32.mrf.mxu0
        %v6533 = vadd.f32 %v6414, %v6532
        %v6534 = vpop.f32.mrf.mxu0
        %v6535 = vadd.f32 %v6414, %v6534
        %6536 = vmatmul.bf16.gmra.mxu0 %v6392
        %v6537 = vpop.f32.mrf.mxu0
        %v6538 = vadd.f32 %v6414, %v6537
        %v6539 = vpop.f32.mrf.mxu0
        %v6540 = vadd.f32 %v6414, %v6539
        %6541 = vmatmul.bf16.gmra.mxu0 %v6393
        %v6542 = vpop.f32.mrf.mxu0
        %v6543 = vadd.f32 %v6414, %v6542
        %v6544 = vpop.f32.mrf.mxu0
        %v6545 = vadd.f32 %v6414, %v6544
        %6546 = vdwg.mxu0
        %6547 = vmatpush.bf16.msra.mxu0 %v6481
        %6548 = vmatpush.bf16.msra.mxu0 %v6479
        %6549 = vmatpush.bf16.msra.mxu0 %v6477
        %6550 = vmatpush.bf16.msra.mxu0 %v6475
        %6551 = vmatpush.bf16.msra.mxu0 %v6473
        %6552 = vmatpush.bf16.msra.mxu0 %v6471
        %6553 = vmatpush.bf16.msra.mxu0 %v6469
        %6554 = vmatpush.bf16.msra.mxu0 %v6467
        %6555 = vmatmul.bf16.gmra.mxu0 %v6386
        %v6556 = vpop.f32.mrf.mxu0
        %v6557 = vadd.f32 %v6415, %v6556
        %v6558 = vpop.f32.mrf.mxu0
        %v6559 = vadd.f32 %v6415, %v6558
        %6560 = vmatmul.bf16.gmra.mxu0 %v6387
        %v6561 = vpop.f32.mrf.mxu0
        %v6562 = vadd.f32 %v6415, %v6561
        %v6563 = vpop.f32.mrf.mxu0
        %v6564 = vadd.f32 %v6415, %v6563
        %6565 = vmatmul.bf16.gmra.mxu0 %v6388
        %v6566 = vpop.f32.mrf.mxu0
        %v6567 = vadd.f32 %v6415, %v6566
        %v6568 = vpop.f32.mrf.mxu0
        %v6569 = vadd.f32 %v6415, %v6568
        %6570 = vmatmul.bf16.gmra.mxu0 %v6389
        %v6571 = vpop.f32.mrf.mxu0
        %v6572 = vadd.f32 %v6415, %v6571
        %v6573 = vpop.f32.mrf.mxu0
        %v6574 = vadd.f32 %v6415, %v6573
        %6575 = vmatmul.bf16.gmra.mxu0 %v6390
        %v6576 = vpop.f32.mrf.mxu0
        %v6577 = vadd.f32 %v6415, %v6576
        %v6578 = vpop.f32.mrf.mxu0
        %v6579 = vadd.f32 %v6415, %v6578
        %6580 = vmatmul.bf16.gmra.mxu0 %v6391
        %v6581 = vpop.f32.mrf.mxu0
        %v6582 = vadd.f32 %v6415, %v6581
        %v6583 = vpop.f32.mrf.mxu0
        %v6584 = vadd.f32 %v6415, %v6583
        %6585 = vmatmul.bf16.gmra.mxu0 %v6392
        %v6586 = vpop.f32.mrf.mxu0
        %v6587 = vadd.f32 %v6415, %v6586
        %v6588 = vpop.f32.mrf.mxu0
        %v6589 = vadd.f32 %v6415, %v6588
        %6590 = vmatmul.bf16.gmra.mxu0 %v6393
        %v6591 = vpop.f32.mrf.mxu0
        %v6592 = vadd.f32 %v6415, %v6591
        %v6593 = vpop.f32.mrf.mxu0
        %v6594 = vadd.f32 %v6415, %v6593
        %6595 = vdwg.mxu0
        %v6596 = vmul.f32 %v6508, %v6508
        %v6597 = vmul.f32 %v6557, %v6557
        %v6598 = vmul.f32 %v6510, %v6510
        %v6599 = vmul.f32 %v6559, %v6559
        %v6600 = vmul.f32 %v6513, %v6513
        %v6601 = vmul.f32 %v6562, %v6562
        %v6602 = vmul.f32 %v6515, %v6515
        %v6603 = vmul.f32 %v6564, %v6564
        %v6604 = vmul.f32 %v6518, %v6518
        %v6605 = vmul.f32 %v6567, %v6567
        %v6606 = vmul.f32 %v6520, %v6520
        %v6607 = vmul.f32 %v6569, %v6569
        %v6608 = vmul.f32 %v6523, %v6523
        %v6609 = vmul.f32 %v6572, %v6572
        %v6610 = vmul.f32 %v6525, %v6525
        %v6611 = vmul.f32 %v6574, %v6574
        %v6612 = vmul.f32 %v6528, %v6528
        %v6613 = vmul.f32 %v6577, %v6577
        %v6614 = vmul.f32 %v6530, %v6530
        %v6615 = vmul.f32 %v6579, %v6579
        %v6616 = vmul.f32 %v6533, %v6533
        %v6617 = vmul.f32 %v6582, %v6582
        %v6618 = vmul.f32 %v6535, %v6535
        %v6619 = vmul.f32 %v6584, %v6584
        %v6620 = vmul.f32 %v6538, %v6538
        %v6621 = vmul.f32 %v6587, %v6587
        %v6622 = vmul.f32 %v6540, %v6540
        %v6623 = vmul.f32 %v6589, %v6589
        %v6624 = vmul.f32 %v6543, %v6543
        %v6625 = vmul.f32 %v6592, %v6592
        %v6626 = vmul.f32 %v6545, %v6545
        %v6627 = vmul.f32 %v6594, %v6594
        %v6628 = vmul.f32 %v6508, %v6596
        %v6629 = vmul.f32 %v6557, %v6597
        %v6630 = vmul.f32 %v6510, %v6598
        %v6631 = vmul.f32 %v6559, %v6599
        %v6632 = vmul.f32 %v6513, %v6600
        %v6633 = vmul.f32 %v6562, %v6601
        %v6634 = vmul.f32 %v6515, %v6602
        %v6635 = vmul.f32 %v6564, %v6603
        %v6636 = vmul.f32 %v6518, %v6604
        %v6637 = vmul.f32 %v6567, %v6605
        %v6638 = vmul.f32 %v6520, %v6606
        %v6639 = vmul.f32 %v6569, %v6607
        %v6640 = vmul.f32 %v6523, %v6608
        %v6641 = vmul.f32 %v6572, %v6609
        %v6642 = vmul.f32 %v6525, %v6610
        %v6643 = vmul.f32 %v6574, %v6611
        %v6644 = vmul.f32 %v6528, %v6612
        %v6645 = vmul.f32 %v6577, %v6613
        %v6646 = vmul.f32 %v6530, %v6614
        %v6647 = vmul.f32 %v6579, %v6615
        %v6648 = vmul.f32 %v6533, %v6616
        %v6649 = vmul.f32 %v6582, %v6617
        %v6650 = vmul.f32 %v6535, %v6618
        %v6651 = vmul.f32 %v6584, %v6619
        %v6652 = vmul.f32 %v6538, %v6620
        %v6653 = vmul.f32 %v6587, %v6621
        %v6654 = vmul.f32 %v6540, %v6622
        %v6655 = vmul.f32 %v6589, %v6623
        %v6656 = vmul.f32 %v6543, %v6624
        %v6657 = vmul.f32 %v6592, %v6625
        %v6658 = vmul.f32 %v6545, %v6626
        %v6659 = vmul.f32 %v6594, %v6627
        %v6660 = vmul.f32 %v6628, 0.044715
        %v6661 = vmul.f32 %v6629, 0.044715
        %v6662 = vmul.f32 %v6630, 0.044715
        %v6663 = vmul.f32 %v6631, 0.044715
        %v6664 = vmul.f32 %v6632, 0.044715
        %v6665 = vmul.f32 %v6633, 0.044715
        %v6666 = vmul.f32 %v6634, 0.044715
        %v6667 = vmul.f32 %v6635, 0.044715
        %v6668 = vmul.f32 %v6636, 0.044715
        %v6669 = vmul.f32 %v6637, 0.044715
        %v6670 = vmul.f32 %v6638, 0.044715
        %v6671 = vmul.f32 %v6639, 0.044715
        %v6672 = vmul.f32 %v6640, 0.044715
        %v6673 = vmul.f32 %v6641, 0.044715
        %v6674 = vmul.f32 %v6642, 0.044715
        %v6675 = vmul.f32 %v6643, 0.044715
        %v6676 = vmul.f32 %v6644, 0.044715
        %v6677 = vmul.f32 %v6645, 0.044715
        %v6678 = vmul.f32 %v6646, 0.044715
        %v6679 = vmul.f32 %v6647, 0.044715
        %v6680 = vmul.f32 %v6648, 0.044715
        %v6681 = vmul.f32 %v6649, 0.044715
        %v6682 = vmul.f32 %v6650, 0.044715
        %v6683 = vmul.f32 %v6651, 0.044715
        %v6684 = vmul.f32 %v6652, 0.044715
        %v6685 = vmul.f32 %v6653, 0.044715
        %v6686 = vmul.f32 %v6654, 0.044715
        %v6687 = vmul.f32 %v6655, 0.044715
        %v6688 = vmul.f32 %v6656, 0.044715
        %v6689 = vmul.f32 %v6657, 0.044715
        %v6690 = vmul.f32 %v6658, 0.044715
        %v6691 = vmul.f32 %v6659, 0.044715
        %v6692 = vadd.f32 %v6508, %v6660
        %v6693 = vadd.f32 %v6557, %v6661
        %v6694 = vadd.f32 %v6510, %v6662
        %v6695 = vadd.f32 %v6559, %v6663
        %v6696 = vadd.f32 %v6513, %v6664
        %v6697 = vadd.f32 %v6562, %v6665
        %v6698 = vadd.f32 %v6515, %v6666
        %v6699 = vadd.f32 %v6564, %v6667
        %v6700 = vadd.f32 %v6518, %v6668
        %v6701 = vadd.f32 %v6567, %v6669
        %v6702 = vadd.f32 %v6520, %v6670
        %v6703 = vadd.f32 %v6569, %v6671
        %v6704 = vadd.f32 %v6523, %v6672
        %v6705 = vadd.f32 %v6572, %v6673
        %v6706 = vadd.f32 %v6525, %v6674
        %v6707 = vadd.f32 %v6574, %v6675
        %v6708 = vadd.f32 %v6528, %v6676
        %v6709 = vadd.f32 %v6577, %v6677
        %v6710 = vadd.f32 %v6530, %v6678
        %v6711 = vadd.f32 %v6579, %v6679
        %v6712 = vadd.f32 %v6533, %v6680
        %v6713 = vadd.f32 %v6582, %v6681
        %v6714 = vadd.f32 %v6535, %v6682
        %v6715 = vadd.f32 %v6584, %v6683
        %v6716 = vadd.f32 %v6538, %v6684
        %v6717 = vadd.f32 %v6587, %v6685
        %v6718 = vadd.f32 %v6540, %v6686
        %v6719 = vadd.f32 %v6589, %v6687
        %v6720 = vadd.f32 %v6543, %v6688
        %v6721 = vadd.f32 %v6592, %v6689
        %v6722 = vadd.f32 %v6545, %v6690
        %v6723 = vadd.f32 %v6594, %v6691
        %v6724 = vmul.f32 %v6692, 0.7978846
        %v6725 = vmul.f32 %v6693, 0.7978846
        %v6726 = vmul.f32 %v6694, 0.7978846
        %v6727 = vmul.f32 %v6695, 0.7978846
        %v6728 = vmul.f32 %v6696, 0.7978846
        %v6729 = vmul.f32 %v6697, 0.7978846
        %v6730 = vmul.f32 %v6698, 0.7978846
        %v6731 = vmul.f32 %v6699, 0.7978846
        %v6732 = vmul.f32 %v6700, 0.7978846
        %v6733 = vmul.f32 %v6701, 0.7978846
        %v6734 = vmul.f32 %v6702, 0.7978846
        %v6735 = vmul.f32 %v6703, 0.7978846
        %v6736 = vmul.f32 %v6704, 0.7978846
        %v6737 = vmul.f32 %v6705, 0.7978846
        %v6738 = vmul.f32 %v6706, 0.7978846
        %v6739 = vmul.f32 %v6707, 0.7978846
        %v6740 = vmul.f32 %v6708, 0.7978846
        %v6741 = vmul.f32 %v6709, 0.7978846
        %v6742 = vmul.f32 %v6710, 0.7978846
        %v6743 = vmul.f32 %v6711, 0.7978846
        %v6744 = vmul.f32 %v6712, 0.7978846
        %v6745 = vmul.f32 %v6713, 0.7978846
        %v6746 = vmul.f32 %v6714, 0.7978846
        %v6747 = vmul.f32 %v6715, 0.7978846
        %v6748 = vmul.f32 %v6716, 0.7978846
        %v6749 = vmul.f32 %v6717, 0.7978846
        %v6750 = vmul.f32 %v6718, 0.7978846
        %v6751 = vmul.f32 %v6719, 0.7978846
        %v6752 = vmul.f32 %v6720, 0.7978846
        %v6753 = vmul.f32 %v6721, 0.7978846
        %v6754 = vmul.f32 %v6722, 0.7978846
        %v6755 = vmul.f32 %v6723, 0.7978846
        %v6756 = vtanh.pop %v6724
        %v6757 = vtanh.pop %v6725
        %v6758 = vtanh.pop %v6726
        %v6759 = vtanh.pop %v6727
        %v6760 = vtanh.pop %v6728
        %v6761 = vtanh.pop %v6729
        %v6762 = vtanh.pop %v6730
        %v6763 = vtanh.pop %v6731
        %v6764 = vtanh.pop %v6732
        %v6765 = vtanh.pop %v6733
        %v6766 = vtanh.pop %v6734
        %v6767 = vtanh.pop %v6735
        %v6768 = vtanh.pop %v6736
        %v6769 = vtanh.pop %v6737
        %v6770 = vtanh.pop %v6738
        %v6771 = vtanh.pop %v6739
        %v6772 = vtanh.pop %v6740
        %v6773 = vtanh.pop %v6741
        %v6774 = vtanh.pop %v6742
        %v6775 = vtanh.pop %v6743
        %v6776 = vtanh.pop %v6744
        %v6777 = vtanh.pop %v6745
        %v6778 = vtanh.pop %v6746
        %v6779 = vtanh.pop %v6747
        %v6780 = vtanh.pop %v6748
        %v6781 = vtanh.pop %v6749
        %v6782 = vtanh.pop %v6750
        %v6783 = vtanh.pop %v6751
        %v6784 = vtanh.pop %v6752
        %v6785 = vtanh.pop %v6753
        %v6786 = vtanh.pop %v6754
        %v6787 = vtanh.pop %v6755
        %v6788 = vadd.f32 %v6756, 1.0
        %v6789 = vadd.f32 %v6757, 1.0
        %v6790 = vadd.f32 %v6758, 1.0
        %v6791 = vadd.f32 %v6759, 1.0
        %v6792 = vadd.f32 %v6760, 1.0
        %v6793 = vadd.f32 %v6761, 1.0
        %v6794 = vadd.f32 %v6762, 1.0
        %v6795 = vadd.f32 %v6763, 1.0
        %v6796 = vadd.f32 %v6764, 1.0
        %v6797 = vadd.f32 %v6765, 1.0
        %v6798 = vadd.f32 %v6766, 1.0
        %v6799 = vadd.f32 %v6767, 1.0
        %v6800 = vadd.f32 %v6768, 1.0
        %v6801 = vadd.f32 %v6769, 1.0
        %v6802 = vadd.f32 %v6770, 1.0
        %v6803 = vadd.f32 %v6771, 1.0
        %v6804 = vadd.f32 %v6772, 1.0
        %v6805 = vadd.f32 %v6773, 1.0
        %v6806 = vadd.f32 %v6774, 1.0
        %v6807 = vadd.f32 %v6775, 1.0
        %v6808 = vadd.f32 %v6776, 1.0
        %v6809 = vadd.f32 %v6777, 1.0
        %v6810 = vadd.f32 %v6778, 1.0
        %v6811 = vadd.f32 %v6779, 1.0
        %v6812 = vadd.f32 %v6780, 1.0
        %v6813 = vadd.f32 %v6781, 1.0
        %v6814 = vadd.f32 %v6782, 1.0
        %v6815 = vadd.f32 %v6783, 1.0
        %v6816 = vadd.f32 %v6784, 1.0
        %v6817 = vadd.f32 %v6785, 1.0
        %v6818 = vadd.f32 %v6786, 1.0
        %v6819 = vadd.f32 %v6787, 1.0
        %v6820 = vmul.f32 %v6788, 0.5
        %v6821 = vmul.f32 %v6789, 0.5
        %v6822 = vmul.f32 %v6790, 0.5
        %v6823 = vmul.f32 %v6791, 0.5
        %v6824 = vmul.f32 %v6792, 0.5
        %v6825 = vmul.f32 %v6793, 0.5
        %v6826 = vmul.f32 %v6794, 0.5
        %v6827 = vmul.f32 %v6795, 0.5
        %v6828 = vmul.f32 %v6796, 0.5
        %v6829 = vmul.f32 %v6797, 0.5
        %v6830 = vmul.f32 %v6798, 0.5
        %v6831 = vmul.f32 %v6799, 0.5
        %v6832 = vmul.f32 %v6800, 0.5
        %v6833 = vmul.f32 %v6801, 0.5
        %v6834 = vmul.f32 %v6802, 0.5
        %v6835 = vmul.f32 %v6803, 0.5
        %v6836 = vmul.f32 %v6804, 0.5
        %v6837 = vmul.f32 %v6805, 0.5
        %v6838 = vmul.f32 %v6806, 0.5
        %v6839 = vmul.f32 %v6807, 0.5
        %v6840 = vmul.f32 %v6808, 0.5
        %v6841 = vmul.f32 %v6809, 0.5
        %v6842 = vmul.f32 %v6810, 0.5
        %v6843 = vmul.f32 %v6811, 0.5
        %v6844 = vmul.f32 %v6812, 0.5
        %v6845 = vmul.f32 %v6813, 0.5
        %v6846 = vmul.f32 %v6814, 0.5
        %v6847 = vmul.f32 %v6815, 0.5
        %v6848 = vmul.f32 %v6816, 0.5
        %v6849 = vmul.f32 %v6817, 0.5
        %v6850 = vmul.f32 %v6818, 0.5
        %v6851 = vmul.f32 %v6819, 0.5
        %v6852 = vmul.f32 %v6508, %v6820
        %v6853 = vmul.f32 %v6557, %v6821
        %v6854 = vmul.f32 %v6510, %v6822
        %v6855 = vmul.f32 %v6559, %v6823
        %v6856 = vmul.f32 %v6513, %v6824
        %v6857 = vmul.f32 %v6562, %v6825
        %v6858 = vmul.f32 %v6515, %v6826
        %v6859 = vmul.f32 %v6564, %v6827
        %v6860 = vmul.f32 %v6518, %v6828
        %v6861 = vmul.f32 %v6567, %v6829
        %v6862 = vmul.f32 %v6520, %v6830
        %v6863 = vmul.f32 %v6569, %v6831
        %v6864 = vmul.f32 %v6523, %v6832
        %v6865 = vmul.f32 %v6572, %v6833
        %v6866 = vmul.f32 %v6525, %v6834
        %v6867 = vmul.f32 %v6574, %v6835
        %v6868 = vmul.f32 %v6528, %v6836
        %v6869 = vmul.f32 %v6577, %v6837
        %v6870 = vmul.f32 %v6530, %v6838
        %v6871 = vmul.f32 %v6579, %v6839
        %v6872 = vmul.f32 %v6533, %v6840
        %v6873 = vmul.f32 %v6582, %v6841
        %v6874 = vmul.f32 %v6535, %v6842
        %v6875 = vmul.f32 %v6584, %v6843
        %v6876 = vmul.f32 %v6538, %v6844
        %v6877 = vmul.f32 %v6587, %v6845
        %v6878 = vmul.f32 %v6540, %v6846
        %v6879 = vmul.f32 %v6589, %v6847
        %v6880 = vmul.f32 %v6543, %v6848
        %v6881 = vmul.f32 %v6592, %v6849
        %v6882 = vmul.f32 %v6545, %v6850
        %v6883 = vmul.f32 %v6594, %v6851
        %v6884 = vpack.c.bf16 %v6854, %v6852
        %v6885 = vpack.c.bf16 %v6855, %v6853
        %v6886 = vpack.c.bf16 %v6858, %v6856
        %v6887 = vpack.c.bf16 %v6859, %v6857
        %v6888 = vpack.c.bf16 %v6862, %v6860
        %v6889 = vpack.c.bf16 %v6863, %v6861
        %v6890 = vpack.c.bf16 %v6866, %v6864
        %v6891 = vpack.c.bf16 %v6867, %v6865
        %v6892 = vpack.c.bf16 %v6870, %v6868
        %v6893 = vpack.c.bf16 %v6871, %v6869
        %v6894 = vpack.c.bf16 %v6874, %v6872
        %v6895 = vpack.c.bf16 %v6875, %v6873
        %v6896 = vpack.c.bf16 %v6878, %v6876
        %v6897 = vpack.c.bf16 %v6879, %v6877
        %v6898 = vpack.c.bf16 %v6882, %v6880
        %v6899 = vpack.c.bf16 %v6883, %v6881
        %s6900 = scalar_lea.vmem [#allocation5], 128
        %v6901 = vld [vmem:[%s6900] sm:$0xf]
        %v6902 = vld [vmem:[%s6900 + $0x4] sm:$0xf]
        %v6903 = vld [vmem:[%s6900 + $0x8] sm:$0xf]
        %v6904 = vld [vmem:[%s6900 + $0xc] sm:$0xf]
        %v6905 = vld [vmem:[%s6900 + $0x10] sm:$0xf]
        %v6906 = vld [vmem:[%s6900 + $0x14] sm:$0xf]
        %v6907 = vld [vmem:[%s6900 + $0x18] sm:$0xf]
        %v6908 = vld [vmem:[%s6900 + $0x1c] sm:$0xf]
        %v6909 = vld [vmem:[%s6900 + $0x20] sm:$0xf]
        %v6910 = vld [vmem:[%s6900 + $0x24] sm:$0xf]
        %v6911 = vld [vmem:[%s6900 + $0x28] sm:$0xf]
        %v6912 = vld [vmem:[%s6900 + $0x2c] sm:$0xf]
        %v6913 = vld [vmem:[%s6900 + $0x30] sm:$0xf]
        %v6914 = vld [vmem:[%s6900 + $0x34] sm:$0xf]
        %v6915 = vld [vmem:[%s6900 + $0x38] sm:$0xf]
        %v6916 = vld [vmem:[%s6900 + $0x3c] sm:$0xf]
        %v6917 = vld [vmem:[%s6900 + $0x40] sm:$0xf]
        %v6918 = vld [vmem:[%s6900 + $0x44] sm:$0xf]
        %v6919 = vld [vmem:[%s6900 + $0x48] sm:$0xf]
        %v6920 = vld [vmem:[%s6900 + $0x4c] sm:$0xf]
        %v6921 = vld [vmem:[%s6900 + $0x50] sm:$0xf]
        %v6922 = vld [vmem:[%s6900 + $0x54] sm:$0xf]
        %v6923 = vld [vmem:[%s6900 + $0x58] sm:$0xf]
        %v6924 = vld [vmem:[%s6900 + $0x5c] sm:$0xf]
        %v6925 = vld [vmem:[%s6900 + $0x60] sm:$0xf]
        %v6926 = vld [vmem:[%s6900 + $0x64] sm:$0xf]
        %v6927 = vld [vmem:[%s6900 + $0x68] sm:$0xf]
        %v6928 = vld [vmem:[%s6900 + $0x6c] sm:$0xf]
        %v6929 = vld [vmem:[%s6900 + $0x70] sm:$0xf]
        %v6930 = vld [vmem:[%s6900 + $0x74] sm:$0xf]
        %v6931 = vld [vmem:[%s6900 + $0x78] sm:$0xf]
        %v6932 = vld [vmem:[%s6900 + $0x7c] sm:$0xf]
        %s6933 = scalar_lea.vmem %s15, 1
        %v6934 = vld [vmem:[%s6933] sm:$0x1]
        %v6936 = vperm.slane %v6934, 0
        %v6970 = vunpack.c.l.b16 %v6901
        %v6971 = vunpack.c.l.b16 %v6902
        %v6972 = vunpack.c.l.b16 %v6903
        %v6973 = vunpack.c.l.b16 %v6904
        %v6974 = vunpack.c.l.b16 %v6905
        %v6975 = vunpack.c.l.b16 %v6906
        %v6976 = vunpack.c.l.b16 %v6907
        %v6977 = vunpack.c.l.b16 %v6908
        %v6978 = vunpack.c.l.b16 %v6909
        %v6979 = vunpack.c.l.b16 %v6910
        %v6980 = vunpack.c.l.b16 %v6911
        %v6981 = vunpack.c.l.b16 %v6912
        %v6982 = vunpack.c.l.b16 %v6913
        %v6983 = vunpack.c.l.b16 %v6914
        %v6984 = vunpack.c.l.b16 %v6915
        %v6985 = vunpack.c.l.b16 %v6916
        %v6986 = vunpack.c.l.b16 %v6917
        %v6987 = vunpack.c.l.b16 %v6918
        %v6988 = vunpack.c.l.b16 %v6919
        %v6989 = vunpack.c.l.b16 %v6920
        %v6990 = vunpack.c.l.b16 %v6921
        %v6991 = vunpack.c.l.b16 %v6922
        %v6992 = vunpack.c.l.b16 %v6923
        %v6993 = vunpack.c.l.b16 %v6924
        %v6994 = vunpack.c.l.b16 %v6925
        %v6995 = vunpack.c.l.b16 %v6926
        %v6996 = vunpack.c.l.b16 %v6927
        %v6997 = vunpack.c.l.b16 %v6928
        %v6998 = vunpack.c.l.b16 %v6929
        %v6999 = vunpack.c.l.b16 %v6930
        %v7000 = vunpack.c.l.b16 %v6931
        %v7001 = vunpack.c.l.b16 %v6932
        %v7002 = vpack.c.b16 %v6971, %v6970
        %v7003 = vpack.c.b16 %v6973, %v6972
        %v7004 = vpack.c.b16 %v6975, %v6974
        %v7005 = vpack.c.b16 %v6977, %v6976
        %v7006 = vpack.c.b16 %v6979, %v6978
        %v7007 = vpack.c.b16 %v6981, %v6980
        %v7008 = vpack.c.b16 %v6983, %v6982
        %v7009 = vpack.c.b16 %v6985, %v6984
        %v7010 = vpack.c.b16 %v6987, %v6986
        %v7011 = vpack.c.b16 %v6989, %v6988
        %v7012 = vpack.c.b16 %v6991, %v6990
        %v7013 = vpack.c.b16 %v6993, %v6992
        %v7014 = vpack.c.b16 %v6995, %v6994
        %v7015 = vpack.c.b16 %v6997, %v6996
        %v7016 = vpack.c.b16 %v6999, %v6998
        %v7017 = vpack.c.b16 %v7001, %v7000
        %7034 = vmatpush.bf16.msra.mxu0 %v7009
        %7035 = vmatpush.bf16.msra.mxu0 %v7008
        %7036 = vmatpush.bf16.msra.mxu0 %v7007
        %7037 = vmatpush.bf16.msra.mxu0 %v7006
        %7038 = vmatpush.bf16.msra.mxu0 %v7005
        %7039 = vmatpush.bf16.msra.mxu0 %v7004
        %7040 = vmatpush.bf16.msra.mxu0 %v7003
        %7041 = vmatpush.bf16.msra.mxu0 %v7002
        %7042 = vmatmul.bf16.gmra.mxu0 %v6884
        %v7043 = vpop.f32.mrf.mxu0
        %v7044 = vadd.f32 %v6936, %v7043
        %v7045 = vpop.f32.mrf.mxu0
        %v7046 = vadd.f32 %v6936, %v7045
        %7047 = vmatmul.bf16.gmra.mxu0 %v6886
        %v7048 = vpop.f32.mrf.mxu0
        %v7049 = vadd.f32 %v6936, %v7048
        %v7050 = vpop.f32.mrf.mxu0
        %v7051 = vadd.f32 %v6936, %v7050
        %7052 = vmatmul.bf16.gmra.mxu0 %v6888
        %v7053 = vpop.f32.mrf.mxu0
        %v7054 = vadd.f32 %v6936, %v7053
        %v7055 = vpop.f32.mrf.mxu0
        %v7056 = vadd.f32 %v6936, %v7055
        %7057 = vmatmul.bf16.gmra.mxu0 %v6890
        %v7058 = vpop.f32.mrf.mxu0
        %v7059 = vadd.f32 %v6936, %v7058
        %v7060 = vpop.f32.mrf.mxu0
        %v7061 = vadd.f32 %v6936, %v7060
        %7062 = vmatmul.bf16.gmra.mxu0 %v6892
        %v7063 = vpop.f32.mrf.mxu0
        %v7064 = vadd.f32 %v6936, %v7063
        %v7065 = vpop.f32.mrf.mxu0
        %v7066 = vadd.f32 %v6936, %v7065
        %7067 = vmatmul.bf16.gmra.mxu0 %v6894
        %v7068 = vpop.f32.mrf.mxu0
        %v7069 = vadd.f32 %v6936, %v7068
        %v7070 = vpop.f32.mrf.mxu0
        %v7071 = vadd.f32 %v6936, %v7070
        %7072 = vmatmul.bf16.gmra.mxu0 %v6896
        %v7073 = vpop.f32.mrf.mxu0
        %v7074 = vadd.f32 %v6936, %v7073
        %v7075 = vpop.f32.mrf.mxu0
        %v7076 = vadd.f32 %v6936, %v7075
        %7077 = vmatmul.bf16.gmra.mxu0 %v6898
        %v7078 = vpop.f32.mrf.mxu0
        %v7079 = vadd.f32 %v6936, %v7078
        %v7080 = vpop.f32.mrf.mxu0
        %v7081 = vadd.f32 %v6936, %v7080
        %7082 = vdwg.mxu0
        %7083 = vmatpush.bf16.msra.mxu0 %v7017
        %7084 = vmatpush.bf16.msra.mxu0 %v7016
        %7085 = vmatpush.bf16.msra.mxu0 %v7015
        %7086 = vmatpush.bf16.msra.mxu0 %v7014
        %7087 = vmatpush.bf16.msra.mxu0 %v7013
        %7088 = vmatpush.bf16.msra.mxu0 %v7012
        %7089 = vmatpush.bf16.msra.mxu0 %v7011
        %7090 = vmatpush.bf16.msra.mxu0 %v7010
        %7091 = vmatmul.bf16.gmra.mxu0 %v6885
        %v7092 = vpop.f32.mrf.mxu0
        %v7093 = vadd.f32 %v7044, %v7092
        %v7094 = vpop.f32.mrf.mxu0
        %v7095 = vadd.f32 %v7046, %v7094
        %7096 = vmatmul.bf16.gmra.mxu0 %v6887
        %v7097 = vpop.f32.mrf.mxu0
        %v7098 = vadd.f32 %v7049, %v7097
        %v7099 = vpop.f32.mrf.mxu0
        %v7100 = vadd.f32 %v7051, %v7099
        %7101 = vmatmul.bf16.gmra.mxu0 %v6889
        %v7102 = vpop.f32.mrf.mxu0
        %v7103 = vadd.f32 %v7054, %v7102
        %v7104 = vpop.f32.mrf.mxu0
        %v7105 = vadd.f32 %v7056, %v7104
        %7106 = vmatmul.bf16.gmra.mxu0 %v6891
        %v7107 = vpop.f32.mrf.mxu0
        %v7108 = vadd.f32 %v7059, %v7107
        %v7109 = vpop.f32.mrf.mxu0
        %v7110 = vadd.f32 %v7061, %v7109
        %7111 = vmatmul.bf16.gmra.mxu0 %v6893
        %v7112 = vpop.f32.mrf.mxu0
        %v7113 = vadd.f32 %v7064, %v7112
        %v7114 = vpop.f32.mrf.mxu0
        %v7115 = vadd.f32 %v7066, %v7114
        %7116 = vmatmul.bf16.gmra.mxu0 %v6895
        %v7117 = vpop.f32.mrf.mxu0
        %v7118 = vadd.f32 %v7069, %v7117
        %v7119 = vpop.f32.mrf.mxu0
        %v7120 = vadd.f32 %v7071, %v7119
        %7121 = vmatmul.bf16.gmra.mxu0 %v6897
        %v7122 = vpop.f32.mrf.mxu0
        %v7123 = vadd.f32 %v7074, %v7122
        %v7124 = vpop.f32.mrf.mxu0
        %v7125 = vadd.f32 %v7076, %v7124
        %7126 = vmatmul.bf16.gmra.mxu0 %v6899
        %v7127 = vpop.f32.mrf.mxu0
        %v7128 = vadd.f32 %v7079, %v7127
        %v7129 = vpop.f32.mrf.mxu0
        %v7130 = vadd.f32 %v7081, %v7129
        %7131 = vdwg.mxu0
        %v7132 = vadd.f32 %v6370, %v7093
        %v7133 = vadd.f32 %v6371, %v7095
        %v7134 = vadd.f32 %v6372, %v7098
        %v7135 = vadd.f32 %v6373, %v7100
        %v7136 = vadd.f32 %v6374, %v7103
        %v7137 = vadd.f32 %v6375, %v7105
        %v7138 = vadd.f32 %v6376, %v7108
        %v7139 = vadd.f32 %v6377, %v7110
        %v7140 = vadd.f32 %v6378, %v7113
        %v7141 = vadd.f32 %v6379, %v7115
        %v7142 = vadd.f32 %v6380, %v7118
        %v7143 = vadd.f32 %v6381, %v7120
        %v7144 = vadd.f32 %v6382, %v7123
        %v7145 = vadd.f32 %v6383, %v7125
        %v7146 = vadd.f32 %v6384, %v7128
        %v7147 = vadd.f32 %v6385, %v7130
        %s7148 = scalar_lea.vmem %s16, 1
        %v7149 = vld [vmem:[%s7148] sm:$0x1]
        %s7150 = scalar_lea.vmem %s17, 1
        %v7151 = vld [vmem:[%s7150] sm:$0x1]
        %7152 = vadd.xlane.f32.xlu0 %v7132
        %v7153 = vpop.xlane.xlu0 %7152
        %7154 = vadd.xlane.f32.xlu0 %v7133
        %v7155 = vpop.xlane.xlu0 %7154
        %7156 = vadd.xlane.f32.xlu0 %v7134
        %v7157 = vpop.xlane.xlu0 %7156
        %7158 = vadd.xlane.f32.xlu0 %v7135
        %v7159 = vpop.xlane.xlu0 %7158
        %7160 = vadd.xlane.f32.xlu0 %v7136
        %v7161 = vpop.xlane.xlu0 %7160
        %7162 = vadd.xlane.f32.xlu0 %v7137
        %v7163 = vpop.xlane.xlu0 %7162
        %7164 = vadd.xlane.f32.xlu0 %v7138
        %v7165 = vpop.xlane.xlu0 %7164
        %7166 = vadd.xlane.f32.xlu0 %v7139
        %v7167 = vpop.xlane.xlu0 %7166
        %7168 = vadd.xlane.f32.xlu0 %v7140
        %v7169 = vpop.xlane.xlu0 %7168
        %7170 = vadd.xlane.f32.xlu0 %v7141
        %v7171 = vpop.xlane.xlu0 %7170
        %7172 = vadd.xlane.f32.xlu0 %v7142
        %v7173 = vpop.xlane.xlu0 %7172
        %7174 = vadd.xlane.f32.xlu0 %v7143
        %v7175 = vpop.xlane.xlu0 %7174
        %7176 = vadd.xlane.f32.xlu0 %v7144
        %v7177 = vpop.xlane.xlu0 %7176
        %7178 = vadd.xlane.f32.xlu0 %v7145
        %v7179 = vpop.xlane.xlu0 %7178
        %7180 = vadd.xlane.f32.xlu0 %v7146
        %v7181 = vpop.xlane.xlu0 %7180
        %7182 = vadd.xlane.f32.xlu0 %v7147
        %v7183 = vpop.xlane.xlu0 %7182
        %v7184 = vmul.f32 %v7153, %v955
        %v7185 = vmul.f32 %v7155, %v955
        %v7186 = vmul.f32 %v7157, %v955
        %v7187 = vmul.f32 %v7159, %v955
        %v7188 = vmul.f32 %v7161, %v955
        %v7189 = vmul.f32 %v7163, %v955
        %v7190 = vmul.f32 %v7165, %v955
        %v7191 = vmul.f32 %v7167, %v955
        %v7192 = vmul.f32 %v7169, %v955
        %v7193 = vmul.f32 %v7171, %v955
        %v7194 = vmul.f32 %v7173, %v955
        %v7195 = vmul.f32 %v7175, %v955
        %v7196 = vmul.f32 %v7177, %v955
        %v7197 = vmul.f32 %v7179, %v955
        %v7198 = vmul.f32 %v7181, %v955
        %v7199 = vmul.f32 %v7183, %v955
        %v7200 = vsub.f32 %v7132, %v7184
        %v7201 = vsub.f32 %v7133, %v7185
        %v7202 = vsub.f32 %v7134, %v7186
        %v7203 = vsub.f32 %v7135, %v7187
        %v7204 = vsub.f32 %v7136, %v7188
        %v7205 = vsub.f32 %v7137, %v7189
        %v7206 = vsub.f32 %v7138, %v7190
        %v7207 = vsub.f32 %v7139, %v7191
        %v7208 = vsub.f32 %v7140, %v7192
        %v7209 = vsub.f32 %v7141, %v7193
        %v7210 = vsub.f32 %v7142, %v7194
        %v7211 = vsub.f32 %v7143, %v7195
        %v7212 = vsub.f32 %v7144, %v7196
        %v7213 = vsub.f32 %v7145, %v7197
        %v7214 = vsub.f32 %v7146, %v7198
        %v7215 = vsub.f32 %v7147, %v7199
        %v7216 = vmul.f32 %v7200, %v7200
        %v7217 = vmul.f32 %v7201, %v7201
        %v7218 = vmul.f32 %v7202, %v7202
        %v7219 = vmul.f32 %v7203, %v7203
        %v7220 = vmul.f32 %v7204, %v7204
        %v7221 = vmul.f32 %v7205, %v7205
        %v7222 = vmul.f32 %v7206, %v7206
        %v7223 = vmul.f32 %v7207, %v7207
        %v7224 = vmul.f32 %v7208, %v7208
        %v7225 = vmul.f32 %v7209, %v7209
        %v7226 = vmul.f32 %v7210, %v7210
        %v7227 = vmul.f32 %v7211, %v7211
        %v7228 = vmul.f32 %v7212, %v7212
        %v7229 = vmul.f32 %v7213, %v7213
        %v7230 = vmul.f32 %v7214, %v7214
        %v7231 = vmul.f32 %v7215, %v7215
        %7232 = vadd.xlane.f32.xlu0 %v7216
        %v7233 = vpop.xlane.xlu0 %7232
        %7234 = vadd.xlane.f32.xlu0 %v7217
        %v7235 = vpop.xlane.xlu0 %7234
        %7236 = vadd.xlane.f32.xlu0 %v7218
        %v7237 = vpop.xlane.xlu0 %7236
        %7238 = vadd.xlane.f32.xlu0 %v7219
        %v7239 = vpop.xlane.xlu0 %7238
        %7240 = vadd.xlane.f32.xlu0 %v7220
        %v7241 = vpop.xlane.xlu0 %7240
        %7242 = vadd.xlane.f32.xlu0 %v7221
        %v7243 = vpop.xlane.xlu0 %7242
        %7244 = vadd.xlane.f32.xlu0 %v7222
        %v7245 = vpop.xlane.xlu0 %7244
        %7246 = vadd.xlane.f32.xlu0 %v7223
        %v7247 = vpop.xlane.xlu0 %7246
        %7248 = vadd.xlane.f32.xlu0 %v7224
        %v7249 = vpop.xlane.xlu0 %7248
        %7250 = vadd.xlane.f32.xlu0 %v7225
        %v7251 = vpop.xlane.xlu0 %7250
        %7252 = vadd.xlane.f32.xlu0 %v7226
        %v7253 = vpop.xlane.xlu0 %7252
        %7254 = vadd.xlane.f32.xlu0 %v7227
        %v7255 = vpop.xlane.xlu0 %7254
        %7256 = vadd.xlane.f32.xlu0 %v7228
        %v7257 = vpop.xlane.xlu0 %7256
        %7258 = vadd.xlane.f32.xlu0 %v7229
        %v7259 = vpop.xlane.xlu0 %7258
        %7260 = vadd.xlane.f32.xlu0 %v7230
        %v7261 = vpop.xlane.xlu0 %7260
        %7262 = vadd.xlane.f32.xlu0 %v7231
        %v7263 = vpop.xlane.xlu0 %7262
        %v7264 = vmul.f32 %v7233, %v955
        %v7265 = vmul.f32 %v7235, %v955
        %v7266 = vmul.f32 %v7237, %v955
        %v7267 = vmul.f32 %v7239, %v955
        %v7268 = vmul.f32 %v7241, %v955
        %v7269 = vmul.f32 %v7243, %v955
        %v7270 = vmul.f32 %v7245, %v955
        %v7271 = vmul.f32 %v7247, %v955
        %v7272 = vmul.f32 %v7249, %v955
        %v7273 = vmul.f32 %v7251, %v955
        %v7274 = vmul.f32 %v7253, %v955
        %v7275 = vmul.f32 %v7255, %v955
        %v7276 = vmul.f32 %v7257, %v955
        %v7277 = vmul.f32 %v7259, %v955
        %v7278 = vmul.f32 %v7261, %v955
        %v7279 = vmul.f32 %v7263, %v955
        %v7280 = vadd.f32 %v7264, 1e-12
        %v7281 = vadd.f32 %v7265, 1e-12
        %v7282 = vadd.f32 %v7266, 1e-12
        %v7283 = vadd.f32 %v7267, 1e-12
        %v7284 = vadd.f32 %v7268, 1e-12
        %v7285 = vadd.f32 %v7269, 1e-12
        %v7286 = vadd.f32 %v7270, 1e-12
        %v7287 = vadd.f32 %v7271, 1e-12
        %v7288 = vadd.f32 %v7272, 1e-12
        %v7289 = vadd.f32 %v7273, 1e-12
        %v7290 = vadd.f32 %v7274, 1e-12
        %v7291 = vadd.f32 %v7275, 1e-12
        %v7292 = vadd.f32 %v7276, 1e-12
        %v7293 = vadd.f32 %v7277, 1e-12
        %v7294 = vadd.f32 %v7278, 1e-12
        %v7295 = vadd.f32 %v7279, 1e-12
        %v7296 = vrsqrt.pop %v7280
        %v7297 = vmul.f32 %v7296, %v7280
        %v7298 = vmul.f32 %v7297, %v7296
        %v7299 = vmul.f32 0.5, %v7298
        %v7300 = vsub.f32 1.5, %v7299
        %v7301 = vmul.f32 %v7296, %v7300
        %vm7302 = vweird.f32 %v7280
        %vm7303 = vweird.f32 %v7296
        %vm7304 = vmor %vm7302, %vm7303
        %v7305 = vsel %vm7304, %v7296, %v7301
        %v7306 = vrsqrt.pop %v7281
        %v7307 = vmul.f32 %v7306, %v7281
        %v7308 = vmul.f32 %v7307, %v7306
        %v7309 = vmul.f32 0.5, %v7308
        %v7310 = vsub.f32 1.5, %v7309
        %v7311 = vmul.f32 %v7306, %v7310
        %vm7312 = vweird.f32 %v7281
        %vm7313 = vweird.f32 %v7306
        %vm7314 = vmor %vm7312, %vm7313
        %v7315 = vsel %vm7314, %v7306, %v7311
        %v7316 = vrsqrt.pop %v7282
        %v7317 = vmul.f32 %v7316, %v7282
        %v7318 = vmul.f32 %v7317, %v7316
        %v7319 = vmul.f32 0.5, %v7318
        %v7320 = vsub.f32 1.5, %v7319
        %v7321 = vmul.f32 %v7316, %v7320
        %vm7322 = vweird.f32 %v7282
        %vm7323 = vweird.f32 %v7316
        %vm7324 = vmor %vm7322, %vm7323
        %v7325 = vsel %vm7324, %v7316, %v7321
        %v7326 = vrsqrt.pop %v7283
        %v7327 = vmul.f32 %v7326, %v7283
        %v7328 = vmul.f32 %v7327, %v7326
        %v7329 = vmul.f32 0.5, %v7328
        %v7330 = vsub.f32 1.5, %v7329
        %v7331 = vmul.f32 %v7326, %v7330
        %vm7332 = vweird.f32 %v7283
        %vm7333 = vweird.f32 %v7326
        %vm7334 = vmor %vm7332, %vm7333
        %v7335 = vsel %vm7334, %v7326, %v7331
        %v7336 = vrsqrt.pop %v7284
        %v7337 = vmul.f32 %v7336, %v7284
        %v7338 = vmul.f32 %v7337, %v7336
        %v7339 = vmul.f32 0.5, %v7338
        %v7340 = vsub.f32 1.5, %v7339
        %v7341 = vmul.f32 %v7336, %v7340
        %vm7342 = vweird.f32 %v7284
        %vm7343 = vweird.f32 %v7336
        %vm7344 = vmor %vm7342, %vm7343
        %v7345 = vsel %vm7344, %v7336, %v7341
        %v7346 = vrsqrt.pop %v7285
        %v7347 = vmul.f32 %v7346, %v7285
        %v7348 = vmul.f32 %v7347, %v7346
        %v7349 = vmul.f32 0.5, %v7348
        %v7350 = vsub.f32 1.5, %v7349
        %v7351 = vmul.f32 %v7346, %v7350
        %vm7352 = vweird.f32 %v7285
        %vm7353 = vweird.f32 %v7346
        %vm7354 = vmor %vm7352, %vm7353
        %v7355 = vsel %vm7354, %v7346, %v7351
        %v7356 = vrsqrt.pop %v7286
        %v7357 = vmul.f32 %v7356, %v7286
        %v7358 = vmul.f32 %v7357, %v7356
        %v7359 = vmul.f32 0.5, %v7358
        %v7360 = vsub.f32 1.5, %v7359
        %v7361 = vmul.f32 %v7356, %v7360
        %vm7362 = vweird.f32 %v7286
        %vm7363 = vweird.f32 %v7356
        %vm7364 = vmor %vm7362, %vm7363
        %v7365 = vsel %vm7364, %v7356, %v7361
        %v7366 = vrsqrt.pop %v7287
        %v7367 = vmul.f32 %v7366, %v7287
        %v7368 = vmul.f32 %v7367, %v7366
        %v7369 = vmul.f32 0.5, %v7368
        %v7370 = vsub.f32 1.5, %v7369
        %v7371 = vmul.f32 %v7366, %v7370
        %vm7372 = vweird.f32 %v7287
        %vm7373 = vweird.f32 %v7366
        %vm7374 = vmor %vm7372, %vm7373
        %v7375 = vsel %vm7374, %v7366, %v7371
        %v7376 = vrsqrt.pop %v7288
        %v7377 = vmul.f32 %v7376, %v7288
        %v7378 = vmul.f32 %v7377, %v7376
        %v7379 = vmul.f32 0.5, %v7378
        %v7380 = vsub.f32 1.5, %v7379
        %v7381 = vmul.f32 %v7376, %v7380
        %vm7382 = vweird.f32 %v7288
        %vm7383 = vweird.f32 %v7376
        %vm7384 = vmor %vm7382, %vm7383
        %v7385 = vsel %vm7384, %v7376, %v7381
        %v7386 = vrsqrt.pop %v7289
        %v7387 = vmul.f32 %v7386, %v7289
        %v7388 = vmul.f32 %v7387, %v7386
        %v7389 = vmul.f32 0.5, %v7388
        %v7390 = vsub.f32 1.5, %v7389
        %v7391 = vmul.f32 %v7386, %v7390
        %vm7392 = vweird.f32 %v7289
        %vm7393 = vweird.f32 %v7386
        %vm7394 = vmor %vm7392, %vm7393
        %v7395 = vsel %vm7394, %v7386, %v7391
        %v7396 = vrsqrt.pop %v7290
        %v7397 = vmul.f32 %v7396, %v7290
        %v7398 = vmul.f32 %v7397, %v7396
        %v7399 = vmul.f32 0.5, %v7398
        %v7400 = vsub.f32 1.5, %v7399
        %v7401 = vmul.f32 %v7396, %v7400
        %vm7402 = vweird.f32 %v7290
        %vm7403 = vweird.f32 %v7396
        %vm7404 = vmor %vm7402, %vm7403
        %v7405 = vsel %vm7404, %v7396, %v7401
        %v7406 = vrsqrt.pop %v7291
        %v7407 = vmul.f32 %v7406, %v7291
        %v7408 = vmul.f32 %v7407, %v7406
        %v7409 = vmul.f32 0.5, %v7408
        %v7410 = vsub.f32 1.5, %v7409
        %v7411 = vmul.f32 %v7406, %v7410
        %vm7412 = vweird.f32 %v7291
        %vm7413 = vweird.f32 %v7406
        %vm7414 = vmor %vm7412, %vm7413
        %v7415 = vsel %vm7414, %v7406, %v7411
        %v7416 = vrsqrt.pop %v7292
        %v7417 = vmul.f32 %v7416, %v7292
        %v7418 = vmul.f32 %v7417, %v7416
        %v7419 = vmul.f32 0.5, %v7418
        %v7420 = vsub.f32 1.5, %v7419
        %v7421 = vmul.f32 %v7416, %v7420
        %vm7422 = vweird.f32 %v7292
        %vm7423 = vweird.f32 %v7416
        %vm7424 = vmor %vm7422, %vm7423
        %v7425 = vsel %vm7424, %v7416, %v7421
        %v7426 = vrsqrt.pop %v7293
        %v7427 = vmul.f32 %v7426, %v7293
        %v7428 = vmul.f32 %v7427, %v7426
        %v7429 = vmul.f32 0.5, %v7428
        %v7430 = vsub.f32 1.5, %v7429
        %v7431 = vmul.f32 %v7426, %v7430
        %vm7432 = vweird.f32 %v7293
        %vm7433 = vweird.f32 %v7426
        %vm7434 = vmor %vm7432, %vm7433
        %v7435 = vsel %vm7434, %v7426, %v7431
        %v7436 = vrsqrt.pop %v7294
        %v7437 = vmul.f32 %v7436, %v7294
        %v7438 = vmul.f32 %v7437, %v7436
        %v7439 = vmul.f32 0.5, %v7438
        %v7440 = vsub.f32 1.5, %v7439
        %v7441 = vmul.f32 %v7436, %v7440
        %vm7442 = vweird.f32 %v7294
        %vm7443 = vweird.f32 %v7436
        %vm7444 = vmor %vm7442, %vm7443
        %v7445 = vsel %vm7444, %v7436, %v7441
        %v7446 = vrsqrt.pop %v7295
        %v7447 = vmul.f32 %v7446, %v7295
        %v7448 = vmul.f32 %v7447, %v7446
        %v7449 = vmul.f32 0.5, %v7448
        %v7450 = vsub.f32 1.5, %v7449
        %v7451 = vmul.f32 %v7446, %v7450
        %vm7452 = vweird.f32 %v7295
        %vm7453 = vweird.f32 %v7446
        %vm7454 = vmor %vm7452, %vm7453
        %v7455 = vsel %vm7454, %v7446, %v7451
        %v7456 = vmul.f32 %v7200, %v7305
        %v7457 = vmul.f32 %v7201, %v7315
        %v7458 = vmul.f32 %v7202, %v7325
        %v7459 = vmul.f32 %v7203, %v7335
        %v7460 = vmul.f32 %v7204, %v7345
        %v7461 = vmul.f32 %v7205, %v7355
        %v7462 = vmul.f32 %v7206, %v7365
        %v7463 = vmul.f32 %v7207, %v7375
        %v7464 = vmul.f32 %v7208, %v7385
        %v7465 = vmul.f32 %v7209, %v7395
        %v7466 = vmul.f32 %v7210, %v7405
        %v7467 = vmul.f32 %v7211, %v7415
        %v7468 = vmul.f32 %v7212, %v7425
        %v7469 = vmul.f32 %v7213, %v7435
        %v7470 = vmul.f32 %v7214, %v7445
        %v7471 = vmul.f32 %v7215, %v7455
        %v7473 = vperm.slane %v7149, 0
        %v7475 = vmul.f32 %v7456, %v7473
        %v7476 = vmul.f32 %v7457, %v7473
        %v7477 = vmul.f32 %v7458, %v7473
        %v7478 = vmul.f32 %v7459, %v7473
        %v7479 = vmul.f32 %v7460, %v7473
        %v7480 = vmul.f32 %v7461, %v7473
        %v7481 = vmul.f32 %v7462, %v7473
        %v7482 = vmul.f32 %v7463, %v7473
        %v7483 = vmul.f32 %v7464, %v7473
        %v7484 = vmul.f32 %v7465, %v7473
        %v7485 = vmul.f32 %v7466, %v7473
        %v7486 = vmul.f32 %v7467, %v7473
        %v7487 = vmul.f32 %v7468, %v7473
        %v7488 = vmul.f32 %v7469, %v7473
        %v7489 = vmul.f32 %v7470, %v7473
        %v7490 = vmul.f32 %v7471, %v7473
        %v7492 = vperm.slane %v7151, 0
        %v7494 = vadd.f32 %v7475, %v7492
        %v7495 = vadd.f32 %v7476, %v7492
        %v7496 = vadd.f32 %v7477, %v7492
        %v7497 = vadd.f32 %v7478, %v7492
        %v7498 = vadd.f32 %v7479, %v7492
        %v7499 = vadd.f32 %v7480, %v7492
        %v7500 = vadd.f32 %v7481, %v7492
        %v7501 = vadd.f32 %v7482, %v7492
        %v7502 = vadd.f32 %v7483, %v7492
        %v7503 = vadd.f32 %v7484, %v7492
        %v7504 = vadd.f32 %v7485, %v7492
        %v7505 = vadd.f32 %v7486, %v7492
        %v7506 = vadd.f32 %v7487, %v7492
        %v7507 = vadd.f32 %v7488, %v7492
        %v7508 = vadd.f32 %v7489, %v7492
        %v7509 = vadd.f32 %v7490, %v7492
        %v7510 = vpack.c.bf16 %v7495, %v7494
        %v7511 = vpack.c.bf16 %v7497, %v7496
        %v7512 = vpack.c.bf16 %v7499, %v7498
        %v7513 = vpack.c.bf16 %v7501, %v7500
        %v7514 = vpack.c.bf16 %v7503, %v7502
        %v7515 = vpack.c.bf16 %v7505, %v7504
        %v7516 = vpack.c.bf16 %v7507, %v7506
        %v7517 = vpack.c.bf16 %v7509, %v7508
        %v7518 = vld [vmem:[%s18] sm:$0xf]
        %v7519 = vld [vmem:[%s18 + $0x4] sm:$0xf]
        %v7520 = vld [vmem:[%s18 + $0x8] sm:$0xf]
        %v7521 = vld [vmem:[%s18 + $0xc] sm:$0xf]
        %v7522 = vld [vmem:[%s18 + $0x10] sm:$0xf]
        %v7523 = vld [vmem:[%s18 + $0x14] sm:$0xf]
        %v7524 = vld [vmem:[%s18 + $0x18] sm:$0xf]
        %v7525 = vld [vmem:[%s18 + $0x1c] sm:$0xf]
        %v7526 = vld [vmem:[%s18 + $0x20] sm:$0xf]
        %v7527 = vld [vmem:[%s18 + $0x24] sm:$0xf]
        %v7528 = vld [vmem:[%s18 + $0x28] sm:$0xf]
        %v7529 = vld [vmem:[%s18 + $0x2c] sm:$0xf]
        %v7530 = vld [vmem:[%s18 + $0x30] sm:$0xf]
        %v7531 = vld [vmem:[%s18 + $0x34] sm:$0xf]
        %v7532 = vld [vmem:[%s18 + $0x38] sm:$0xf]
        %v7533 = vld [vmem:[%s18 + $0x3c] sm:$0xf]
        %v7534 = vld [vmem:[%s19] sm:$0x1]
        %v7536 = vperm.slane %v7534, 0
        %v7554 = vunpack.c.l.b16 %v7518
        %v7555 = vunpack.c.l.b16 %v7519
        %v7556 = vunpack.c.l.b16 %v7520
        %v7557 = vunpack.c.l.b16 %v7521
        %v7558 = vunpack.c.l.b16 %v7522
        %v7559 = vunpack.c.l.b16 %v7523
        %v7560 = vunpack.c.l.b16 %v7524
        %v7561 = vunpack.c.l.b16 %v7525
        %v7562 = vunpack.c.l.b16 %v7526
        %v7563 = vunpack.c.l.b16 %v7527
        %v7564 = vunpack.c.l.b16 %v7528
        %v7565 = vunpack.c.l.b16 %v7529
        %v7566 = vunpack.c.l.b16 %v7530
        %v7567 = vunpack.c.l.b16 %v7531
        %v7568 = vunpack.c.l.b16 %v7532
        %v7569 = vunpack.c.l.b16 %v7533
        %v7570 = vpack.c.b16 %v7555, %v7554
        %v7571 = vpack.c.b16 %v7557, %v7556
        %v7572 = vpack.c.b16 %v7559, %v7558
        %v7573 = vpack.c.b16 %v7561, %v7560
        %v7574 = vpack.c.b16 %v7563, %v7562
        %v7575 = vpack.c.b16 %v7565, %v7564
        %v7576 = vpack.c.b16 %v7567, %v7566
        %v7577 = vpack.c.b16 %v7569, %v7568
        %7586 = vmatpush.bf16.msra.mxu0 %v7577
        %7587 = vmatpush.bf16.msra.mxu0 %v7576
        %7588 = vmatpush.bf16.msra.mxu0 %v7575
        %7589 = vmatpush.bf16.msra.mxu0 %v7574
        %7590 = vmatpush.bf16.msra.mxu0 %v7573
        %7591 = vmatpush.bf16.msra.mxu0 %v7572
        %7592 = vmatpush.bf16.msra.mxu0 %v7571
        %7593 = vmatpush.bf16.msra.mxu0 %v7570
        %7594 = vmatmul.bf16.gmra.mxu0 %v7510
        %v7595 = vpop.f32.mrf.mxu0
        %v7596 = vadd.f32 %v7536, %v7595
        %v7597 = vpop.f32.mrf.mxu0
        %v7598 = vadd.f32 %v7536, %v7597
        %7599 = vmatmul.bf16.gmra.mxu0 %v7511
        %v7600 = vpop.f32.mrf.mxu0
        %v7601 = vadd.f32 %v7536, %v7600
        %v7602 = vpop.f32.mrf.mxu0
        %v7603 = vadd.f32 %v7536, %v7602
        %7604 = vmatmul.bf16.gmra.mxu0 %v7512
        %v7605 = vpop.f32.mrf.mxu0
        %v7606 = vadd.f32 %v7536, %v7605
        %v7607 = vpop.f32.mrf.mxu0
        %v7608 = vadd.f32 %v7536, %v7607
        %7609 = vmatmul.bf16.gmra.mxu0 %v7513
        %v7610 = vpop.f32.mrf.mxu0
        %v7611 = vadd.f32 %v7536, %v7610
        %v7612 = vpop.f32.mrf.mxu0
        %v7613 = vadd.f32 %v7536, %v7612
        %7614 = vmatmul.bf16.gmra.mxu0 %v7514
        %v7615 = vpop.f32.mrf.mxu0
        %v7616 = vadd.f32 %v7536, %v7615
        %v7617 = vpop.f32.mrf.mxu0
        %v7618 = vadd.f32 %v7536, %v7617
        %7619 = vmatmul.bf16.gmra.mxu0 %v7515
        %v7620 = vpop.f32.mrf.mxu0
        %v7621 = vadd.f32 %v7536, %v7620
        %v7622 = vpop.f32.mrf.mxu0
        %v7623 = vadd.f32 %v7536, %v7622
        %7624 = vmatmul.bf16.gmra.mxu0 %v7516
        %v7625 = vpop.f32.mrf.mxu0
        %v7626 = vadd.f32 %v7536, %v7625
        %v7627 = vpop.f32.mrf.mxu0
        %v7628 = vadd.f32 %v7536, %v7627
        %7629 = vmatmul.bf16.gmra.mxu0 %v7517
        %v7630 = vpop.f32.mrf.mxu0
        %v7631 = vadd.f32 %v7536, %v7630
        %v7632 = vpop.f32.mrf.mxu0
        %v7633 = vadd.f32 %v7536, %v7632
        %7634 = vdwg.mxu0
        %7635 = vmax.xlane.f32.xlu0 %v7596
        %v7636 = vpop.xlane.xlu0 %7635
        %7637 = vmax.xlane.f32.xlu0 %v7598
        %v7638 = vpop.xlane.xlu0 %7637
        %7639 = vmax.xlane.f32.xlu0 %v7601
        %v7640 = vpop.xlane.xlu0 %7639
        %7641 = vmax.xlane.f32.xlu0 %v7603
        %v7642 = vpop.xlane.xlu0 %7641
        %7643 = vmax.xlane.f32.xlu0 %v7606
        %v7644 = vpop.xlane.xlu0 %7643
        %7645 = vmax.xlane.f32.xlu0 %v7608
        %v7646 = vpop.xlane.xlu0 %7645
        %7647 = vmax.xlane.f32.xlu0 %v7611
        %v7648 = vpop.xlane.xlu0 %7647
        %7649 = vmax.xlane.f32.xlu0 %v7613
        %v7650 = vpop.xlane.xlu0 %7649
        %7651 = vmax.xlane.f32.xlu0 %v7616
        %v7652 = vpop.xlane.xlu0 %7651
        %7653 = vmax.xlane.f32.xlu0 %v7618
        %v7654 = vpop.xlane.xlu0 %7653
        %7655 = vmax.xlane.f32.xlu0 %v7621
        %v7656 = vpop.xlane.xlu0 %7655
        %7657 = vmax.xlane.f32.xlu0 %v7623
        %v7658 = vpop.xlane.xlu0 %7657
        %7659 = vmax.xlane.f32.xlu0 %v7626
        %v7660 = vpop.xlane.xlu0 %7659
        %7661 = vmax.xlane.f32.xlu0 %v7628
        %v7662 = vpop.xlane.xlu0 %7661
        %7663 = vmax.xlane.f32.xlu0 %v7631
        %v7664 = vpop.xlane.xlu0 %7663
        %7665 = vmax.xlane.f32.xlu0 %v7633
        %v7666 = vpop.xlane.xlu0 %7665
        %vm7667 = vcmp.eq.f32.partialorder %v7596, %v7636
        %vm7668 = vcmp.eq.f32.partialorder %v7598, %v7638
        %vm7669 = vcmp.eq.f32.partialorder %v7601, %v7640
        %vm7670 = vcmp.eq.f32.partialorder %v7603, %v7642
        %vm7671 = vcmp.eq.f32.partialorder %v7606, %v7644
        %vm7672 = vcmp.eq.f32.partialorder %v7608, %v7646
        %vm7673 = vcmp.eq.f32.partialorder %v7611, %v7648
        %vm7674 = vcmp.eq.f32.partialorder %v7613, %v7650
        %vm7675 = vcmp.eq.f32.partialorder %v7616, %v7652
        %vm7676 = vcmp.eq.f32.partialorder %v7618, %v7654
        %vm7677 = vcmp.eq.f32.partialorder %v7621, %v7656
        %vm7678 = vcmp.eq.f32.partialorder %v7623, %v7658
        %vm7679 = vcmp.eq.f32.partialorder %v7626, %v7660
        %vm7680 = vcmp.eq.f32.partialorder %v7628, %v7662
        %vm7681 = vcmp.eq.f32.partialorder %v7631, %v7664
        %vm7682 = vcmp.eq.f32.partialorder %v7633, %v7666
        %v7683 = vsel %vm7667, %v697, 2147483647
        %v7684 = vsel %vm7668, %v697, 2147483647
        %v7685 = vsel %vm7669, %v697, 2147483647
        %v7686 = vsel %vm7670, %v697, 2147483647
        %v7687 = vsel %vm7671, %v697, 2147483647
        %v7688 = vsel %vm7672, %v697, 2147483647
        %v7689 = vsel %vm7673, %v697, 2147483647
        %v7690 = vsel %vm7674, %v697, 2147483647
        %v7691 = vsel %vm7675, %v697, 2147483647
        %v7692 = vsel %vm7676, %v697, 2147483647
        %v7693 = vsel %vm7677, %v697, 2147483647
        %v7694 = vsel %vm7678, %v697, 2147483647
        %v7695 = vsel %vm7679, %v697, 2147483647
        %v7696 = vsel %vm7680, %v697, 2147483647
        %v7697 = vsel %vm7681, %v697, 2147483647
        %v7698 = vsel %vm7682, %v697, 2147483647
        %v7699 = vand.u32 %v7683, 65535
        %v7700 = vshra.s32 %v7683, 16
        %v7701 = vcvt.s32.f32 %v7699
        %v7702 = vcvt.s32.f32 %v7700
        %7703 = vmin.xlane.f32.xlu0 %v7702
        %v7704 = vpop.xlane.xlu0 %7703
        %vm7705 = vcmp.eq.f32.partialorder %v7702, %v7704
        %v7706 = vsel %vm7705, %v7701, inf
        %7707 = vmin.xlane.f32.xlu0 %v7706
        %v7708 = vpop.xlane.xlu0 %7707
        %v7709 = vcvt.f32.s32 %v7708
        %v7710 = vcvt.f32.s32 %v7704
        %v7711 = vshll.u32 %v7710, 16
        %v7712 = vadd.s32 %v7711, %v7709
        %v7713 = vand.u32 %v7684, 65535
        %v7714 = vshra.s32 %v7684, 16
        %v7715 = vcvt.s32.f32 %v7713
        %v7716 = vcvt.s32.f32 %v7714
        %7717 = vmin.xlane.f32.xlu0 %v7716
        %v7718 = vpop.xlane.xlu0 %7717
        %vm7719 = vcmp.eq.f32.partialorder %v7716, %v7718
        %v7720 = vsel %vm7719, %v7715, inf
        %7721 = vmin.xlane.f32.xlu0 %v7720
        %v7722 = vpop.xlane.xlu0 %7721
        %v7723 = vcvt.f32.s32 %v7722
        %v7724 = vcvt.f32.s32 %v7718
        %v7725 = vshll.u32 %v7724, 16
        %v7726 = vadd.s32 %v7725, %v7723
        %v7727 = vand.u32 %v7685, 65535
        %v7728 = vshra.s32 %v7685, 16
        %v7729 = vcvt.s32.f32 %v7727
        %v7730 = vcvt.s32.f32 %v7728
        %7731 = vmin.xlane.f32.xlu0 %v7730
        %v7732 = vpop.xlane.xlu0 %7731
        %vm7733 = vcmp.eq.f32.partialorder %v7730, %v7732
        %v7734 = vsel %vm7733, %v7729, inf
        %7735 = vmin.xlane.f32.xlu0 %v7734
        %v7736 = vpop.xlane.xlu0 %7735
        %v7737 = vcvt.f32.s32 %v7736
        %v7738 = vcvt.f32.s32 %v7732
        %v7739 = vshll.u32 %v7738, 16
        %v7740 = vadd.s32 %v7739, %v7737
        %v7741 = vand.u32 %v7686, 65535
        %v7742 = vshra.s32 %v7686, 16
        %v7743 = vcvt.s32.f32 %v7741
        %v7744 = vcvt.s32.f32 %v7742
        %7745 = vmin.xlane.f32.xlu0 %v7744
        %v7746 = vpop.xlane.xlu0 %7745
        %vm7747 = vcmp.eq.f32.partialorder %v7744, %v7746
        %v7748 = vsel %vm7747, %v7743, inf
        %7749 = vmin.xlane.f32.xlu0 %v7748
        %v7750 = vpop.xlane.xlu0 %7749
        %v7751 = vcvt.f32.s32 %v7750
        %v7752 = vcvt.f32.s32 %v7746
        %v7753 = vshll.u32 %v7752, 16
        %v7754 = vadd.s32 %v7753, %v7751
        %v7755 = vand.u32 %v7687, 65535
        %v7756 = vshra.s32 %v7687, 16
        %v7757 = vcvt.s32.f32 %v7755
        %v7758 = vcvt.s32.f32 %v7756
        %7759 = vmin.xlane.f32.xlu0 %v7758
        %v7760 = vpop.xlane.xlu0 %7759
        %vm7761 = vcmp.eq.f32.partialorder %v7758, %v7760
        %v7762 = vsel %vm7761, %v7757, inf
        %7763 = vmin.xlane.f32.xlu0 %v7762
        %v7764 = vpop.xlane.xlu0 %7763
        %v7765 = vcvt.f32.s32 %v7764
        %v7766 = vcvt.f32.s32 %v7760
        %v7767 = vshll.u32 %v7766, 16
        %v7768 = vadd.s32 %v7767, %v7765
        %v7769 = vand.u32 %v7688, 65535
        %v7770 = vshra.s32 %v7688, 16
        %v7771 = vcvt.s32.f32 %v7769
        %v7772 = vcvt.s32.f32 %v7770
        %7773 = vmin.xlane.f32.xlu0 %v7772
        %v7774 = vpop.xlane.xlu0 %7773
        %vm7775 = vcmp.eq.f32.partialorder %v7772, %v7774
        %v7776 = vsel %vm7775, %v7771, inf
        %7777 = vmin.xlane.f32.xlu0 %v7776
        %v7778 = vpop.xlane.xlu0 %7777
        %v7779 = vcvt.f32.s32 %v7778
        %v7780 = vcvt.f32.s32 %v7774
        %v7781 = vshll.u32 %v7780, 16
        %v7782 = vadd.s32 %v7781, %v7779
        %v7783 = vand.u32 %v7689, 65535
        %v7784 = vshra.s32 %v7689, 16
        %v7785 = vcvt.s32.f32 %v7783
        %v7786 = vcvt.s32.f32 %v7784
        %7787 = vmin.xlane.f32.xlu0 %v7786
        %v7788 = vpop.xlane.xlu0 %7787
        %vm7789 = vcmp.eq.f32.partialorder %v7786, %v7788
        %v7790 = vsel %vm7789, %v7785, inf
        %7791 = vmin.xlane.f32.xlu0 %v7790
        %v7792 = vpop.xlane.xlu0 %7791
        %v7793 = vcvt.f32.s32 %v7792
        %v7794 = vcvt.f32.s32 %v7788
        %v7795 = vshll.u32 %v7794, 16
        %v7796 = vadd.s32 %v7795, %v7793
        %v7797 = vand.u32 %v7690, 65535
        %v7798 = vshra.s32 %v7690, 16
        %v7799 = vcvt.s32.f32 %v7797
        %v7800 = vcvt.s32.f32 %v7798
        %7801 = vmin.xlane.f32.xlu0 %v7800
        %v7802 = vpop.xlane.xlu0 %7801
        %vm7803 = vcmp.eq.f32.partialorder %v7800, %v7802
        %v7804 = vsel %vm7803, %v7799, inf
        %7805 = vmin.xlane.f32.xlu0 %v7804
        %v7806 = vpop.xlane.xlu0 %7805
        %v7807 = vcvt.f32.s32 %v7806
        %v7808 = vcvt.f32.s32 %v7802
        %v7809 = vshll.u32 %v7808, 16
        %v7810 = vadd.s32 %v7809, %v7807
        %v7811 = vand.u32 %v7691, 65535
        %v7812 = vshra.s32 %v7691, 16
        %v7813 = vcvt.s32.f32 %v7811
        %v7814 = vcvt.s32.f32 %v7812
        %7815 = vmin.xlane.f32.xlu0 %v7814
        %v7816 = vpop.xlane.xlu0 %7815
        %vm7817 = vcmp.eq.f32.partialorder %v7814, %v7816
        %v7818 = vsel %vm7817, %v7813, inf
        %7819 = vmin.xlane.f32.xlu0 %v7818
        %v7820 = vpop.xlane.xlu0 %7819
        %v7821 = vcvt.f32.s32 %v7820
        %v7822 = vcvt.f32.s32 %v7816
        %v7823 = vshll.u32 %v7822, 16
        %v7824 = vadd.s32 %v7823, %v7821
        %v7825 = vand.u32 %v7692, 65535
        %v7826 = vshra.s32 %v7692, 16
        %v7827 = vcvt.s32.f32 %v7825
        %v7828 = vcvt.s32.f32 %v7826
        %7829 = vmin.xlane.f32.xlu0 %v7828
        %v7830 = vpop.xlane.xlu0 %7829
        %vm7831 = vcmp.eq.f32.partialorder %v7828, %v7830
        %v7832 = vsel %vm7831, %v7827, inf
        %7833 = vmin.xlane.f32.xlu0 %v7832
        %v7834 = vpop.xlane.xlu0 %7833
        %v7835 = vcvt.f32.s32 %v7834
        %v7836 = vcvt.f32.s32 %v7830
        %v7837 = vshll.u32 %v7836, 16
        %v7838 = vadd.s32 %v7837, %v7835
        %v7839 = vand.u32 %v7693, 65535
        %v7840 = vshra.s32 %v7693, 16
        %v7841 = vcvt.s32.f32 %v7839
        %v7842 = vcvt.s32.f32 %v7840
        %7843 = vmin.xlane.f32.xlu0 %v7842
        %v7844 = vpop.xlane.xlu0 %7843
        %vm7845 = vcmp.eq.f32.partialorder %v7842, %v7844
        %v7846 = vsel %vm7845, %v7841, inf
        %7847 = vmin.xlane.f32.xlu0 %v7846
        %v7848 = vpop.xlane.xlu0 %7847
        %v7849 = vcvt.f32.s32 %v7848
        %v7850 = vcvt.f32.s32 %v7844
        %v7851 = vshll.u32 %v7850, 16
        %v7852 = vadd.s32 %v7851, %v7849
        %v7853 = vand.u32 %v7694, 65535
        %v7854 = vshra.s32 %v7694, 16
        %v7855 = vcvt.s32.f32 %v7853
        %v7856 = vcvt.s32.f32 %v7854
        %7857 = vmin.xlane.f32.xlu0 %v7856
        %v7858 = vpop.xlane.xlu0 %7857
        %vm7859 = vcmp.eq.f32.partialorder %v7856, %v7858
        %v7860 = vsel %vm7859, %v7855, inf
        %7861 = vmin.xlane.f32.xlu0 %v7860
        %v7862 = vpop.xlane.xlu0 %7861
        %v7863 = vcvt.f32.s32 %v7862
        %v7864 = vcvt.f32.s32 %v7858
        %v7865 = vshll.u32 %v7864, 16
        %v7866 = vadd.s32 %v7865, %v7863
        %v7867 = vand.u32 %v7695, 65535
        %v7868 = vshra.s32 %v7695, 16
        %v7869 = vcvt.s32.f32 %v7867
        %v7870 = vcvt.s32.f32 %v7868
        %7871 = vmin.xlane.f32.xlu0 %v7870
        %v7872 = vpop.xlane.xlu0 %7871
        %vm7873 = vcmp.eq.f32.partialorder %v7870, %v7872
        %v7874 = vsel %vm7873, %v7869, inf
        %7875 = vmin.xlane.f32.xlu0 %v7874
        %v7876 = vpop.xlane.xlu0 %7875
        %v7877 = vcvt.f32.s32 %v7876
        %v7878 = vcvt.f32.s32 %v7872
        %v7879 = vshll.u32 %v7878, 16
        %v7880 = vadd.s32 %v7879, %v7877
        %v7881 = vand.u32 %v7696, 65535
        %v7882 = vshra.s32 %v7696, 16
        %v7883 = vcvt.s32.f32 %v7881
        %v7884 = vcvt.s32.f32 %v7882
        %7885 = vmin.xlane.f32.xlu0 %v7884
        %v7886 = vpop.xlane.xlu0 %7885
        %vm7887 = vcmp.eq.f32.partialorder %v7884, %v7886
        %v7888 = vsel %vm7887, %v7883, inf
        %7889 = vmin.xlane.f32.xlu0 %v7888
        %v7890 = vpop.xlane.xlu0 %7889
        %v7891 = vcvt.f32.s32 %v7890
        %v7892 = vcvt.f32.s32 %v7886
        %v7893 = vshll.u32 %v7892, 16
        %v7894 = vadd.s32 %v7893, %v7891
        %v7895 = vand.u32 %v7697, 65535
        %v7896 = vshra.s32 %v7697, 16
        %v7897 = vcvt.s32.f32 %v7895
        %v7898 = vcvt.s32.f32 %v7896
        %7899 = vmin.xlane.f32.xlu0 %v7898
        %v7900 = vpop.xlane.xlu0 %7899
        %vm7901 = vcmp.eq.f32.partialorder %v7898, %v7900
        %v7902 = vsel %vm7901, %v7897, inf
        %7903 = vmin.xlane.f32.xlu0 %v7902
        %v7904 = vpop.xlane.xlu0 %7903
        %v7905 = vcvt.f32.s32 %v7904
        %v7906 = vcvt.f32.s32 %v7900
        %v7907 = vshll.u32 %v7906, 16
        %v7908 = vadd.s32 %v7907, %v7905
        %v7909 = vand.u32 %v7698, 65535
        %v7910 = vshra.s32 %v7698, 16
        %v7911 = vcvt.s32.f32 %v7909
        %v7912 = vcvt.s32.f32 %v7910
        %7913 = vmin.xlane.f32.xlu0 %v7912
        %v7914 = vpop.xlane.xlu0 %7913
        %vm7915 = vcmp.eq.f32.partialorder %v7912, %v7914
        %v7916 = vsel %vm7915, %v7911, inf
        %7917 = vmin.xlane.f32.xlu0 %v7916
        %v7918 = vpop.xlane.xlu0 %7917
        %v7919 = vcvt.f32.s32 %v7918
        %v7920 = vcvt.f32.s32 %v7914
        %v7921 = vshll.u32 %v7920, 16
        %v7922 = vadd.s32 %v7921, %v7919
        %v7923 = vperm.slane %v7712, %v697
        %v7924 = vadd.s32 %v697, 4294967288
        %v7925 = vperm.slane %v7726, %v7924
        %vm7926 = vcmask 130112
        %v7927 = vsel %vm7926, %v7925, %v7923
        %v7928 = vadd.s32 %v697, 4294967280
        %v7929 = vperm.slane %v7740, %v7928
        %vm7930 = vcmask 195712
        %v7931 = vsel %vm7930, %v7929, %v7927
        %v7932 = vadd.s32 %v697, 4294967272
        %v7933 = vperm.slane %v7754, %v7932
        %vm7934 = vcmask 261312
        %v7935 = vsel %vm7934, %v7933, %v7931
        %v7936 = vadd.s32 %v697, 4294967264
        %v7937 = vperm.slane %v7768, %v7936
        %vm7938 = vcmask 326912
        %v7939 = vsel %vm7938, %v7937, %v7935
        %v7940 = vadd.s32 %v697, 4294967256
        %v7941 = vperm.slane %v7782, %v7940
        %vm7942 = vcmask 392512
        %v7943 = vsel %vm7942, %v7941, %v7939
        %v7944 = vadd.s32 %v697, 4294967248
        %v7945 = vperm.slane %v7796, %v7944
        %vm7946 = vcmask 458112
        %v7947 = vsel %vm7946, %v7945, %v7943
        %v7948 = vadd.s32 %v697, 4294967240
        %v7949 = vperm.slane %v7810, %v7948
        %vm7950 = vcmask 523712
        %v7951 = vsel %vm7950, %v7949, %v7947
        %v7952 = vadd.s32 %v697, 4294967232
        %v7953 = vperm.slane %v7824, %v7952
        %vm7954 = vcmask 589312
        %v7955 = vsel %vm7954, %v7953, %v7951
        %v7956 = vadd.s32 %v697, 4294967224
        %v7957 = vperm.slane %v7838, %v7956
        %vm7958 = vcmask 654912
        %v7959 = vsel %vm7958, %v7957, %v7955
        %v7960 = vadd.s32 %v697, 4294967216
        %v7961 = vperm.slane %v7852, %v7960
        %vm7962 = vcmask 720512
        %v7963 = vsel %vm7962, %v7961, %v7959
        %v7964 = vadd.s32 %v697, 4294967208
        %v7965 = vperm.slane %v7866, %v7964
        %vm7966 = vcmask 786112
        %v7967 = vsel %vm7966, %v7965, %v7963
        %v7968 = vadd.s32 %v697, 4294967200
        %v7969 = vperm.slane %v7880, %v7968
        %vm7970 = vcmask 851712
        %v7971 = vsel %vm7970, %v7969, %v7967
        %v7972 = vadd.s32 %v697, 4294967192
        %v7973 = vperm.slane %v7894, %v7972
        %vm7974 = vcmask 917312
        %v7975 = vsel %vm7974, %v7973, %v7971
        %v7976 = vadd.s32 %v697, 4294967184
        %v7977 = vperm.slane %v7908, %v7976
        %vm7978 = vcmask 982912
        %v7979 = vsel %vm7978, %v7977, %v7975
        %v7980 = vadd.s32 %v697, 4294967176
        %v7981 = vperm.slane %v7922, %v7980
        %vm7982 = vcmask 1048512
        %v7983 = vsel %vm7982, %v7981, %v7979
        %7984 = vst [vmem:[%s679] sm:$0x1] %v7983
        %p7985 = scmp.lt.s32.totalorder %s33, 1
        %s7986 = scalar_select %p7985, %s33, 1
        %s7987 = scalar_lea.vmem %s20, %s7986
        // Predicated region
        $region109: #{bert_forward.1} parent=99 // pred_check
          %p7988 = pneg %p481
        $region110: #{bert_forward.1} parent=99 // pred_check_branch
          %7990 = sbr.rel (%p7988) target = $region112
        $region111: #{bert_forward.1} parent=99 // pred_region
          _
        $region112: #{bert_forward.1} parent=99 // pred_fallthru
          _
      $region100: #{bert_forward.1} parent=5 // pred_fallthru
        _
      %p7991 = scmp.le.s32.totalorder 2, %s28
      // Predicated region
      $region113: #{bert_forward.1} parent=5 // pred_check
        %p7992 = pneg %p7991
      $region114: #{bert_forward.1} parent=5 // pred_check_branch
        %7994 = sbr.rel (%p7992) target = $region116
      $region115: #{bert_forward.1} parent=5 // pred_region
        %s7995 = ssub.s32 %s28, 2
        // Predicated region
        $region117: #{bert_forward.1} parent=115 // pred_check
          %p7996 = pneg %p487
        $region118: #{bert_forward.1} parent=115 // pred_check_branch
          %7998 = sbr.rel (%p7996) target = $region120
        $region119: #{bert_forward.1} parent=115 // pred_region
          %p7999 = scmp.lt.s32.totalorder %s34, 1
          %s8000 = scalar_select %p7999, %s34, 1
          %s8001 = scalar_lea.vmem %s20, %s8000
        $region120: #{bert_forward.1} parent=115 // pred_fallthru
          _
      $region116: #{bert_forward.1} parent=5 // pred_fallthru
        _
    $region6: #{bert_forward.1} parent=1 // loop_footer
      %s32 = sadd.s32 1, %s28
    $region7: #{bert_forward.1} parent=1 // loop_footer_branch
      %27 = sbr.rel target = $region3
    $region8: #{bert_forward.1} parent=1 // loop_exit
      _
    %8002 = vsyncpa [#allocation4], 1
    %s8003 = scalar_lea.sflag [#allocation4], 1
    %8004 = vsyncpa %s8003, 1
    %8005 = vsyncpa [#allocation6], 1

</llo_original>
